<compile_context>
chip_gen: v7x
topology: tpu7x:2x2x1
jax: 0.10.0
libtpu: 0.0.40
codegen_flags: <defaults>
</compile_context>

<pallas_src>
import jax
import jax.numpy as jnp
from jax.experimental import pallas as pl
from jax.experimental.pallas import tpu as pltpu


def _round_up(x, m):
    return (x + m - 1) // m * m


# ----------------------------------------------------------------------------
# Kernel 1: layer-1 TCM with fused preprocessing.
#   o = relu( log2(relu(x)+1) @ W1 + bias1 ),  accumulated over K tiles.
# Grid = (N//tn, K//tk); K is the reduction axis (last, "arbitrary").
# Output block index is (0, j) for every k, so o_ref stays VMEM-resident
# across the whole K loop and doubles as the f32 accumulator.
# ----------------------------------------------------------------------------
def _layer1_kernel(x_ref, w_ref, b_ref, o_ref):
    k = pl.program_id(1)

    @pl.when(k == 0)
    def _():
        o_ref[...] = jnp.zeros_like(o_ref)

    # Fused preprocessing (EUP/VPU work, hidden under weight streaming).
    x = jnp.log2(jnp.maximum(x_ref[...], 0.0) + 1.0)
    o_ref[...] += jnp.dot(
        x.astype(jnp.bfloat16), w_ref[...], preferred_element_type=jnp.float32
    )

    @pl.when(k == pl.num_programs(1) - 1)
    def _():
        o_ref[...] = jnp.maximum(o_ref[...] + b_ref[...], 0.0)


def layer1_forward(expr, w, bias, *, tk=2048, tn=1024):
    """expr: (B, K) f32, w: (K, N) bf16, bias: (N,) f32 -> (B, N) f32.

    B must already be a multiple of 8 (padded by the caller)."""
    B, K = expr.shape
    Kw, N = w.shape
    assert K == Kw and bias.shape == (N,)

    tk = min(tk, _round_up(K, 128))
    tn = min(tn, _round_up(N, 128))
    Kp = _round_up(K, tk)
    Np = _round_up(N, tn)

    # Pad once: padded K rows contribute 0 (log2(relu(0)+1)=0 and W rows are 0).
    if Kp != K:
        expr = jnp.pad(expr, ((0, 0), (0, Kp - K)))
        w = jnp.pad(w, ((0, Kp - K), (0, 0)))
    if Np != N:
        w = jnp.pad(w, ((0, 0), (0, Np - N)))
        bias = jnp.pad(bias, ((0, Np - N),))
    b2 = bias.reshape(1, Np)

    out = pl.pallas_call(
        _layer1_kernel,
        out_shape=jax.ShapeDtypeStruct((B, Np), jnp.float32),
        grid_spec=pltpu.PrefetchScalarGridSpec(
            num_scalar_prefetch=0,
            grid=(Np // tn, Kp // tk),
            in_specs=[
                pl.BlockSpec((B, tk), lambda j, k: (0, k)),
                pl.BlockSpec((tk, tn), lambda j, k: (k, j)),
                pl.BlockSpec((1, tn), lambda j, k: (0, j)),
            ],
            out_specs=pl.BlockSpec((B, tn), lambda j, k: (0, j)),
        ),
        compiler_params=pltpu.CompilerParams(
            dimension_semantics=("parallel", "arbitrary"),
            vmem_limit_bytes=32 * 1024 * 1024,
        ),
    )(expr, w, b2)
    return out[:, :N] if Np != N else out


# ----------------------------------------------------------------------------
# Kernel 2: layers 2, 3 and the output Linear fused into one call.
# All weights (~5 MiB bf16) are full-array VMEM blocks; intermediate
# activations (Bx1024, Bx512) never leave VMEM/vregs.
# ----------------------------------------------------------------------------
def _tail_kernel(h_ref, w2_ref, b2_ref, w3_ref, b3_ref, wo_ref, bo_ref, o_ref):
    h = h_ref[...].astype(jnp.bfloat16)
    h2 = jnp.maximum(
        jnp.dot(h, w2_ref[...], preferred_element_type=jnp.float32) + b2_ref[...],
        0.0,
    )
    h3 = jnp.maximum(
        jnp.dot(h2.astype(jnp.bfloat16), w3_ref[...],
                preferred_element_type=jnp.float32) + b3_ref[...],
        0.0,
    )
    o_ref[...] = (
        jnp.dot(h3.astype(jnp.bfloat16), wo_ref[...],
                preferred_element_type=jnp.float32) + bo_ref[...]
    )


def tail_forward(h, w2, b2, w3, b3, wo, bo):
    """h: (B, 2048) f32; layer 2/3 TCM biases already include the tissue emb."""
    B, D1 = h.shape
    D2 = w2.shape[1]
    D3 = w3.shape[1]
    DC = wo.shape[1]
    return pl.pallas_call(
        _tail_kernel,
        out_shape=jax.ShapeDtypeStruct((B, DC), jnp.float32),
        grid_spec=pltpu.PrefetchScalarGridSpec(
            num_scalar_prefetch=0,
            grid=(1,),
            in_specs=[
                pl.BlockSpec((B, D1), lambda i: (0, 0)),
                pl.BlockSpec((D1, D2), lambda i: (0, 0)),
                pl.BlockSpec((1, D2), lambda i: (0, 0)),
                pl.BlockSpec((D2, D3), lambda i: (0, 0)),
                pl.BlockSpec((1, D3), lambda i: (0, 0)),
                pl.BlockSpec((D3, DC), lambda i: (0, 0)),
                pl.BlockSpec((1, DC), lambda i: (0, 0)),
            ],
            out_specs=pl.BlockSpec((B, DC), lambda i: (0, 0)),
        ),
        compiler_params=pltpu.CompilerParams(
            dimension_semantics=("arbitrary",),
            vmem_limit_bytes=32 * 1024 * 1024,
        ),
    )(h, w2, b2, w3, b3, wo, bo)


# ----------------------------------------------------------------------------
# Encoder: parameters + forward
# ----------------------------------------------------------------------------
def init_encoder_params(key, n_genes, n_tissues, dim_code):
    dims = [n_genes, 2048, 1024, 512]
    params = {"tcm": [], "out": None}
    keys = jax.random.split(key, 3 * 3 + 2)
    ki = 0
    for li in range(3):
        d_in, d_out = dims[li], dims[li + 1]
        scale = 1.0 / jnp.sqrt(jnp.float32(d_in))
        w = (jax.random.normal(keys[ki], (d_in, d_out), jnp.float32) * scale
             ).astype(jnp.bfloat16)          # bf16 weight storage/streaming
        ki += 1
        b = jax.random.normal(keys[ki], (d_out,), jnp.float32) * 0.01
        ki += 1
        t_emb = jax.random.normal(keys[ki], (n_tissues, d_out), jnp.float32) * 0.01
        ki += 1
        params["tcm"].append({"w": w, "b": b, "t_emb": t_emb})
    scale = 1.0 / jnp.sqrt(jnp.float32(512))
    w_out = (jax.random.normal(keys[-2], (512, dim_code), jnp.float32) * scale
             ).astype(jnp.bfloat16)
    b_out = jax.random.normal(keys[-1], (dim_code,), jnp.float32) * 0.01
    params["out"] = {"w": w_out, "b": b_out}
    return params


def encoder_forward(params, expr, tissue_idx):
    """expr: (batch, n_genes) f32; tissue_idx: int scalar."""
    l1, l2, l3 = params["tcm"]
    out = params["out"]
    # Per-tissue additive bias folded into the layer bias (tiny glue op).
    bias1 = l1["b"] + l1["t_emb"][tissue_idx]
    bias2 = l2["b"] + l2["t_emb"][tissue_idx]
    bias3 = l3["b"] + l3["t_emb"][tissue_idx]

    # Pad batch to a sublane multiple once; padded rows are sliced off at the end.
    B = expr.shape[0]
    Bp = _round_up(max(B, 1), 8)
    x = expr.astype(jnp.float32)
    if Bp != B:
        x = jnp.pad(x, ((0, Bp - B), (0, 0)))

    # Kernel 1: fused preprocess + TCM(n_genes -> 2048), weight streaming.
    h1 = layer1_forward(x, l1["w"], bias1)
    # Kernel 2: TCM(2048->1024) + TCM(1024->512) + Linear(512->dim_code).
    code = tail_forward(
        h1,
        l2["w"], bias2.reshape(1, -1),
        l3["w"], bias3.reshape(1, -1),
        out["w"], out["b"].reshape(1, -1),
    )
    return code[:B] if Bp != B else code


# ----------------------------------------------------------------------------
# Reference (pure JAX, same bf16-weight numerics) for a sanity check
# ----------------------------------------------------------------------------
def encoder_reference(params, expr, tissue_idx):
    def mm(x, w):
        return jnp.dot(x.astype(jnp.bfloat16), w, preferred_element_type=jnp.float32)

    h = jnp.log2(jnp.maximum(expr, 0.0) + 1.0)
    for layer in params["tcm"]:
        h = jnp.maximum(mm(h, layer["w"]) + layer["b"] + layer["t_emb"][tissue_idx], 0.0)
    return mm(h, params["out"]["w"]) + params["out"]["b"]


if __name__ == "__main__":
    batch = 8
    n_genes = 256
    n_tissues = 4
    dim_code = 32
    tissue_idx = 2

    key = jax.random.PRNGKey(0)
    k_param, k_x = jax.random.split(key)
    params = init_encoder_params(k_param, n_genes, n_tissues, dim_code)
    expr = jax.random.normal(k_x, (batch, n_genes), jnp.float32) * 3.0 + 1.0

    fwd = jax.jit(encoder_forward)
    code = jax.block_until_ready(fwd(params, expr, jnp.int32(tissue_idx)))

    ref = encoder_reference(params, expr, tissue_idx)
    assert code.shape == (batch, dim_code)
    assert bool(jnp.all(jnp.isfinite(code))), "non-finite output"
    assert jnp.allclose(code, ref, atol=1e-2, rtol=1e-2), "mismatch vs reference"

    print("KERNEL_OK")
</pallas_src>

<mosaic_0001>
module attributes {stable_mosaic.version = 11 : i64} {
  func.func @_layer1_kernel(%arg0: i32, %arg1: i32, %arg2: memref<8x256xf32, #tpu.memory_space<vmem>>, %arg3: memref<256x1024xbf16, #tpu.memory_space<vmem>>, %arg4: memref<1x1024xf32, #tpu.memory_space<vmem>>, %arg5: memref<8x1024xf32, #tpu.memory_space<vmem>>) attributes {dimension_semantics = [#tpu.dimension_semantics<parallel>, #tpu.dimension_semantics<arbitrary>], iteration_bounds = array<i64: 2, 1>, scalar_prefetch = 0 : i64, scratch_operands = 0 : i64, tpu.core_type = #tpu.core_type<tc>, window_params = [{transform_indices = @transform_0, window_bounds = array<i64: 8, 256>}, {transform_indices = @transform_1, window_bounds = array<i64: 256, 1024>}, {transform_indices = @transform_2, window_bounds = array<i64: 1, 1024>}, {transform_indices = @transform_3, window_bounds = array<i64: 8, 1024>}]} {
    %c0_i32 = arith.constant 0 : i32
    %0 = arith.cmpi eq, %arg1, %c0_i32 : i32
    %1 = arith.extui %0 : i1 to i32
    %c0_i32_0 = arith.constant 0 : i32
    %2 = arith.cmpi ne, %1, %c0_i32_0 : i32
    scf.if %2 {
      %cst_13 = arith.constant 0.000000e+00 : f32
      %21 = vector.broadcast %cst_13 : f32 to vector<8x1024xf32>
      %c0_14 = arith.constant 0 : index
      %c0_15 = arith.constant 0 : index
      %22 = vector.load %arg5[%c0_14, %c0_15] : memref<8x1024xf32, #tpu.memory_space<vmem>>, vector<8x1024xf32>
      tpu.vector_store %arg5[%c0_14, %c0_15], %21 {strides = array<i32>} : memref<8x1024xf32, #tpu.memory_space<vmem>>, vector<8x1024xf32>,
    } else {
    }
    %c0 = arith.constant 0 : index
    %c0_1 = arith.constant 0 : index
    %3 = vector.load %arg2[%c0, %c0_1] : memref<8x256xf32, #tpu.memory_space<vmem>>, vector<8x256xf32>
    %cst = arith.constant 0.000000e+00 : f32
    %4 = vector.broadcast %cst : f32 to vector<8x256xf32>
    %5 = arith.maximumf %3, %4 : vector<8x256xf32>
    %cst_2 = arith.constant 1.000000e+00 : f32
    %6 = vector.broadcast %cst_2 : f32 to vector<8x256xf32>
    %7 = arith.addf %5, %6 : vector<8x256xf32>
    %8 = math.log %7 : vector<8x256xf32>
    %cst_3 = arith.constant 2.000000e+00 : f32
    %9 = math.log %cst_3 : f32
    %10 = vector.broadcast %9 : f32 to vector<8x256xf32>
    %11 = arith.divf %8, %10 : vector<8x256xf32>
    %c0_4 = arith.constant 0 : index
    %c0_5 = arith.constant 0 : index
    %12 = vector.load %arg5[%c0_4, %c0_5] : memref<8x1024xf32, #tpu.memory_space<vmem>>, vector<8x1024xf32>
    %13 = arith.truncf %11 : vector<8x256xf32> to vector<8x256xbf16>
    %c0_6 = arith.constant 0 : index
    %c0_7 = arith.constant 0 : index
    %14 = vector.load %arg3[%c0_6, %c0_7] : memref<256x1024xbf16, #tpu.memory_space<vmem>>, vector<256x1024xbf16>
    %cst_8 = arith.constant dense<0.000000e+00> : vector<8x1024xf32>
    %15 = tpu.matmul %13, %14, %cst_8 {dimension_numbers = #tpu.dot_dimension_numbers<[1], [0], [0], [1], [0, 0, 1, 1], [], []>} : vector<8x256xbf16>, vector<256x1024xbf16>, vector<8x1024xf32> -> vector<8x1024xf32>
    %16 = arith.addf %12, %15 : vector<8x1024xf32>
    %c0_9 = arith.constant 0 : index
    %c0_10 = arith.constant 0 : index
    %17 = vector.load %arg5[%c0_9, %c0_10] : memref<8x1024xf32, #tpu.memory_space<vmem>>, vector<8x1024xf32>
    tpu.vector_store %arg5[%c0_9, %c0_10], %16 {strides = array<i32>} : memref<8x1024xf32, #tpu.memory_space<vmem>>, vector<8x1024xf32>,
    %c0_i32_11 = arith.constant 0 : i32
    %18 = arith.cmpi eq, %arg1, %c0_i32_11 : i32
    %19 = arith.extui %18 : i1 to i32
    %c0_i32_12 = arith.constant 0 : i32
    %20 = arith.cmpi ne, %19, %c0_i32_12 : i32
    scf.if %20 {
      %c0_13 = arith.constant 0 : index
      %c0_14 = arith.constant 0 : index
      %21 = vector.load %arg5[%c0_13, %c0_14] : memref<8x1024xf32, #tpu.memory_space<vmem>>, vector<8x1024xf32>
      %c0_15 = arith.constant 0 : index
      %c0_16 = arith.constant 0 : index
      %22 = vector.load %arg4[%c0_15, %c0_16] : memref<1x1024xf32, #tpu.memory_space<vmem>>, vector<1x1024xf32>
      %23 = vector.broadcast %22 : vector<1x1024xf32> to vector<8x1024xf32>
      %24 = arith.addf %21, %23 : vector<8x1024xf32>
      %cst_17 = arith.constant 0.000000e+00 : f32
      %25 = vector.broadcast %cst_17 : f32 to vector<8x1024xf32>
      %26 = arith.maximumf %24, %25 : vector<8x1024xf32>
      %c0_18 = arith.constant 0 : index
      %c0_19 = arith.constant 0 : index
      %27 = vector.load %arg5[%c0_18, %c0_19] : memref<8x1024xf32, #tpu.memory_space<vmem>>, vector<8x1024xf32>
      tpu.vector_store %arg5[%c0_18, %c0_19], %26 {strides = array<i32>} : memref<8x1024xf32, #tpu.memory_space<vmem>>, vector<8x1024xf32>,
    } else {
    }
    return
  }
  func.func @transform_0(%arg0: i32, %arg1: i32) -> (i32, i32) {
    %c0_i32 = arith.constant 0 : i32
    %c0_i32_0 = arith.constant 0 : i32
    return %c0_i32, %arg1 : i32, i32
  }
  func.func @transform_1(%arg0: i32, %arg1: i32) -> (i32, i32) {
    %c0_i32 = arith.constant 0 : i32
    return %arg1, %arg0 : i32, i32
  }
  func.func @transform_2(%arg0: i32, %arg1: i32) -> (i32, i32) {
    %c0_i32 = arith.constant 0 : i32
    %c0_i32_0 = arith.constant 0 : i32
    return %c0_i32, %arg0 : i32, i32
  }
  func.func @transform_3(%arg0: i32, %arg1: i32) -> (i32, i32) {
    %c0_i32 = arith.constant 0 : i32
    %c0_i32_0 = arith.constant 0 : i32
    return %c0_i32, %arg0 : i32, i32
  }
}

module attributes {stable_mosaic.version = 11 : i64} {
  func.func @_tail_kernel(%arg0: i32, %arg1: memref<8x2048xf32, #tpu.memory_space<vmem>>, %arg2: memref<2048x1024xbf16, #tpu.memory_space<vmem>>, %arg3: memref<1x1024xf32, #tpu.memory_space<vmem>>, %arg4: memref<1024x512xbf16, #tpu.memory_space<vmem>>, %arg5: memref<1x512xf32, #tpu.memory_space<vmem>>, %arg6: memref<512x32xbf16, #tpu.memory_space<vmem>>, %arg7: memref<1x32xf32, #tpu.memory_space<vmem>>, %arg8: memref<8x32xf32, #tpu.memory_space<vmem>>) attributes {dimension_semantics = [#tpu.dimension_semantics<arbitrary>], iteration_bounds = array<i64: 1>, scalar_prefetch = 0 : i64, scratch_operands = 0 : i64, tpu.core_type = #tpu.core_type<tc>, window_params = [{pipeline_mode = #tpu.pipeline_mode<synchronous>, transform_indices = @transform_0, window_bounds = array<i64: 8, 2048>}, {pipeline_mode = #tpu.pipeline_mode<synchronous>, transform_indices = @transform_1, window_bounds = array<i64: 2048, 1024>}, {pipeline_mode = #tpu.pipeline_mode<synchronous>, transform_indices = @transform_2, window_bounds = array<i64: 1, 1024>}, {pipeline_mode = #tpu.pipeline_mode<synchronous>, transform_indices = @transform_3, window_bounds = array<i64: 1024, 512>}, {pipeline_mode = #tpu.pipeline_mode<synchronous>, transform_indices = @transform_4, window_bounds = array<i64: 1, 512>}, {pipeline_mode = #tpu.pipeline_mode<synchronous>, transform_indices = @transform_5, window_bounds = array<i64: 512, 32>}, {pipeline_mode = #tpu.pipeline_mode<synchronous>, transform_indices = @transform_6, window_bounds = array<i64: 1, 32>}, {pipeline_mode = #tpu.pipeline_mode<synchronous>, transform_indices = @transform_7, window_bounds = array<i64: 8, 32>}]} {
    %c0 = arith.constant 0 : index
    %c0_0 = arith.constant 0 : index
    %0 = vector.load %arg1[%c0, %c0_0] : memref<8x2048xf32, #tpu.memory_space<vmem>>, vector<8x2048xf32>
    %1 = arith.truncf %0 : vector<8x2048xf32> to vector<8x2048xbf16>
    %c0_1 = arith.constant 0 : index
    %c0_2 = arith.constant 0 : index
    %2 = vector.load %arg2[%c0_1, %c0_2] : memref<2048x1024xbf16, #tpu.memory_space<vmem>>, vector<2048x1024xbf16>
    %cst = arith.constant dense<0.000000e+00> : vector<8x1024xf32>
    %3 = tpu.matmul %1, %2, %cst {dimension_numbers = #tpu.dot_dimension_numbers<[1], [0], [0], [1], [0, 0, 1, 1], [], []>} : vector<8x2048xbf16>, vector<2048x1024xbf16>, vector<8x1024xf32> -> vector<8x1024xf32>
    %c0_3 = arith.constant 0 : index
    %c0_4 = arith.constant 0 : index
    %4 = vector.load %arg3[%c0_3, %c0_4] : memref<1x1024xf32, #tpu.memory_space<vmem>>, vector<1x1024xf32>
    %5 = vector.broadcast %4 : vector<1x1024xf32> to vector<8x1024xf32>
    %6 = arith.addf %3, %5 : vector<8x1024xf32>
    %cst_5 = arith.constant 0.000000e+00 : f32
    %7 = vector.broadcast %cst_5 : f32 to vector<8x1024xf32>
    %8 = arith.maximumf %6, %7 : vector<8x1024xf32>
    %9 = arith.truncf %8 : vector<8x1024xf32> to vector<8x1024xbf16>
    %c0_6 = arith.constant 0 : index
    %c0_7 = arith.constant 0 : index
    %10 = vector.load %arg4[%c0_6, %c0_7] : memref<1024x512xbf16, #tpu.memory_space<vmem>>, vector<1024x512xbf16>
    %cst_8 = arith.constant dense<0.000000e+00> : vector<8x512xf32>
    %11 = tpu.matmul %9, %10, %cst_8 {dimension_numbers = #tpu.dot_dimension_numbers<[1], [0], [0], [1], [0, 0, 1, 1], [], []>} : vector<8x1024xbf16>, vector<1024x512xbf16>, vector<8x512xf32> -> vector<8x512xf32>
    %c0_9 = arith.constant 0 : index
    %c0_10 = arith.constant 0 : index
    %12 = vector.load %arg5[%c0_9, %c0_10] : memref<1x512xf32, #tpu.memory_space<vmem>>, vector<1x512xf32>
    %13 = vector.broadcast %12 : vector<1x512xf32> to vector<8x512xf32>
    %14 = arith.addf %11, %13 : vector<8x512xf32>
    %cst_11 = arith.constant 0.000000e+00 : f32
    %15 = vector.broadcast %cst_11 : f32 to vector<8x512xf32>
    %16 = arith.maximumf %14, %15 : vector<8x512xf32>
    %17 = arith.truncf %16 : vector<8x512xf32> to vector<8x512xbf16>
    %c0_12 = arith.constant 0 : index
    %c0_13 = arith.constant 0 : index
    %18 = vector.load %arg6[%c0_12, %c0_13] : memref<512x32xbf16, #tpu.memory_space<vmem>>, vector<512x32xbf16>
    %cst_14 = arith.constant dense<0.000000e+00> : vector<8x32xf32>
    %19 = tpu.matmul %17, %18, %cst_14 {dimension_numbers = #tpu.dot_dimension_numbers<[1], [0], [0], [1], [0, 0, 1, 1], [], []>} : vector<8x512xbf16>, vector<512x32xbf16>, vector<8x32xf32> -> vector<8x32xf32>
    %c0_15 = arith.constant 0 : index
    %c0_16 = arith.constant 0 : index
    %20 = vector.load %arg7[%c0_15, %c0_16] : memref<1x32xf32, #tpu.memory_space<vmem>>, vector<1x32xf32>
    %21 = vector.broadcast %20 : vector<1x32xf32> to vector<8x32xf32>
    %22 = arith.addf %19, %21 : vector<8x32xf32>
    %c0_17 = arith.constant 0 : index
    %c0_18 = arith.constant 0 : index
    %23 = vector.load %arg8[%c0_17, %c0_18] : memref<8x32xf32, #tpu.memory_space<vmem>>, vector<8x32xf32>
    tpu.vector_store %arg8[%c0_17, %c0_18], %22 {strides = array<i32>} : memref<8x32xf32, #tpu.memory_space<vmem>>, vector<8x32xf32>,
    return
  }
  func.func @transform_0(%arg0: i32) -> (i32, i32) {
    %c0_i32 = arith.constant 0 : i32
    %c0_i32_0 = arith.constant 0 : i32
    %c0_i32_1 = arith.constant 0 : i32
    return %c0_i32, %c0_i32_0 : i32, i32
  }
  func.func @transform_1(%arg0: i32) -> (i32, i32) {
    %c0_i32 = arith.constant 0 : i32
    %c0_i32_0 = arith.constant 0 : i32
    %c0_i32_1 = arith.constant 0 : i32
    return %c0_i32, %c0_i32_0 : i32, i32
  }
  func.func @transform_2(%arg0: i32) -> (i32, i32) {
    %c0_i32 = arith.constant 0 : i32
    %c0_i32_0 = arith.constant 0 : i32
    %c0_i32_1 = arith.constant 0 : i32
    return %c0_i32, %c0_i32_0 : i32, i32
  }
  func.func @transform_3(%arg0: i32) -> (i32, i32) {
    %c0_i32 = arith.constant 0 : i32
    %c0_i32_0 = arith.constant 0 : i32
    %c0_i32_1 = arith.constant 0 : i32
    return %c0_i32, %c0_i32_0 : i32, i32
  }
  func.func @transform_4(%arg0: i32) -> (i32, i32) {
    %c0_i32 = arith.constant 0 : i32
    %c0_i32_0 = arith.constant 0 : i32
    %c0_i32_1 = arith.constant 0 : i32
    return %c0_i32, %c0_i32_0 : i32, i32
  }
  func.func @transform_5(%arg0: i32) -> (i32, i32) {
    %c0_i32 = arith.constant 0 : i32
    %c0_i32_0 = arith.constant 0 : i32
    %c0_i32_1 = arith.constant 0 : i32
    return %c0_i32, %c0_i32_0 : i32, i32
  }
  func.func @transform_6(%arg0: i32) -> (i32, i32) {
    %c0_i32 = arith.constant 0 : i32
    %c0_i32_0 = arith.constant 0 : i32
    %c0_i32_1 = arith.constant 0 : i32
    return %c0_i32, %c0_i32_0 : i32, i32
  }
  func.func @transform_7(%arg0: i32) -> (i32, i32) {
    %c0_i32 = arith.constant 0 : i32
    %c0_i32_0 = arith.constant 0 : i32
    %c0_i32_1 = arith.constant 0 : i32
    return %c0_i32, %c0_i32_0 : i32, i32
  }
}

</mosaic_0001>

<llo_original>
// kernel: encoder_forward.2
$region0: #{encoder_forward.2}
  #allocation0 [shape = 'u32[]', space=smem, size = 0x4, offset = 0x4, fixed_abs, tag = 'smem constant byte address 0x4 - core index']
  #allocation1 [shape = 'u32[144,128]{1,0:T(1,128)}', space=vmem, size = 0x12000, scoped, tag = 'internal scratch']
  %s0 = inlined_call_operand.hbm [shape: f32[8,256], index: 0, kind: input, shape index: {}]
  %s1 = inlined_call_operand.hbm [shape: bf16[256,2048], index: 1, kind: input, shape index: {}]
  %s2 = inlined_call_operand.vmem [shape: f32[1,2048], index: 2, kind: input, shape index: {}]
  %s3 = inlined_call_operand.vmem [shape: f32[8,2048], index: 3, kind: output, shape index: {}]
  %s4 = sld [smem:[#allocation0]]
  $region61: #{encoder_forward.2} parent=0
    _
  %s6 = ssub.s32 1, %s4
  %s7 = scalar_select 0, %s6, %s4
  $region1: #{encoder_forward.2} parent=0
    #allocation2 [shape = 'u8[8192]{0}', space=vmem, size = 0x2000, scoped, tag = 'input window, operand 0, single buffered']
    #allocation3 [shape = 's32[2]{0}', space=sflag, size = 0x8, scoped, tag = 'scoped memory for encoder_forward.2']
    #allocation4 [shape = 'u8[1048576]{0}', space=vmem, size = 0x100000, scoped, tag = 'input window, operand 1']
    #allocation5 [shape = 's32[2]{0}', space=sflag, size = 0x8, scoped, tag = 'scoped memory for encoder_forward.2']
    %8 = vsyncpa [#allocation3], 0
    %9 = vsyncpa [#allocation5], 0
    %s10 = scalar_lea.sflag [#allocation5], 1
    %11 = vsyncpa %s10, 0
    loop: start=0, step=1, limit=4
    $region2: #{encoder_forward.2} parent=1 // loop_pre_header
      _
    $region3: #{encoder_forward.2} parent=1 // loop_header
      %s13 = sphi 0, %s17
      %p14 = scmp.ge.s32.totalorder %s13, 4
      %s20 = sphi 0, %s32
      %s21 = sphi 0, %s28
      %s22 = sphi 0, %s20
      %s23 = sphi 0, %s21
      %s24 = sphi 0, %s22
      %s25 = sphi 0, %s23
      %s35 = sphi 0, %s37
      %s38 = sphi 0, %s35
      %s39 = sphi 0, %s38
      %s55 = sphi 0, %s39
      %s63 = sphi 0, %s65
      %s66 = sphi 0, %s63
      %s67 = sphi 0, %s66
      %s83 = sphi 0, %s67
      %s89 = sphi 0, %s91
      %s92 = sphi 0, %s89
      %s93 = sphi 0, %s92
      %s109 = sphi 0, %s93
      %s115 = sphi 0, %s117
      %s118 = sphi 0, %s115
      %s119 = sphi 0, %s118
      %s135 = sphi 0, %s119
    $region4: #{encoder_forward.2} parent=1 // loop_header_branch
      %16 = sbr.rel (%p14) target = $region8
    $region5: #{encoder_forward.2} parent=1 // loop_body
      %s18 = ssub.s32 %s13, 1
      %s19 = ssub.s32 %s13, 2
      %s26 = sadd.s32 1, %s21
      %p27 = scmp.ge.s32.totalorder %s26, 1
      %s28 = scalar_select %p27, 0, %s26
      %s29 = sadd.s32 1, %s20
      %s30 = scalar_select %p27, %s29, %s20
      %p31 = scmp.ge.s32.totalorder %s30, 2
      %s32 = scalar_select %p31, 0, %s30
      %s33 = ssub.s32 %s21, %s28
      %p34 = scmp.eq.s32.totalorder %s33, 0
      %s36 = sadd.s32 %s35, 1
      %s37 = scalar_select %p34, %s35, %s36
      %p40 = pneg %p34
      %p41 = scmp.eq.s32.totalorder %s13, 1
      %p42 = por %p40, %p41
      %p43 = scmp.ne.s32.totalorder %s35, %s38
      %p44 = scmp.eq.s32.totalorder %s13, 0
      %p45 = por %p43, %p44
      %p46 = scmp.ne.s32.totalorder %s35, %s38
      %p47 = scmp.eq.s32.totalorder %s18, 1
      %p48 = por %p46, %p47
      %p49 = scmp.ne.s32.totalorder %s38, %s39
      %p50 = scmp.eq.s32.totalorder %s18, 0
      %p51 = por %p49, %p50
      %p52 = scmp.ne.s32.totalorder %s38, %s39
      %p53 = scmp.eq.s32.totalorder %s19, 1
      %p54 = por %p52, %p53
      %p56 = scmp.ne.s32.totalorder %s39, %s55
      %p57 = scmp.eq.s32.totalorder %s19, 0
      %p58 = por %p56, %p57
      %s59 = ssub.s32 %s21, %s28
      %s60 = ssub.s32 %s20, %s32
      %s61 = sor.u32 %s59, %s60
      %p62 = scmp.eq.s32.totalorder %s61, 0
      %s64 = sadd.s32 %s63, 1
      %s65 = scalar_select %p62, %s63, %s64
      %p68 = pneg %p62
      %p69 = scmp.eq.s32.totalorder %s13, 1
      %p70 = por %p68, %p69
      %p71 = scmp.ne.s32.totalorder %s63, %s66
      %p72 = scmp.eq.s32.totalorder %s13, 0
      %p73 = por %p71, %p72
      %p74 = scmp.ne.s32.totalorder %s63, %s66
      %p75 = scmp.eq.s32.totalorder %s18, 1
      %p76 = por %p74, %p75
      %p77 = scmp.ne.s32.totalorder %s66, %s67
      %p78 = scmp.eq.s32.totalorder %s18, 0
      %p79 = por %p77, %p78
      %p80 = scmp.ne.s32.totalorder %s66, %s67
      %p81 = scmp.eq.s32.totalorder %s19, 1
      %p82 = por %p80, %p81
      %p84 = scmp.ne.s32.totalorder %s67, %s83
      %p85 = scmp.eq.s32.totalorder %s19, 0
      %p86 = por %p84, %p85
      %s87 = ssub.s32 %s20, %s32
      %p88 = scmp.eq.s32.totalorder %s87, 0
      %s90 = sadd.s32 %s89, 1
      %s91 = scalar_select %p88, %s89, %s90
      %p94 = pneg %p88
      %p95 = scmp.eq.s32.totalorder %s13, 1
      %p96 = por %p94, %p95
      %p97 = scmp.ne.s32.totalorder %s89, %s92
      %p98 = scmp.eq.s32.totalorder %s13, 0
      %p99 = por %p97, %p98
      %p100 = scmp.ne.s32.totalorder %s89, %s92
      %p101 = scmp.eq.s32.totalorder %s18, 1
      %p102 = por %p100, %p101
      %p103 = scmp.ne.s32.totalorder %s92, %s93
      %p104 = scmp.eq.s32.totalorder %s18, 0
      %p105 = por %p103, %p104
      %p106 = scmp.ne.s32.totalorder %s92, %s93
      %p107 = scmp.eq.s32.totalorder %s19, 1
      %p108 = por %p106, %p107
      %p110 = scmp.ne.s32.totalorder %s93, %s109
      %p111 = scmp.eq.s32.totalorder %s19, 0
      %p112 = por %p110, %p111
      %s113 = ssub.s32 %s20, %s32
      %p114 = scmp.eq.s32.totalorder %s113, 0
      %s116 = sadd.s32 %s115, 1
      %s117 = scalar_select %p114, %s115, %s116
      %p120 = pneg %p114
      %p121 = scmp.eq.s32.totalorder %s13, 1
      %p122 = por %p120, %p121
      %p123 = scmp.ne.s32.totalorder %s115, %s118
      %p124 = scmp.eq.s32.totalorder %s13, 0
      %p125 = por %p123, %p124
      %p126 = scmp.ne.s32.totalorder %s115, %s118
      %p127 = scmp.eq.s32.totalorder %s18, 1
      %p128 = por %p126, %p127
      %p129 = scmp.ne.s32.totalorder %s118, %s119
      %p130 = scmp.eq.s32.totalorder %s18, 0
      %p131 = por %p129, %p130
      %p132 = scmp.ne.s32.totalorder %s118, %s119
      %p133 = scmp.eq.s32.totalorder %s19, 1
      %p134 = por %p132, %p133
      %p136 = scmp.ne.s32.totalorder %s119, %s135
      %p137 = scmp.eq.s32.totalorder %s19, 0
      %p138 = por %p136, %p137
      %p139 = scmp.le.s32.totalorder 1, %s13
      %p140 = scmp.lt.s32.totalorder %s13, 3
      %p141 = pnand %p139, %p140
      %p142 = pneg %p141
      // Predicated region
      $region9: #{encoder_forward.2} parent=5 // pred_check
        _
      $region10: #{encoder_forward.2} parent=5 // pred_check_branch
        %144 = sbr.rel (%p141) target = $region12
      $region11: #{encoder_forward.2} parent=5 // pred_region
        %s145 = ssub.s32 %s13, 1
        // Predicated region
        $region13: #{encoder_forward.2} parent=11 // pred_check
          %p146 = pneg %p51
        $region14: #{encoder_forward.2} parent=11 // pred_check_branch
          %148 = sbr.rel (%p146) target = $region16
        $region15: #{encoder_forward.2} parent=11 // pred_region
          %s149 = smul.u32 2, %s23
          %s151 = ssub.s32 256, 256
          %152 = vsyncadd [#allocation3], %s151
          %s153 = smul.addr %s149, 128
          %s154 = scalar_lea.hbm %s0, %s153
          %s156 = sshll.u32 [#allocation2], 4
          %s157 = int_to_ptr.vmem [resolvable:$true] %s156
          %159 = dma.hbm_to_vmem [thread:$0]  %s154, 256, %s157, [#allocation3]
        $region16: #{encoder_forward.2} parent=11 // pred_fallthru
          _
      $region12: #{encoder_forward.2} parent=5 // pred_fallthru
        _
      %p160 = scmp.lt.s32.totalorder %s13, 2
      // Predicated region
      $region17: #{encoder_forward.2} parent=5 // pred_check
        %p161 = pneg %p160
      $region18: #{encoder_forward.2} parent=5 // pred_check_branch
        %163 = sbr.rel (%p161) target = $region20
      $region19: #{encoder_forward.2} parent=5 // pred_region
        // Predicated region
        $region21: #{encoder_forward.2} parent=19 // pred_check
          %p164 = pneg %p73
        $region22: #{encoder_forward.2} parent=19 // pred_check_branch
          %166 = sbr.rel (%p164) target = $region24
        $region23: #{encoder_forward.2} parent=19 // pred_region
          %s167 = sand.u32 %s63, 1
          %s168 = scalar_lea.sflag [#allocation5], %s167
          %s169 = sand.u32 %s63, 1
          %s170 = smul.addr %s169, 1024
          %s171 = scalar_lea.vmem [#allocation4], %s170
          %s172 = smul.u32 32, %s21
          %s173 = smul.u32 8, %s20
          %s175 = ssub.s32 16384, 16384
          %176 = vsyncadd %s168, %s175
          %s177 = smul.addr %s172, 16
          %s178 = sadd.s32 %s173, %s177
          %s179 = smul.addr %s178, 64
          %s180 = scalar_lea.hbm %s1, %s179
          %s181 = sshll.u32 %s171, 4
          %s182 = int_to_ptr.vmem [resolvable:$true] %s181
          %187 = dma.hbm_to_vmem [thread:$0]  %s180, 16384, %s182, %s168, 1024, 512, 32
        $region24: #{encoder_forward.2} parent=19 // pred_fallthru
          _
        // Predicated region
        $region25: #{encoder_forward.2} parent=19 // pred_check
          %p188 = pneg %p99
        $region26: #{encoder_forward.2} parent=19 // pred_check_branch
          %190 = sbr.rel (%p188) target = $region28
        $region27: #{encoder_forward.2} parent=19 // pred_region
          %s191 = smul.u32 8, %s20
          %p192 = scmp.lt.s32.totalorder %s191, 15
          %s193 = scalar_select %p192, %s191, 15
          %s194 = scalar_lea.vmem %s2, %s193
          %s195 = smul.u32 8, %s20
        $region28: #{encoder_forward.2} parent=19 // pred_fallthru
          _
      $region20: #{encoder_forward.2} parent=5 // pred_fallthru
        _
      %p196 = scmp.le.s32.totalorder 1, %s13
      %p197 = scmp.lt.s32.totalorder %s13, 3
      %p198 = pnand %p196, %p197
      %p199 = pneg %p198
      // Predicated region
      $region29: #{encoder_forward.2} parent=5 // pred_check
        _
      $region30: #{encoder_forward.2} parent=5 // pred_check_branch
        %201 = sbr.rel (%p198) target = $region32
      $region31: #{encoder_forward.2} parent=5 // pred_region
        %s202 = ssub.s32 %s13, 1
        // Predicated region
        $region33: #{encoder_forward.2} parent=31 // pred_check
          %p203 = pneg %p51
        $region34: #{encoder_forward.2} parent=31 // pred_check_branch
          %205 = sbr.rel (%p203) target = $region36
        $region35: #{encoder_forward.2} parent=31 // pred_region
          %206 = dma.done [#allocation3], 256
        $region36: #{encoder_forward.2} parent=31 // pred_fallthru
          _
        %s207 = sand.u32 %s66, 1
        %s208 = scalar_lea.sflag [#allocation5], %s207
        %s209 = sand.u32 %s66, 1
        %s210 = smul.addr %s209, 1024
        %s211 = scalar_lea.vmem [#allocation4], %s210
        // Predicated region
        $region37: #{encoder_forward.2} parent=31 // pred_check
          %p212 = pneg %p79
        $region38: #{encoder_forward.2} parent=31 // pred_check_branch
          %214 = sbr.rel (%p212) target = $region40
        $region39: #{encoder_forward.2} parent=31 // pred_region
          %215 = dma.done %s208, 16384
        $region40: #{encoder_forward.2} parent=31 // pred_fallthru
          _
        %p216 = pneg %p51
        %p217 = pneg %p48
        %s218 = sand.u32 %s66, 1
        %s219 = scalar_lea.sflag [#allocation5], %s218
        %s220 = sand.u32 %s66, 1
        %s221 = smul.addr %s220, 1024
        %s222 = scalar_lea.vmem [#allocation4], %s221
        %p223 = pneg %p79
        %p224 = pneg %p76
        %s225 = smul.u32 8, %s22
        %p226 = scmp.lt.s32.totalorder %s225, 15
        %s227 = scalar_select %p226, %s225, 15
        %s228 = scalar_lea.vmem %s2, %s227
        %p229 = pneg %p105
        %p230 = pneg %p102
        %p231 = pneg %p131
        %p232 = pneg %p128
        %s233 = smul.u32 8, %s22
        %p234 = scmp.lt.s32.totalorder %s233, 15
        %s235 = scalar_select %p234, %s233, 15
        %s236 = smul.addr %s235, 8
        %s237 = scalar_lea.vmem %s3, %s236
        %s238 = smul.u32 2, %s23
        %s239 = smul.u32 32, %s23
        %s240 = smul.u32 8, %s22
        %s241 = smul.u32 8, %s22
        %p242 = scmp.lt.s32.totalorder %s241, 15
        %s243 = scalar_select %p242, %s241, 15
        %s244 = scalar_lea.vmem %s2, %s243
        %s245 = smul.u32 8, %s22
        %s246 = smul.u32 8, %s22
        %p247 = scmp.lt.s32.totalorder %s246, 15
        %s248 = scalar_select %p247, %s246, 15
        %s249 = smul.addr %s248, 8
        %s250 = scalar_lea.vmem %s3, %s249
        %s251 = smul.u32 8, %s22
        %p252 = scmp.eq.s32.totalorder %s23, 0
        // Predicated region
        $region41: #{encoder_forward.2} parent=31 // pred_check
          %p253 = pneg %p252
        $region42: #{encoder_forward.2} parent=31 // pred_check_branch
          %255 = sbr.rel (%p253) target = $region44
        $region43: #{encoder_forward.2} parent=31 // pred_region
          %256 = vst [vmem:[%s250] sm:$0xff] 0.0
          %257 = vst [vmem:[%s250 + $0x8] sm:$0xff] 0.0
          %258 = vst [vmem:[%s250 + $0x10] sm:$0xff] 0.0
          %259 = vst [vmem:[%s250 + $0x18] sm:$0xff] 0.0
          %260 = vst [vmem:[%s250 + $0x20] sm:$0xff] 0.0
          %261 = vst [vmem:[%s250 + $0x28] sm:$0xff] 0.0
          %262 = vst [vmem:[%s250 + $0x30] sm:$0xff] 0.0
          %263 = vst [vmem:[%s250 + $0x38] sm:$0xff] 0.0
        $region44: #{encoder_forward.2} parent=31 // pred_fallthru
          _
        %v264 = vld [vmem:[#allocation2] sm:$0xff]
        %v265 = vld [vmem:[#allocation2 + $0x8] sm:$0xff]
        %v266 = vmax.f32 %v264, 0.0
        %v267 = vmax.f32 %v265, 0.0
        %v268 = vadd.f32 %v266, 1.0
        %v269 = vadd.f32 %v267, 1.0
        %v270 = vlog2.pop %v268
        %v271 = vmul.f32 %v270, 0.6931472
        %v272 = vlog2.pop %v269
        %v273 = vmul.f32 %v272, 0.6931472
        %v274 = vrcp.pop 0.6931472
        %v275 = vmul.f32 %v271, %v274
        %v276 = vmul.f32 %v273, %v274
        %v277 = vld [vmem:[%s250] sm:$0xff]
        %v278 = vld [vmem:[%s250 + $0x8] sm:$0xff]
        %v279 = vld [vmem:[%s250 + $0x10] sm:$0xff]
        %v280 = vld [vmem:[%s250 + $0x18] sm:$0xff]
        %v281 = vld [vmem:[%s250 + $0x20] sm:$0xff]
        %v282 = vld [vmem:[%s250 + $0x28] sm:$0xff]
        %v283 = vld [vmem:[%s250 + $0x30] sm:$0xff]
        %v284 = vld [vmem:[%s250 + $0x38] sm:$0xff]
        %v285 = vpack.c.bf16 %v275, %v275
        %v286 = vpack.c.bf16 %v276, %v276
        %v287 = vld [vmem:[%s211] sm:$0xff]
        %v288 = vld [vmem:[%s211 + $0x8] sm:$0xff]
        %v289 = vld [vmem:[%s211 + $0x10] sm:$0xff]
        %v290 = vld [vmem:[%s211 + $0x18] sm:$0xff]
        %v291 = vld [vmem:[%s211 + $0x20] sm:$0xff]
        %v292 = vld [vmem:[%s211 + $0x28] sm:$0xff]
        %v293 = vld [vmem:[%s211 + $0x30] sm:$0xff]
        %v294 = vld [vmem:[%s211 + $0x38] sm:$0xff]
        %v295 = vld [vmem:[%s211 + $0x40] sm:$0xff]
        %v296 = vld [vmem:[%s211 + $0x48] sm:$0xff]
        %v297 = vld [vmem:[%s211 + $0x50] sm:$0xff]
        %v298 = vld [vmem:[%s211 + $0x58] sm:$0xff]
        %v299 = vld [vmem:[%s211 + $0x60] sm:$0xff]
        %v300 = vld [vmem:[%s211 + $0x68] sm:$0xff]
        %v301 = vld [vmem:[%s211 + $0x70] sm:$0xff]
        %v302 = vld [vmem:[%s211 + $0x78] sm:$0xff]
        %v303 = vld [vmem:[%s211 + $0x80] sm:$0xff]
        %v304 = vld [vmem:[%s211 + $0x88] sm:$0xff]
        %v305 = vld [vmem:[%s211 + $0x90] sm:$0xff]
        %v306 = vld [vmem:[%s211 + $0x98] sm:$0xff]
        %v307 = vld [vmem:[%s211 + $0xa0] sm:$0xff]
        %v308 = vld [vmem:[%s211 + $0xa8] sm:$0xff]
        %v309 = vld [vmem:[%s211 + $0xb0] sm:$0xff]
        %v310 = vld [vmem:[%s211 + $0xb8] sm:$0xff]
        %v311 = vld [vmem:[%s211 + $0xc0] sm:$0xff]
        %v312 = vld [vmem:[%s211 + $0xc8] sm:$0xff]
        %v313 = vld [vmem:[%s211 + $0xd0] sm:$0xff]
        %v314 = vld [vmem:[%s211 + $0xd8] sm:$0xff]
        %v315 = vld [vmem:[%s211 + $0xe0] sm:$0xff]
        %v316 = vld [vmem:[%s211 + $0xe8] sm:$0xff]
        %v317 = vld [vmem:[%s211 + $0xf0] sm:$0xff]
        %v318 = vld [vmem:[%s211 + $0xf8] sm:$0xff]
        %v319 = vld [vmem:[%s211 + $0x100] sm:$0xff]
        %v320 = vld [vmem:[%s211 + $0x108] sm:$0xff]
        %v321 = vld [vmem:[%s211 + $0x110] sm:$0xff]
        %v322 = vld [vmem:[%s211 + $0x118] sm:$0xff]
        %v323 = vld [vmem:[%s211 + $0x120] sm:$0xff]
        %v324 = vld [vmem:[%s211 + $0x128] sm:$0xff]
        %v325 = vld [vmem:[%s211 + $0x130] sm:$0xff]
        %v326 = vld [vmem:[%s211 + $0x138] sm:$0xff]
        %v327 = vld [vmem:[%s211 + $0x140] sm:$0xff]
        %v328 = vld [vmem:[%s211 + $0x148] sm:$0xff]
        %v329 = vld [vmem:[%s211 + $0x150] sm:$0xff]
        %v330 = vld [vmem:[%s211 + $0x158] sm:$0xff]
        %v331 = vld [vmem:[%s211 + $0x160] sm:$0xff]
        %v332 = vld [vmem:[%s211 + $0x168] sm:$0xff]
        %v333 = vld [vmem:[%s211 + $0x170] sm:$0xff]
        %v334 = vld [vmem:[%s211 + $0x178] sm:$0xff]
        %v335 = vld [vmem:[%s211 + $0x180] sm:$0xff]
        %v336 = vld [vmem:[%s211 + $0x188] sm:$0xff]
        %v337 = vld [vmem:[%s211 + $0x190] sm:$0xff]
        %v338 = vld [vmem:[%s211 + $0x198] sm:$0xff]
        %v339 = vld [vmem:[%s211 + $0x1a0] sm:$0xff]
        %v340 = vld [vmem:[%s211 + $0x1a8] sm:$0xff]
        %v341 = vld [vmem:[%s211 + $0x1b0] sm:$0xff]
        %v342 = vld [vmem:[%s211 + $0x1b8] sm:$0xff]
        %v343 = vld [vmem:[%s211 + $0x1c0] sm:$0xff]
        %v344 = vld [vmem:[%s211 + $0x1c8] sm:$0xff]
        %v345 = vld [vmem:[%s211 + $0x1d0] sm:$0xff]
        %v346 = vld [vmem:[%s211 + $0x1d8] sm:$0xff]
        %v347 = vld [vmem:[%s211 + $0x1e0] sm:$0xff]
        %v348 = vld [vmem:[%s211 + $0x1e8] sm:$0xff]
        %v349 = vld [vmem:[%s211 + $0x1f0] sm:$0xff]
        %v350 = vld [vmem:[%s211 + $0x1f8] sm:$0xff]
        %v351 = vld [vmem:[%s211 + $0x200] sm:$0xff]
        %v352 = vld [vmem:[%s211 + $0x208] sm:$0xff]
        %v353 = vld [vmem:[%s211 + $0x210] sm:$0xff]
        %v354 = vld [vmem:[%s211 + $0x218] sm:$0xff]
        %v355 = vld [vmem:[%s211 + $0x220] sm:$0xff]
        %v356 = vld [vmem:[%s211 + $0x228] sm:$0xff]
        %v357 = vld [vmem:[%s211 + $0x230] sm:$0xff]
        %v358 = vld [vmem:[%s211 + $0x238] sm:$0xff]
        %v359 = vld [vmem:[%s211 + $0x240] sm:$0xff]
        %v360 = vld [vmem:[%s211 + $0x248] sm:$0xff]
        %v361 = vld [vmem:[%s211 + $0x250] sm:$0xff]
        %v362 = vld [vmem:[%s211 + $0x258] sm:$0xff]
        %v363 = vld [vmem:[%s211 + $0x260] sm:$0xff]
        %v364 = vld [vmem:[%s211 + $0x268] sm:$0xff]
        %v365 = vld [vmem:[%s211 + $0x270] sm:$0xff]
        %v366 = vld [vmem:[%s211 + $0x278] sm:$0xff]
        %v367 = vld [vmem:[%s211 + $0x280] sm:$0xff]
        %v368 = vld [vmem:[%s211 + $0x288] sm:$0xff]
        %v369 = vld [vmem:[%s211 + $0x290] sm:$0xff]
        %v370 = vld [vmem:[%s211 + $0x298] sm:$0xff]
        %v371 = vld [vmem:[%s211 + $0x2a0] sm:$0xff]
        %v372 = vld [vmem:[%s211 + $0x2a8] sm:$0xff]
        %v373 = vld [vmem:[%s211 + $0x2b0] sm:$0xff]
        %v374 = vld [vmem:[%s211 + $0x2b8] sm:$0xff]
        %v375 = vld [vmem:[%s211 + $0x2c0] sm:$0xff]
        %v376 = vld [vmem:[%s211 + $0x2c8] sm:$0xff]
        %v377 = vld [vmem:[%s211 + $0x2d0] sm:$0xff]
        %v378 = vld [vmem:[%s211 + $0x2d8] sm:$0xff]
        %v379 = vld [vmem:[%s211 + $0x2e0] sm:$0xff]
        %v380 = vld [vmem:[%s211 + $0x2e8] sm:$0xff]
        %v381 = vld [vmem:[%s211 + $0x2f0] sm:$0xff]
        %v382 = vld [vmem:[%s211 + $0x2f8] sm:$0xff]
        %v383 = vld [vmem:[%s211 + $0x300] sm:$0xff]
        %v384 = vld [vmem:[%s211 + $0x308] sm:$0xff]
        %v385 = vld [vmem:[%s211 + $0x310] sm:$0xff]
        %v386 = vld [vmem:[%s211 + $0x318] sm:$0xff]
        %v387 = vld [vmem:[%s211 + $0x320] sm:$0xff]
        %v388 = vld [vmem:[%s211 + $0x328] sm:$0xff]
        %v389 = vld [vmem:[%s211 + $0x330] sm:$0xff]
        %v390 = vld [vmem:[%s211 + $0x338] sm:$0xff]
        %v391 = vld [vmem:[%s211 + $0x340] sm:$0xff]
        %v392 = vld [vmem:[%s211 + $0x348] sm:$0xff]
        %v393 = vld [vmem:[%s211 + $0x350] sm:$0xff]
        %v394 = vld [vmem:[%s211 + $0x358] sm:$0xff]
        %v395 = vld [vmem:[%s211 + $0x360] sm:$0xff]
        %v396 = vld [vmem:[%s211 + $0x368] sm:$0xff]
        %v397 = vld [vmem:[%s211 + $0x370] sm:$0xff]
        %v398 = vld [vmem:[%s211 + $0x378] sm:$0xff]
        %v399 = vld [vmem:[%s211 + $0x380] sm:$0xff]
        %v400 = vld [vmem:[%s211 + $0x388] sm:$0xff]
        %v401 = vld [vmem:[%s211 + $0x390] sm:$0xff]
        %v402 = vld [vmem:[%s211 + $0x398] sm:$0xff]
        %v403 = vld [vmem:[%s211 + $0x3a0] sm:$0xff]
        %v404 = vld [vmem:[%s211 + $0x3a8] sm:$0xff]
        %v405 = vld [vmem:[%s211 + $0x3b0] sm:$0xff]
        %v406 = vld [vmem:[%s211 + $0x3b8] sm:$0xff]
        %v407 = vld [vmem:[%s211 + $0x3c0] sm:$0xff]
        %v408 = vld [vmem:[%s211 + $0x3c8] sm:$0xff]
        %v409 = vld [vmem:[%s211 + $0x3d0] sm:$0xff]
        %v410 = vld [vmem:[%s211 + $0x3d8] sm:$0xff]
        %v411 = vld [vmem:[%s211 + $0x3e0] sm:$0xff]
        %v412 = vld [vmem:[%s211 + $0x3e8] sm:$0xff]
        %v413 = vld [vmem:[%s211 + $0x3f0] sm:$0xff]
        %v414 = vld [vmem:[%s211 + $0x3f8] sm:$0xff]
        %v543 = vunpack.c.l.b16 %v287
        %v544 = vunpack.c.h.b16 %v287
        %v545 = vunpack.c.l.b16 %v288
        %v546 = vunpack.c.h.b16 %v288
        %v547 = vunpack.c.l.b16 %v289
        %v548 = vunpack.c.h.b16 %v289
        %v549 = vunpack.c.l.b16 %v290
        %v550 = vunpack.c.h.b16 %v290
        %v551 = vunpack.c.l.b16 %v291
        %v552 = vunpack.c.h.b16 %v291
        %v553 = vunpack.c.l.b16 %v292
        %v554 = vunpack.c.h.b16 %v292
        %v555 = vunpack.c.l.b16 %v293
        %v556 = vunpack.c.h.b16 %v293
        %v557 = vunpack.c.l.b16 %v294
        %v558 = vunpack.c.h.b16 %v294
        %v559 = vunpack.c.l.b16 %v295
        %v560 = vunpack.c.h.b16 %v295
        %v561 = vunpack.c.l.b16 %v296
        %v562 = vunpack.c.h.b16 %v296
        %v563 = vunpack.c.l.b16 %v297
        %v564 = vunpack.c.h.b16 %v297
        %v565 = vunpack.c.l.b16 %v298
        %v566 = vunpack.c.h.b16 %v298
        %v567 = vunpack.c.l.b16 %v299
        %v568 = vunpack.c.h.b16 %v299
        %v569 = vunpack.c.l.b16 %v300
        %v570 = vunpack.c.h.b16 %v300
        %v571 = vunpack.c.l.b16 %v301
        %v572 = vunpack.c.h.b16 %v301
        %v573 = vunpack.c.l.b16 %v302
        %v574 = vunpack.c.h.b16 %v302
        %v575 = vunpack.c.l.b16 %v303
        %v576 = vunpack.c.h.b16 %v303
        %v577 = vunpack.c.l.b16 %v304
        %v578 = vunpack.c.h.b16 %v304
        %v579 = vunpack.c.l.b16 %v305
        %v580 = vunpack.c.h.b16 %v305
        %v581 = vunpack.c.l.b16 %v306
        %v582 = vunpack.c.h.b16 %v306
        %v583 = vunpack.c.l.b16 %v307
        %v584 = vunpack.c.h.b16 %v307
        %v585 = vunpack.c.l.b16 %v308
        %v586 = vunpack.c.h.b16 %v308
        %v587 = vunpack.c.l.b16 %v309
        %v588 = vunpack.c.h.b16 %v309
        %v589 = vunpack.c.l.b16 %v310
        %v590 = vunpack.c.h.b16 %v310
        %v591 = vunpack.c.l.b16 %v311
        %v592 = vunpack.c.h.b16 %v311
        %v593 = vunpack.c.l.b16 %v312
        %v594 = vunpack.c.h.b16 %v312
        %v595 = vunpack.c.l.b16 %v313
        %v596 = vunpack.c.h.b16 %v313
        %v597 = vunpack.c.l.b16 %v314
        %v598 = vunpack.c.h.b16 %v314
        %v599 = vunpack.c.l.b16 %v315
        %v600 = vunpack.c.h.b16 %v315
        %v601 = vunpack.c.l.b16 %v316
        %v602 = vunpack.c.h.b16 %v316
        %v603 = vunpack.c.l.b16 %v317
        %v604 = vunpack.c.h.b16 %v317
        %v605 = vunpack.c.l.b16 %v318
        %v606 = vunpack.c.h.b16 %v318
        %v607 = vunpack.c.l.b16 %v319
        %v608 = vunpack.c.h.b16 %v319
        %v609 = vunpack.c.l.b16 %v320
        %v610 = vunpack.c.h.b16 %v320
        %v611 = vunpack.c.l.b16 %v321
        %v612 = vunpack.c.h.b16 %v321
        %v613 = vunpack.c.l.b16 %v322
        %v614 = vunpack.c.h.b16 %v322
        %v615 = vunpack.c.l.b16 %v323
        %v616 = vunpack.c.h.b16 %v323
        %v617 = vunpack.c.l.b16 %v324
        %v618 = vunpack.c.h.b16 %v324
        %v619 = vunpack.c.l.b16 %v325
        %v620 = vunpack.c.h.b16 %v325
        %v621 = vunpack.c.l.b16 %v326
        %v622 = vunpack.c.h.b16 %v326
        %v623 = vunpack.c.l.b16 %v327
        %v624 = vunpack.c.h.b16 %v327
        %v625 = vunpack.c.l.b16 %v328
        %v626 = vunpack.c.h.b16 %v328
        %v627 = vunpack.c.l.b16 %v329
        %v628 = vunpack.c.h.b16 %v329
        %v629 = vunpack.c.l.b16 %v330
        %v630 = vunpack.c.h.b16 %v330
        %v631 = vunpack.c.l.b16 %v331
        %v632 = vunpack.c.h.b16 %v331
        %v633 = vunpack.c.l.b16 %v332
        %v634 = vunpack.c.h.b16 %v332
        %v635 = vunpack.c.l.b16 %v333
        %v636 = vunpack.c.h.b16 %v333
        %v637 = vunpack.c.l.b16 %v334
        %v638 = vunpack.c.h.b16 %v334
        %v639 = vunpack.c.l.b16 %v335
        %v640 = vunpack.c.h.b16 %v335
        %v641 = vunpack.c.l.b16 %v336
        %v642 = vunpack.c.h.b16 %v336
        %v643 = vunpack.c.l.b16 %v337
        %v644 = vunpack.c.h.b16 %v337
        %v645 = vunpack.c.l.b16 %v338
        %v646 = vunpack.c.h.b16 %v338
        %v647 = vunpack.c.l.b16 %v339
        %v648 = vunpack.c.h.b16 %v339
        %v649 = vunpack.c.l.b16 %v340
        %v650 = vunpack.c.h.b16 %v340
        %v651 = vunpack.c.l.b16 %v341
        %v652 = vunpack.c.h.b16 %v341
        %v653 = vunpack.c.l.b16 %v342
        %v654 = vunpack.c.h.b16 %v342
        %v655 = vunpack.c.l.b16 %v343
        %v656 = vunpack.c.h.b16 %v343
        %v657 = vunpack.c.l.b16 %v344
        %v658 = vunpack.c.h.b16 %v344
        %v659 = vunpack.c.l.b16 %v345
        %v660 = vunpack.c.h.b16 %v345
        %v661 = vunpack.c.l.b16 %v346
        %v662 = vunpack.c.h.b16 %v346
        %v663 = vunpack.c.l.b16 %v347
        %v664 = vunpack.c.h.b16 %v347
        %v665 = vunpack.c.l.b16 %v348
        %v666 = vunpack.c.h.b16 %v348
        %v667 = vunpack.c.l.b16 %v349
        %v668 = vunpack.c.h.b16 %v349
        %v669 = vunpack.c.l.b16 %v350
        %v670 = vunpack.c.h.b16 %v350
        %v671 = vunpack.c.l.b16 %v351
        %v672 = vunpack.c.h.b16 %v351
        %v673 = vunpack.c.l.b16 %v352
        %v674 = vunpack.c.h.b16 %v352
        %v675 = vunpack.c.l.b16 %v353
        %v676 = vunpack.c.h.b16 %v353
        %v677 = vunpack.c.l.b16 %v354
        %v678 = vunpack.c.h.b16 %v354
        %v679 = vunpack.c.l.b16 %v355
        %v680 = vunpack.c.h.b16 %v355
        %v681 = vunpack.c.l.b16 %v356
        %v682 = vunpack.c.h.b16 %v356
        %v683 = vunpack.c.l.b16 %v357
        %v684 = vunpack.c.h.b16 %v357
        %v685 = vunpack.c.l.b16 %v358
        %v686 = vunpack.c.h.b16 %v358
        %v687 = vunpack.c.l.b16 %v359
        %v688 = vunpack.c.h.b16 %v359
        %v689 = vunpack.c.l.b16 %v360
        %v690 = vunpack.c.h.b16 %v360
        %v691 = vunpack.c.l.b16 %v361
        %v692 = vunpack.c.h.b16 %v361
        %v693 = vunpack.c.l.b16 %v362
        %v694 = vunpack.c.h.b16 %v362
        %v695 = vunpack.c.l.b16 %v363
        %v696 = vunpack.c.h.b16 %v363
        %v697 = vunpack.c.l.b16 %v364
        %v698 = vunpack.c.h.b16 %v364
        %v699 = vunpack.c.l.b16 %v365
        %v700 = vunpack.c.h.b16 %v365
        %v701 = vunpack.c.l.b16 %v366
        %v702 = vunpack.c.h.b16 %v366
        %v703 = vunpack.c.l.b16 %v367
        %v704 = vunpack.c.h.b16 %v367
        %v705 = vunpack.c.l.b16 %v368
        %v706 = vunpack.c.h.b16 %v368
        %v707 = vunpack.c.l.b16 %v369
        %v708 = vunpack.c.h.b16 %v369
        %v709 = vunpack.c.l.b16 %v370
        %v710 = vunpack.c.h.b16 %v370
        %v711 = vunpack.c.l.b16 %v371
        %v712 = vunpack.c.h.b16 %v371
        %v713 = vunpack.c.l.b16 %v372
        %v714 = vunpack.c.h.b16 %v372
        %v715 = vunpack.c.l.b16 %v373
        %v716 = vunpack.c.h.b16 %v373
        %v717 = vunpack.c.l.b16 %v374
        %v718 = vunpack.c.h.b16 %v374
        %v719 = vunpack.c.l.b16 %v375
        %v720 = vunpack.c.h.b16 %v375
        %v721 = vunpack.c.l.b16 %v376
        %v722 = vunpack.c.h.b16 %v376
        %v723 = vunpack.c.l.b16 %v377
        %v724 = vunpack.c.h.b16 %v377
        %v725 = vunpack.c.l.b16 %v378
        %v726 = vunpack.c.h.b16 %v378
        %v727 = vunpack.c.l.b16 %v379
        %v728 = vunpack.c.h.b16 %v379
        %v729 = vunpack.c.l.b16 %v380
        %v730 = vunpack.c.h.b16 %v380
        %v731 = vunpack.c.l.b16 %v381
        %v732 = vunpack.c.h.b16 %v381
        %v733 = vunpack.c.l.b16 %v382
        %v734 = vunpack.c.h.b16 %v382
        %v735 = vunpack.c.l.b16 %v383
        %v736 = vunpack.c.h.b16 %v383
        %v737 = vunpack.c.l.b16 %v384
        %v738 = vunpack.c.h.b16 %v384
        %v739 = vunpack.c.l.b16 %v385
        %v740 = vunpack.c.h.b16 %v385
        %v741 = vunpack.c.l.b16 %v386
        %v742 = vunpack.c.h.b16 %v386
        %v743 = vunpack.c.l.b16 %v387
        %v744 = vunpack.c.h.b16 %v387
        %v745 = vunpack.c.l.b16 %v388
        %v746 = vunpack.c.h.b16 %v388
        %v747 = vunpack.c.l.b16 %v389
        %v748 = vunpack.c.h.b16 %v389
        %v749 = vunpack.c.l.b16 %v390
        %v750 = vunpack.c.h.b16 %v390
        %v751 = vunpack.c.l.b16 %v391
        %v752 = vunpack.c.h.b16 %v391
        %v753 = vunpack.c.l.b16 %v392
        %v754 = vunpack.c.h.b16 %v392
        %v755 = vunpack.c.l.b16 %v393
        %v756 = vunpack.c.h.b16 %v393
        %v757 = vunpack.c.l.b16 %v394
        %v758 = vunpack.c.h.b16 %v394
        %v759 = vunpack.c.l.b16 %v395
        %v760 = vunpack.c.h.b16 %v395
        %v761 = vunpack.c.l.b16 %v396
        %v762 = vunpack.c.h.b16 %v396
        %v763 = vunpack.c.l.b16 %v397
        %v764 = vunpack.c.h.b16 %v397
        %v765 = vunpack.c.l.b16 %v398
        %v766 = vunpack.c.h.b16 %v398
        %v767 = vunpack.c.l.b16 %v399
        %v768 = vunpack.c.h.b16 %v399
        %v769 = vunpack.c.l.b16 %v400
        %v770 = vunpack.c.h.b16 %v400
        %v771 = vunpack.c.l.b16 %v401
        %v772 = vunpack.c.h.b16 %v401
        %v773 = vunpack.c.l.b16 %v402
        %v774 = vunpack.c.h.b16 %v402
        %v775 = vunpack.c.l.b16 %v403
        %v776 = vunpack.c.h.b16 %v403
        %v777 = vunpack.c.l.b16 %v404
        %v778 = vunpack.c.h.b16 %v404
        %v779 = vunpack.c.l.b16 %v405
        %v780 = vunpack.c.h.b16 %v405
        %v781 = vunpack.c.l.b16 %v406
        %v782 = vunpack.c.h.b16 %v406
        %v783 = vunpack.c.l.b16 %v407
        %v784 = vunpack.c.h.b16 %v407
        %v785 = vunpack.c.l.b16 %v408
        %v786 = vunpack.c.h.b16 %v408
        %v787 = vunpack.c.l.b16 %v409
        %v788 = vunpack.c.h.b16 %v409
        %v789 = vunpack.c.l.b16 %v410
        %v790 = vunpack.c.h.b16 %v410
        %v791 = vunpack.c.l.b16 %v411
        %v792 = vunpack.c.h.b16 %v411
        %v793 = vunpack.c.l.b16 %v412
        %v794 = vunpack.c.h.b16 %v412
        %v795 = vunpack.c.l.b16 %v413
        %v796 = vunpack.c.h.b16 %v413
        %v797 = vunpack.c.l.b16 %v414
        %v798 = vunpack.c.h.b16 %v414
        %v799 = vpack.c.b16 %v551, %v543
        %v800 = vpack.c.b16 %v552, %v544
        %v801 = vpack.c.b16 %v553, %v545
        %v802 = vpack.c.b16 %v554, %v546
        %v803 = vpack.c.b16 %v555, %v547
        %v804 = vpack.c.b16 %v556, %v548
        %v805 = vpack.c.b16 %v557, %v549
        %v806 = vpack.c.b16 %v558, %v550
        %v807 = vpack.c.b16 %v567, %v559
        %v808 = vpack.c.b16 %v568, %v560
        %v809 = vpack.c.b16 %v569, %v561
        %v810 = vpack.c.b16 %v570, %v562
        %v811 = vpack.c.b16 %v571, %v563
        %v812 = vpack.c.b16 %v572, %v564
        %v813 = vpack.c.b16 %v573, %v565
        %v814 = vpack.c.b16 %v574, %v566
        %v815 = vpack.c.b16 %v583, %v575
        %v816 = vpack.c.b16 %v584, %v576
        %v817 = vpack.c.b16 %v585, %v577
        %v818 = vpack.c.b16 %v586, %v578
        %v819 = vpack.c.b16 %v587, %v579
        %v820 = vpack.c.b16 %v588, %v580
        %v821 = vpack.c.b16 %v589, %v581
        %v822 = vpack.c.b16 %v590, %v582
        %v823 = vpack.c.b16 %v599, %v591
        %v824 = vpack.c.b16 %v600, %v592
        %v825 = vpack.c.b16 %v601, %v593
        %v826 = vpack.c.b16 %v602, %v594
        %v827 = vpack.c.b16 %v603, %v595
        %v828 = vpack.c.b16 %v604, %v596
        %v829 = vpack.c.b16 %v605, %v597
        %v830 = vpack.c.b16 %v606, %v598
        %v831 = vpack.c.b16 %v615, %v607
        %v832 = vpack.c.b16 %v616, %v608
        %v833 = vpack.c.b16 %v617, %v609
        %v834 = vpack.c.b16 %v618, %v610
        %v835 = vpack.c.b16 %v619, %v611
        %v836 = vpack.c.b16 %v620, %v612
        %v837 = vpack.c.b16 %v621, %v613
        %v838 = vpack.c.b16 %v622, %v614
        %v839 = vpack.c.b16 %v631, %v623
        %v840 = vpack.c.b16 %v632, %v624
        %v841 = vpack.c.b16 %v633, %v625
        %v842 = vpack.c.b16 %v634, %v626
        %v843 = vpack.c.b16 %v635, %v627
        %v844 = vpack.c.b16 %v636, %v628
        %v845 = vpack.c.b16 %v637, %v629
        %v846 = vpack.c.b16 %v638, %v630
        %v847 = vpack.c.b16 %v647, %v639
        %v848 = vpack.c.b16 %v648, %v640
        %v849 = vpack.c.b16 %v649, %v641
        %v850 = vpack.c.b16 %v650, %v642
        %v851 = vpack.c.b16 %v651, %v643
        %v852 = vpack.c.b16 %v652, %v644
        %v853 = vpack.c.b16 %v653, %v645
        %v854 = vpack.c.b16 %v654, %v646
        %v855 = vpack.c.b16 %v663, %v655
        %v856 = vpack.c.b16 %v664, %v656
        %v857 = vpack.c.b16 %v665, %v657
        %v858 = vpack.c.b16 %v666, %v658
        %v859 = vpack.c.b16 %v667, %v659
        %v860 = vpack.c.b16 %v668, %v660
        %v861 = vpack.c.b16 %v669, %v661
        %v862 = vpack.c.b16 %v670, %v662
        %v863 = vpack.c.b16 %v679, %v671
        %v864 = vpack.c.b16 %v680, %v672
        %v865 = vpack.c.b16 %v681, %v673
        %v866 = vpack.c.b16 %v682, %v674
        %v867 = vpack.c.b16 %v683, %v675
        %v868 = vpack.c.b16 %v684, %v676
        %v869 = vpack.c.b16 %v685, %v677
        %v870 = vpack.c.b16 %v686, %v678
        %v871 = vpack.c.b16 %v695, %v687
        %v872 = vpack.c.b16 %v696, %v688
        %v873 = vpack.c.b16 %v697, %v689
        %v874 = vpack.c.b16 %v698, %v690
        %v875 = vpack.c.b16 %v699, %v691
        %v876 = vpack.c.b16 %v700, %v692
        %v877 = vpack.c.b16 %v701, %v693
        %v878 = vpack.c.b16 %v702, %v694
        %v879 = vpack.c.b16 %v711, %v703
        %v880 = vpack.c.b16 %v712, %v704
        %v881 = vpack.c.b16 %v713, %v705
        %v882 = vpack.c.b16 %v714, %v706
        %v883 = vpack.c.b16 %v715, %v707
        %v884 = vpack.c.b16 %v716, %v708
        %v885 = vpack.c.b16 %v717, %v709
        %v886 = vpack.c.b16 %v718, %v710
        %v887 = vpack.c.b16 %v727, %v719
        %v888 = vpack.c.b16 %v728, %v720
        %v889 = vpack.c.b16 %v729, %v721
        %v890 = vpack.c.b16 %v730, %v722
        %v891 = vpack.c.b16 %v731, %v723
        %v892 = vpack.c.b16 %v732, %v724
        %v893 = vpack.c.b16 %v733, %v725
        %v894 = vpack.c.b16 %v734, %v726
        %v895 = vpack.c.b16 %v743, %v735
        %v896 = vpack.c.b16 %v744, %v736
        %v897 = vpack.c.b16 %v745, %v737
        %v898 = vpack.c.b16 %v746, %v738
        %v899 = vpack.c.b16 %v747, %v739
        %v900 = vpack.c.b16 %v748, %v740
        %v901 = vpack.c.b16 %v749, %v741
        %v902 = vpack.c.b16 %v750, %v742
        %v903 = vpack.c.b16 %v759, %v751
        %v904 = vpack.c.b16 %v760, %v752
        %v905 = vpack.c.b16 %v761, %v753
        %v906 = vpack.c.b16 %v762, %v754
        %v907 = vpack.c.b16 %v763, %v755
        %v908 = vpack.c.b16 %v764, %v756
        %v909 = vpack.c.b16 %v765, %v757
        %v910 = vpack.c.b16 %v766, %v758
        %v911 = vpack.c.b16 %v775, %v767
        %v912 = vpack.c.b16 %v776, %v768
        %v913 = vpack.c.b16 %v777, %v769
        %v914 = vpack.c.b16 %v778, %v770
        %v915 = vpack.c.b16 %v779, %v771
        %v916 = vpack.c.b16 %v780, %v772
        %v917 = vpack.c.b16 %v781, %v773
        %v918 = vpack.c.b16 %v782, %v774
        %v919 = vpack.c.b16 %v791, %v783
        %v920 = vpack.c.b16 %v792, %v784
        %v921 = vpack.c.b16 %v793, %v785
        %v922 = vpack.c.b16 %v794, %v786
        %v923 = vpack.c.b16 %v795, %v787
        %v924 = vpack.c.b16 %v796, %v788
        %v925 = vpack.c.b16 %v797, %v789
        %v926 = vpack.c.b16 %v798, %v790
        %1055 = vmatprep.subr.bf16.mxu0 %v800
        %1056 = vmatpush1.bf16.msra.mxu0 %v799
        %1057 = vmatprep.subr.bf16.mxu0 %v808
        %1058 = vmatpush1.bf16.msra.mxu0 %v807
        %1059 = vmatprep.subr.bf16.mxu0 %v816
        %1060 = vmatpush1.bf16.msra.mxu0 %v815
        %1061 = vmatprep.subr.bf16.mxu0 %v824
        %1062 = vmatpush1.bf16.msra.mxu0 %v823
        %1063 = vmatprep.subr.bf16.mxu0 %v832
        %1064 = vmatpush1.bf16.msra.mxu0 %v831
        %1065 = vmatprep.subr.bf16.mxu0 %v840
        %1066 = vmatpush1.bf16.msra.mxu0 %v839
        %1067 = vmatprep.subr.bf16.mxu0 %v848
        %1068 = vmatpush1.bf16.msra.mxu0 %v847
        %1069 = vmatprep.subr.bf16.mxu0 %v856
        %1070 = vmatpush1.bf16.msra.mxu0 %v855
        %1071 = vmatprep.subr.bf16.mxu0 %v864
        %1072 = vmatpush1.bf16.msra.mxu0 %v863
        %1073 = vmatprep.subr.bf16.mxu0 %v872
        %1074 = vmatpush1.bf16.msra.mxu0 %v871
        %1075 = vmatprep.subr.bf16.mxu0 %v880
        %1076 = vmatpush1.bf16.msra.mxu0 %v879
        %1077 = vmatprep.subr.bf16.mxu0 %v888
        %1078 = vmatpush1.bf16.msra.mxu0 %v887
        %1079 = vmatprep.subr.bf16.mxu0 %v896
        %1080 = vmatpush1.bf16.msra.mxu0 %v895
        %1081 = vmatprep.subr.bf16.mxu0 %v904
        %1082 = vmatpush1.bf16.msra.mxu0 %v903
        %1083 = vmatprep.subr.bf16.mxu0 %v912
        %1084 = vmatpush1.bf16.msra.mxu0 %v911
        %1085 = vmatprep.subr.bf16.mxu0 %v920
        %1086 = vmatpush1.bf16.msra.mxu0 %v919
        %1087 = vmatprep.mubr.bf16.mxu0 %v286
        %1088 = vmatmul.mubr.bf16.gmra.mrb[0].mxu0 %v285
        %v1089 = vpop.f32.mrb[0].mxu0
        %v1090 = vadd.f32 0.0, %v1089
        %v1091 = vpop.f32.mrb[0].mxu0
        %v1092 = vadd.f32 0.0, %v1091
        %v1093 = vpop.f32.mrb[0].mxu0
        %v1094 = vpop.f32.mrb[0].mxu0
        %1095 = vdwg.mxu0
        %1096 = vmatprep.subr.bf16.mxu0 %v802
        %1097 = vmatpush1.bf16.msra.mxu0 %v801
        %1098 = vmatprep.subr.bf16.mxu0 %v810
        %1099 = vmatpush1.bf16.msra.mxu0 %v809
        %1100 = vmatprep.subr.bf16.mxu0 %v818
        %1101 = vmatpush1.bf16.msra.mxu0 %v817
        %1102 = vmatprep.subr.bf16.mxu0 %v826
        %1103 = vmatpush1.bf16.msra.mxu0 %v825
        %1104 = vmatprep.subr.bf16.mxu0 %v834
        %1105 = vmatpush1.bf16.msra.mxu0 %v833
        %1106 = vmatprep.subr.bf16.mxu0 %v842
        %1107 = vmatpush1.bf16.msra.mxu0 %v841
        %1108 = vmatprep.subr.bf16.mxu0 %v850
        %1109 = vmatpush1.bf16.msra.mxu0 %v849
        %1110 = vmatprep.subr.bf16.mxu0 %v858
        %1111 = vmatpush1.bf16.msra.mxu0 %v857
        %1112 = vmatprep.subr.bf16.mxu0 %v866
        %1113 = vmatpush1.bf16.msra.mxu0 %v865
        %1114 = vmatprep.subr.bf16.mxu0 %v874
        %1115 = vmatpush1.bf16.msra.mxu0 %v873
        %1116 = vmatprep.subr.bf16.mxu0 %v882
        %1117 = vmatpush1.bf16.msra.mxu0 %v881
        %1118 = vmatprep.subr.bf16.mxu0 %v890
        %1119 = vmatpush1.bf16.msra.mxu0 %v889
        %1120 = vmatprep.subr.bf16.mxu0 %v898
        %1121 = vmatpush1.bf16.msra.mxu0 %v897
        %1122 = vmatprep.subr.bf16.mxu0 %v906
        %1123 = vmatpush1.bf16.msra.mxu0 %v905
        %1124 = vmatprep.subr.bf16.mxu0 %v914
        %1125 = vmatpush1.bf16.msra.mxu0 %v913
        %1126 = vmatprep.subr.bf16.mxu0 %v922
        %1127 = vmatpush1.bf16.msra.mxu0 %v921
        %1128 = vmatprep.mubr.bf16.mxu0 %v286
        %1129 = vmatmul.mubr.bf16.gmra.mrb[0].mxu0 %v285
        %v1130 = vpop.f32.mrb[0].mxu0
        %v1131 = vadd.f32 0.0, %v1130
        %v1132 = vpop.f32.mrb[0].mxu0
        %v1133 = vadd.f32 0.0, %v1132
        %v1134 = vpop.f32.mrb[0].mxu0
        %v1135 = vpop.f32.mrb[0].mxu0
        %1136 = vdwg.mxu0
        %1137 = vmatprep.subr.bf16.mxu0 %v804
        %1138 = vmatpush1.bf16.msra.mxu0 %v803
        %1139 = vmatprep.subr.bf16.mxu0 %v812
        %1140 = vmatpush1.bf16.msra.mxu0 %v811
        %1141 = vmatprep.subr.bf16.mxu0 %v820
        %1142 = vmatpush1.bf16.msra.mxu0 %v819
        %1143 = vmatprep.subr.bf16.mxu0 %v828
        %1144 = vmatpush1.bf16.msra.mxu0 %v827
        %1145 = vmatprep.subr.bf16.mxu0 %v836
        %1146 = vmatpush1.bf16.msra.mxu0 %v835
        %1147 = vmatprep.subr.bf16.mxu0 %v844
        %1148 = vmatpush1.bf16.msra.mxu0 %v843
        %1149 = vmatprep.subr.bf16.mxu0 %v852
        %1150 = vmatpush1.bf16.msra.mxu0 %v851
        %1151 = vmatprep.subr.bf16.mxu0 %v860
        %1152 = vmatpush1.bf16.msra.mxu0 %v859
        %1153 = vmatprep.subr.bf16.mxu0 %v868
        %1154 = vmatpush1.bf16.msra.mxu0 %v867
        %1155 = vmatprep.subr.bf16.mxu0 %v876
        %1156 = vmatpush1.bf16.msra.mxu0 %v875
        %1157 = vmatprep.subr.bf16.mxu0 %v884
        %1158 = vmatpush1.bf16.msra.mxu0 %v883
        %1159 = vmatprep.subr.bf16.mxu0 %v892
        %1160 = vmatpush1.bf16.msra.mxu0 %v891
        %1161 = vmatprep.subr.bf16.mxu0 %v900
        %1162 = vmatpush1.bf16.msra.mxu0 %v899
        %1163 = vmatprep.subr.bf16.mxu0 %v908
        %1164 = vmatpush1.bf16.msra.mxu0 %v907
        %1165 = vmatprep.subr.bf16.mxu0 %v916
        %1166 = vmatpush1.bf16.msra.mxu0 %v915
        %1167 = vmatprep.subr.bf16.mxu0 %v924
        %1168 = vmatpush1.bf16.msra.mxu0 %v923
        %1169 = vmatprep.mubr.bf16.mxu0 %v286
        %1170 = vmatmul.mubr.bf16.gmra.mrb[0].mxu0 %v285
        %v1171 = vpop.f32.mrb[0].mxu0
        %v1172 = vadd.f32 0.0, %v1171
        %v1173 = vpop.f32.mrb[0].mxu0
        %v1174 = vadd.f32 0.0, %v1173
        %v1175 = vpop.f32.mrb[0].mxu0
        %v1176 = vpop.f32.mrb[0].mxu0
        %1177 = vdwg.mxu0
        %1178 = vmatprep.subr.bf16.mxu0 %v806
        %1179 = vmatpush1.bf16.msra.mxu0 %v805
        %1180 = vmatprep.subr.bf16.mxu0 %v814
        %1181 = vmatpush1.bf16.msra.mxu0 %v813
        %1182 = vmatprep.subr.bf16.mxu0 %v822
        %1183 = vmatpush1.bf16.msra.mxu0 %v821
        %1184 = vmatprep.subr.bf16.mxu0 %v830
        %1185 = vmatpush1.bf16.msra.mxu0 %v829
        %1186 = vmatprep.subr.bf16.mxu0 %v838
        %1187 = vmatpush1.bf16.msra.mxu0 %v837
        %1188 = vmatprep.subr.bf16.mxu0 %v846
        %1189 = vmatpush1.bf16.msra.mxu0 %v845
        %1190 = vmatprep.subr.bf16.mxu0 %v854
        %1191 = vmatpush1.bf16.msra.mxu0 %v853
        %1192 = vmatprep.subr.bf16.mxu0 %v862
        %1193 = vmatpush1.bf16.msra.mxu0 %v861
        %1194 = vmatprep.subr.bf16.mxu0 %v870
        %1195 = vmatpush1.bf16.msra.mxu0 %v869
        %1196 = vmatprep.subr.bf16.mxu0 %v878
        %1197 = vmatpush1.bf16.msra.mxu0 %v877
        %1198 = vmatprep.subr.bf16.mxu0 %v886
        %1199 = vmatpush1.bf16.msra.mxu0 %v885
        %1200 = vmatprep.subr.bf16.mxu0 %v894
        %1201 = vmatpush1.bf16.msra.mxu0 %v893
        %1202 = vmatprep.subr.bf16.mxu0 %v902
        %1203 = vmatpush1.bf16.msra.mxu0 %v901
        %1204 = vmatprep.subr.bf16.mxu0 %v910
        %1205 = vmatpush1.bf16.msra.mxu0 %v909
        %1206 = vmatprep.subr.bf16.mxu0 %v918
        %1207 = vmatpush1.bf16.msra.mxu0 %v917
        %1208 = vmatprep.subr.bf16.mxu0 %v926
        %1209 = vmatpush1.bf16.msra.mxu0 %v925
        %1210 = vmatprep.mubr.bf16.mxu0 %v286
        %1211 = vmatmul.mubr.bf16.gmra.mrb[0].mxu0 %v285
        %v1212 = vpop.f32.mrb[0].mxu0
        %v1213 = vadd.f32 0.0, %v1212
        %v1214 = vpop.f32.mrb[0].mxu0
        %v1215 = vadd.f32 0.0, %v1214
        %v1216 = vpop.f32.mrb[0].mxu0
        %v1217 = vpop.f32.mrb[0].mxu0
        %1218 = vdwg.mxu0
        %v1219 = vadd.f32 %v277, %v1090
        %v1220 = vadd.f32 %v278, %v1092
        %v1221 = vadd.f32 %v279, %v1131
        %v1222 = vadd.f32 %v280, %v1133
        %v1223 = vadd.f32 %v281, %v1172
        %v1224 = vadd.f32 %v282, %v1174
        %v1225 = vadd.f32 %v283, %v1213
        %v1226 = vadd.f32 %v284, %v1215
        %1227 = vst [vmem:[%s250] sm:$0xff] %v1219
        %1228 = vst [vmem:[%s250 + $0x8] sm:$0xff] %v1220
        %1229 = vst [vmem:[%s250 + $0x10] sm:$0xff] %v1221
        %1230 = vst [vmem:[%s250 + $0x18] sm:$0xff] %v1222
        %1231 = vst [vmem:[%s250 + $0x20] sm:$0xff] %v1223
        %1232 = vst [vmem:[%s250 + $0x28] sm:$0xff] %v1224
        %1233 = vst [vmem:[%s250 + $0x30] sm:$0xff] %v1225
        %1234 = vst [vmem:[%s250 + $0x38] sm:$0xff] %v1226
        // Predicated region
        $region45: #{encoder_forward.2} parent=31 // pred_check
          %p1235 = pneg %p252
        $region46: #{encoder_forward.2} parent=31 // pred_check_branch
          %1237 = sbr.rel (%p1235) target = $region48
        $region47: #{encoder_forward.2} parent=31 // pred_region
          %v1238 = vld [vmem:[%s250] sm:$0xff]
          %v1239 = vld [vmem:[%s250 + $0x8] sm:$0xff]
          %v1240 = vld [vmem:[%s250 + $0x10] sm:$0xff]
          %v1241 = vld [vmem:[%s250 + $0x18] sm:$0xff]
          %v1242 = vld [vmem:[%s250 + $0x20] sm:$0xff]
          %v1243 = vld [vmem:[%s250 + $0x28] sm:$0xff]
          %v1244 = vld [vmem:[%s250 + $0x30] sm:$0xff]
          %v1245 = vld [vmem:[%s250 + $0x38] sm:$0xff]
          %v1246 = vld [vmem:[%s244] sm:$0xff]
          %v1248 = vlaneseq
          %v1249 = vshrl.u32 %v1248, 7
          %v1250 = vsub.s32 0, %v1249
          %v1251 = vrot.slane %v1246, %v1250
          %v1252 = vlaneseq
          %v1253 = vshrl.u32 %v1252, 7
          %v1254 = vsub.s32 1, %v1253
          %v1255 = vrot.slane %v1246, %v1254
          %v1256 = vlaneseq
          %v1257 = vshrl.u32 %v1256, 7
          %v1258 = vsub.s32 2, %v1257
          %v1259 = vrot.slane %v1246, %v1258
          %v1260 = vlaneseq
          %v1261 = vshrl.u32 %v1260, 7
          %v1262 = vsub.s32 3, %v1261
          %v1263 = vrot.slane %v1246, %v1262
          %v1264 = vlaneseq
          %v1265 = vshrl.u32 %v1264, 7
          %v1266 = vsub.s32 4, %v1265
          %v1267 = vrot.slane %v1246, %v1266
          %v1268 = vlaneseq
          %v1269 = vshrl.u32 %v1268, 7
          %v1270 = vsub.s32 5, %v1269
          %v1271 = vrot.slane %v1246, %v1270
          %v1272 = vlaneseq
          %v1273 = vshrl.u32 %v1272, 7
          %v1274 = vsub.s32 6, %v1273
          %v1275 = vrot.slane %v1246, %v1274
          %v1276 = vlaneseq
          %v1277 = vshrl.u32 %v1276, 7
          %v1278 = vsub.s32 7, %v1277
          %v1279 = vrot.slane %v1246, %v1278
          %v1288 = vadd.f32 %v1238, %v1251
          %v1289 = vadd.f32 %v1239, %v1255
          %v1290 = vadd.f32 %v1240, %v1259
          %v1291 = vadd.f32 %v1241, %v1263
          %v1292 = vadd.f32 %v1242, %v1267
          %v1293 = vadd.f32 %v1243, %v1271
          %v1294 = vadd.f32 %v1244, %v1275
          %v1295 = vadd.f32 %v1245, %v1279
          %v1296 = vmax.f32 %v1288, 0.0
          %v1297 = vmax.f32 %v1289, 0.0
          %v1298 = vmax.f32 %v1290, 0.0
          %v1299 = vmax.f32 %v1291, 0.0
          %v1300 = vmax.f32 %v1292, 0.0
          %v1301 = vmax.f32 %v1293, 0.0
          %v1302 = vmax.f32 %v1294, 0.0
          %v1303 = vmax.f32 %v1295, 0.0
          %1304 = vst [vmem:[%s250] sm:$0xff] %v1296
          %1305 = vst [vmem:[%s250 + $0x8] sm:$0xff] %v1297
          %1306 = vst [vmem:[%s250 + $0x10] sm:$0xff] %v1298
          %1307 = vst [vmem:[%s250 + $0x18] sm:$0xff] %v1299
          %1308 = vst [vmem:[%s250 + $0x20] sm:$0xff] %v1300
          %1309 = vst [vmem:[%s250 + $0x28] sm:$0xff] %v1301
          %1310 = vst [vmem:[%s250 + $0x30] sm:$0xff] %v1302
          %1311 = vst [vmem:[%s250 + $0x38] sm:$0xff] %v1303
        $region48: #{encoder_forward.2} parent=31 // pred_fallthru
          _
        %s1312 = smul.u32 8, %s22
        %p1313 = scmp.lt.s32.totalorder %s1312, 15
        %s1314 = scalar_select %p1313, %s1312, 15
        %s1315 = smul.addr %s1314, 8
        %s1316 = scalar_lea.vmem %s3, %s1315
        // Predicated region
        $region49: #{encoder_forward.2} parent=31 // pred_check
          %p1317 = pneg %p128
        $region50: #{encoder_forward.2} parent=31 // pred_check_branch
          %1319 = sbr.rel (%p1317) target = $region52
        $region51: #{encoder_forward.2} parent=31 // pred_region
          %s1320 = smul.u32 8, %s22
        $region52: #{encoder_forward.2} parent=31 // pred_fallthru
          _
      $region32: #{encoder_forward.2} parent=5 // pred_fallthru
        _
      %p1321 = scmp.le.s32.totalorder 2, %s13
      // Predicated region
      $region53: #{encoder_forward.2} parent=5 // pred_check
        %p1322 = pneg %p1321
      $region54: #{encoder_forward.2} parent=5 // pred_check_branch
        %1324 = sbr.rel (%p1322) target = $region56
      $region55: #{encoder_forward.2} parent=5 // pred_region
        %s1325 = ssub.s32 %s13, 2
        // Predicated region
        $region57: #{encoder_forward.2} parent=55 // pred_check
          %p1326 = pneg %p134
        $region58: #{encoder_forward.2} parent=55 // pred_check_branch
          %1328 = sbr.rel (%p1326) target = $region60
        $region59: #{encoder_forward.2} parent=55 // pred_region
          %s1329 = smul.u32 8, %s24
          %p1330 = scmp.lt.s32.totalorder %s1329, 15
          %s1331 = scalar_select %p1330, %s1329, 15
          %s1332 = smul.addr %s1331, 8
          %s1333 = scalar_lea.vmem %s3, %s1332
        $region60: #{encoder_forward.2} parent=55 // pred_fallthru
          _
      $region56: #{encoder_forward.2} parent=5 // pred_fallthru
        _
    $region6: #{encoder_forward.2} parent=1 // loop_footer
      %s17 = sadd.s32 1, %s13
    $region7: #{encoder_forward.2} parent=1 // loop_footer_branch
      %12 = sbr.rel target = $region3
    $region8: #{encoder_forward.2} parent=1 // loop_exit
      _
    %1334 = vsyncpa [#allocation3], 1
    %s1335 = scalar_lea.sflag [#allocation3], 1
    %1336 = vsyncpa %s1335, 1
    %1337 = vsyncpa [#allocation5], 1
    %s1338 = scalar_lea.sflag [#allocation5], 1
    %1339 = vsyncpa %s1338, 1

// kernel: encoder_forward.3
$region0: #{encoder_forward.3}
  #allocation0 [shape = 'u32[]', space=smem, size = 0x4, offset = 0x4, fixed_abs, tag = 'smem constant byte address 0x4 - core index']
  #allocation1 [shape = 'u32[144,128]{1,0:T(1,128)}', space=vmem, size = 0x12000, scoped, tag = 'internal scratch']
  %s0 = inlined_call_operand.vmem [shape: f32[8,2048], index: 0, kind: input, shape index: {}]
  %s1 = inlined_call_operand.hbm [shape: bf16[2048,1024], index: 1, kind: input, shape index: {}]
  %s2 = inlined_call_operand.vmem [shape: f32[1,1024], index: 2, kind: input, shape index: {}]
  %s3 = inlined_call_operand.hbm [shape: bf16[1024,512], index: 3, kind: input, shape index: {}]
  %s4 = inlined_call_operand.vmem [shape: f32[1,512], index: 4, kind: input, shape index: {}]
  %s5 = inlined_call_operand.vmem [shape: bf16[512,32], index: 5, kind: input, shape index: {}]
  %s6 = inlined_call_operand.hbm [shape: f32[1,32], index: 6, kind: input, shape index: {}]
  %s7 = inlined_call_operand.hbm [shape: f32[8,32], index: 7, kind: output, shape index: {}]
  %s8 = sld [smem:[#allocation0]]
  $region50: #{encoder_forward.3} parent=0
    _
  %s10 = ssub.s32 1, %s8
  %s11 = scalar_select 0, %s10, %s8
  $region1: #{encoder_forward.3} parent=0
    #allocation2 [shape = 'u8[4194304]{0}', space=vmem, size = 0x400000, scoped, tag = 'input window, operand 1, single buffered']
    #allocation3 [shape = 's32[1]{0}', space=sflag, size = 0x4, scoped, tag = 'scoped memory for encoder_forward.3']
    #allocation4 [shape = 's32[1]{0}', space=sflag, size = 0x4, scoped, tag = 'scoped memory for encoder_forward.3']
    #allocation5 [shape = 'u8[1048576]{0}', space=vmem, size = 0x100000, scoped, tag = 'input window, operand 3, single buffered']
    #allocation6 [shape = 's32[1]{0}', space=sflag, size = 0x4, scoped, tag = 'scoped memory for encoder_forward.3']
    #allocation7 [shape = 'u8[512]{0}', space=vmem, size = 0x400, scoped, tag = 'input window, operand 6, single buffered']
    #allocation8 [shape = 'u8[4096]{0}', space=vmem, size = 0x1000, scoped, tag = 'output window, operand 0, single buffered']
    %12 = vsyncpa [#allocation3], 0
    %13 = vsyncpa [#allocation6], 0
    %14 = vsyncpa [#allocation4], 0
    // Predicated region
    $region2: #{encoder_forward.3} parent=1 // pred_check
      _
    $region3: #{encoder_forward.3} parent=1 // pred_check_branch
      %16 = sbr.rel (0) target = $region5
    $region4: #{encoder_forward.3} parent=1 // pred_region
      _
    $region5: #{encoder_forward.3} parent=1 // pred_fallthru
      _
    // Predicated region
    $region6: #{encoder_forward.3} parent=1 // pred_check
      _
    $region7: #{encoder_forward.3} parent=1 // pred_check_branch
      %18 = sbr.rel (0) target = $region9
    $region8: #{encoder_forward.3} parent=1 // pred_region
      %s20 = ssub.s32 131072, 131072
      %21 = vsyncadd [#allocation3], %s20
      %s22 = sshll.u32 [#allocation2], 4
      %s23 = int_to_ptr.vmem [resolvable:$true] %s22
      %28 = dma.hbm_to_vmem [thread:$0]  %s1, 131072, %s23, [#allocation3], 512, 512, 32
    $region9: #{encoder_forward.3} parent=1 // pred_fallthru
      _
    // Predicated region
    $region10: #{encoder_forward.3} parent=1 // pred_check
      _
    $region11: #{encoder_forward.3} parent=1 // pred_check_branch
      %30 = sbr.rel (0) target = $region13
    $region12: #{encoder_forward.3} parent=1 // pred_region
      _
    $region13: #{encoder_forward.3} parent=1 // pred_fallthru
      _
    // Predicated region
    $region14: #{encoder_forward.3} parent=1 // pred_check
      _
    $region15: #{encoder_forward.3} parent=1 // pred_check_branch
      %32 = sbr.rel (0) target = $region17
    $region16: #{encoder_forward.3} parent=1 // pred_region
      %s34 = ssub.s32 32768, 32768
      %35 = vsyncadd [#allocation6], %s34
      %s36 = sshll.u32 [#allocation5], 4
      %s37 = int_to_ptr.vmem [resolvable:$true] %s36
      %42 = dma.hbm_to_vmem [thread:$0]  %s3, 32768, %s37, [#allocation6], 256, 256, 16
    $region17: #{encoder_forward.3} parent=1 // pred_fallthru
      _
    // Predicated region
    $region18: #{encoder_forward.3} parent=1 // pred_check
      _
    $region19: #{encoder_forward.3} parent=1 // pred_check_branch
      %44 = sbr.rel (0) target = $region21
    $region20: #{encoder_forward.3} parent=1 // pred_region
      _
    $region21: #{encoder_forward.3} parent=1 // pred_fallthru
      _
    // Predicated region
    $region22: #{encoder_forward.3} parent=1 // pred_check
      _
    $region23: #{encoder_forward.3} parent=1 // pred_check_branch
      %46 = sbr.rel (0) target = $region25
    $region24: #{encoder_forward.3} parent=1 // pred_region
      _
    $region25: #{encoder_forward.3} parent=1 // pred_fallthru
      _
    // Predicated region
    $region26: #{encoder_forward.3} parent=1 // pred_check
      _
    $region27: #{encoder_forward.3} parent=1 // pred_check_branch
      %48 = sbr.rel (0) target = $region29
    $region28: #{encoder_forward.3} parent=1 // pred_region
      %s50 = ssub.s32 16, 16
      %51 = vsyncadd [#allocation6], %s50
      %s53 = sshll.u32 [#allocation7], 4
      %s54 = int_to_ptr.vmem [resolvable:$true] %s53
      %56 = dma.hbm_to_vmem [thread:$0]  %s6, 16, %s54, [#allocation6]
    $region29: #{encoder_forward.3} parent=1 // pred_fallthru
      _
    // Predicated region
    $region30: #{encoder_forward.3} parent=1 // pred_check
      _
    $region31: #{encoder_forward.3} parent=1 // pred_check_branch
      %58 = sbr.rel (0) target = $region33
    $region32: #{encoder_forward.3} parent=1 // pred_region
      %59 = dma.done [#allocation3], 131072
    $region33: #{encoder_forward.3} parent=1 // pred_fallthru
      _
    // Predicated region
    $region34: #{encoder_forward.3} parent=1 // pred_check
      _
    $region35: #{encoder_forward.3} parent=1 // pred_check_branch
      %61 = sbr.rel (0) target = $region37
    $region36: #{encoder_forward.3} parent=1 // pred_region
      %62 = dma.done [#allocation6], 32768
    $region37: #{encoder_forward.3} parent=1 // pred_fallthru
      _
    // Predicated region
    $region38: #{encoder_forward.3} parent=1 // pred_check
      _
    $region39: #{encoder_forward.3} parent=1 // pred_check_branch
      %64 = sbr.rel (0) target = $region41
    $region40: #{encoder_forward.3} parent=1 // pred_region
      %65 = dma.done [#allocation6], 16
    $region41: #{encoder_forward.3} parent=1 // pred_fallthru
      _
    %v67 = vld [vmem:[%s0] sm:$0xff]
    %v68 = vld [vmem:[%s0 + $0x8] sm:$0xff]
    %v69 = vld [vmem:[%s0 + $0x10] sm:$0xff]
    %v70 = vld [vmem:[%s0 + $0x18] sm:$0xff]
    %v71 = vld [vmem:[%s0 + $0x20] sm:$0xff]
    %v72 = vld [vmem:[%s0 + $0x28] sm:$0xff]
    %v73 = vld [vmem:[%s0 + $0x30] sm:$0xff]
    %v74 = vld [vmem:[%s0 + $0x38] sm:$0xff]
    %v75 = vld [vmem:[%s0 + $0x40] sm:$0xff]
    %v76 = vld [vmem:[%s0 + $0x48] sm:$0xff]
    %v77 = vld [vmem:[%s0 + $0x50] sm:$0xff]
    %v78 = vld [vmem:[%s0 + $0x58] sm:$0xff]
    %v79 = vld [vmem:[%s0 + $0x60] sm:$0xff]
    %v80 = vld [vmem:[%s0 + $0x68] sm:$0xff]
    %v81 = vld [vmem:[%s0 + $0x70] sm:$0xff]
    %v82 = vld [vmem:[%s0 + $0x78] sm:$0xff]
    %v83 = vpack.c.bf16 %v67, %v67
    %v84 = vpack.c.bf16 %v68, %v68
    %v85 = vpack.c.bf16 %v69, %v69
    %v86 = vpack.c.bf16 %v70, %v70
    %v87 = vpack.c.bf16 %v71, %v71
    %v88 = vpack.c.bf16 %v72, %v72
    %v89 = vpack.c.bf16 %v73, %v73
    %v90 = vpack.c.bf16 %v74, %v74
    %v91 = vpack.c.bf16 %v75, %v75
    %v92 = vpack.c.bf16 %v76, %v76
    %v93 = vpack.c.bf16 %v77, %v77
    %v94 = vpack.c.bf16 %v78, %v78
    %v95 = vpack.c.bf16 %v79, %v79
    %v96 = vpack.c.bf16 %v80, %v80
    %v97 = vpack.c.bf16 %v81, %v81
    %v98 = vpack.c.bf16 %v82, %v82
    %v99 = vld [vmem:[#allocation2] sm:$0xff]
    %v100 = vld [vmem:[#allocation2 + $0x8] sm:$0xff]
    %v101 = vld [vmem:[#allocation2 + $0x10] sm:$0xff]
    %v102 = vld [vmem:[#allocation2 + $0x18] sm:$0xff]
    %v103 = vld [vmem:[#allocation2 + $0x20] sm:$0xff]
    %v104 = vld [vmem:[#allocation2 + $0x28] sm:$0xff]
    %v105 = vld [vmem:[#allocation2 + $0x30] sm:$0xff]
    %v106 = vld [vmem:[#allocation2 + $0x38] sm:$0xff]
    %v107 = vld [vmem:[#allocation2 + $0x40] sm:$0xff]
    %v108 = vld [vmem:[#allocation2 + $0x48] sm:$0xff]
    %v109 = vld [vmem:[#allocation2 + $0x50] sm:$0xff]
    %v110 = vld [vmem:[#allocation2 + $0x58] sm:$0xff]
    %v111 = vld [vmem:[#allocation2 + $0x60] sm:$0xff]
    %v112 = vld [vmem:[#allocation2 + $0x68] sm:$0xff]
    %v113 = vld [vmem:[#allocation2 + $0x70] sm:$0xff]
    %v114 = vld [vmem:[#allocation2 + $0x78] sm:$0xff]
    %v115 = vld [vmem:[#allocation2 + $0x80] sm:$0xff]
    %v116 = vld [vmem:[#allocation2 + $0x88] sm:$0xff]
    %v117 = vld [vmem:[#allocation2 + $0x90] sm:$0xff]
    %v118 = vld [vmem:[#allocation2 + $0x98] sm:$0xff]
    %v119 = vld [vmem:[#allocation2 + $0xa0] sm:$0xff]
    %v120 = vld [vmem:[#allocation2 + $0xa8] sm:$0xff]
    %v121 = vld [vmem:[#allocation2 + $0xb0] sm:$0xff]
    %v122 = vld [vmem:[#allocation2 + $0xb8] sm:$0xff]
    %v123 = vld [vmem:[#allocation2 + $0xc0] sm:$0xff]
    %v124 = vld [vmem:[#allocation2 + $0xc8] sm:$0xff]
    %v125 = vld [vmem:[#allocation2 + $0xd0] sm:$0xff]
    %v126 = vld [vmem:[#allocation2 + $0xd8] sm:$0xff]
    %v127 = vld [vmem:[#allocation2 + $0xe0] sm:$0xff]
    %v128 = vld [vmem:[#allocation2 + $0xe8] sm:$0xff]
    %v129 = vld [vmem:[#allocation2 + $0xf0] sm:$0xff]
    %v130 = vld [vmem:[#allocation2 + $0xf8] sm:$0xff]
    %v131 = vld [vmem:[#allocation2 + $0x100] sm:$0xff]
    %v132 = vld [vmem:[#allocation2 + $0x108] sm:$0xff]
    %v133 = vld [vmem:[#allocation2 + $0x110] sm:$0xff]
    %v134 = vld [vmem:[#allocation2 + $0x118] sm:$0xff]
    %v135 = vld [vmem:[#allocation2 + $0x120] sm:$0xff]
    %v136 = vld [vmem:[#allocation2 + $0x128] sm:$0xff]
    %v137 = vld [vmem:[#allocation2 + $0x130] sm:$0xff]
    %v138 = vld [vmem:[#allocation2 + $0x138] sm:$0xff]
    %v139 = vld [vmem:[#allocation2 + $0x140] sm:$0xff]
    %v140 = vld [vmem:[#allocation2 + $0x148] sm:$0xff]
    %v141 = vld [vmem:[#allocation2 + $0x150] sm:$0xff]
    %v142 = vld [vmem:[#allocation2 + $0x158] sm:$0xff]
    %v143 = vld [vmem:[#allocation2 + $0x160] sm:$0xff]
    %v144 = vld [vmem:[#allocation2 + $0x168] sm:$0xff]
    %v145 = vld [vmem:[#allocation2 + $0x170] sm:$0xff]
    %v146 = vld [vmem:[#allocation2 + $0x178] sm:$0xff]
    %v147 = vld [vmem:[#allocation2 + $0x180] sm:$0xff]
    %v148 = vld [vmem:[#allocation2 + $0x188] sm:$0xff]
    %v149 = vld [vmem:[#allocation2 + $0x190] sm:$0xff]
    %v150 = vld [vmem:[#allocation2 + $0x198] sm:$0xff]
    %v151 = vld [vmem:[#allocation2 + $0x1a0] sm:$0xff]
    %v152 = vld [vmem:[#allocation2 + $0x1a8] sm:$0xff]
    %v153 = vld [vmem:[#allocation2 + $0x1b0] sm:$0xff]
    %v154 = vld [vmem:[#allocation2 + $0x1b8] sm:$0xff]
    %v155 = vld [vmem:[#allocation2 + $0x1c0] sm:$0xff]
    %v156 = vld [vmem:[#allocation2 + $0x1c8] sm:$0xff]
    %v157 = vld [vmem:[#allocation2 + $0x1d0] sm:$0xff]
    %v158 = vld [vmem:[#allocation2 + $0x1d8] sm:$0xff]
    %v159 = vld [vmem:[#allocation2 + $0x1e0] sm:$0xff]
    %v160 = vld [vmem:[#allocation2 + $0x1e8] sm:$0xff]
    %v161 = vld [vmem:[#allocation2 + $0x1f0] sm:$0xff]
    %v162 = vld [vmem:[#allocation2 + $0x1f8] sm:$0xff]
    %v163 = vld [vmem:[#allocation2 + $0x200] sm:$0xff]
    %v164 = vld [vmem:[#allocation2 + $0x208] sm:$0xff]
    %v165 = vld [vmem:[#allocation2 + $0x210] sm:$0xff]
    %v166 = vld [vmem:[#allocation2 + $0x218] sm:$0xff]
    %v167 = vld [vmem:[#allocation2 + $0x220] sm:$0xff]
    %v168 = vld [vmem:[#allocation2 + $0x228] sm:$0xff]
    %v169 = vld [vmem:[#allocation2 + $0x230] sm:$0xff]
    %v170 = vld [vmem:[#allocation2 + $0x238] sm:$0xff]
    %v171 = vld [vmem:[#allocation2 + $0x240] sm:$0xff]
    %v172 = vld [vmem:[#allocation2 + $0x248] sm:$0xff]
    %v173 = vld [vmem:[#allocation2 + $0x250] sm:$0xff]
    %v174 = vld [vmem:[#allocation2 + $0x258] sm:$0xff]
    %v175 = vld [vmem:[#allocation2 + $0x260] sm:$0xff]
    %v176 = vld [vmem:[#allocation2 + $0x268] sm:$0xff]
    %v177 = vld [vmem:[#allocation2 + $0x270] sm:$0xff]
    %v178 = vld [vmem:[#allocation2 + $0x278] sm:$0xff]
    %v179 = vld [vmem:[#allocation2 + $0x280] sm:$0xff]
    %v180 = vld [vmem:[#allocation2 + $0x288] sm:$0xff]
    %v181 = vld [vmem:[#allocation2 + $0x290] sm:$0xff]
    %v182 = vld [vmem:[#allocation2 + $0x298] sm:$0xff]
    %v183 = vld [vmem:[#allocation2 + $0x2a0] sm:$0xff]
    %v184 = vld [vmem:[#allocation2 + $0x2a8] sm:$0xff]
    %v185 = vld [vmem:[#allocation2 + $0x2b0] sm:$0xff]
    %v186 = vld [vmem:[#allocation2 + $0x2b8] sm:$0xff]
    %v187 = vld [vmem:[#allocation2 + $0x2c0] sm:$0xff]
    %v188 = vld [vmem:[#allocation2 + $0x2c8] sm:$0xff]
    %v189 = vld [vmem:[#allocation2 + $0x2d0] sm:$0xff]
    %v190 = vld [vmem:[#allocation2 + $0x2d8] sm:$0xff]
    %v191 = vld [vmem:[#allocation2 + $0x2e0] sm:$0xff]
    %v192 = vld [vmem:[#allocation2 + $0x2e8] sm:$0xff]
    %v193 = vld [vmem:[#allocation2 + $0x2f0] sm:$0xff]
    %v194 = vld [vmem:[#allocation2 + $0x2f8] sm:$0xff]
    %v195 = vld [vmem:[#allocation2 + $0x300] sm:$0xff]
    %v196 = vld [vmem:[#allocation2 + $0x308] sm:$0xff]
    %v197 = vld [vmem:[#allocation2 + $0x310] sm:$0xff]
    %v198 = vld [vmem:[#allocation2 + $0x318] sm:$0xff]
    %v199 = vld [vmem:[#allocation2 + $0x320] sm:$0xff]
    %v200 = vld [vmem:[#allocation2 + $0x328] sm:$0xff]
    %v201 = vld [vmem:[#allocation2 + $0x330] sm:$0xff]
    %v202 = vld [vmem:[#allocation2 + $0x338] sm:$0xff]
    %v203 = vld [vmem:[#allocation2 + $0x340] sm:$0xff]
    %v204 = vld [vmem:[#allocation2 + $0x348] sm:$0xff]
    %v205 = vld [vmem:[#allocation2 + $0x350] sm:$0xff]
    %v206 = vld [vmem:[#allocation2 + $0x358] sm:$0xff]
    %v207 = vld [vmem:[#allocation2 + $0x360] sm:$0xff]
    %v208 = vld [vmem:[#allocation2 + $0x368] sm:$0xff]
    %v209 = vld [vmem:[#allocation2 + $0x370] sm:$0xff]
    %v210 = vld [vmem:[#allocation2 + $0x378] sm:$0xff]
    %v211 = vld [vmem:[#allocation2 + $0x380] sm:$0xff]
    %v212 = vld [vmem:[#allocation2 + $0x388] sm:$0xff]
    %v213 = vld [vmem:[#allocation2 + $0x390] sm:$0xff]
    %v214 = vld [vmem:[#allocation2 + $0x398] sm:$0xff]
    %v215 = vld [vmem:[#allocation2 + $0x3a0] sm:$0xff]
    %v216 = vld [vmem:[#allocation2 + $0x3a8] sm:$0xff]
    %v217 = vld [vmem:[#allocation2 + $0x3b0] sm:$0xff]
    %v218 = vld [vmem:[#allocation2 + $0x3b8] sm:$0xff]
    %v219 = vld [vmem:[#allocation2 + $0x3c0] sm:$0xff]
    %v220 = vld [vmem:[#allocation2 + $0x3c8] sm:$0xff]
    %v221 = vld [vmem:[#allocation2 + $0x3d0] sm:$0xff]
    %v222 = vld [vmem:[#allocation2 + $0x3d8] sm:$0xff]
    %v223 = vld [vmem:[#allocation2 + $0x3e0] sm:$0xff]
    %v224 = vld [vmem:[#allocation2 + $0x3e8] sm:$0xff]
    %v225 = vld [vmem:[#allocation2 + $0x3f0] sm:$0xff]
    %v226 = vld [vmem:[#allocation2 + $0x3f8] sm:$0xff]
    %v227 = vld [vmem:[#allocation2 + $0x400] sm:$0xff]
    %v228 = vld [vmem:[#allocation2 + $0x408] sm:$0xff]
    %v229 = vld [vmem:[#allocation2 + $0x410] sm:$0xff]
    %v230 = vld [vmem:[#allocation2 + $0x418] sm:$0xff]
    %v231 = vld [vmem:[#allocation2 + $0x420] sm:$0xff]
    %v232 = vld [vmem:[#allocation2 + $0x428] sm:$0xff]
    %v233 = vld [vmem:[#allocation2 + $0x430] sm:$0xff]
    %v234 = vld [vmem:[#allocation2 + $0x438] sm:$0xff]
    %v235 = vld [vmem:[#allocation2 + $0x440] sm:$0xff]
    %v236 = vld [vmem:[#allocation2 + $0x448] sm:$0xff]
    %v237 = vld [vmem:[#allocation2 + $0x450] sm:$0xff]
    %v238 = vld [vmem:[#allocation2 + $0x458] sm:$0xff]
    %v239 = vld [vmem:[#allocation2 + $0x460] sm:$0xff]
    %v240 = vld [vmem:[#allocation2 + $0x468] sm:$0xff]
    %v241 = vld [vmem:[#allocation2 + $0x470] sm:$0xff]
    %v242 = vld [vmem:[#allocation2 + $0x478] sm:$0xff]
    %v243 = vld [vmem:[#allocation2 + $0x480] sm:$0xff]
    %v244 = vld [vmem:[#allocation2 + $0x488] sm:$0xff]
    %v245 = vld [vmem:[#allocation2 + $0x490] sm:$0xff]
    %v246 = vld [vmem:[#allocation2 + $0x498] sm:$0xff]
    %v247 = vld [vmem:[#allocation2 + $0x4a0] sm:$0xff]
    %v248 = vld [vmem:[#allocation2 + $0x4a8] sm:$0xff]
    %v249 = vld [vmem:[#allocation2 + $0x4b0] sm:$0xff]
    %v250 = vld [vmem:[#allocation2 + $0x4b8] sm:$0xff]
    %v251 = vld [vmem:[#allocation2 + $0x4c0] sm:$0xff]
    %v252 = vld [vmem:[#allocation2 + $0x4c8] sm:$0xff]
    %v253 = vld [vmem:[#allocation2 + $0x4d0] sm:$0xff]
    %v254 = vld [vmem:[#allocation2 + $0x4d8] sm:$0xff]
    %v255 = vld [vmem:[#allocation2 + $0x4e0] sm:$0xff]
    %v256 = vld [vmem:[#allocation2 + $0x4e8] sm:$0xff]
    %v257 = vld [vmem:[#allocation2 + $0x4f0] sm:$0xff]
    %v258 = vld [vmem:[#allocation2 + $0x4f8] sm:$0xff]
    %v259 = vld [vmem:[#allocation2 + $0x500] sm:$0xff]
    %v260 = vld [vmem:[#allocation2 + $0x508] sm:$0xff]
    %v261 = vld [vmem:[#allocation2 + $0x510] sm:$0xff]
    %v262 = vld [vmem:[#allocation2 + $0x518] sm:$0xff]
    %v263 = vld [vmem:[#allocation2 + $0x520] sm:$0xff]
    %v264 = vld [vmem:[#allocation2 + $0x528] sm:$0xff]
    %v265 = vld [vmem:[#allocation2 + $0x530] sm:$0xff]
    %v266 = vld [vmem:[#allocation2 + $0x538] sm:$0xff]
    %v267 = vld [vmem:[#allocation2 + $0x540] sm:$0xff]
    %v268 = vld [vmem:[#allocation2 + $0x548] sm:$0xff]
    %v269 = vld [vmem:[#allocation2 + $0x550] sm:$0xff]
    %v270 = vld [vmem:[#allocation2 + $0x558] sm:$0xff]
    %v271 = vld [vmem:[#allocation2 + $0x560] sm:$0xff]
    %v272 = vld [vmem:[#allocation2 + $0x568] sm:$0xff]
    %v273 = vld [vmem:[#allocation2 + $0x570] sm:$0xff]
    %v274 = vld [vmem:[#allocation2 + $0x578] sm:$0xff]
    %v275 = vld [vmem:[#allocation2 + $0x580] sm:$0xff]
    %v276 = vld [vmem:[#allocation2 + $0x588] sm:$0xff]
    %v277 = vld [vmem:[#allocation2 + $0x590] sm:$0xff]
    %v278 = vld [vmem:[#allocation2 + $0x598] sm:$0xff]
    %v279 = vld [vmem:[#allocation2 + $0x5a0] sm:$0xff]
    %v280 = vld [vmem:[#allocation2 + $0x5a8] sm:$0xff]
    %v281 = vld [vmem:[#allocation2 + $0x5b0] sm:$0xff]
    %v282 = vld [vmem:[#allocation2 + $0x5b8] sm:$0xff]
    %v283 = vld [vmem:[#allocation2 + $0x5c0] sm:$0xff]
    %v284 = vld [vmem:[#allocation2 + $0x5c8] sm:$0xff]
    %v285 = vld [vmem:[#allocation2 + $0x5d0] sm:$0xff]
    %v286 = vld [vmem:[#allocation2 + $0x5d8] sm:$0xff]
    %v287 = vld [vmem:[#allocation2 + $0x5e0] sm:$0xff]
    %v288 = vld [vmem:[#allocation2 + $0x5e8] sm:$0xff]
    %v289 = vld [vmem:[#allocation2 + $0x5f0] sm:$0xff]
    %v290 = vld [vmem:[#allocation2 + $0x5f8] sm:$0xff]
    %v291 = vld [vmem:[#allocation2 + $0x600] sm:$0xff]
    %v292 = vld [vmem:[#allocation2 + $0x608] sm:$0xff]
    %v293 = vld [vmem:[#allocation2 + $0x610] sm:$0xff]
    %v294 = vld [vmem:[#allocation2 + $0x618] sm:$0xff]
    %v295 = vld [vmem:[#allocation2 + $0x620] sm:$0xff]
    %v296 = vld [vmem:[#allocation2 + $0x628] sm:$0xff]
    %v297 = vld [vmem:[#allocation2 + $0x630] sm:$0xff]
    %v298 = vld [vmem:[#allocation2 + $0x638] sm:$0xff]
    %v299 = vld [vmem:[#allocation2 + $0x640] sm:$0xff]
    %v300 = vld [vmem:[#allocation2 + $0x648] sm:$0xff]
    %v301 = vld [vmem:[#allocation2 + $0x650] sm:$0xff]
    %v302 = vld [vmem:[#allocation2 + $0x658] sm:$0xff]
    %v303 = vld [vmem:[#allocation2 + $0x660] sm:$0xff]
    %v304 = vld [vmem:[#allocation2 + $0x668] sm:$0xff]
    %v305 = vld [vmem:[#allocation2 + $0x670] sm:$0xff]
    %v306 = vld [vmem:[#allocation2 + $0x678] sm:$0xff]
    %v307 = vld [vmem:[#allocation2 + $0x680] sm:$0xff]
    %v308 = vld [vmem:[#allocation2 + $0x688] sm:$0xff]
    %v309 = vld [vmem:[#allocation2 + $0x690] sm:$0xff]
    %v310 = vld [vmem:[#allocation2 + $0x698] sm:$0xff]
    %v311 = vld [vmem:[#allocation2 + $0x6a0] sm:$0xff]
    %v312 = vld [vmem:[#allocation2 + $0x6a8] sm:$0xff]
    %v313 = vld [vmem:[#allocation2 + $0x6b0] sm:$0xff]
    %v314 = vld [vmem:[#allocation2 + $0x6b8] sm:$0xff]
    %v315 = vld [vmem:[#allocation2 + $0x6c0] sm:$0xff]
    %v316 = vld [vmem:[#allocation2 + $0x6c8] sm:$0xff]
    %v317 = vld [vmem:[#allocation2 + $0x6d0] sm:$0xff]
    %v318 = vld [vmem:[#allocation2 + $0x6d8] sm:$0xff]
    %v319 = vld [vmem:[#allocation2 + $0x6e0] sm:$0xff]
    %v320 = vld [vmem:[#allocation2 + $0x6e8] sm:$0xff]
    %v321 = vld [vmem:[#allocation2 + $0x6f0] sm:$0xff]
    %v322 = vld [vmem:[#allocation2 + $0x6f8] sm:$0xff]
    %v323 = vld [vmem:[#allocation2 + $0x700] sm:$0xff]
    %v324 = vld [vmem:[#allocation2 + $0x708] sm:$0xff]
    %v325 = vld [vmem:[#allocation2 + $0x710] sm:$0xff]
    %v326 = vld [vmem:[#allocation2 + $0x718] sm:$0xff]
    %v327 = vld [vmem:[#allocation2 + $0x720] sm:$0xff]
    %v328 = vld [vmem:[#allocation2 + $0x728] sm:$0xff]
    %v329 = vld [vmem:[#allocation2 + $0x730] sm:$0xff]
    %v330 = vld [vmem:[#allocation2 + $0x738] sm:$0xff]
    %v331 = vld [vmem:[#allocation2 + $0x740] sm:$0xff]
    %v332 = vld [vmem:[#allocation2 + $0x748] sm:$0xff]
    %v333 = vld [vmem:[#allocation2 + $0x750] sm:$0xff]
    %v334 = vld [vmem:[#allocation2 + $0x758] sm:$0xff]
    %v335 = vld [vmem:[#allocation2 + $0x760] sm:$0xff]
    %v336 = vld [vmem:[#allocation2 + $0x768] sm:$0xff]
    %v337 = vld [vmem:[#allocation2 + $0x770] sm:$0xff]
    %v338 = vld [vmem:[#allocation2 + $0x778] sm:$0xff]
    %v339 = vld [vmem:[#allocation2 + $0x780] sm:$0xff]
    %v340 = vld [vmem:[#allocation2 + $0x788] sm:$0xff]
    %v341 = vld [vmem:[#allocation2 + $0x790] sm:$0xff]
    %v342 = vld [vmem:[#allocation2 + $0x798] sm:$0xff]
    %v343 = vld [vmem:[#allocation2 + $0x7a0] sm:$0xff]
    %v344 = vld [vmem:[#allocation2 + $0x7a8] sm:$0xff]
    %v345 = vld [vmem:[#allocation2 + $0x7b0] sm:$0xff]
    %v346 = vld [vmem:[#allocation2 + $0x7b8] sm:$0xff]
    %v347 = vld [vmem:[#allocation2 + $0x7c0] sm:$0xff]
    %v348 = vld [vmem:[#allocation2 + $0x7c8] sm:$0xff]
    %v349 = vld [vmem:[#allocation2 + $0x7d0] sm:$0xff]
    %v350 = vld [vmem:[#allocation2 + $0x7d8] sm:$0xff]
    %v351 = vld [vmem:[#allocation2 + $0x7e0] sm:$0xff]
    %v352 = vld [vmem:[#allocation2 + $0x7e8] sm:$0xff]
    %v353 = vld [vmem:[#allocation2 + $0x7f0] sm:$0xff]
    %v354 = vld [vmem:[#allocation2 + $0x7f8] sm:$0xff]
    %v355 = vld [vmem:[#allocation2 + $0x800] sm:$0xff]
    %v356 = vld [vmem:[#allocation2 + $0x808] sm:$0xff]
    %v357 = vld [vmem:[#allocation2 + $0x810] sm:$0xff]
    %v358 = vld [vmem:[#allocation2 + $0x818] sm:$0xff]
    %v359 = vld [vmem:[#allocation2 + $0x820] sm:$0xff]
    %v360 = vld [vmem:[#allocation2 + $0x828] sm:$0xff]
    %v361 = vld [vmem:[#allocation2 + $0x830] sm:$0xff]
    %v362 = vld [vmem:[#allocation2 + $0x838] sm:$0xff]
    %v363 = vld [vmem:[#allocation2 + $0x840] sm:$0xff]
    %v364 = vld [vmem:[#allocation2 + $0x848] sm:$0xff]
    %v365 = vld [vmem:[#allocation2 + $0x850] sm:$0xff]
    %v366 = vld [vmem:[#allocation2 + $0x858] sm:$0xff]
    %v367 = vld [vmem:[#allocation2 + $0x860] sm:$0xff]
    %v368 = vld [vmem:[#allocation2 + $0x868] sm:$0xff]
    %v369 = vld [vmem:[#allocation2 + $0x870] sm:$0xff]
    %v370 = vld [vmem:[#allocation2 + $0x878] sm:$0xff]
    %v371 = vld [vmem:[#allocation2 + $0x880] sm:$0xff]
    %v372 = vld [vmem:[#allocation2 + $0x888] sm:$0xff]
    %v373 = vld [vmem:[#allocation2 + $0x890] sm:$0xff]
    %v374 = vld [vmem:[#allocation2 + $0x898] sm:$0xff]
    %v375 = vld [vmem:[#allocation2 + $0x8a0] sm:$0xff]
    %v376 = vld [vmem:[#allocation2 + $0x8a8] sm:$0xff]
    %v377 = vld [vmem:[#allocation2 + $0x8b0] sm:$0xff]
    %v378 = vld [vmem:[#allocation2 + $0x8b8] sm:$0xff]
    %v379 = vld [vmem:[#allocation2 + $0x8c0] sm:$0xff]
    %v380 = vld [vmem:[#allocation2 + $0x8c8] sm:$0xff]
    %v381 = vld [vmem:[#allocation2 + $0x8d0] sm:$0xff]
    %v382 = vld [vmem:[#allocation2 + $0x8d8] sm:$0xff]
    %v383 = vld [vmem:[#allocation2 + $0x8e0] sm:$0xff]
    %v384 = vld [vmem:[#allocation2 + $0x8e8] sm:$0xff]
    %v385 = vld [vmem:[#allocation2 + $0x8f0] sm:$0xff]
    %v386 = vld [vmem:[#allocation2 + $0x8f8] sm:$0xff]
    %v387 = vld [vmem:[#allocation2 + $0x900] sm:$0xff]
    %v388 = vld [vmem:[#allocation2 + $0x908] sm:$0xff]
    %v389 = vld [vmem:[#allocation2 + $0x910] sm:$0xff]
    %v390 = vld [vmem:[#allocation2 + $0x918] sm:$0xff]
    %v391 = vld [vmem:[#allocation2 + $0x920] sm:$0xff]
    %v392 = vld [vmem:[#allocation2 + $0x928] sm:$0xff]
    %v393 = vld [vmem:[#allocation2 + $0x930] sm:$0xff]
    %v394 = vld [vmem:[#allocation2 + $0x938] sm:$0xff]
    %v395 = vld [vmem:[#allocation2 + $0x940] sm:$0xff]
    %v396 = vld [vmem:[#allocation2 + $0x948] sm:$0xff]
    %v397 = vld [vmem:[#allocation2 + $0x950] sm:$0xff]
    %v398 = vld [vmem:[#allocation2 + $0x958] sm:$0xff]
    %v399 = vld [vmem:[#allocation2 + $0x960] sm:$0xff]
    %v400 = vld [vmem:[#allocation2 + $0x968] sm:$0xff]
    %v401 = vld [vmem:[#allocation2 + $0x970] sm:$0xff]
    %v402 = vld [vmem:[#allocation2 + $0x978] sm:$0xff]
    %v403 = vld [vmem:[#allocation2 + $0x980] sm:$0xff]
    %v404 = vld [vmem:[#allocation2 + $0x988] sm:$0xff]
    %v405 = vld [vmem:[#allocation2 + $0x990] sm:$0xff]
    %v406 = vld [vmem:[#allocation2 + $0x998] sm:$0xff]
    %v407 = vld [vmem:[#allocation2 + $0x9a0] sm:$0xff]
    %v408 = vld [vmem:[#allocation2 + $0x9a8] sm:$0xff]
    %v409 = vld [vmem:[#allocation2 + $0x9b0] sm:$0xff]
    %v410 = vld [vmem:[#allocation2 + $0x9b8] sm:$0xff]
    %v411 = vld [vmem:[#allocation2 + $0x9c0] sm:$0xff]
    %v412 = vld [vmem:[#allocation2 + $0x9c8] sm:$0xff]
    %v413 = vld [vmem:[#allocation2 + $0x9d0] sm:$0xff]
    %v414 = vld [vmem:[#allocation2 + $0x9d8] sm:$0xff]
    %v415 = vld [vmem:[#allocation2 + $0x9e0] sm:$0xff]
    %v416 = vld [vmem:[#allocation2 + $0x9e8] sm:$0xff]
    %v417 = vld [vmem:[#allocation2 + $0x9f0] sm:$0xff]
    %v418 = vld [vmem:[#allocation2 + $0x9f8] sm:$0xff]
    %v419 = vld [vmem:[#allocation2 + $0xa00] sm:$0xff]
    %v420 = vld [vmem:[#allocation2 + $0xa08] sm:$0xff]
    %v421 = vld [vmem:[#allocation2 + $0xa10] sm:$0xff]
    %v422 = vld [vmem:[#allocation2 + $0xa18] sm:$0xff]
    %v423 = vld [vmem:[#allocation2 + $0xa20] sm:$0xff]
    %v424 = vld [vmem:[#allocation2 + $0xa28] sm:$0xff]
    %v425 = vld [vmem:[#allocation2 + $0xa30] sm:$0xff]
    %v426 = vld [vmem:[#allocation2 + $0xa38] sm:$0xff]
    %v427 = vld [vmem:[#allocation2 + $0xa40] sm:$0xff]
    %v428 = vld [vmem:[#allocation2 + $0xa48] sm:$0xff]
    %v429 = vld [vmem:[#allocation2 + $0xa50] sm:$0xff]
    %v430 = vld [vmem:[#allocation2 + $0xa58] sm:$0xff]
    %v431 = vld [vmem:[#allocation2 + $0xa60] sm:$0xff]
    %v432 = vld [vmem:[#allocation2 + $0xa68] sm:$0xff]
    %v433 = vld [vmem:[#allocation2 + $0xa70] sm:$0xff]
    %v434 = vld [vmem:[#allocation2 + $0xa78] sm:$0xff]
    %v435 = vld [vmem:[#allocation2 + $0xa80] sm:$0xff]
    %v436 = vld [vmem:[#allocation2 + $0xa88] sm:$0xff]
    %v437 = vld [vmem:[#allocation2 + $0xa90] sm:$0xff]
    %v438 = vld [vmem:[#allocation2 + $0xa98] sm:$0xff]
    %v439 = vld [vmem:[#allocation2 + $0xaa0] sm:$0xff]
    %v440 = vld [vmem:[#allocation2 + $0xaa8] sm:$0xff]
    %v441 = vld [vmem:[#allocation2 + $0xab0] sm:$0xff]
    %v442 = vld [vmem:[#allocation2 + $0xab8] sm:$0xff]
    %v443 = vld [vmem:[#allocation2 + $0xac0] sm:$0xff]
    %v444 = vld [vmem:[#allocation2 + $0xac8] sm:$0xff]
    %v445 = vld [vmem:[#allocation2 + $0xad0] sm:$0xff]
    %v446 = vld [vmem:[#allocation2 + $0xad8] sm:$0xff]
    %v447 = vld [vmem:[#allocation2 + $0xae0] sm:$0xff]
    %v448 = vld [vmem:[#allocation2 + $0xae8] sm:$0xff]
    %v449 = vld [vmem:[#allocation2 + $0xaf0] sm:$0xff]
    %v450 = vld [vmem:[#allocation2 + $0xaf8] sm:$0xff]
    %v451 = vld [vmem:[#allocation2 + $0xb00] sm:$0xff]
    %v452 = vld [vmem:[#allocation2 + $0xb08] sm:$0xff]
    %v453 = vld [vmem:[#allocation2 + $0xb10] sm:$0xff]
    %v454 = vld [vmem:[#allocation2 + $0xb18] sm:$0xff]
    %v455 = vld [vmem:[#allocation2 + $0xb20] sm:$0xff]
    %v456 = vld [vmem:[#allocation2 + $0xb28] sm:$0xff]
    %v457 = vld [vmem:[#allocation2 + $0xb30] sm:$0xff]
    %v458 = vld [vmem:[#allocation2 + $0xb38] sm:$0xff]
    %v459 = vld [vmem:[#allocation2 + $0xb40] sm:$0xff]
    %v460 = vld [vmem:[#allocation2 + $0xb48] sm:$0xff]
    %v461 = vld [vmem:[#allocation2 + $0xb50] sm:$0xff]
    %v462 = vld [vmem:[#allocation2 + $0xb58] sm:$0xff]
    %v463 = vld [vmem:[#allocation2 + $0xb60] sm:$0xff]
    %v464 = vld [vmem:[#allocation2 + $0xb68] sm:$0xff]
    %v465 = vld [vmem:[#allocation2 + $0xb70] sm:$0xff]
    %v466 = vld [vmem:[#allocation2 + $0xb78] sm:$0xff]
    %v467 = vld [vmem:[#allocation2 + $0xb80] sm:$0xff]
    %v468 = vld [vmem:[#allocation2 + $0xb88] sm:$0xff]
    %v469 = vld [vmem:[#allocation2 + $0xb90] sm:$0xff]
    %v470 = vld [vmem:[#allocation2 + $0xb98] sm:$0xff]
    %v471 = vld [vmem:[#allocation2 + $0xba0] sm:$0xff]
    %v472 = vld [vmem:[#allocation2 + $0xba8] sm:$0xff]
    %v473 = vld [vmem:[#allocation2 + $0xbb0] sm:$0xff]
    %v474 = vld [vmem:[#allocation2 + $0xbb8] sm:$0xff]
    %v475 = vld [vmem:[#allocation2 + $0xbc0] sm:$0xff]
    %v476 = vld [vmem:[#allocation2 + $0xbc8] sm:$0xff]
    %v477 = vld [vmem:[#allocation2 + $0xbd0] sm:$0xff]
    %v478 = vld [vmem:[#allocation2 + $0xbd8] sm:$0xff]
    %v479 = vld [vmem:[#allocation2 + $0xbe0] sm:$0xff]
    %v480 = vld [vmem:[#allocation2 + $0xbe8] sm:$0xff]
    %v481 = vld [vmem:[#allocation2 + $0xbf0] sm:$0xff]
    %v482 = vld [vmem:[#allocation2 + $0xbf8] sm:$0xff]
    %v483 = vld [vmem:[#allocation2 + $0xc00] sm:$0xff]
    %v484 = vld [vmem:[#allocation2 + $0xc08] sm:$0xff]
    %v485 = vld [vmem:[#allocation2 + $0xc10] sm:$0xff]
    %v486 = vld [vmem:[#allocation2 + $0xc18] sm:$0xff]
    %v487 = vld [vmem:[#allocation2 + $0xc20] sm:$0xff]
    %v488 = vld [vmem:[#allocation2 + $0xc28] sm:$0xff]
    %v489 = vld [vmem:[#allocation2 + $0xc30] sm:$0xff]
    %v490 = vld [vmem:[#allocation2 + $0xc38] sm:$0xff]
    %v491 = vld [vmem:[#allocation2 + $0xc40] sm:$0xff]
    %v492 = vld [vmem:[#allocation2 + $0xc48] sm:$0xff]
    %v493 = vld [vmem:[#allocation2 + $0xc50] sm:$0xff]
    %v494 = vld [vmem:[#allocation2 + $0xc58] sm:$0xff]
    %v495 = vld [vmem:[#allocation2 + $0xc60] sm:$0xff]
    %v496 = vld [vmem:[#allocation2 + $0xc68] sm:$0xff]
    %v497 = vld [vmem:[#allocation2 + $0xc70] sm:$0xff]
    %v498 = vld [vmem:[#allocation2 + $0xc78] sm:$0xff]
    %v499 = vld [vmem:[#allocation2 + $0xc80] sm:$0xff]
    %v500 = vld [vmem:[#allocation2 + $0xc88] sm:$0xff]
    %v501 = vld [vmem:[#allocation2 + $0xc90] sm:$0xff]
    %v502 = vld [vmem:[#allocation2 + $0xc98] sm:$0xff]
    %v503 = vld [vmem:[#allocation2 + $0xca0] sm:$0xff]
    %v504 = vld [vmem:[#allocation2 + $0xca8] sm:$0xff]
    %v505 = vld [vmem:[#allocation2 + $0xcb0] sm:$0xff]
    %v506 = vld [vmem:[#allocation2 + $0xcb8] sm:$0xff]
    %v507 = vld [vmem:[#allocation2 + $0xcc0] sm:$0xff]
    %v508 = vld [vmem:[#allocation2 + $0xcc8] sm:$0xff]
    %v509 = vld [vmem:[#allocation2 + $0xcd0] sm:$0xff]
    %v510 = vld [vmem:[#allocation2 + $0xcd8] sm:$0xff]
    %v511 = vld [vmem:[#allocation2 + $0xce0] sm:$0xff]
    %v512 = vld [vmem:[#allocation2 + $0xce8] sm:$0xff]
    %v513 = vld [vmem:[#allocation2 + $0xcf0] sm:$0xff]
    %v514 = vld [vmem:[#allocation2 + $0xcf8] sm:$0xff]
    %v515 = vld [vmem:[#allocation2 + $0xd00] sm:$0xff]
    %v516 = vld [vmem:[#allocation2 + $0xd08] sm:$0xff]
    %v517 = vld [vmem:[#allocation2 + $0xd10] sm:$0xff]
    %v518 = vld [vmem:[#allocation2 + $0xd18] sm:$0xff]
    %v519 = vld [vmem:[#allocation2 + $0xd20] sm:$0xff]
    %v520 = vld [vmem:[#allocation2 + $0xd28] sm:$0xff]
    %v521 = vld [vmem:[#allocation2 + $0xd30] sm:$0xff]
    %v522 = vld [vmem:[#allocation2 + $0xd38] sm:$0xff]
    %v523 = vld [vmem:[#allocation2 + $0xd40] sm:$0xff]
    %v524 = vld [vmem:[#allocation2 + $0xd48] sm:$0xff]
    %v525 = vld [vmem:[#allocation2 + $0xd50] sm:$0xff]
    %v526 = vld [vmem:[#allocation2 + $0xd58] sm:$0xff]
    %v527 = vld [vmem:[#allocation2 + $0xd60] sm:$0xff]
    %v528 = vld [vmem:[#allocation2 + $0xd68] sm:$0xff]
    %v529 = vld [vmem:[#allocation2 + $0xd70] sm:$0xff]
    %v530 = vld [vmem:[#allocation2 + $0xd78] sm:$0xff]
    %v531 = vld [vmem:[#allocation2 + $0xd80] sm:$0xff]
    %v532 = vld [vmem:[#allocation2 + $0xd88] sm:$0xff]
    %v533 = vld [vmem:[#allocation2 + $0xd90] sm:$0xff]
    %v534 = vld [vmem:[#allocation2 + $0xd98] sm:$0xff]
    %v535 = vld [vmem:[#allocation2 + $0xda0] sm:$0xff]
    %v536 = vld [vmem:[#allocation2 + $0xda8] sm:$0xff]
    %v537 = vld [vmem:[#allocation2 + $0xdb0] sm:$0xff]
    %v538 = vld [vmem:[#allocation2 + $0xdb8] sm:$0xff]
    %v539 = vld [vmem:[#allocation2 + $0xdc0] sm:$0xff]
    %v540 = vld [vmem:[#allocation2 + $0xdc8] sm:$0xff]
    %v541 = vld [vmem:[#allocation2 + $0xdd0] sm:$0xff]
    %v542 = vld [vmem:[#allocation2 + $0xdd8] sm:$0xff]
    %v543 = vld [vmem:[#allocation2 + $0xde0] sm:$0xff]
    %v544 = vld [vmem:[#allocation2 + $0xde8] sm:$0xff]
    %v545 = vld [vmem:[#allocation2 + $0xdf0] sm:$0xff]
    %v546 = vld [vmem:[#allocation2 + $0xdf8] sm:$0xff]
    %v547 = vld [vmem:[#allocation2 + $0xe00] sm:$0xff]
    %v548 = vld [vmem:[#allocation2 + $0xe08] sm:$0xff]
    %v549 = vld [vmem:[#allocation2 + $0xe10] sm:$0xff]
    %v550 = vld [vmem:[#allocation2 + $0xe18] sm:$0xff]
    %v551 = vld [vmem:[#allocation2 + $0xe20] sm:$0xff]
    %v552 = vld [vmem:[#allocation2 + $0xe28] sm:$0xff]
    %v553 = vld [vmem:[#allocation2 + $0xe30] sm:$0xff]
    %v554 = vld [vmem:[#allocation2 + $0xe38] sm:$0xff]
    %v555 = vld [vmem:[#allocation2 + $0xe40] sm:$0xff]
    %v556 = vld [vmem:[#allocation2 + $0xe48] sm:$0xff]
    %v557 = vld [vmem:[#allocation2 + $0xe50] sm:$0xff]
    %v558 = vld [vmem:[#allocation2 + $0xe58] sm:$0xff]
    %v559 = vld [vmem:[#allocation2 + $0xe60] sm:$0xff]
    %v560 = vld [vmem:[#allocation2 + $0xe68] sm:$0xff]
    %v561 = vld [vmem:[#allocation2 + $0xe70] sm:$0xff]
    %v562 = vld [vmem:[#allocation2 + $0xe78] sm:$0xff]
    %v563 = vld [vmem:[#allocation2 + $0xe80] sm:$0xff]
    %v564 = vld [vmem:[#allocation2 + $0xe88] sm:$0xff]
    %v565 = vld [vmem:[#allocation2 + $0xe90] sm:$0xff]
    %v566 = vld [vmem:[#allocation2 + $0xe98] sm:$0xff]
    %v567 = vld [vmem:[#allocation2 + $0xea0] sm:$0xff]
    %v568 = vld [vmem:[#allocation2 + $0xea8] sm:$0xff]
    %v569 = vld [vmem:[#allocation2 + $0xeb0] sm:$0xff]
    %v570 = vld [vmem:[#allocation2 + $0xeb8] sm:$0xff]
    %v571 = vld [vmem:[#allocation2 + $0xec0] sm:$0xff]
    %v572 = vld [vmem:[#allocation2 + $0xec8] sm:$0xff]
    %v573 = vld [vmem:[#allocation2 + $0xed0] sm:$0xff]
    %v574 = vld [vmem:[#allocation2 + $0xed8] sm:$0xff]
    %v575 = vld [vmem:[#allocation2 + $0xee0] sm:$0xff]
    %v576 = vld [vmem:[#allocation2 + $0xee8] sm:$0xff]
    %v577 = vld [vmem:[#allocation2 + $0xef0] sm:$0xff]
    %v578 = vld [vmem:[#allocation2 + $0xef8] sm:$0xff]
    %v579 = vld [vmem:[#allocation2 + $0xf00] sm:$0xff]
    %v580 = vld [vmem:[#allocation2 + $0xf08] sm:$0xff]
    %v581 = vld [vmem:[#allocation2 + $0xf10] sm:$0xff]
    %v582 = vld [vmem:[#allocation2 + $0xf18] sm:$0xff]
    %v583 = vld [vmem:[#allocation2 + $0xf20] sm:$0xff]
    %v584 = vld [vmem:[#allocation2 + $0xf28] sm:$0xff]
    %v585 = vld [vmem:[#allocation2 + $0xf30] sm:$0xff]
    %v586 = vld [vmem:[#allocation2 + $0xf38] sm:$0xff]
    %v587 = vld [vmem:[#allocation2 + $0xf40] sm:$0xff]
    %v588 = vld [vmem:[#allocation2 + $0xf48] sm:$0xff]
    %v589 = vld [vmem:[#allocation2 + $0xf50] sm:$0xff]
    %v590 = vld [vmem:[#allocation2 + $0xf58] sm:$0xff]
    %v591 = vld [vmem:[#allocation2 + $0xf60] sm:$0xff]
    %v592 = vld [vmem:[#allocation2 + $0xf68] sm:$0xff]
    %v593 = vld [vmem:[#allocation2 + $0xf70] sm:$0xff]
    %v594 = vld [vmem:[#allocation2 + $0xf78] sm:$0xff]
    %v595 = vld [vmem:[#allocation2 + $0xf80] sm:$0xff]
    %v596 = vld [vmem:[#allocation2 + $0xf88] sm:$0xff]
    %v597 = vld [vmem:[#allocation2 + $0xf90] sm:$0xff]
    %v598 = vld [vmem:[#allocation2 + $0xf98] sm:$0xff]
    %v599 = vld [vmem:[#allocation2 + $0xfa0] sm:$0xff]
    %v600 = vld [vmem:[#allocation2 + $0xfa8] sm:$0xff]
    %v601 = vld [vmem:[#allocation2 + $0xfb0] sm:$0xff]
    %v602 = vld [vmem:[#allocation2 + $0xfb8] sm:$0xff]
    %v603 = vld [vmem:[#allocation2 + $0xfc0] sm:$0xff]
    %v604 = vld [vmem:[#allocation2 + $0xfc8] sm:$0xff]
    %v605 = vld [vmem:[#allocation2 + $0xfd0] sm:$0xff]
    %v606 = vld [vmem:[#allocation2 + $0xfd8] sm:$0xff]
    %v607 = vld [vmem:[#allocation2 + $0xfe0] sm:$0xff]
    %v608 = vld [vmem:[#allocation2 + $0xfe8] sm:$0xff]
    %v609 = vld [vmem:[#allocation2 + $0xff0] sm:$0xff]
    %v610 = vld [vmem:[#allocation2 + $0xff8] sm:$0xff]
    %v611 = vld [vmem:[#allocation2 + $0x1000] sm:$0xff]
    %v612 = vld [vmem:[#allocation2 + $0x1008] sm:$0xff]
    %v613 = vld [vmem:[#allocation2 + $0x1010] sm:$0xff]
    %v614 = vld [vmem:[#allocation2 + $0x1018] sm:$0xff]
    %v615 = vld [vmem:[#allocation2 + $0x1020] sm:$0xff]
    %v616 = vld [vmem:[#allocation2 + $0x1028] sm:$0xff]
    %v617 = vld [vmem:[#allocation2 + $0x1030] sm:$0xff]
    %v618 = vld [vmem:[#allocation2 + $0x1038] sm:$0xff]
    %v619 = vld [vmem:[#allocation2 + $0x1040] sm:$0xff]
    %v620 = vld [vmem:[#allocation2 + $0x1048] sm:$0xff]
    %v621 = vld [vmem:[#allocation2 + $0x1050] sm:$0xff]
    %v622 = vld [vmem:[#allocation2 + $0x1058] sm:$0xff]
    %v623 = vld [vmem:[#allocation2 + $0x1060] sm:$0xff]
    %v624 = vld [vmem:[#allocation2 + $0x1068] sm:$0xff]
    %v625 = vld [vmem:[#allocation2 + $0x1070] sm:$0xff]
    %v626 = vld [vmem:[#allocation2 + $0x1078] sm:$0xff]
    %v627 = vld [vmem:[#allocation2 + $0x1080] sm:$0xff]
    %v628 = vld [vmem:[#allocation2 + $0x1088] sm:$0xff]
    %v629 = vld [vmem:[#allocation2 + $0x1090] sm:$0xff]
    %v630 = vld [vmem:[#allocation2 + $0x1098] sm:$0xff]
    %v631 = vld [vmem:[#allocation2 + $0x10a0] sm:$0xff]
    %v632 = vld [vmem:[#allocation2 + $0x10a8] sm:$0xff]
    %v633 = vld [vmem:[#allocation2 + $0x10b0] sm:$0xff]
    %v634 = vld [vmem:[#allocation2 + $0x10b8] sm:$0xff]
    %v635 = vld [vmem:[#allocation2 + $0x10c0] sm:$0xff]
    %v636 = vld [vmem:[#allocation2 + $0x10c8] sm:$0xff]
    %v637 = vld [vmem:[#allocation2 + $0x10d0] sm:$0xff]
    %v638 = vld [vmem:[#allocation2 + $0x10d8] sm:$0xff]
    %v639 = vld [vmem:[#allocation2 + $0x10e0] sm:$0xff]
    %v640 = vld [vmem:[#allocation2 + $0x10e8] sm:$0xff]
    %v641 = vld [vmem:[#allocation2 + $0x10f0] sm:$0xff]
    %v642 = vld [vmem:[#allocation2 + $0x10f8] sm:$0xff]
    %v643 = vld [vmem:[#allocation2 + $0x1100] sm:$0xff]
    %v644 = vld [vmem:[#allocation2 + $0x1108] sm:$0xff]
    %v645 = vld [vmem:[#allocation2 + $0x1110] sm:$0xff]
    %v646 = vld [vmem:[#allocation2 + $0x1118] sm:$0xff]
    %v647 = vld [vmem:[#allocation2 + $0x1120] sm:$0xff]
    %v648 = vld [vmem:[#allocation2 + $0x1128] sm:$0xff]
    %v649 = vld [vmem:[#allocation2 + $0x1130] sm:$0xff]
    %v650 = vld [vmem:[#allocation2 + $0x1138] sm:$0xff]
    %v651 = vld [vmem:[#allocation2 + $0x1140] sm:$0xff]
    %v652 = vld [vmem:[#allocation2 + $0x1148] sm:$0xff]
    %v653 = vld [vmem:[#allocation2 + $0x1150] sm:$0xff]
    %v654 = vld [vmem:[#allocation2 + $0x1158] sm:$0xff]
    %v655 = vld [vmem:[#allocation2 + $0x1160] sm:$0xff]
    %v656 = vld [vmem:[#allocation2 + $0x1168] sm:$0xff]
    %v657 = vld [vmem:[#allocation2 + $0x1170] sm:$0xff]
    %v658 = vld [vmem:[#allocation2 + $0x1178] sm:$0xff]
    %v659 = vld [vmem:[#allocation2 + $0x1180] sm:$0xff]
    %v660 = vld [vmem:[#allocation2 + $0x1188] sm:$0xff]
    %v661 = vld [vmem:[#allocation2 + $0x1190] sm:$0xff]
    %v662 = vld [vmem:[#allocation2 + $0x1198] sm:$0xff]
    %v663 = vld [vmem:[#allocation2 + $0x11a0] sm:$0xff]
    %v664 = vld [vmem:[#allocation2 + $0x11a8] sm:$0xff]
    %v665 = vld [vmem:[#allocation2 + $0x11b0] sm:$0xff]
    %v666 = vld [vmem:[#allocation2 + $0x11b8] sm:$0xff]
    %v667 = vld [vmem:[#allocation2 + $0x11c0] sm:$0xff]
    %v668 = vld [vmem:[#allocation2 + $0x11c8] sm:$0xff]
    %v669 = vld [vmem:[#allocation2 + $0x11d0] sm:$0xff]
    %v670 = vld [vmem:[#allocation2 + $0x11d8] sm:$0xff]
    %v671 = vld [vmem:[#allocation2 + $0x11e0] sm:$0xff]
    %v672 = vld [vmem:[#allocation2 + $0x11e8] sm:$0xff]
    %v673 = vld [vmem:[#allocation2 + $0x11f0] sm:$0xff]
    %v674 = vld [vmem:[#allocation2 + $0x11f8] sm:$0xff]
    %v675 = vld [vmem:[#allocation2 + $0x1200] sm:$0xff]
    %v676 = vld [vmem:[#allocation2 + $0x1208] sm:$0xff]
    %v677 = vld [vmem:[#allocation2 + $0x1210] sm:$0xff]
    %v678 = vld [vmem:[#allocation2 + $0x1218] sm:$0xff]
    %v679 = vld [vmem:[#allocation2 + $0x1220] sm:$0xff]
    %v680 = vld [vmem:[#allocation2 + $0x1228] sm:$0xff]
    %v681 = vld [vmem:[#allocation2 + $0x1230] sm:$0xff]
    %v682 = vld [vmem:[#allocation2 + $0x1238] sm:$0xff]
    %v683 = vld [vmem:[#allocation2 + $0x1240] sm:$0xff]
    %v684 = vld [vmem:[#allocation2 + $0x1248] sm:$0xff]
    %v685 = vld [vmem:[#allocation2 + $0x1250] sm:$0xff]
    %v686 = vld [vmem:[#allocation2 + $0x1258] sm:$0xff]
    %v687 = vld [vmem:[#allocation2 + $0x1260] sm:$0xff]
    %v688 = vld [vmem:[#allocation2 + $0x1268] sm:$0xff]
    %v689 = vld [vmem:[#allocation2 + $0x1270] sm:$0xff]
    %v690 = vld [vmem:[#allocation2 + $0x1278] sm:$0xff]
    %v691 = vld [vmem:[#allocation2 + $0x1280] sm:$0xff]
    %v692 = vld [vmem:[#allocation2 + $0x1288] sm:$0xff]
    %v693 = vld [vmem:[#allocation2 + $0x1290] sm:$0xff]
    %v694 = vld [vmem:[#allocation2 + $0x1298] sm:$0xff]
    %v695 = vld [vmem:[#allocation2 + $0x12a0] sm:$0xff]
    %v696 = vld [vmem:[#allocation2 + $0x12a8] sm:$0xff]
    %v697 = vld [vmem:[#allocation2 + $0x12b0] sm:$0xff]
    %v698 = vld [vmem:[#allocation2 + $0x12b8] sm:$0xff]
    %v699 = vld [vmem:[#allocation2 + $0x12c0] sm:$0xff]
    %v700 = vld [vmem:[#allocation2 + $0x12c8] sm:$0xff]
    %v701 = vld [vmem:[#allocation2 + $0x12d0] sm:$0xff]
    %v702 = vld [vmem:[#allocation2 + $0x12d8] sm:$0xff]
    %v703 = vld [vmem:[#allocation2 + $0x12e0] sm:$0xff]
    %v704 = vld [vmem:[#allocation2 + $0x12e8] sm:$0xff]
    %v705 = vld [vmem:[#allocation2 + $0x12f0] sm:$0xff]
    %v706 = vld [vmem:[#allocation2 + $0x12f8] sm:$0xff]
    %v707 = vld [vmem:[#allocation2 + $0x1300] sm:$0xff]
    %v708 = vld [vmem:[#allocation2 + $0x1308] sm:$0xff]
    %v709 = vld [vmem:[#allocation2 + $0x1310] sm:$0xff]
    %v710 = vld [vmem:[#allocation2 + $0x1318] sm:$0xff]
    %v711 = vld [vmem:[#allocation2 + $0x1320] sm:$0xff]
    %v712 = vld [vmem:[#allocation2 + $0x1328] sm:$0xff]
    %v713 = vld [vmem:[#allocation2 + $0x1330] sm:$0xff]
    %v714 = vld [vmem:[#allocation2 + $0x1338] sm:$0xff]
    %v715 = vld [vmem:[#allocation2 + $0x1340] sm:$0xff]
    %v716 = vld [vmem:[#allocation2 + $0x1348] sm:$0xff]
    %v717 = vld [vmem:[#allocation2 + $0x1350] sm:$0xff]
    %v718 = vld [vmem:[#allocation2 + $0x1358] sm:$0xff]
    %v719 = vld [vmem:[#allocation2 + $0x1360] sm:$0xff]
    %v720 = vld [vmem:[#allocation2 + $0x1368] sm:$0xff]
    %v721 = vld [vmem:[#allocation2 + $0x1370] sm:$0xff]
    %v722 = vld [vmem:[#allocation2 + $0x1378] sm:$0xff]
    %v723 = vld [vmem:[#allocation2 + $0x1380] sm:$0xff]
    %v724 = vld [vmem:[#allocation2 + $0x1388] sm:$0xff]
    %v725 = vld [vmem:[#allocation2 + $0x1390] sm:$0xff]
    %v726 = vld [vmem:[#allocation2 + $0x1398] sm:$0xff]
    %v727 = vld [vmem:[#allocation2 + $0x13a0] sm:$0xff]
    %v728 = vld [vmem:[#allocation2 + $0x13a8] sm:$0xff]
    %v729 = vld [vmem:[#allocation2 + $0x13b0] sm:$0xff]
    %v730 = vld [vmem:[#allocation2 + $0x13b8] sm:$0xff]
    %v731 = vld [vmem:[#allocation2 + $0x13c0] sm:$0xff]
    %v732 = vld [vmem:[#allocation2 + $0x13c8] sm:$0xff]
    %v733 = vld [vmem:[#allocation2 + $0x13d0] sm:$0xff]
    %v734 = vld [vmem:[#allocation2 + $0x13d8] sm:$0xff]
    %v735 = vld [vmem:[#allocation2 + $0x13e0] sm:$0xff]
    %v736 = vld [vmem:[#allocation2 + $0x13e8] sm:$0xff]
    %v737 = vld [vmem:[#allocation2 + $0x13f0] sm:$0xff]
    %v738 = vld [vmem:[#allocation2 + $0x13f8] sm:$0xff]
    %v739 = vld [vmem:[#allocation2 + $0x1400] sm:$0xff]
    %v740 = vld [vmem:[#allocation2 + $0x1408] sm:$0xff]
    %v741 = vld [vmem:[#allocation2 + $0x1410] sm:$0xff]
    %v742 = vld [vmem:[#allocation2 + $0x1418] sm:$0xff]
    %v743 = vld [vmem:[#allocation2 + $0x1420] sm:$0xff]
    %v744 = vld [vmem:[#allocation2 + $0x1428] sm:$0xff]
    %v745 = vld [vmem:[#allocation2 + $0x1430] sm:$0xff]
    %v746 = vld [vmem:[#allocation2 + $0x1438] sm:$0xff]
    %v747 = vld [vmem:[#allocation2 + $0x1440] sm:$0xff]
    %v748 = vld [vmem:[#allocation2 + $0x1448] sm:$0xff]
    %v749 = vld [vmem:[#allocation2 + $0x1450] sm:$0xff]
    %v750 = vld [vmem:[#allocation2 + $0x1458] sm:$0xff]
    %v751 = vld [vmem:[#allocation2 + $0x1460] sm:$0xff]
    %v752 = vld [vmem:[#allocation2 + $0x1468] sm:$0xff]
    %v753 = vld [vmem:[#allocation2 + $0x1470] sm:$0xff]
    %v754 = vld [vmem:[#allocation2 + $0x1478] sm:$0xff]
    %v755 = vld [vmem:[#allocation2 + $0x1480] sm:$0xff]
    %v756 = vld [vmem:[#allocation2 + $0x1488] sm:$0xff]
    %v757 = vld [vmem:[#allocation2 + $0x1490] sm:$0xff]
    %v758 = vld [vmem:[#allocation2 + $0x1498] sm:$0xff]
    %v759 = vld [vmem:[#allocation2 + $0x14a0] sm:$0xff]
    %v760 = vld [vmem:[#allocation2 + $0x14a8] sm:$0xff]
    %v761 = vld [vmem:[#allocation2 + $0x14b0] sm:$0xff]
    %v762 = vld [vmem:[#allocation2 + $0x14b8] sm:$0xff]
    %v763 = vld [vmem:[#allocation2 + $0x14c0] sm:$0xff]
    %v764 = vld [vmem:[#allocation2 + $0x14c8] sm:$0xff]
    %v765 = vld [vmem:[#allocation2 + $0x14d0] sm:$0xff]
    %v766 = vld [vmem:[#allocation2 + $0x14d8] sm:$0xff]
    %v767 = vld [vmem:[#allocation2 + $0x14e0] sm:$0xff]
    %v768 = vld [vmem:[#allocation2 + $0x14e8] sm:$0xff]
    %v769 = vld [vmem:[#allocation2 + $0x14f0] sm:$0xff]
    %v770 = vld [vmem:[#allocation2 + $0x14f8] sm:$0xff]
    %v771 = vld [vmem:[#allocation2 + $0x1500] sm:$0xff]
    %v772 = vld [vmem:[#allocation2 + $0x1508] sm:$0xff]
    %v773 = vld [vmem:[#allocation2 + $0x1510] sm:$0xff]
    %v774 = vld [vmem:[#allocation2 + $0x1518] sm:$0xff]
    %v775 = vld [vmem:[#allocation2 + $0x1520] sm:$0xff]
    %v776 = vld [vmem:[#allocation2 + $0x1528] sm:$0xff]
    %v777 = vld [vmem:[#allocation2 + $0x1530] sm:$0xff]
    %v778 = vld [vmem:[#allocation2 + $0x1538] sm:$0xff]
    %v779 = vld [vmem:[#allocation2 + $0x1540] sm:$0xff]
    %v780 = vld [vmem:[#allocation2 + $0x1548] sm:$0xff]
    %v781 = vld [vmem:[#allocation2 + $0x1550] sm:$0xff]
    %v782 = vld [vmem:[#allocation2 + $0x1558] sm:$0xff]
    %v783 = vld [vmem:[#allocation2 + $0x1560] sm:$0xff]
    %v784 = vld [vmem:[#allocation2 + $0x1568] sm:$0xff]
    %v785 = vld [vmem:[#allocation2 + $0x1570] sm:$0xff]
    %v786 = vld [vmem:[#allocation2 + $0x1578] sm:$0xff]
    %v787 = vld [vmem:[#allocation2 + $0x1580] sm:$0xff]
    %v788 = vld [vmem:[#allocation2 + $0x1588] sm:$0xff]
    %v789 = vld [vmem:[#allocation2 + $0x1590] sm:$0xff]
    %v790 = vld [vmem:[#allocation2 + $0x1598] sm:$0xff]
    %v791 = vld [vmem:[#allocation2 + $0x15a0] sm:$0xff]
    %v792 = vld [vmem:[#allocation2 + $0x15a8] sm:$0xff]
    %v793 = vld [vmem:[#allocation2 + $0x15b0] sm:$0xff]
    %v794 = vld [vmem:[#allocation2 + $0x15b8] sm:$0xff]
    %v795 = vld [vmem:[#allocation2 + $0x15c0] sm:$0xff]
    %v796 = vld [vmem:[#allocation2 + $0x15c8] sm:$0xff]
    %v797 = vld [vmem:[#allocation2 + $0x15d0] sm:$0xff]
    %v798 = vld [vmem:[#allocation2 + $0x15d8] sm:$0xff]
    %v799 = vld [vmem:[#allocation2 + $0x15e0] sm:$0xff]
    %v800 = vld [vmem:[#allocation2 + $0x15e8] sm:$0xff]
    %v801 = vld [vmem:[#allocation2 + $0x15f0] sm:$0xff]
    %v802 = vld [vmem:[#allocation2 + $0x15f8] sm:$0xff]
    %v803 = vld [vmem:[#allocation2 + $0x1600] sm:$0xff]
    %v804 = vld [vmem:[#allocation2 + $0x1608] sm:$0xff]
    %v805 = vld [vmem:[#allocation2 + $0x1610] sm:$0xff]
    %v806 = vld [vmem:[#allocation2 + $0x1618] sm:$0xff]
    %v807 = vld [vmem:[#allocation2 + $0x1620] sm:$0xff]
    %v808 = vld [vmem:[#allocation2 + $0x1628] sm:$0xff]
    %v809 = vld [vmem:[#allocation2 + $0x1630] sm:$0xff]
    %v810 = vld [vmem:[#allocation2 + $0x1638] sm:$0xff]
    %v811 = vld [vmem:[#allocation2 + $0x1640] sm:$0xff]
    %v812 = vld [vmem:[#allocation2 + $0x1648] sm:$0xff]
    %v813 = vld [vmem:[#allocation2 + $0x1650] sm:$0xff]
    %v814 = vld [vmem:[#allocation2 + $0x1658] sm:$0xff]
    %v815 = vld [vmem:[#allocation2 + $0x1660] sm:$0xff]
    %v816 = vld [vmem:[#allocation2 + $0x1668] sm:$0xff]
    %v817 = vld [vmem:[#allocation2 + $0x1670] sm:$0xff]
    %v818 = vld [vmem:[#allocation2 + $0x1678] sm:$0xff]
    %v819 = vld [vmem:[#allocation2 + $0x1680] sm:$0xff]
    %v820 = vld [vmem:[#allocation2 + $0x1688] sm:$0xff]
    %v821 = vld [vmem:[#allocation2 + $0x1690] sm:$0xff]
    %v822 = vld [vmem:[#allocation2 + $0x1698] sm:$0xff]
    %v823 = vld [vmem:[#allocation2 + $0x16a0] sm:$0xff]
    %v824 = vld [vmem:[#allocation2 + $0x16a8] sm:$0xff]
    %v825 = vld [vmem:[#allocation2 + $0x16b0] sm:$0xff]
    %v826 = vld [vmem:[#allocation2 + $0x16b8] sm:$0xff]
    %v827 = vld [vmem:[#allocation2 + $0x16c0] sm:$0xff]
    %v828 = vld [vmem:[#allocation2 + $0x16c8] sm:$0xff]
    %v829 = vld [vmem:[#allocation2 + $0x16d0] sm:$0xff]
    %v830 = vld [vmem:[#allocation2 + $0x16d8] sm:$0xff]
    %v831 = vld [vmem:[#allocation2 + $0x16e0] sm:$0xff]
    %v832 = vld [vmem:[#allocation2 + $0x16e8] sm:$0xff]
    %v833 = vld [vmem:[#allocation2 + $0x16f0] sm:$0xff]
    %v834 = vld [vmem:[#allocation2 + $0x16f8] sm:$0xff]
    %v835 = vld [vmem:[#allocation2 + $0x1700] sm:$0xff]
    %v836 = vld [vmem:[#allocation2 + $0x1708] sm:$0xff]
    %v837 = vld [vmem:[#allocation2 + $0x1710] sm:$0xff]
    %v838 = vld [vmem:[#allocation2 + $0x1718] sm:$0xff]
    %v839 = vld [vmem:[#allocation2 + $0x1720] sm:$0xff]
    %v840 = vld [vmem:[#allocation2 + $0x1728] sm:$0xff]
    %v841 = vld [vmem:[#allocation2 + $0x1730] sm:$0xff]
    %v842 = vld [vmem:[#allocation2 + $0x1738] sm:$0xff]
    %v843 = vld [vmem:[#allocation2 + $0x1740] sm:$0xff]
    %v844 = vld [vmem:[#allocation2 + $0x1748] sm:$0xff]
    %v845 = vld [vmem:[#allocation2 + $0x1750] sm:$0xff]
    %v846 = vld [vmem:[#allocation2 + $0x1758] sm:$0xff]
    %v847 = vld [vmem:[#allocation2 + $0x1760] sm:$0xff]
    %v848 = vld [vmem:[#allocation2 + $0x1768] sm:$0xff]
    %v849 = vld [vmem:[#allocation2 + $0x1770] sm:$0xff]
    %v850 = vld [vmem:[#allocation2 + $0x1778] sm:$0xff]
    %v851 = vld [vmem:[#allocation2 + $0x1780] sm:$0xff]
    %v852 = vld [vmem:[#allocation2 + $0x1788] sm:$0xff]
    %v853 = vld [vmem:[#allocation2 + $0x1790] sm:$0xff]
    %v854 = vld [vmem:[#allocation2 + $0x1798] sm:$0xff]
    %v855 = vld [vmem:[#allocation2 + $0x17a0] sm:$0xff]
    %v856 = vld [vmem:[#allocation2 + $0x17a8] sm:$0xff]
    %v857 = vld [vmem:[#allocation2 + $0x17b0] sm:$0xff]
    %v858 = vld [vmem:[#allocation2 + $0x17b8] sm:$0xff]
    %v859 = vld [vmem:[#allocation2 + $0x17c0] sm:$0xff]
    %v860 = vld [vmem:[#allocation2 + $0x17c8] sm:$0xff]
    %v861 = vld [vmem:[#allocation2 + $0x17d0] sm:$0xff]
    %v862 = vld [vmem:[#allocation2 + $0x17d8] sm:$0xff]
    %v863 = vld [vmem:[#allocation2 + $0x17e0] sm:$0xff]
    %v864 = vld [vmem:[#allocation2 + $0x17e8] sm:$0xff]
    %v865 = vld [vmem:[#allocation2 + $0x17f0] sm:$0xff]
    %v866 = vld [vmem:[#allocation2 + $0x17f8] sm:$0xff]
    %v867 = vld [vmem:[#allocation2 + $0x1800] sm:$0xff]
    %v868 = vld [vmem:[#allocation2 + $0x1808] sm:$0xff]
    %v869 = vld [vmem:[#allocation2 + $0x1810] sm:$0xff]
    %v870 = vld [vmem:[#allocation2 + $0x1818] sm:$0xff]
    %v871 = vld [vmem:[#allocation2 + $0x1820] sm:$0xff]
    %v872 = vld [vmem:[#allocation2 + $0x1828] sm:$0xff]
    %v873 = vld [vmem:[#allocation2 + $0x1830] sm:$0xff]
    %v874 = vld [vmem:[#allocation2 + $0x1838] sm:$0xff]
    %v875 = vld [vmem:[#allocation2 + $0x1840] sm:$0xff]
    %v876 = vld [vmem:[#allocation2 + $0x1848] sm:$0xff]
    %v877 = vld [vmem:[#allocation2 + $0x1850] sm:$0xff]
    %v878 = vld [vmem:[#allocation2 + $0x1858] sm:$0xff]
    %v879 = vld [vmem:[#allocation2 + $0x1860] sm:$0xff]
    %v880 = vld [vmem:[#allocation2 + $0x1868] sm:$0xff]
    %v881 = vld [vmem:[#allocation2 + $0x1870] sm:$0xff]
    %v882 = vld [vmem:[#allocation2 + $0x1878] sm:$0xff]
    %v883 = vld [vmem:[#allocation2 + $0x1880] sm:$0xff]
    %v884 = vld [vmem:[#allocation2 + $0x1888] sm:$0xff]
    %v885 = vld [vmem:[#allocation2 + $0x1890] sm:$0xff]
    %v886 = vld [vmem:[#allocation2 + $0x1898] sm:$0xff]
    %v887 = vld [vmem:[#allocation2 + $0x18a0] sm:$0xff]
    %v888 = vld [vmem:[#allocation2 + $0x18a8] sm:$0xff]
    %v889 = vld [vmem:[#allocation2 + $0x18b0] sm:$0xff]
    %v890 = vld [vmem:[#allocation2 + $0x18b8] sm:$0xff]
    %v891 = vld [vmem:[#allocation2 + $0x18c0] sm:$0xff]
    %v892 = vld [vmem:[#allocation2 + $0x18c8] sm:$0xff]
    %v893 = vld [vmem:[#allocation2 + $0x18d0] sm:$0xff]
    %v894 = vld [vmem:[#allocation2 + $0x18d8] sm:$0xff]
    %v895 = vld [vmem:[#allocation2 + $0x18e0] sm:$0xff]
    %v896 = vld [vmem:[#allocation2 + $0x18e8] sm:$0xff]
    %v897 = vld [vmem:[#allocation2 + $0x18f0] sm:$0xff]
    %v898 = vld [vmem:[#allocation2 + $0x18f8] sm:$0xff]
    %v899 = vld [vmem:[#allocation2 + $0x1900] sm:$0xff]
    %v900 = vld [vmem:[#allocation2 + $0x1908] sm:$0xff]
    %v901 = vld [vmem:[#allocation2 + $0x1910] sm:$0xff]
    %v902 = vld [vmem:[#allocation2 + $0x1918] sm:$0xff]
    %v903 = vld [vmem:[#allocation2 + $0x1920] sm:$0xff]
    %v904 = vld [vmem:[#allocation2 + $0x1928] sm:$0xff]
    %v905 = vld [vmem:[#allocation2 + $0x1930] sm:$0xff]
    %v906 = vld [vmem:[#allocation2 + $0x1938] sm:$0xff]
    %v907 = vld [vmem:[#allocation2 + $0x1940] sm:$0xff]
    %v908 = vld [vmem:[#allocation2 + $0x1948] sm:$0xff]
    %v909 = vld [vmem:[#allocation2 + $0x1950] sm:$0xff]
    %v910 = vld [vmem:[#allocation2 + $0x1958] sm:$0xff]
    %v911 = vld [vmem:[#allocation2 + $0x1960] sm:$0xff]
    %v912 = vld [vmem:[#allocation2 + $0x1968] sm:$0xff]
    %v913 = vld [vmem:[#allocation2 + $0x1970] sm:$0xff]
    %v914 = vld [vmem:[#allocation2 + $0x1978] sm:$0xff]
    %v915 = vld [vmem:[#allocation2 + $0x1980] sm:$0xff]
    %v916 = vld [vmem:[#allocation2 + $0x1988] sm:$0xff]
    %v917 = vld [vmem:[#allocation2 + $0x1990] sm:$0xff]
    %v918 = vld [vmem:[#allocation2 + $0x1998] sm:$0xff]
    %v919 = vld [vmem:[#allocation2 + $0x19a0] sm:$0xff]
    %v920 = vld [vmem:[#allocation2 + $0x19a8] sm:$0xff]
    %v921 = vld [vmem:[#allocation2 + $0x19b0] sm:$0xff]
    %v922 = vld [vmem:[#allocation2 + $0x19b8] sm:$0xff]
    %v923 = vld [vmem:[#allocation2 + $0x19c0] sm:$0xff]
    %v924 = vld [vmem:[#allocation2 + $0x19c8] sm:$0xff]
    %v925 = vld [vmem:[#allocation2 + $0x19d0] sm:$0xff]
    %v926 = vld [vmem:[#allocation2 + $0x19d8] sm:$0xff]
    %v927 = vld [vmem:[#allocation2 + $0x19e0] sm:$0xff]
    %v928 = vld [vmem:[#allocation2 + $0x19e8] sm:$0xff]
    %v929 = vld [vmem:[#allocation2 + $0x19f0] sm:$0xff]
    %v930 = vld [vmem:[#allocation2 + $0x19f8] sm:$0xff]
    %v931 = vld [vmem:[#allocation2 + $0x1a00] sm:$0xff]
    %v932 = vld [vmem:[#allocation2 + $0x1a08] sm:$0xff]
    %v933 = vld [vmem:[#allocation2 + $0x1a10] sm:$0xff]
    %v934 = vld [vmem:[#allocation2 + $0x1a18] sm:$0xff]
    %v935 = vld [vmem:[#allocation2 + $0x1a20] sm:$0xff]
    %v936 = vld [vmem:[#allocation2 + $0x1a28] sm:$0xff]
    %v937 = vld [vmem:[#allocation2 + $0x1a30] sm:$0xff]
    %v938 = vld [vmem:[#allocation2 + $0x1a38] sm:$0xff]
    %v939 = vld [vmem:[#allocation2 + $0x1a40] sm:$0xff]
    %v940 = vld [vmem:[#allocation2 + $0x1a48] sm:$0xff]
    %v941 = vld [vmem:[#allocation2 + $0x1a50] sm:$0xff]
    %v942 = vld [vmem:[#allocation2 + $0x1a58] sm:$0xff]
    %v943 = vld [vmem:[#allocation2 + $0x1a60] sm:$0xff]
    %v944 = vld [vmem:[#allocation2 + $0x1a68] sm:$0xff]
    %v945 = vld [vmem:[#allocation2 + $0x1a70] sm:$0xff]
    %v946 = vld [vmem:[#allocation2 + $0x1a78] sm:$0xff]
    %v947 = vld [vmem:[#allocation2 + $0x1a80] sm:$0xff]
    %v948 = vld [vmem:[#allocation2 + $0x1a88] sm:$0xff]
    %v949 = vld [vmem:[#allocation2 + $0x1a90] sm:$0xff]
    %v950 = vld [vmem:[#allocation2 + $0x1a98] sm:$0xff]
    %v951 = vld [vmem:[#allocation2 + $0x1aa0] sm:$0xff]
    %v952 = vld [vmem:[#allocation2 + $0x1aa8] sm:$0xff]
    %v953 = vld [vmem:[#allocation2 + $0x1ab0] sm:$0xff]
    %v954 = vld [vmem:[#allocation2 + $0x1ab8] sm:$0xff]
    %v955 = vld [vmem:[#allocation2 + $0x1ac0] sm:$0xff]
    %v956 = vld [vmem:[#allocation2 + $0x1ac8] sm:$0xff]
    %v957 = vld [vmem:[#allocation2 + $0x1ad0] sm:$0xff]
    %v958 = vld [vmem:[#allocation2 + $0x1ad8] sm:$0xff]
    %v959 = vld [vmem:[#allocation2 + $0x1ae0] sm:$0xff]
    %v960 = vld [vmem:[#allocation2 + $0x1ae8] sm:$0xff]
    %v961 = vld [vmem:[#allocation2 + $0x1af0] sm:$0xff]
    %v962 = vld [vmem:[#allocation2 + $0x1af8] sm:$0xff]
    %v963 = vld [vmem:[#allocation2 + $0x1b00] sm:$0xff]
    %v964 = vld [vmem:[#allocation2 + $0x1b08] sm:$0xff]
    %v965 = vld [vmem:[#allocation2 + $0x1b10] sm:$0xff]
    %v966 = vld [vmem:[#allocation2 + $0x1b18] sm:$0xff]
    %v967 = vld [vmem:[#allocation2 + $0x1b20] sm:$0xff]
    %v968 = vld [vmem:[#allocation2 + $0x1b28] sm:$0xff]
    %v969 = vld [vmem:[#allocation2 + $0x1b30] sm:$0xff]
    %v970 = vld [vmem:[#allocation2 + $0x1b38] sm:$0xff]
    %v971 = vld [vmem:[#allocation2 + $0x1b40] sm:$0xff]
    %v972 = vld [vmem:[#allocation2 + $0x1b48] sm:$0xff]
    %v973 = vld [vmem:[#allocation2 + $0x1b50] sm:$0xff]
    %v974 = vld [vmem:[#allocation2 + $0x1b58] sm:$0xff]
    %v975 = vld [vmem:[#allocation2 + $0x1b60] sm:$0xff]
    %v976 = vld [vmem:[#allocation2 + $0x1b68] sm:$0xff]
    %v977 = vld [vmem:[#allocation2 + $0x1b70] sm:$0xff]
    %v978 = vld [vmem:[#allocation2 + $0x1b78] sm:$0xff]
    %v979 = vld [vmem:[#allocation2 + $0x1b80] sm:$0xff]
    %v980 = vld [vmem:[#allocation2 + $0x1b88] sm:$0xff]
    %v981 = vld [vmem:[#allocation2 + $0x1b90] sm:$0xff]
    %v982 = vld [vmem:[#allocation2 + $0x1b98] sm:$0xff]
    %v983 = vld [vmem:[#allocation2 + $0x1ba0] sm:$0xff]
    %v984 = vld [vmem:[#allocation2 + $0x1ba8] sm:$0xff]
    %v985 = vld [vmem:[#allocation2 + $0x1bb0] sm:$0xff]
    %v986 = vld [vmem:[#allocation2 + $0x1bb8] sm:$0xff]
    %v987 = vld [vmem:[#allocation2 + $0x1bc0] sm:$0xff]
    %v988 = vld [vmem:[#allocation2 + $0x1bc8] sm:$0xff]
    %v989 = vld [vmem:[#allocation2 + $0x1bd0] sm:$0xff]
    %v990 = vld [vmem:[#allocation2 + $0x1bd8] sm:$0xff]
    %v991 = vld [vmem:[#allocation2 + $0x1be0] sm:$0xff]
    %v992 = vld [vmem:[#allocation2 + $0x1be8] sm:$0xff]
    %v993 = vld [vmem:[#allocation2 + $0x1bf0] sm:$0xff]
    %v994 = vld [vmem:[#allocation2 + $0x1bf8] sm:$0xff]
    %v995 = vld [vmem:[#allocation2 + $0x1c00] sm:$0xff]
    %v996 = vld [vmem:[#allocation2 + $0x1c08] sm:$0xff]
    %v997 = vld [vmem:[#allocation2 + $0x1c10] sm:$0xff]
    %v998 = vld [vmem:[#allocation2 + $0x1c18] sm:$0xff]
    %v999 = vld [vmem:[#allocation2 + $0x1c20] sm:$0xff]
    %v1000 = vld [vmem:[#allocation2 + $0x1c28] sm:$0xff]
    %v1001 = vld [vmem:[#allocation2 + $0x1c30] sm:$0xff]
    %v1002 = vld [vmem:[#allocation2 + $0x1c38] sm:$0xff]
    %v1003 = vld [vmem:[#allocation2 + $0x1c40] sm:$0xff]
    %v1004 = vld [vmem:[#allocation2 + $0x1c48] sm:$0xff]
    %v1005 = vld [vmem:[#allocation2 + $0x1c50] sm:$0xff]
    %v1006 = vld [vmem:[#allocation2 + $0x1c58] sm:$0xff]
    %v1007 = vld [vmem:[#allocation2 + $0x1c60] sm:$0xff]
    %v1008 = vld [vmem:[#allocation2 + $0x1c68] sm:$0xff]
    %v1009 = vld [vmem:[#allocation2 + $0x1c70] sm:$0xff]
    %v1010 = vld [vmem:[#allocation2 + $0x1c78] sm:$0xff]
    %v1011 = vld [vmem:[#allocation2 + $0x1c80] sm:$0xff]
    %v1012 = vld [vmem:[#allocation2 + $0x1c88] sm:$0xff]
    %v1013 = vld [vmem:[#allocation2 + $0x1c90] sm:$0xff]
    %v1014 = vld [vmem:[#allocation2 + $0x1c98] sm:$0xff]
    %v1015 = vld [vmem:[#allocation2 + $0x1ca0] sm:$0xff]
    %v1016 = vld [vmem:[#allocation2 + $0x1ca8] sm:$0xff]
    %v1017 = vld [vmem:[#allocation2 + $0x1cb0] sm:$0xff]
    %v1018 = vld [vmem:[#allocation2 + $0x1cb8] sm:$0xff]
    %v1019 = vld [vmem:[#allocation2 + $0x1cc0] sm:$0xff]
    %v1020 = vld [vmem:[#allocation2 + $0x1cc8] sm:$0xff]
    %v1021 = vld [vmem:[#allocation2 + $0x1cd0] sm:$0xff]
    %v1022 = vld [vmem:[#allocation2 + $0x1cd8] sm:$0xff]
    %v1023 = vld [vmem:[#allocation2 + $0x1ce0] sm:$0xff]
    %v1024 = vld [vmem:[#allocation2 + $0x1ce8] sm:$0xff]
    %v1025 = vld [vmem:[#allocation2 + $0x1cf0] sm:$0xff]
    %v1026 = vld [vmem:[#allocation2 + $0x1cf8] sm:$0xff]
    %v1027 = vld [vmem:[#allocation2 + $0x1d00] sm:$0xff]
    %v1028 = vld [vmem:[#allocation2 + $0x1d08] sm:$0xff]
    %v1029 = vld [vmem:[#allocation2 + $0x1d10] sm:$0xff]
    %v1030 = vld [vmem:[#allocation2 + $0x1d18] sm:$0xff]
    %v1031 = vld [vmem:[#allocation2 + $0x1d20] sm:$0xff]
    %v1032 = vld [vmem:[#allocation2 + $0x1d28] sm:$0xff]
    %v1033 = vld [vmem:[#allocation2 + $0x1d30] sm:$0xff]
    %v1034 = vld [vmem:[#allocation2 + $0x1d38] sm:$0xff]
    %v1035 = vld [vmem:[#allocation2 + $0x1d40] sm:$0xff]
    %v1036 = vld [vmem:[#allocation2 + $0x1d48] sm:$0xff]
    %v1037 = vld [vmem:[#allocation2 + $0x1d50] sm:$0xff]
    %v1038 = vld [vmem:[#allocation2 + $0x1d58] sm:$0xff]
    %v1039 = vld [vmem:[#allocation2 + $0x1d60] sm:$0xff]
    %v1040 = vld [vmem:[#allocation2 + $0x1d68] sm:$0xff]
    %v1041 = vld [vmem:[#allocation2 + $0x1d70] sm:$0xff]
    %v1042 = vld [vmem:[#allocation2 + $0x1d78] sm:$0xff]
    %v1043 = vld [vmem:[#allocation2 + $0x1d80] sm:$0xff]
    %v1044 = vld [vmem:[#allocation2 + $0x1d88] sm:$0xff]
    %v1045 = vld [vmem:[#allocation2 + $0x1d90] sm:$0xff]
    %v1046 = vld [vmem:[#allocation2 + $0x1d98] sm:$0xff]
    %v1047 = vld [vmem:[#allocation2 + $0x1da0] sm:$0xff]
    %v1048 = vld [vmem:[#allocation2 + $0x1da8] sm:$0xff]
    %v1049 = vld [vmem:[#allocation2 + $0x1db0] sm:$0xff]
    %v1050 = vld [vmem:[#allocation2 + $0x1db8] sm:$0xff]
    %v1051 = vld [vmem:[#allocation2 + $0x1dc0] sm:$0xff]
    %v1052 = vld [vmem:[#allocation2 + $0x1dc8] sm:$0xff]
    %v1053 = vld [vmem:[#allocation2 + $0x1dd0] sm:$0xff]
    %v1054 = vld [vmem:[#allocation2 + $0x1dd8] sm:$0xff]
    %v1055 = vld [vmem:[#allocation2 + $0x1de0] sm:$0xff]
    %v1056 = vld [vmem:[#allocation2 + $0x1de8] sm:$0xff]
    %v1057 = vld [vmem:[#allocation2 + $0x1df0] sm:$0xff]
    %v1058 = vld [vmem:[#allocation2 + $0x1df8] sm:$0xff]
    %v1059 = vld [vmem:[#allocation2 + $0x1e00] sm:$0xff]
    %v1060 = vld [vmem:[#allocation2 + $0x1e08] sm:$0xff]
    %v1061 = vld [vmem:[#allocation2 + $0x1e10] sm:$0xff]
    %v1062 = vld [vmem:[#allocation2 + $0x1e18] sm:$0xff]
    %v1063 = vld [vmem:[#allocation2 + $0x1e20] sm:$0xff]
    %v1064 = vld [vmem:[#allocation2 + $0x1e28] sm:$0xff]
    %v1065 = vld [vmem:[#allocation2 + $0x1e30] sm:$0xff]
    %v1066 = vld [vmem:[#allocation2 + $0x1e38] sm:$0xff]
    %v1067 = vld [vmem:[#allocation2 + $0x1e40] sm:$0xff]
    %v1068 = vld [vmem:[#allocation2 + $0x1e48] sm:$0xff]
    %v1069 = vld [vmem:[#allocation2 + $0x1e50] sm:$0xff]
    %v1070 = vld [vmem:[#allocation2 + $0x1e58] sm:$0xff]
    %v1071 = vld [vmem:[#allocation2 + $0x1e60] sm:$0xff]
    %v1072 = vld [vmem:[#allocation2 + $0x1e68] sm:$0xff]
    %v1073 = vld [vmem:[#allocation2 + $0x1e70] sm:$0xff]
    %v1074 = vld [vmem:[#allocation2 + $0x1e78] sm:$0xff]
    %v1075 = vld [vmem:[#allocation2 + $0x1e80] sm:$0xff]
    %v1076 = vld [vmem:[#allocation2 + $0x1e88] sm:$0xff]
    %v1077 = vld [vmem:[#allocation2 + $0x1e90] sm:$0xff]
    %v1078 = vld [vmem:[#allocation2 + $0x1e98] sm:$0xff]
    %v1079 = vld [vmem:[#allocation2 + $0x1ea0] sm:$0xff]
    %v1080 = vld [vmem:[#allocation2 + $0x1ea8] sm:$0xff]
    %v1081 = vld [vmem:[#allocation2 + $0x1eb0] sm:$0xff]
    %v1082 = vld [vmem:[#allocation2 + $0x1eb8] sm:$0xff]
    %v1083 = vld [vmem:[#allocation2 + $0x1ec0] sm:$0xff]
    %v1084 = vld [vmem:[#allocation2 + $0x1ec8] sm:$0xff]
    %v1085 = vld [vmem:[#allocation2 + $0x1ed0] sm:$0xff]
    %v1086 = vld [vmem:[#allocation2 + $0x1ed8] sm:$0xff]
    %v1087 = vld [vmem:[#allocation2 + $0x1ee0] sm:$0xff]
    %v1088 = vld [vmem:[#allocation2 + $0x1ee8] sm:$0xff]
    %v1089 = vld [vmem:[#allocation2 + $0x1ef0] sm:$0xff]
    %v1090 = vld [vmem:[#allocation2 + $0x1ef8] sm:$0xff]
    %v1091 = vld [vmem:[#allocation2 + $0x1f00] sm:$0xff]
    %v1092 = vld [vmem:[#allocation2 + $0x1f08] sm:$0xff]
    %v1093 = vld [vmem:[#allocation2 + $0x1f10] sm:$0xff]
    %v1094 = vld [vmem:[#allocation2 + $0x1f18] sm:$0xff]
    %v1095 = vld [vmem:[#allocation2 + $0x1f20] sm:$0xff]
    %v1096 = vld [vmem:[#allocation2 + $0x1f28] sm:$0xff]
    %v1097 = vld [vmem:[#allocation2 + $0x1f30] sm:$0xff]
    %v1098 = vld [vmem:[#allocation2 + $0x1f38] sm:$0xff]
    %v1099 = vld [vmem:[#allocation2 + $0x1f40] sm:$0xff]
    %v1100 = vld [vmem:[#allocation2 + $0x1f48] sm:$0xff]
    %v1101 = vld [vmem:[#allocation2 + $0x1f50] sm:$0xff]
    %v1102 = vld [vmem:[#allocation2 + $0x1f58] sm:$0xff]
    %v1103 = vld [vmem:[#allocation2 + $0x1f60] sm:$0xff]
    %v1104 = vld [vmem:[#allocation2 + $0x1f68] sm:$0xff]
    %v1105 = vld [vmem:[#allocation2 + $0x1f70] sm:$0xff]
    %v1106 = vld [vmem:[#allocation2 + $0x1f78] sm:$0xff]
    %v1107 = vld [vmem:[#allocation2 + $0x1f80] sm:$0xff]
    %v1108 = vld [vmem:[#allocation2 + $0x1f88] sm:$0xff]
    %v1109 = vld [vmem:[#allocation2 + $0x1f90] sm:$0xff]
    %v1110 = vld [vmem:[#allocation2 + $0x1f98] sm:$0xff]
    %v1111 = vld [vmem:[#allocation2 + $0x1fa0] sm:$0xff]
    %v1112 = vld [vmem:[#allocation2 + $0x1fa8] sm:$0xff]
    %v1113 = vld [vmem:[#allocation2 + $0x1fb0] sm:$0xff]
    %v1114 = vld [vmem:[#allocation2 + $0x1fb8] sm:$0xff]
    %v1115 = vld [vmem:[#allocation2 + $0x1fc0] sm:$0xff]
    %v1116 = vld [vmem:[#allocation2 + $0x1fc8] sm:$0xff]
    %v1117 = vld [vmem:[#allocation2 + $0x1fd0] sm:$0xff]
    %v1118 = vld [vmem:[#allocation2 + $0x1fd8] sm:$0xff]
    %v1119 = vld [vmem:[#allocation2 + $0x1fe0] sm:$0xff]
    %v1120 = vld [vmem:[#allocation2 + $0x1fe8] sm:$0xff]
    %v1121 = vld [vmem:[#allocation2 + $0x1ff0] sm:$0xff]
    %v1122 = vld [vmem:[#allocation2 + $0x1ff8] sm:$0xff]
    %v1123 = vld [vmem:[%s2] sm:$0xff]
    %v1125 = vlaneseq
    %v1126 = vshrl.u32 %v1125, 7
    %v1127 = vsub.s32 0, %v1126
    %v1128 = vrot.slane %v1123, %v1127
    %v1129 = vlaneseq
    %v1130 = vshrl.u32 %v1129, 7
    %v1131 = vsub.s32 1, %v1130
    %v1132 = vrot.slane %v1123, %v1131
    %v1133 = vlaneseq
    %v1134 = vshrl.u32 %v1133, 7
    %v1135 = vsub.s32 2, %v1134
    %v1136 = vrot.slane %v1123, %v1135
    %v1137 = vlaneseq
    %v1138 = vshrl.u32 %v1137, 7
    %v1139 = vsub.s32 3, %v1138
    %v1140 = vrot.slane %v1123, %v1139
    %v1141 = vlaneseq
    %v1142 = vshrl.u32 %v1141, 7
    %v1143 = vsub.s32 4, %v1142
    %v1144 = vrot.slane %v1123, %v1143
    %v1145 = vlaneseq
    %v1146 = vshrl.u32 %v1145, 7
    %v1147 = vsub.s32 5, %v1146
    %v1148 = vrot.slane %v1123, %v1147
    %v1149 = vlaneseq
    %v1150 = vshrl.u32 %v1149, 7
    %v1151 = vsub.s32 6, %v1150
    %v1152 = vrot.slane %v1123, %v1151
    %v1153 = vlaneseq
    %v1154 = vshrl.u32 %v1153, 7
    %v1155 = vsub.s32 7, %v1154
    %v1156 = vrot.slane %v1123, %v1155
    %v2189 = vunpack.c.l.b16 %v99
    %v2190 = vunpack.c.h.b16 %v99
    %v2191 = vunpack.c.l.b16 %v100
    %v2192 = vunpack.c.h.b16 %v100
    %v2193 = vunpack.c.l.b16 %v101
    %v2194 = vunpack.c.h.b16 %v101
    %v2195 = vunpack.c.l.b16 %v102
    %v2196 = vunpack.c.h.b16 %v102
    %v2197 = vunpack.c.l.b16 %v103
    %v2198 = vunpack.c.h.b16 %v103
    %v2199 = vunpack.c.l.b16 %v104
    %v2200 = vunpack.c.h.b16 %v104
    %v2201 = vunpack.c.l.b16 %v105
    %v2202 = vunpack.c.h.b16 %v105
    %v2203 = vunpack.c.l.b16 %v106
    %v2204 = vunpack.c.h.b16 %v106
    %v2205 = vunpack.c.l.b16 %v107
    %v2206 = vunpack.c.h.b16 %v107
    %v2207 = vunpack.c.l.b16 %v108
    %v2208 = vunpack.c.h.b16 %v108
    %v2209 = vunpack.c.l.b16 %v109
    %v2210 = vunpack.c.h.b16 %v109
    %v2211 = vunpack.c.l.b16 %v110
    %v2212 = vunpack.c.h.b16 %v110
    %v2213 = vunpack.c.l.b16 %v111
    %v2214 = vunpack.c.h.b16 %v111
    %v2215 = vunpack.c.l.b16 %v112
    %v2216 = vunpack.c.h.b16 %v112
    %v2217 = vunpack.c.l.b16 %v113
    %v2218 = vunpack.c.h.b16 %v113
    %v2219 = vunpack.c.l.b16 %v114
    %v2220 = vunpack.c.h.b16 %v114
    %v2221 = vunpack.c.l.b16 %v115
    %v2222 = vunpack.c.h.b16 %v115
    %v2223 = vunpack.c.l.b16 %v116
    %v2224 = vunpack.c.h.b16 %v116
    %v2225 = vunpack.c.l.b16 %v117
    %v2226 = vunpack.c.h.b16 %v117
    %v2227 = vunpack.c.l.b16 %v118
    %v2228 = vunpack.c.h.b16 %v118
    %v2229 = vunpack.c.l.b16 %v119
    %v2230 = vunpack.c.h.b16 %v119
    %v2231 = vunpack.c.l.b16 %v120
    %v2232 = vunpack.c.h.b16 %v120
    %v2233 = vunpack.c.l.b16 %v121
    %v2234 = vunpack.c.h.b16 %v121
    %v2235 = vunpack.c.l.b16 %v122
    %v2236 = vunpack.c.h.b16 %v122
    %v2237 = vunpack.c.l.b16 %v123
    %v2238 = vunpack.c.h.b16 %v123
    %v2239 = vunpack.c.l.b16 %v124
    %v2240 = vunpack.c.h.b16 %v124
    %v2241 = vunpack.c.l.b16 %v125
    %v2242 = vunpack.c.h.b16 %v125
    %v2243 = vunpack.c.l.b16 %v126
    %v2244 = vunpack.c.h.b16 %v126
    %v2245 = vunpack.c.l.b16 %v127
    %v2246 = vunpack.c.h.b16 %v127
    %v2247 = vunpack.c.l.b16 %v128
    %v2248 = vunpack.c.h.b16 %v128
    %v2249 = vunpack.c.l.b16 %v129
    %v2250 = vunpack.c.h.b16 %v129
    %v2251 = vunpack.c.l.b16 %v130
    %v2252 = vunpack.c.h.b16 %v130
    %v2253 = vunpack.c.l.b16 %v131
    %v2254 = vunpack.c.h.b16 %v131
    %v2255 = vunpack.c.l.b16 %v132
    %v2256 = vunpack.c.h.b16 %v132
    %v2257 = vunpack.c.l.b16 %v133
    %v2258 = vunpack.c.h.b16 %v133
    %v2259 = vunpack.c.l.b16 %v134
    %v2260 = vunpack.c.h.b16 %v134
    %v2261 = vunpack.c.l.b16 %v135
    %v2262 = vunpack.c.h.b16 %v135
    %v2263 = vunpack.c.l.b16 %v136
    %v2264 = vunpack.c.h.b16 %v136
    %v2265 = vunpack.c.l.b16 %v137
    %v2266 = vunpack.c.h.b16 %v137
    %v2267 = vunpack.c.l.b16 %v138
    %v2268 = vunpack.c.h.b16 %v138
    %v2269 = vunpack.c.l.b16 %v139
    %v2270 = vunpack.c.h.b16 %v139
    %v2271 = vunpack.c.l.b16 %v140
    %v2272 = vunpack.c.h.b16 %v140
    %v2273 = vunpack.c.l.b16 %v141
    %v2274 = vunpack.c.h.b16 %v141
    %v2275 = vunpack.c.l.b16 %v142
    %v2276 = vunpack.c.h.b16 %v142
    %v2277 = vunpack.c.l.b16 %v143
    %v2278 = vunpack.c.h.b16 %v143
    %v2279 = vunpack.c.l.b16 %v144
    %v2280 = vunpack.c.h.b16 %v144
    %v2281 = vunpack.c.l.b16 %v145
    %v2282 = vunpack.c.h.b16 %v145
    %v2283 = vunpack.c.l.b16 %v146
    %v2284 = vunpack.c.h.b16 %v146
    %v2285 = vunpack.c.l.b16 %v147
    %v2286 = vunpack.c.h.b16 %v147
    %v2287 = vunpack.c.l.b16 %v148
    %v2288 = vunpack.c.h.b16 %v148
    %v2289 = vunpack.c.l.b16 %v149
    %v2290 = vunpack.c.h.b16 %v149
    %v2291 = vunpack.c.l.b16 %v150
    %v2292 = vunpack.c.h.b16 %v150
    %v2293 = vunpack.c.l.b16 %v151
    %v2294 = vunpack.c.h.b16 %v151
    %v2295 = vunpack.c.l.b16 %v152
    %v2296 = vunpack.c.h.b16 %v152
    %v2297 = vunpack.c.l.b16 %v153
    %v2298 = vunpack.c.h.b16 %v153
    %v2299 = vunpack.c.l.b16 %v154
    %v2300 = vunpack.c.h.b16 %v154
    %v2301 = vunpack.c.l.b16 %v155
    %v2302 = vunpack.c.h.b16 %v155
    %v2303 = vunpack.c.l.b16 %v156
    %v2304 = vunpack.c.h.b16 %v156
    %v2305 = vunpack.c.l.b16 %v157
    %v2306 = vunpack.c.h.b16 %v157
    %v2307 = vunpack.c.l.b16 %v158
    %v2308 = vunpack.c.h.b16 %v158
    %v2309 = vunpack.c.l.b16 %v159
    %v2310 = vunpack.c.h.b16 %v159
    %v2311 = vunpack.c.l.b16 %v160
    %v2312 = vunpack.c.h.b16 %v160
    %v2313 = vunpack.c.l.b16 %v161
    %v2314 = vunpack.c.h.b16 %v161
    %v2315 = vunpack.c.l.b16 %v162
    %v2316 = vunpack.c.h.b16 %v162
    %v2317 = vunpack.c.l.b16 %v163
    %v2318 = vunpack.c.h.b16 %v163
    %v2319 = vunpack.c.l.b16 %v164
    %v2320 = vunpack.c.h.b16 %v164
    %v2321 = vunpack.c.l.b16 %v165
    %v2322 = vunpack.c.h.b16 %v165
    %v2323 = vunpack.c.l.b16 %v166
    %v2324 = vunpack.c.h.b16 %v166
    %v2325 = vunpack.c.l.b16 %v167
    %v2326 = vunpack.c.h.b16 %v167
    %v2327 = vunpack.c.l.b16 %v168
    %v2328 = vunpack.c.h.b16 %v168
    %v2329 = vunpack.c.l.b16 %v169
    %v2330 = vunpack.c.h.b16 %v169
    %v2331 = vunpack.c.l.b16 %v170
    %v2332 = vunpack.c.h.b16 %v170
    %v2333 = vunpack.c.l.b16 %v171
    %v2334 = vunpack.c.h.b16 %v171
    %v2335 = vunpack.c.l.b16 %v172
    %v2336 = vunpack.c.h.b16 %v172
    %v2337 = vunpack.c.l.b16 %v173
    %v2338 = vunpack.c.h.b16 %v173
    %v2339 = vunpack.c.l.b16 %v174
    %v2340 = vunpack.c.h.b16 %v174
    %v2341 = vunpack.c.l.b16 %v175
    %v2342 = vunpack.c.h.b16 %v175
    %v2343 = vunpack.c.l.b16 %v176
    %v2344 = vunpack.c.h.b16 %v176
    %v2345 = vunpack.c.l.b16 %v177
    %v2346 = vunpack.c.h.b16 %v177
    %v2347 = vunpack.c.l.b16 %v178
    %v2348 = vunpack.c.h.b16 %v178
    %v2349 = vunpack.c.l.b16 %v179
    %v2350 = vunpack.c.h.b16 %v179
    %v2351 = vunpack.c.l.b16 %v180
    %v2352 = vunpack.c.h.b16 %v180
    %v2353 = vunpack.c.l.b16 %v181
    %v2354 = vunpack.c.h.b16 %v181
    %v2355 = vunpack.c.l.b16 %v182
    %v2356 = vunpack.c.h.b16 %v182
    %v2357 = vunpack.c.l.b16 %v183
    %v2358 = vunpack.c.h.b16 %v183
    %v2359 = vunpack.c.l.b16 %v184
    %v2360 = vunpack.c.h.b16 %v184
    %v2361 = vunpack.c.l.b16 %v185
    %v2362 = vunpack.c.h.b16 %v185
    %v2363 = vunpack.c.l.b16 %v186
    %v2364 = vunpack.c.h.b16 %v186
    %v2365 = vunpack.c.l.b16 %v187
    %v2366 = vunpack.c.h.b16 %v187
    %v2367 = vunpack.c.l.b16 %v188
    %v2368 = vunpack.c.h.b16 %v188
    %v2369 = vunpack.c.l.b16 %v189
    %v2370 = vunpack.c.h.b16 %v189
    %v2371 = vunpack.c.l.b16 %v190
    %v2372 = vunpack.c.h.b16 %v190
    %v2373 = vunpack.c.l.b16 %v191
    %v2374 = vunpack.c.h.b16 %v191
    %v2375 = vunpack.c.l.b16 %v192
    %v2376 = vunpack.c.h.b16 %v192
    %v2377 = vunpack.c.l.b16 %v193
    %v2378 = vunpack.c.h.b16 %v193
    %v2379 = vunpack.c.l.b16 %v194
    %v2380 = vunpack.c.h.b16 %v194
    %v2381 = vunpack.c.l.b16 %v195
    %v2382 = vunpack.c.h.b16 %v195
    %v2383 = vunpack.c.l.b16 %v196
    %v2384 = vunpack.c.h.b16 %v196
    %v2385 = vunpack.c.l.b16 %v197
    %v2386 = vunpack.c.h.b16 %v197
    %v2387 = vunpack.c.l.b16 %v198
    %v2388 = vunpack.c.h.b16 %v198
    %v2389 = vunpack.c.l.b16 %v199
    %v2390 = vunpack.c.h.b16 %v199
    %v2391 = vunpack.c.l.b16 %v200
    %v2392 = vunpack.c.h.b16 %v200
    %v2393 = vunpack.c.l.b16 %v201
    %v2394 = vunpack.c.h.b16 %v201
    %v2395 = vunpack.c.l.b16 %v202
    %v2396 = vunpack.c.h.b16 %v202
    %v2397 = vunpack.c.l.b16 %v203
    %v2398 = vunpack.c.h.b16 %v203
    %v2399 = vunpack.c.l.b16 %v204
    %v2400 = vunpack.c.h.b16 %v204
    %v2401 = vunpack.c.l.b16 %v205
    %v2402 = vunpack.c.h.b16 %v205
    %v2403 = vunpack.c.l.b16 %v206
    %v2404 = vunpack.c.h.b16 %v206
    %v2405 = vunpack.c.l.b16 %v207
    %v2406 = vunpack.c.h.b16 %v207
    %v2407 = vunpack.c.l.b16 %v208
    %v2408 = vunpack.c.h.b16 %v208
    %v2409 = vunpack.c.l.b16 %v209
    %v2410 = vunpack.c.h.b16 %v209
    %v2411 = vunpack.c.l.b16 %v210
    %v2412 = vunpack.c.h.b16 %v210
    %v2413 = vunpack.c.l.b16 %v211
    %v2414 = vunpack.c.h.b16 %v211
    %v2415 = vunpack.c.l.b16 %v212
    %v2416 = vunpack.c.h.b16 %v212
    %v2417 = vunpack.c.l.b16 %v213
    %v2418 = vunpack.c.h.b16 %v213
    %v2419 = vunpack.c.l.b16 %v214
    %v2420 = vunpack.c.h.b16 %v214
    %v2421 = vunpack.c.l.b16 %v215
    %v2422 = vunpack.c.h.b16 %v215
    %v2423 = vunpack.c.l.b16 %v216
    %v2424 = vunpack.c.h.b16 %v216
    %v2425 = vunpack.c.l.b16 %v217
    %v2426 = vunpack.c.h.b16 %v217
    %v2427 = vunpack.c.l.b16 %v218
    %v2428 = vunpack.c.h.b16 %v218
    %v2429 = vunpack.c.l.b16 %v219
    %v2430 = vunpack.c.h.b16 %v219
    %v2431 = vunpack.c.l.b16 %v220
    %v2432 = vunpack.c.h.b16 %v220
    %v2433 = vunpack.c.l.b16 %v221
    %v2434 = vunpack.c.h.b16 %v221
    %v2435 = vunpack.c.l.b16 %v222
    %v2436 = vunpack.c.h.b16 %v222
    %v2437 = vunpack.c.l.b16 %v223
    %v2438 = vunpack.c.h.b16 %v223
    %v2439 = vunpack.c.l.b16 %v224
    %v2440 = vunpack.c.h.b16 %v224
    %v2441 = vunpack.c.l.b16 %v225
    %v2442 = vunpack.c.h.b16 %v225
    %v2443 = vunpack.c.l.b16 %v226
    %v2444 = vunpack.c.h.b16 %v226
    %v2445 = vunpack.c.l.b16 %v227
    %v2446 = vunpack.c.h.b16 %v227
    %v2447 = vunpack.c.l.b16 %v228
    %v2448 = vunpack.c.h.b16 %v228
    %v2449 = vunpack.c.l.b16 %v229
    %v2450 = vunpack.c.h.b16 %v229
    %v2451 = vunpack.c.l.b16 %v230
    %v2452 = vunpack.c.h.b16 %v230
    %v2453 = vunpack.c.l.b16 %v231
    %v2454 = vunpack.c.h.b16 %v231
    %v2455 = vunpack.c.l.b16 %v232
    %v2456 = vunpack.c.h.b16 %v232
    %v2457 = vunpack.c.l.b16 %v233
    %v2458 = vunpack.c.h.b16 %v233
    %v2459 = vunpack.c.l.b16 %v234
    %v2460 = vunpack.c.h.b16 %v234
    %v2461 = vunpack.c.l.b16 %v235
    %v2462 = vunpack.c.h.b16 %v235
    %v2463 = vunpack.c.l.b16 %v236
    %v2464 = vunpack.c.h.b16 %v236
    %v2465 = vunpack.c.l.b16 %v237
    %v2466 = vunpack.c.h.b16 %v237
    %v2467 = vunpack.c.l.b16 %v238
    %v2468 = vunpack.c.h.b16 %v238
    %v2469 = vunpack.c.l.b16 %v239
    %v2470 = vunpack.c.h.b16 %v239
    %v2471 = vunpack.c.l.b16 %v240
    %v2472 = vunpack.c.h.b16 %v240
    %v2473 = vunpack.c.l.b16 %v241
    %v2474 = vunpack.c.h.b16 %v241
    %v2475 = vunpack.c.l.b16 %v242
    %v2476 = vunpack.c.h.b16 %v242
    %v2477 = vunpack.c.l.b16 %v243
    %v2478 = vunpack.c.h.b16 %v243
    %v2479 = vunpack.c.l.b16 %v244
    %v2480 = vunpack.c.h.b16 %v244
    %v2481 = vunpack.c.l.b16 %v245
    %v2482 = vunpack.c.h.b16 %v245
    %v2483 = vunpack.c.l.b16 %v246
    %v2484 = vunpack.c.h.b16 %v246
    %v2485 = vunpack.c.l.b16 %v247
    %v2486 = vunpack.c.h.b16 %v247
    %v2487 = vunpack.c.l.b16 %v248
    %v2488 = vunpack.c.h.b16 %v248
    %v2489 = vunpack.c.l.b16 %v249
    %v2490 = vunpack.c.h.b16 %v249
    %v2491 = vunpack.c.l.b16 %v250
    %v2492 = vunpack.c.h.b16 %v250
    %v2493 = vunpack.c.l.b16 %v251
    %v2494 = vunpack.c.h.b16 %v251
    %v2495 = vunpack.c.l.b16 %v252
    %v2496 = vunpack.c.h.b16 %v252
    %v2497 = vunpack.c.l.b16 %v253
    %v2498 = vunpack.c.h.b16 %v253
    %v2499 = vunpack.c.l.b16 %v254
    %v2500 = vunpack.c.h.b16 %v254
    %v2501 = vunpack.c.l.b16 %v255
    %v2502 = vunpack.c.h.b16 %v255
    %v2503 = vunpack.c.l.b16 %v256
    %v2504 = vunpack.c.h.b16 %v256
    %v2505 = vunpack.c.l.b16 %v257
    %v2506 = vunpack.c.h.b16 %v257
    %v2507 = vunpack.c.l.b16 %v258
    %v2508 = vunpack.c.h.b16 %v258
    %v2509 = vunpack.c.l.b16 %v259
    %v2510 = vunpack.c.h.b16 %v259
    %v2511 = vunpack.c.l.b16 %v260
    %v2512 = vunpack.c.h.b16 %v260
    %v2513 = vunpack.c.l.b16 %v261
    %v2514 = vunpack.c.h.b16 %v261
    %v2515 = vunpack.c.l.b16 %v262
    %v2516 = vunpack.c.h.b16 %v262
    %v2517 = vunpack.c.l.b16 %v263
    %v2518 = vunpack.c.h.b16 %v263
    %v2519 = vunpack.c.l.b16 %v264
    %v2520 = vunpack.c.h.b16 %v264
    %v2521 = vunpack.c.l.b16 %v265
    %v2522 = vunpack.c.h.b16 %v265
    %v2523 = vunpack.c.l.b16 %v266
    %v2524 = vunpack.c.h.b16 %v266
    %v2525 = vunpack.c.l.b16 %v267
    %v2526 = vunpack.c.h.b16 %v267
    %v2527 = vunpack.c.l.b16 %v268
    %v2528 = vunpack.c.h.b16 %v268
    %v2529 = vunpack.c.l.b16 %v269
    %v2530 = vunpack.c.h.b16 %v269
    %v2531 = vunpack.c.l.b16 %v270
    %v2532 = vunpack.c.h.b16 %v270
    %v2533 = vunpack.c.l.b16 %v271
    %v2534 = vunpack.c.h.b16 %v271
    %v2535 = vunpack.c.l.b16 %v272
    %v2536 = vunpack.c.h.b16 %v272
    %v2537 = vunpack.c.l.b16 %v273
    %v2538 = vunpack.c.h.b16 %v273
    %v2539 = vunpack.c.l.b16 %v274
    %v2540 = vunpack.c.h.b16 %v274
    %v2541 = vunpack.c.l.b16 %v275
    %v2542 = vunpack.c.h.b16 %v275
    %v2543 = vunpack.c.l.b16 %v276
    %v2544 = vunpack.c.h.b16 %v276
    %v2545 = vunpack.c.l.b16 %v277
    %v2546 = vunpack.c.h.b16 %v277
    %v2547 = vunpack.c.l.b16 %v278
    %v2548 = vunpack.c.h.b16 %v278
    %v2549 = vunpack.c.l.b16 %v279
    %v2550 = vunpack.c.h.b16 %v279
    %v2551 = vunpack.c.l.b16 %v280
    %v2552 = vunpack.c.h.b16 %v280
    %v2553 = vunpack.c.l.b16 %v281
    %v2554 = vunpack.c.h.b16 %v281
    %v2555 = vunpack.c.l.b16 %v282
    %v2556 = vunpack.c.h.b16 %v282
    %v2557 = vunpack.c.l.b16 %v283
    %v2558 = vunpack.c.h.b16 %v283
    %v2559 = vunpack.c.l.b16 %v284
    %v2560 = vunpack.c.h.b16 %v284
    %v2561 = vunpack.c.l.b16 %v285
    %v2562 = vunpack.c.h.b16 %v285
    %v2563 = vunpack.c.l.b16 %v286
    %v2564 = vunpack.c.h.b16 %v286
    %v2565 = vunpack.c.l.b16 %v287
    %v2566 = vunpack.c.h.b16 %v287
    %v2567 = vunpack.c.l.b16 %v288
    %v2568 = vunpack.c.h.b16 %v288
    %v2569 = vunpack.c.l.b16 %v289
    %v2570 = vunpack.c.h.b16 %v289
    %v2571 = vunpack.c.l.b16 %v290
    %v2572 = vunpack.c.h.b16 %v290
    %v2573 = vunpack.c.l.b16 %v291
    %v2574 = vunpack.c.h.b16 %v291
    %v2575 = vunpack.c.l.b16 %v292
    %v2576 = vunpack.c.h.b16 %v292
    %v2577 = vunpack.c.l.b16 %v293
    %v2578 = vunpack.c.h.b16 %v293
    %v2579 = vunpack.c.l.b16 %v294
    %v2580 = vunpack.c.h.b16 %v294
    %v2581 = vunpack.c.l.b16 %v295
    %v2582 = vunpack.c.h.b16 %v295
    %v2583 = vunpack.c.l.b16 %v296
    %v2584 = vunpack.c.h.b16 %v296
    %v2585 = vunpack.c.l.b16 %v297
    %v2586 = vunpack.c.h.b16 %v297
    %v2587 = vunpack.c.l.b16 %v298
    %v2588 = vunpack.c.h.b16 %v298
    %v2589 = vunpack.c.l.b16 %v299
    %v2590 = vunpack.c.h.b16 %v299
    %v2591 = vunpack.c.l.b16 %v300
    %v2592 = vunpack.c.h.b16 %v300
    %v2593 = vunpack.c.l.b16 %v301
    %v2594 = vunpack.c.h.b16 %v301
    %v2595 = vunpack.c.l.b16 %v302
    %v2596 = vunpack.c.h.b16 %v302
    %v2597 = vunpack.c.l.b16 %v303
    %v2598 = vunpack.c.h.b16 %v303
    %v2599 = vunpack.c.l.b16 %v304
    %v2600 = vunpack.c.h.b16 %v304
    %v2601 = vunpack.c.l.b16 %v305
    %v2602 = vunpack.c.h.b16 %v305
    %v2603 = vunpack.c.l.b16 %v306
    %v2604 = vunpack.c.h.b16 %v306
    %v2605 = vunpack.c.l.b16 %v307
    %v2606 = vunpack.c.h.b16 %v307
    %v2607 = vunpack.c.l.b16 %v308
    %v2608 = vunpack.c.h.b16 %v308
    %v2609 = vunpack.c.l.b16 %v309
    %v2610 = vunpack.c.h.b16 %v309
    %v2611 = vunpack.c.l.b16 %v310
    %v2612 = vunpack.c.h.b16 %v310
    %v2613 = vunpack.c.l.b16 %v311
    %v2614 = vunpack.c.h.b16 %v311
    %v2615 = vunpack.c.l.b16 %v312
    %v2616 = vunpack.c.h.b16 %v312
    %v2617 = vunpack.c.l.b16 %v313
    %v2618 = vunpack.c.h.b16 %v313
    %v2619 = vunpack.c.l.b16 %v314
    %v2620 = vunpack.c.h.b16 %v314
    %v2621 = vunpack.c.l.b16 %v315
    %v2622 = vunpack.c.h.b16 %v315
    %v2623 = vunpack.c.l.b16 %v316
    %v2624 = vunpack.c.h.b16 %v316
    %v2625 = vunpack.c.l.b16 %v317
    %v2626 = vunpack.c.h.b16 %v317
    %v2627 = vunpack.c.l.b16 %v318
    %v2628 = vunpack.c.h.b16 %v318
    %v2629 = vunpack.c.l.b16 %v319
    %v2630 = vunpack.c.h.b16 %v319
    %v2631 = vunpack.c.l.b16 %v320
    %v2632 = vunpack.c.h.b16 %v320
    %v2633 = vunpack.c.l.b16 %v321
    %v2634 = vunpack.c.h.b16 %v321
    %v2635 = vunpack.c.l.b16 %v322
    %v2636 = vunpack.c.h.b16 %v322
    %v2637 = vunpack.c.l.b16 %v323
    %v2638 = vunpack.c.h.b16 %v323
    %v2639 = vunpack.c.l.b16 %v324
    %v2640 = vunpack.c.h.b16 %v324
    %v2641 = vunpack.c.l.b16 %v325
    %v2642 = vunpack.c.h.b16 %v325
    %v2643 = vunpack.c.l.b16 %v326
    %v2644 = vunpack.c.h.b16 %v326
    %v2645 = vunpack.c.l.b16 %v327
    %v2646 = vunpack.c.h.b16 %v327
    %v2647 = vunpack.c.l.b16 %v328
    %v2648 = vunpack.c.h.b16 %v328
    %v2649 = vunpack.c.l.b16 %v329
    %v2650 = vunpack.c.h.b16 %v329
    %v2651 = vunpack.c.l.b16 %v330
    %v2652 = vunpack.c.h.b16 %v330
    %v2653 = vunpack.c.l.b16 %v331
    %v2654 = vunpack.c.h.b16 %v331
    %v2655 = vunpack.c.l.b16 %v332
    %v2656 = vunpack.c.h.b16 %v332
    %v2657 = vunpack.c.l.b16 %v333
    %v2658 = vunpack.c.h.b16 %v333
    %v2659 = vunpack.c.l.b16 %v334
    %v2660 = vunpack.c.h.b16 %v334
    %v2661 = vunpack.c.l.b16 %v335
    %v2662 = vunpack.c.h.b16 %v335
    %v2663 = vunpack.c.l.b16 %v336
    %v2664 = vunpack.c.h.b16 %v336
    %v2665 = vunpack.c.l.b16 %v337
    %v2666 = vunpack.c.h.b16 %v337
    %v2667 = vunpack.c.l.b16 %v338
    %v2668 = vunpack.c.h.b16 %v338
    %v2669 = vunpack.c.l.b16 %v339
    %v2670 = vunpack.c.h.b16 %v339
    %v2671 = vunpack.c.l.b16 %v340
    %v2672 = vunpack.c.h.b16 %v340
    %v2673 = vunpack.c.l.b16 %v341
    %v2674 = vunpack.c.h.b16 %v341
    %v2675 = vunpack.c.l.b16 %v342
    %v2676 = vunpack.c.h.b16 %v342
    %v2677 = vunpack.c.l.b16 %v343
    %v2678 = vunpack.c.h.b16 %v343
    %v2679 = vunpack.c.l.b16 %v344
    %v2680 = vunpack.c.h.b16 %v344
    %v2681 = vunpack.c.l.b16 %v345
    %v2682 = vunpack.c.h.b16 %v345
    %v2683 = vunpack.c.l.b16 %v346
    %v2684 = vunpack.c.h.b16 %v346
    %v2685 = vunpack.c.l.b16 %v347
    %v2686 = vunpack.c.h.b16 %v347
    %v2687 = vunpack.c.l.b16 %v348
    %v2688 = vunpack.c.h.b16 %v348
    %v2689 = vunpack.c.l.b16 %v349
    %v2690 = vunpack.c.h.b16 %v349
    %v2691 = vunpack.c.l.b16 %v350
    %v2692 = vunpack.c.h.b16 %v350
    %v2693 = vunpack.c.l.b16 %v351
    %v2694 = vunpack.c.h.b16 %v351
    %v2695 = vunpack.c.l.b16 %v352
    %v2696 = vunpack.c.h.b16 %v352
    %v2697 = vunpack.c.l.b16 %v353
    %v2698 = vunpack.c.h.b16 %v353
    %v2699 = vunpack.c.l.b16 %v354
    %v2700 = vunpack.c.h.b16 %v354
    %v2701 = vunpack.c.l.b16 %v355
    %v2702 = vunpack.c.h.b16 %v355
    %v2703 = vunpack.c.l.b16 %v356
    %v2704 = vunpack.c.h.b16 %v356
    %v2705 = vunpack.c.l.b16 %v357
    %v2706 = vunpack.c.h.b16 %v357
    %v2707 = vunpack.c.l.b16 %v358
    %v2708 = vunpack.c.h.b16 %v358
    %v2709 = vunpack.c.l.b16 %v359
    %v2710 = vunpack.c.h.b16 %v359
    %v2711 = vunpack.c.l.b16 %v360
    %v2712 = vunpack.c.h.b16 %v360
    %v2713 = vunpack.c.l.b16 %v361
    %v2714 = vunpack.c.h.b16 %v361
    %v2715 = vunpack.c.l.b16 %v362
    %v2716 = vunpack.c.h.b16 %v362
    %v2717 = vunpack.c.l.b16 %v363
    %v2718 = vunpack.c.h.b16 %v363
    %v2719 = vunpack.c.l.b16 %v364
    %v2720 = vunpack.c.h.b16 %v364
    %v2721 = vunpack.c.l.b16 %v365
    %v2722 = vunpack.c.h.b16 %v365
    %v2723 = vunpack.c.l.b16 %v366
    %v2724 = vunpack.c.h.b16 %v366
    %v2725 = vunpack.c.l.b16 %v367
    %v2726 = vunpack.c.h.b16 %v367
    %v2727 = vunpack.c.l.b16 %v368
    %v2728 = vunpack.c.h.b16 %v368
    %v2729 = vunpack.c.l.b16 %v369
    %v2730 = vunpack.c.h.b16 %v369
    %v2731 = vunpack.c.l.b16 %v370
    %v2732 = vunpack.c.h.b16 %v370
    %v2733 = vunpack.c.l.b16 %v371
    %v2734 = vunpack.c.h.b16 %v371
    %v2735 = vunpack.c.l.b16 %v372
    %v2736 = vunpack.c.h.b16 %v372
    %v2737 = vunpack.c.l.b16 %v373
    %v2738 = vunpack.c.h.b16 %v373
    %v2739 = vunpack.c.l.b16 %v374
    %v2740 = vunpack.c.h.b16 %v374
    %v2741 = vunpack.c.l.b16 %v375
    %v2742 = vunpack.c.h.b16 %v375
    %v2743 = vunpack.c.l.b16 %v376
    %v2744 = vunpack.c.h.b16 %v376
    %v2745 = vunpack.c.l.b16 %v377
    %v2746 = vunpack.c.h.b16 %v377
    %v2747 = vunpack.c.l.b16 %v378
    %v2748 = vunpack.c.h.b16 %v378
    %v2749 = vunpack.c.l.b16 %v379
    %v2750 = vunpack.c.h.b16 %v379
    %v2751 = vunpack.c.l.b16 %v380
    %v2752 = vunpack.c.h.b16 %v380
    %v2753 = vunpack.c.l.b16 %v381
    %v2754 = vunpack.c.h.b16 %v381
    %v2755 = vunpack.c.l.b16 %v382
    %v2756 = vunpack.c.h.b16 %v382
    %v2757 = vunpack.c.l.b16 %v383
    %v2758 = vunpack.c.h.b16 %v383
    %v2759 = vunpack.c.l.b16 %v384
    %v2760 = vunpack.c.h.b16 %v384
    %v2761 = vunpack.c.l.b16 %v385
    %v2762 = vunpack.c.h.b16 %v385
    %v2763 = vunpack.c.l.b16 %v386
    %v2764 = vunpack.c.h.b16 %v386
    %v2765 = vunpack.c.l.b16 %v387
    %v2766 = vunpack.c.h.b16 %v387
    %v2767 = vunpack.c.l.b16 %v388
    %v2768 = vunpack.c.h.b16 %v388
    %v2769 = vunpack.c.l.b16 %v389
    %v2770 = vunpack.c.h.b16 %v389
    %v2771 = vunpack.c.l.b16 %v390
    %v2772 = vunpack.c.h.b16 %v390
    %v2773 = vunpack.c.l.b16 %v391
    %v2774 = vunpack.c.h.b16 %v391
    %v2775 = vunpack.c.l.b16 %v392
    %v2776 = vunpack.c.h.b16 %v392
    %v2777 = vunpack.c.l.b16 %v393
    %v2778 = vunpack.c.h.b16 %v393
    %v2779 = vunpack.c.l.b16 %v394
    %v2780 = vunpack.c.h.b16 %v394
    %v2781 = vunpack.c.l.b16 %v395
    %v2782 = vunpack.c.h.b16 %v395
    %v2783 = vunpack.c.l.b16 %v396
    %v2784 = vunpack.c.h.b16 %v396
    %v2785 = vunpack.c.l.b16 %v397
    %v2786 = vunpack.c.h.b16 %v397
    %v2787 = vunpack.c.l.b16 %v398
    %v2788 = vunpack.c.h.b16 %v398
    %v2789 = vunpack.c.l.b16 %v399
    %v2790 = vunpack.c.h.b16 %v399
    %v2791 = vunpack.c.l.b16 %v400
    %v2792 = vunpack.c.h.b16 %v400
    %v2793 = vunpack.c.l.b16 %v401
    %v2794 = vunpack.c.h.b16 %v401
    %v2795 = vunpack.c.l.b16 %v402
    %v2796 = vunpack.c.h.b16 %v402
    %v2797 = vunpack.c.l.b16 %v403
    %v2798 = vunpack.c.h.b16 %v403
    %v2799 = vunpack.c.l.b16 %v404
    %v2800 = vunpack.c.h.b16 %v404
    %v2801 = vunpack.c.l.b16 %v405
    %v2802 = vunpack.c.h.b16 %v405
    %v2803 = vunpack.c.l.b16 %v406
    %v2804 = vunpack.c.h.b16 %v406
    %v2805 = vunpack.c.l.b16 %v407
    %v2806 = vunpack.c.h.b16 %v407
    %v2807 = vunpack.c.l.b16 %v408
    %v2808 = vunpack.c.h.b16 %v408
    %v2809 = vunpack.c.l.b16 %v409
    %v2810 = vunpack.c.h.b16 %v409
    %v2811 = vunpack.c.l.b16 %v410
    %v2812 = vunpack.c.h.b16 %v410
    %v2813 = vunpack.c.l.b16 %v411
    %v2814 = vunpack.c.h.b16 %v411
    %v2815 = vunpack.c.l.b16 %v412
    %v2816 = vunpack.c.h.b16 %v412
    %v2817 = vunpack.c.l.b16 %v413
    %v2818 = vunpack.c.h.b16 %v413
    %v2819 = vunpack.c.l.b16 %v414
    %v2820 = vunpack.c.h.b16 %v414
    %v2821 = vunpack.c.l.b16 %v415
    %v2822 = vunpack.c.h.b16 %v415
    %v2823 = vunpack.c.l.b16 %v416
    %v2824 = vunpack.c.h.b16 %v416
    %v2825 = vunpack.c.l.b16 %v417
    %v2826 = vunpack.c.h.b16 %v417
    %v2827 = vunpack.c.l.b16 %v418
    %v2828 = vunpack.c.h.b16 %v418
    %v2829 = vunpack.c.l.b16 %v419
    %v2830 = vunpack.c.h.b16 %v419
    %v2831 = vunpack.c.l.b16 %v420
    %v2832 = vunpack.c.h.b16 %v420
    %v2833 = vunpack.c.l.b16 %v421
    %v2834 = vunpack.c.h.b16 %v421
    %v2835 = vunpack.c.l.b16 %v422
    %v2836 = vunpack.c.h.b16 %v422
    %v2837 = vunpack.c.l.b16 %v423
    %v2838 = vunpack.c.h.b16 %v423
    %v2839 = vunpack.c.l.b16 %v424
    %v2840 = vunpack.c.h.b16 %v424
    %v2841 = vunpack.c.l.b16 %v425
    %v2842 = vunpack.c.h.b16 %v425
    %v2843 = vunpack.c.l.b16 %v426
    %v2844 = vunpack.c.h.b16 %v426
    %v2845 = vunpack.c.l.b16 %v427
    %v2846 = vunpack.c.h.b16 %v427
    %v2847 = vunpack.c.l.b16 %v428
    %v2848 = vunpack.c.h.b16 %v428
    %v2849 = vunpack.c.l.b16 %v429
    %v2850 = vunpack.c.h.b16 %v429
    %v2851 = vunpack.c.l.b16 %v430
    %v2852 = vunpack.c.h.b16 %v430
    %v2853 = vunpack.c.l.b16 %v431
    %v2854 = vunpack.c.h.b16 %v431
    %v2855 = vunpack.c.l.b16 %v432
    %v2856 = vunpack.c.h.b16 %v432
    %v2857 = vunpack.c.l.b16 %v433
    %v2858 = vunpack.c.h.b16 %v433
    %v2859 = vunpack.c.l.b16 %v434
    %v2860 = vunpack.c.h.b16 %v434
    %v2861 = vunpack.c.l.b16 %v435
    %v2862 = vunpack.c.h.b16 %v435
    %v2863 = vunpack.c.l.b16 %v436
    %v2864 = vunpack.c.h.b16 %v436
    %v2865 = vunpack.c.l.b16 %v437
    %v2866 = vunpack.c.h.b16 %v437
    %v2867 = vunpack.c.l.b16 %v438
    %v2868 = vunpack.c.h.b16 %v438
    %v2869 = vunpack.c.l.b16 %v439
    %v2870 = vunpack.c.h.b16 %v439
    %v2871 = vunpack.c.l.b16 %v440
    %v2872 = vunpack.c.h.b16 %v440
    %v2873 = vunpack.c.l.b16 %v441
    %v2874 = vunpack.c.h.b16 %v441
    %v2875 = vunpack.c.l.b16 %v442
    %v2876 = vunpack.c.h.b16 %v442
    %v2877 = vunpack.c.l.b16 %v443
    %v2878 = vunpack.c.h.b16 %v443
    %v2879 = vunpack.c.l.b16 %v444
    %v2880 = vunpack.c.h.b16 %v444
    %v2881 = vunpack.c.l.b16 %v445
    %v2882 = vunpack.c.h.b16 %v445
    %v2883 = vunpack.c.l.b16 %v446
    %v2884 = vunpack.c.h.b16 %v446
    %v2885 = vunpack.c.l.b16 %v447
    %v2886 = vunpack.c.h.b16 %v447
    %v2887 = vunpack.c.l.b16 %v448
    %v2888 = vunpack.c.h.b16 %v448
    %v2889 = vunpack.c.l.b16 %v449
    %v2890 = vunpack.c.h.b16 %v449
    %v2891 = vunpack.c.l.b16 %v450
    %v2892 = vunpack.c.h.b16 %v450
    %v2893 = vunpack.c.l.b16 %v451
    %v2894 = vunpack.c.h.b16 %v451
    %v2895 = vunpack.c.l.b16 %v452
    %v2896 = vunpack.c.h.b16 %v452
    %v2897 = vunpack.c.l.b16 %v453
    %v2898 = vunpack.c.h.b16 %v453
    %v2899 = vunpack.c.l.b16 %v454
    %v2900 = vunpack.c.h.b16 %v454
    %v2901 = vunpack.c.l.b16 %v455
    %v2902 = vunpack.c.h.b16 %v455
    %v2903 = vunpack.c.l.b16 %v456
    %v2904 = vunpack.c.h.b16 %v456
    %v2905 = vunpack.c.l.b16 %v457
    %v2906 = vunpack.c.h.b16 %v457
    %v2907 = vunpack.c.l.b16 %v458
    %v2908 = vunpack.c.h.b16 %v458
    %v2909 = vunpack.c.l.b16 %v459
    %v2910 = vunpack.c.h.b16 %v459
    %v2911 = vunpack.c.l.b16 %v460
    %v2912 = vunpack.c.h.b16 %v460
    %v2913 = vunpack.c.l.b16 %v461
    %v2914 = vunpack.c.h.b16 %v461
    %v2915 = vunpack.c.l.b16 %v462
    %v2916 = vunpack.c.h.b16 %v462
    %v2917 = vunpack.c.l.b16 %v463
    %v2918 = vunpack.c.h.b16 %v463
    %v2919 = vunpack.c.l.b16 %v464
    %v2920 = vunpack.c.h.b16 %v464
    %v2921 = vunpack.c.l.b16 %v465
    %v2922 = vunpack.c.h.b16 %v465
    %v2923 = vunpack.c.l.b16 %v466
    %v2924 = vunpack.c.h.b16 %v466
    %v2925 = vunpack.c.l.b16 %v467
    %v2926 = vunpack.c.h.b16 %v467
    %v2927 = vunpack.c.l.b16 %v468
    %v2928 = vunpack.c.h.b16 %v468
    %v2929 = vunpack.c.l.b16 %v469
    %v2930 = vunpack.c.h.b16 %v469
    %v2931 = vunpack.c.l.b16 %v470
    %v2932 = vunpack.c.h.b16 %v470
    %v2933 = vunpack.c.l.b16 %v471
    %v2934 = vunpack.c.h.b16 %v471
    %v2935 = vunpack.c.l.b16 %v472
    %v2936 = vunpack.c.h.b16 %v472
    %v2937 = vunpack.c.l.b16 %v473
    %v2938 = vunpack.c.h.b16 %v473
    %v2939 = vunpack.c.l.b16 %v474
    %v2940 = vunpack.c.h.b16 %v474
    %v2941 = vunpack.c.l.b16 %v475
    %v2942 = vunpack.c.h.b16 %v475
    %v2943 = vunpack.c.l.b16 %v476
    %v2944 = vunpack.c.h.b16 %v476
    %v2945 = vunpack.c.l.b16 %v477
    %v2946 = vunpack.c.h.b16 %v477
    %v2947 = vunpack.c.l.b16 %v478
    %v2948 = vunpack.c.h.b16 %v478
    %v2949 = vunpack.c.l.b16 %v479
    %v2950 = vunpack.c.h.b16 %v479
    %v2951 = vunpack.c.l.b16 %v480
    %v2952 = vunpack.c.h.b16 %v480
    %v2953 = vunpack.c.l.b16 %v481
    %v2954 = vunpack.c.h.b16 %v481
    %v2955 = vunpack.c.l.b16 %v482
    %v2956 = vunpack.c.h.b16 %v482
    %v2957 = vunpack.c.l.b16 %v483
    %v2958 = vunpack.c.h.b16 %v483
    %v2959 = vunpack.c.l.b16 %v484
    %v2960 = vunpack.c.h.b16 %v484
    %v2961 = vunpack.c.l.b16 %v485
    %v2962 = vunpack.c.h.b16 %v485
    %v2963 = vunpack.c.l.b16 %v486
    %v2964 = vunpack.c.h.b16 %v486
    %v2965 = vunpack.c.l.b16 %v487
    %v2966 = vunpack.c.h.b16 %v487
    %v2967 = vunpack.c.l.b16 %v488
    %v2968 = vunpack.c.h.b16 %v488
    %v2969 = vunpack.c.l.b16 %v489
    %v2970 = vunpack.c.h.b16 %v489
    %v2971 = vunpack.c.l.b16 %v490
    %v2972 = vunpack.c.h.b16 %v490
    %v2973 = vunpack.c.l.b16 %v491
    %v2974 = vunpack.c.h.b16 %v491
    %v2975 = vunpack.c.l.b16 %v492
    %v2976 = vunpack.c.h.b16 %v492
    %v2977 = vunpack.c.l.b16 %v493
    %v2978 = vunpack.c.h.b16 %v493
    %v2979 = vunpack.c.l.b16 %v494
    %v2980 = vunpack.c.h.b16 %v494
    %v2981 = vunpack.c.l.b16 %v495
    %v2982 = vunpack.c.h.b16 %v495
    %v2983 = vunpack.c.l.b16 %v496
    %v2984 = vunpack.c.h.b16 %v496
    %v2985 = vunpack.c.l.b16 %v497
    %v2986 = vunpack.c.h.b16 %v497
    %v2987 = vunpack.c.l.b16 %v498
    %v2988 = vunpack.c.h.b16 %v498
    %v2989 = vunpack.c.l.b16 %v499
    %v2990 = vunpack.c.h.b16 %v499
    %v2991 = vunpack.c.l.b16 %v500
    %v2992 = vunpack.c.h.b16 %v500
    %v2993 = vunpack.c.l.b16 %v501
    %v2994 = vunpack.c.h.b16 %v501
    %v2995 = vunpack.c.l.b16 %v502
    %v2996 = vunpack.c.h.b16 %v502
    %v2997 = vunpack.c.l.b16 %v503
    %v2998 = vunpack.c.h.b16 %v503
    %v2999 = vunpack.c.l.b16 %v504
    %v3000 = vunpack.c.h.b16 %v504
    %v3001 = vunpack.c.l.b16 %v505
    %v3002 = vunpack.c.h.b16 %v505
    %v3003 = vunpack.c.l.b16 %v506
    %v3004 = vunpack.c.h.b16 %v506
    %v3005 = vunpack.c.l.b16 %v507
    %v3006 = vunpack.c.h.b16 %v507
    %v3007 = vunpack.c.l.b16 %v508
    %v3008 = vunpack.c.h.b16 %v508
    %v3009 = vunpack.c.l.b16 %v509
    %v3010 = vunpack.c.h.b16 %v509
    %v3011 = vunpack.c.l.b16 %v510
    %v3012 = vunpack.c.h.b16 %v510
    %v3013 = vunpack.c.l.b16 %v511
    %v3014 = vunpack.c.h.b16 %v511
    %v3015 = vunpack.c.l.b16 %v512
    %v3016 = vunpack.c.h.b16 %v512
    %v3017 = vunpack.c.l.b16 %v513
    %v3018 = vunpack.c.h.b16 %v513
    %v3019 = vunpack.c.l.b16 %v514
    %v3020 = vunpack.c.h.b16 %v514
    %v3021 = vunpack.c.l.b16 %v515
    %v3022 = vunpack.c.h.b16 %v515
    %v3023 = vunpack.c.l.b16 %v516
    %v3024 = vunpack.c.h.b16 %v516
    %v3025 = vunpack.c.l.b16 %v517
    %v3026 = vunpack.c.h.b16 %v517
    %v3027 = vunpack.c.l.b16 %v518
    %v3028 = vunpack.c.h.b16 %v518
    %v3029 = vunpack.c.l.b16 %v519
    %v3030 = vunpack.c.h.b16 %v519
    %v3031 = vunpack.c.l.b16 %v520
    %v3032 = vunpack.c.h.b16 %v520
    %v3033 = vunpack.c.l.b16 %v521
    %v3034 = vunpack.c.h.b16 %v521
    %v3035 = vunpack.c.l.b16 %v522
    %v3036 = vunpack.c.h.b16 %v522
    %v3037 = vunpack.c.l.b16 %v523
    %v3038 = vunpack.c.h.b16 %v523
    %v3039 = vunpack.c.l.b16 %v524
    %v3040 = vunpack.c.h.b16 %v524
    %v3041 = vunpack.c.l.b16 %v525
    %v3042 = vunpack.c.h.b16 %v525
    %v3043 = vunpack.c.l.b16 %v526
    %v3044 = vunpack.c.h.b16 %v526
    %v3045 = vunpack.c.l.b16 %v527
    %v3046 = vunpack.c.h.b16 %v527
    %v3047 = vunpack.c.l.b16 %v528
    %v3048 = vunpack.c.h.b16 %v528
    %v3049 = vunpack.c.l.b16 %v529
    %v3050 = vunpack.c.h.b16 %v529
    %v3051 = vunpack.c.l.b16 %v530
    %v3052 = vunpack.c.h.b16 %v530
    %v3053 = vunpack.c.l.b16 %v531
    %v3054 = vunpack.c.h.b16 %v531
    %v3055 = vunpack.c.l.b16 %v532
    %v3056 = vunpack.c.h.b16 %v532
    %v3057 = vunpack.c.l.b16 %v533
    %v3058 = vunpack.c.h.b16 %v533
    %v3059 = vunpack.c.l.b16 %v534
    %v3060 = vunpack.c.h.b16 %v534
    %v3061 = vunpack.c.l.b16 %v535
    %v3062 = vunpack.c.h.b16 %v535
    %v3063 = vunpack.c.l.b16 %v536
    %v3064 = vunpack.c.h.b16 %v536
    %v3065 = vunpack.c.l.b16 %v537
    %v3066 = vunpack.c.h.b16 %v537
    %v3067 = vunpack.c.l.b16 %v538
    %v3068 = vunpack.c.h.b16 %v538
    %v3069 = vunpack.c.l.b16 %v539
    %v3070 = vunpack.c.h.b16 %v539
    %v3071 = vunpack.c.l.b16 %v540
    %v3072 = vunpack.c.h.b16 %v540
    %v3073 = vunpack.c.l.b16 %v541
    %v3074 = vunpack.c.h.b16 %v541
    %v3075 = vunpack.c.l.b16 %v542
    %v3076 = vunpack.c.h.b16 %v542
    %v3077 = vunpack.c.l.b16 %v543
    %v3078 = vunpack.c.h.b16 %v543
    %v3079 = vunpack.c.l.b16 %v544
    %v3080 = vunpack.c.h.b16 %v544
    %v3081 = vunpack.c.l.b16 %v545
    %v3082 = vunpack.c.h.b16 %v545
    %v3083 = vunpack.c.l.b16 %v546
    %v3084 = vunpack.c.h.b16 %v546
    %v3085 = vunpack.c.l.b16 %v547
    %v3086 = vunpack.c.h.b16 %v547
    %v3087 = vunpack.c.l.b16 %v548
    %v3088 = vunpack.c.h.b16 %v548
    %v3089 = vunpack.c.l.b16 %v549
    %v3090 = vunpack.c.h.b16 %v549
    %v3091 = vunpack.c.l.b16 %v550
    %v3092 = vunpack.c.h.b16 %v550
    %v3093 = vunpack.c.l.b16 %v551
    %v3094 = vunpack.c.h.b16 %v551
    %v3095 = vunpack.c.l.b16 %v552
    %v3096 = vunpack.c.h.b16 %v552
    %v3097 = vunpack.c.l.b16 %v553
    %v3098 = vunpack.c.h.b16 %v553
    %v3099 = vunpack.c.l.b16 %v554
    %v3100 = vunpack.c.h.b16 %v554
    %v3101 = vunpack.c.l.b16 %v555
    %v3102 = vunpack.c.h.b16 %v555
    %v3103 = vunpack.c.l.b16 %v556
    %v3104 = vunpack.c.h.b16 %v556
    %v3105 = vunpack.c.l.b16 %v557
    %v3106 = vunpack.c.h.b16 %v557
    %v3107 = vunpack.c.l.b16 %v558
    %v3108 = vunpack.c.h.b16 %v558
    %v3109 = vunpack.c.l.b16 %v559
    %v3110 = vunpack.c.h.b16 %v559
    %v3111 = vunpack.c.l.b16 %v560
    %v3112 = vunpack.c.h.b16 %v560
    %v3113 = vunpack.c.l.b16 %v561
    %v3114 = vunpack.c.h.b16 %v561
    %v3115 = vunpack.c.l.b16 %v562
    %v3116 = vunpack.c.h.b16 %v562
    %v3117 = vunpack.c.l.b16 %v563
    %v3118 = vunpack.c.h.b16 %v563
    %v3119 = vunpack.c.l.b16 %v564
    %v3120 = vunpack.c.h.b16 %v564
    %v3121 = vunpack.c.l.b16 %v565
    %v3122 = vunpack.c.h.b16 %v565
    %v3123 = vunpack.c.l.b16 %v566
    %v3124 = vunpack.c.h.b16 %v566
    %v3125 = vunpack.c.l.b16 %v567
    %v3126 = vunpack.c.h.b16 %v567
    %v3127 = vunpack.c.l.b16 %v568
    %v3128 = vunpack.c.h.b16 %v568
    %v3129 = vunpack.c.l.b16 %v569
    %v3130 = vunpack.c.h.b16 %v569
    %v3131 = vunpack.c.l.b16 %v570
    %v3132 = vunpack.c.h.b16 %v570
    %v3133 = vunpack.c.l.b16 %v571
    %v3134 = vunpack.c.h.b16 %v571
    %v3135 = vunpack.c.l.b16 %v572
    %v3136 = vunpack.c.h.b16 %v572
    %v3137 = vunpack.c.l.b16 %v573
    %v3138 = vunpack.c.h.b16 %v573
    %v3139 = vunpack.c.l.b16 %v574
    %v3140 = vunpack.c.h.b16 %v574
    %v3141 = vunpack.c.l.b16 %v575
    %v3142 = vunpack.c.h.b16 %v575
    %v3143 = vunpack.c.l.b16 %v576
    %v3144 = vunpack.c.h.b16 %v576
    %v3145 = vunpack.c.l.b16 %v577
    %v3146 = vunpack.c.h.b16 %v577
    %v3147 = vunpack.c.l.b16 %v578
    %v3148 = vunpack.c.h.b16 %v578
    %v3149 = vunpack.c.l.b16 %v579
    %v3150 = vunpack.c.h.b16 %v579
    %v3151 = vunpack.c.l.b16 %v580
    %v3152 = vunpack.c.h.b16 %v580
    %v3153 = vunpack.c.l.b16 %v581
    %v3154 = vunpack.c.h.b16 %v581
    %v3155 = vunpack.c.l.b16 %v582
    %v3156 = vunpack.c.h.b16 %v582
    %v3157 = vunpack.c.l.b16 %v583
    %v3158 = vunpack.c.h.b16 %v583
    %v3159 = vunpack.c.l.b16 %v584
    %v3160 = vunpack.c.h.b16 %v584
    %v3161 = vunpack.c.l.b16 %v585
    %v3162 = vunpack.c.h.b16 %v585
    %v3163 = vunpack.c.l.b16 %v586
    %v3164 = vunpack.c.h.b16 %v586
    %v3165 = vunpack.c.l.b16 %v587
    %v3166 = vunpack.c.h.b16 %v587
    %v3167 = vunpack.c.l.b16 %v588
    %v3168 = vunpack.c.h.b16 %v588
    %v3169 = vunpack.c.l.b16 %v589
    %v3170 = vunpack.c.h.b16 %v589
    %v3171 = vunpack.c.l.b16 %v590
    %v3172 = vunpack.c.h.b16 %v590
    %v3173 = vunpack.c.l.b16 %v591
    %v3174 = vunpack.c.h.b16 %v591
    %v3175 = vunpack.c.l.b16 %v592
    %v3176 = vunpack.c.h.b16 %v592
    %v3177 = vunpack.c.l.b16 %v593
    %v3178 = vunpack.c.h.b16 %v593
    %v3179 = vunpack.c.l.b16 %v594
    %v3180 = vunpack.c.h.b16 %v594
    %v3181 = vunpack.c.l.b16 %v595
    %v3182 = vunpack.c.h.b16 %v595
    %v3183 = vunpack.c.l.b16 %v596
    %v3184 = vunpack.c.h.b16 %v596
    %v3185 = vunpack.c.l.b16 %v597
    %v3186 = vunpack.c.h.b16 %v597
    %v3187 = vunpack.c.l.b16 %v598
    %v3188 = vunpack.c.h.b16 %v598
    %v3189 = vunpack.c.l.b16 %v599
    %v3190 = vunpack.c.h.b16 %v599
    %v3191 = vunpack.c.l.b16 %v600
    %v3192 = vunpack.c.h.b16 %v600
    %v3193 = vunpack.c.l.b16 %v601
    %v3194 = vunpack.c.h.b16 %v601
    %v3195 = vunpack.c.l.b16 %v602
    %v3196 = vunpack.c.h.b16 %v602
    %v3197 = vunpack.c.l.b16 %v603
    %v3198 = vunpack.c.h.b16 %v603
    %v3199 = vunpack.c.l.b16 %v604
    %v3200 = vunpack.c.h.b16 %v604
    %v3201 = vunpack.c.l.b16 %v605
    %v3202 = vunpack.c.h.b16 %v605
    %v3203 = vunpack.c.l.b16 %v606
    %v3204 = vunpack.c.h.b16 %v606
    %v3205 = vunpack.c.l.b16 %v607
    %v3206 = vunpack.c.h.b16 %v607
    %v3207 = vunpack.c.l.b16 %v608
    %v3208 = vunpack.c.h.b16 %v608
    %v3209 = vunpack.c.l.b16 %v609
    %v3210 = vunpack.c.h.b16 %v609
    %v3211 = vunpack.c.l.b16 %v610
    %v3212 = vunpack.c.h.b16 %v610
    %v3213 = vunpack.c.l.b16 %v611
    %v3214 = vunpack.c.h.b16 %v611
    %v3215 = vunpack.c.l.b16 %v612
    %v3216 = vunpack.c.h.b16 %v612
    %v3217 = vunpack.c.l.b16 %v613
    %v3218 = vunpack.c.h.b16 %v613
    %v3219 = vunpack.c.l.b16 %v614
    %v3220 = vunpack.c.h.b16 %v614
    %v3221 = vunpack.c.l.b16 %v615
    %v3222 = vunpack.c.h.b16 %v615
    %v3223 = vunpack.c.l.b16 %v616
    %v3224 = vunpack.c.h.b16 %v616
    %v3225 = vunpack.c.l.b16 %v617
    %v3226 = vunpack.c.h.b16 %v617
    %v3227 = vunpack.c.l.b16 %v618
    %v3228 = vunpack.c.h.b16 %v618
    %v3229 = vunpack.c.l.b16 %v619
    %v3230 = vunpack.c.h.b16 %v619
    %v3231 = vunpack.c.l.b16 %v620
    %v3232 = vunpack.c.h.b16 %v620
    %v3233 = vunpack.c.l.b16 %v621
    %v3234 = vunpack.c.h.b16 %v621
    %v3235 = vunpack.c.l.b16 %v622
    %v3236 = vunpack.c.h.b16 %v622
    %v3237 = vunpack.c.l.b16 %v623
    %v3238 = vunpack.c.h.b16 %v623
    %v3239 = vunpack.c.l.b16 %v624
    %v3240 = vunpack.c.h.b16 %v624
    %v3241 = vunpack.c.l.b16 %v625
    %v3242 = vunpack.c.h.b16 %v625
    %v3243 = vunpack.c.l.b16 %v626
    %v3244 = vunpack.c.h.b16 %v626
    %v3245 = vunpack.c.l.b16 %v627
    %v3246 = vunpack.c.h.b16 %v627
    %v3247 = vunpack.c.l.b16 %v628
    %v3248 = vunpack.c.h.b16 %v628
    %v3249 = vunpack.c.l.b16 %v629
    %v3250 = vunpack.c.h.b16 %v629
    %v3251 = vunpack.c.l.b16 %v630
    %v3252 = vunpack.c.h.b16 %v630
    %v3253 = vunpack.c.l.b16 %v631
    %v3254 = vunpack.c.h.b16 %v631
    %v3255 = vunpack.c.l.b16 %v632
    %v3256 = vunpack.c.h.b16 %v632
    %v3257 = vunpack.c.l.b16 %v633
    %v3258 = vunpack.c.h.b16 %v633
    %v3259 = vunpack.c.l.b16 %v634
    %v3260 = vunpack.c.h.b16 %v634
    %v3261 = vunpack.c.l.b16 %v635
    %v3262 = vunpack.c.h.b16 %v635
    %v3263 = vunpack.c.l.b16 %v636
    %v3264 = vunpack.c.h.b16 %v636
    %v3265 = vunpack.c.l.b16 %v637
    %v3266 = vunpack.c.h.b16 %v637
    %v3267 = vunpack.c.l.b16 %v638
    %v3268 = vunpack.c.h.b16 %v638
    %v3269 = vunpack.c.l.b16 %v639
    %v3270 = vunpack.c.h.b16 %v639
    %v3271 = vunpack.c.l.b16 %v640
    %v3272 = vunpack.c.h.b16 %v640
    %v3273 = vunpack.c.l.b16 %v641
    %v3274 = vunpack.c.h.b16 %v641
    %v3275 = vunpack.c.l.b16 %v642
    %v3276 = vunpack.c.h.b16 %v642
    %v3277 = vunpack.c.l.b16 %v643
    %v3278 = vunpack.c.h.b16 %v643
    %v3279 = vunpack.c.l.b16 %v644
    %v3280 = vunpack.c.h.b16 %v644
    %v3281 = vunpack.c.l.b16 %v645
    %v3282 = vunpack.c.h.b16 %v645
    %v3283 = vunpack.c.l.b16 %v646
    %v3284 = vunpack.c.h.b16 %v646
    %v3285 = vunpack.c.l.b16 %v647
    %v3286 = vunpack.c.h.b16 %v647
    %v3287 = vunpack.c.l.b16 %v648
    %v3288 = vunpack.c.h.b16 %v648
    %v3289 = vunpack.c.l.b16 %v649
    %v3290 = vunpack.c.h.b16 %v649
    %v3291 = vunpack.c.l.b16 %v650
    %v3292 = vunpack.c.h.b16 %v650
    %v3293 = vunpack.c.l.b16 %v651
    %v3294 = vunpack.c.h.b16 %v651
    %v3295 = vunpack.c.l.b16 %v652
    %v3296 = vunpack.c.h.b16 %v652
    %v3297 = vunpack.c.l.b16 %v653
    %v3298 = vunpack.c.h.b16 %v653
    %v3299 = vunpack.c.l.b16 %v654
    %v3300 = vunpack.c.h.b16 %v654
    %v3301 = vunpack.c.l.b16 %v655
    %v3302 = vunpack.c.h.b16 %v655
    %v3303 = vunpack.c.l.b16 %v656
    %v3304 = vunpack.c.h.b16 %v656
    %v3305 = vunpack.c.l.b16 %v657
    %v3306 = vunpack.c.h.b16 %v657
    %v3307 = vunpack.c.l.b16 %v658
    %v3308 = vunpack.c.h.b16 %v658
    %v3309 = vunpack.c.l.b16 %v659
    %v3310 = vunpack.c.h.b16 %v659
    %v3311 = vunpack.c.l.b16 %v660
    %v3312 = vunpack.c.h.b16 %v660
    %v3313 = vunpack.c.l.b16 %v661
    %v3314 = vunpack.c.h.b16 %v661
    %v3315 = vunpack.c.l.b16 %v662
    %v3316 = vunpack.c.h.b16 %v662
    %v3317 = vunpack.c.l.b16 %v663
    %v3318 = vunpack.c.h.b16 %v663
    %v3319 = vunpack.c.l.b16 %v664
    %v3320 = vunpack.c.h.b16 %v664
    %v3321 = vunpack.c.l.b16 %v665
    %v3322 = vunpack.c.h.b16 %v665
    %v3323 = vunpack.c.l.b16 %v666
    %v3324 = vunpack.c.h.b16 %v666
    %v3325 = vunpack.c.l.b16 %v667
    %v3326 = vunpack.c.h.b16 %v667
    %v3327 = vunpack.c.l.b16 %v668
    %v3328 = vunpack.c.h.b16 %v668
    %v3329 = vunpack.c.l.b16 %v669
    %v3330 = vunpack.c.h.b16 %v669
    %v3331 = vunpack.c.l.b16 %v670
    %v3332 = vunpack.c.h.b16 %v670
    %v3333 = vunpack.c.l.b16 %v671
    %v3334 = vunpack.c.h.b16 %v671
    %v3335 = vunpack.c.l.b16 %v672
    %v3336 = vunpack.c.h.b16 %v672
    %v3337 = vunpack.c.l.b16 %v673
    %v3338 = vunpack.c.h.b16 %v673
    %v3339 = vunpack.c.l.b16 %v674
    %v3340 = vunpack.c.h.b16 %v674
    %v3341 = vunpack.c.l.b16 %v675
    %v3342 = vunpack.c.h.b16 %v675
    %v3343 = vunpack.c.l.b16 %v676
    %v3344 = vunpack.c.h.b16 %v676
    %v3345 = vunpack.c.l.b16 %v677
    %v3346 = vunpack.c.h.b16 %v677
    %v3347 = vunpack.c.l.b16 %v678
    %v3348 = vunpack.c.h.b16 %v678
    %v3349 = vunpack.c.l.b16 %v679
    %v3350 = vunpack.c.h.b16 %v679
    %v3351 = vunpack.c.l.b16 %v680
    %v3352 = vunpack.c.h.b16 %v680
    %v3353 = vunpack.c.l.b16 %v681
    %v3354 = vunpack.c.h.b16 %v681
    %v3355 = vunpack.c.l.b16 %v682
    %v3356 = vunpack.c.h.b16 %v682
    %v3357 = vunpack.c.l.b16 %v683
    %v3358 = vunpack.c.h.b16 %v683
    %v3359 = vunpack.c.l.b16 %v684
    %v3360 = vunpack.c.h.b16 %v684
    %v3361 = vunpack.c.l.b16 %v685
    %v3362 = vunpack.c.h.b16 %v685
    %v3363 = vunpack.c.l.b16 %v686
    %v3364 = vunpack.c.h.b16 %v686
    %v3365 = vunpack.c.l.b16 %v687
    %v3366 = vunpack.c.h.b16 %v687
    %v3367 = vunpack.c.l.b16 %v688
    %v3368 = vunpack.c.h.b16 %v688
    %v3369 = vunpack.c.l.b16 %v689
    %v3370 = vunpack.c.h.b16 %v689
    %v3371 = vunpack.c.l.b16 %v690
    %v3372 = vunpack.c.h.b16 %v690
    %v3373 = vunpack.c.l.b16 %v691
    %v3374 = vunpack.c.h.b16 %v691
    %v3375 = vunpack.c.l.b16 %v692
    %v3376 = vunpack.c.h.b16 %v692
    %v3377 = vunpack.c.l.b16 %v693
    %v3378 = vunpack.c.h.b16 %v693
    %v3379 = vunpack.c.l.b16 %v694
    %v3380 = vunpack.c.h.b16 %v694
    %v3381 = vunpack.c.l.b16 %v695
    %v3382 = vunpack.c.h.b16 %v695
    %v3383 = vunpack.c.l.b16 %v696
    %v3384 = vunpack.c.h.b16 %v696
    %v3385 = vunpack.c.l.b16 %v697
    %v3386 = vunpack.c.h.b16 %v697
    %v3387 = vunpack.c.l.b16 %v698
    %v3388 = vunpack.c.h.b16 %v698
    %v3389 = vunpack.c.l.b16 %v699
    %v3390 = vunpack.c.h.b16 %v699
    %v3391 = vunpack.c.l.b16 %v700
    %v3392 = vunpack.c.h.b16 %v700
    %v3393 = vunpack.c.l.b16 %v701
    %v3394 = vunpack.c.h.b16 %v701
    %v3395 = vunpack.c.l.b16 %v702
    %v3396 = vunpack.c.h.b16 %v702
    %v3397 = vunpack.c.l.b16 %v703
    %v3398 = vunpack.c.h.b16 %v703
    %v3399 = vunpack.c.l.b16 %v704
    %v3400 = vunpack.c.h.b16 %v704
    %v3401 = vunpack.c.l.b16 %v705
    %v3402 = vunpack.c.h.b16 %v705
    %v3403 = vunpack.c.l.b16 %v706
    %v3404 = vunpack.c.h.b16 %v706
    %v3405 = vunpack.c.l.b16 %v707
    %v3406 = vunpack.c.h.b16 %v707
    %v3407 = vunpack.c.l.b16 %v708
    %v3408 = vunpack.c.h.b16 %v708
    %v3409 = vunpack.c.l.b16 %v709
    %v3410 = vunpack.c.h.b16 %v709
    %v3411 = vunpack.c.l.b16 %v710
    %v3412 = vunpack.c.h.b16 %v710
    %v3413 = vunpack.c.l.b16 %v711
    %v3414 = vunpack.c.h.b16 %v711
    %v3415 = vunpack.c.l.b16 %v712
    %v3416 = vunpack.c.h.b16 %v712
    %v3417 = vunpack.c.l.b16 %v713
    %v3418 = vunpack.c.h.b16 %v713
    %v3419 = vunpack.c.l.b16 %v714
    %v3420 = vunpack.c.h.b16 %v714
    %v3421 = vunpack.c.l.b16 %v715
    %v3422 = vunpack.c.h.b16 %v715
    %v3423 = vunpack.c.l.b16 %v716
    %v3424 = vunpack.c.h.b16 %v716
    %v3425 = vunpack.c.l.b16 %v717
    %v3426 = vunpack.c.h.b16 %v717
    %v3427 = vunpack.c.l.b16 %v718
    %v3428 = vunpack.c.h.b16 %v718
    %v3429 = vunpack.c.l.b16 %v719
    %v3430 = vunpack.c.h.b16 %v719
    %v3431 = vunpack.c.l.b16 %v720
    %v3432 = vunpack.c.h.b16 %v720
    %v3433 = vunpack.c.l.b16 %v721
    %v3434 = vunpack.c.h.b16 %v721
    %v3435 = vunpack.c.l.b16 %v722
    %v3436 = vunpack.c.h.b16 %v722
    %v3437 = vunpack.c.l.b16 %v723
    %v3438 = vunpack.c.h.b16 %v723
    %v3439 = vunpack.c.l.b16 %v724
    %v3440 = vunpack.c.h.b16 %v724
    %v3441 = vunpack.c.l.b16 %v725
    %v3442 = vunpack.c.h.b16 %v725
    %v3443 = vunpack.c.l.b16 %v726
    %v3444 = vunpack.c.h.b16 %v726
    %v3445 = vunpack.c.l.b16 %v727
    %v3446 = vunpack.c.h.b16 %v727
    %v3447 = vunpack.c.l.b16 %v728
    %v3448 = vunpack.c.h.b16 %v728
    %v3449 = vunpack.c.l.b16 %v729
    %v3450 = vunpack.c.h.b16 %v729
    %v3451 = vunpack.c.l.b16 %v730
    %v3452 = vunpack.c.h.b16 %v730
    %v3453 = vunpack.c.l.b16 %v731
    %v3454 = vunpack.c.h.b16 %v731
    %v3455 = vunpack.c.l.b16 %v732
    %v3456 = vunpack.c.h.b16 %v732
    %v3457 = vunpack.c.l.b16 %v733
    %v3458 = vunpack.c.h.b16 %v733
    %v3459 = vunpack.c.l.b16 %v734
    %v3460 = vunpack.c.h.b16 %v734
    %v3461 = vunpack.c.l.b16 %v735
    %v3462 = vunpack.c.h.b16 %v735
    %v3463 = vunpack.c.l.b16 %v736
    %v3464 = vunpack.c.h.b16 %v736
    %v3465 = vunpack.c.l.b16 %v737
    %v3466 = vunpack.c.h.b16 %v737
    %v3467 = vunpack.c.l.b16 %v738
    %v3468 = vunpack.c.h.b16 %v738
    %v3469 = vunpack.c.l.b16 %v739
    %v3470 = vunpack.c.h.b16 %v739
    %v3471 = vunpack.c.l.b16 %v740
    %v3472 = vunpack.c.h.b16 %v740
    %v3473 = vunpack.c.l.b16 %v741
    %v3474 = vunpack.c.h.b16 %v741
    %v3475 = vunpack.c.l.b16 %v742
    %v3476 = vunpack.c.h.b16 %v742
    %v3477 = vunpack.c.l.b16 %v743
    %v3478 = vunpack.c.h.b16 %v743
    %v3479 = vunpack.c.l.b16 %v744
    %v3480 = vunpack.c.h.b16 %v744
    %v3481 = vunpack.c.l.b16 %v745
    %v3482 = vunpack.c.h.b16 %v745
    %v3483 = vunpack.c.l.b16 %v746
    %v3484 = vunpack.c.h.b16 %v746
    %v3485 = vunpack.c.l.b16 %v747
    %v3486 = vunpack.c.h.b16 %v747
    %v3487 = vunpack.c.l.b16 %v748
    %v3488 = vunpack.c.h.b16 %v748
    %v3489 = vunpack.c.l.b16 %v749
    %v3490 = vunpack.c.h.b16 %v749
    %v3491 = vunpack.c.l.b16 %v750
    %v3492 = vunpack.c.h.b16 %v750
    %v3493 = vunpack.c.l.b16 %v751
    %v3494 = vunpack.c.h.b16 %v751
    %v3495 = vunpack.c.l.b16 %v752
    %v3496 = vunpack.c.h.b16 %v752
    %v3497 = vunpack.c.l.b16 %v753
    %v3498 = vunpack.c.h.b16 %v753
    %v3499 = vunpack.c.l.b16 %v754
    %v3500 = vunpack.c.h.b16 %v754
    %v3501 = vunpack.c.l.b16 %v755
    %v3502 = vunpack.c.h.b16 %v755
    %v3503 = vunpack.c.l.b16 %v756
    %v3504 = vunpack.c.h.b16 %v756
    %v3505 = vunpack.c.l.b16 %v757
    %v3506 = vunpack.c.h.b16 %v757
    %v3507 = vunpack.c.l.b16 %v758
    %v3508 = vunpack.c.h.b16 %v758
    %v3509 = vunpack.c.l.b16 %v759
    %v3510 = vunpack.c.h.b16 %v759
    %v3511 = vunpack.c.l.b16 %v760
    %v3512 = vunpack.c.h.b16 %v760
    %v3513 = vunpack.c.l.b16 %v761
    %v3514 = vunpack.c.h.b16 %v761
    %v3515 = vunpack.c.l.b16 %v762
    %v3516 = vunpack.c.h.b16 %v762
    %v3517 = vunpack.c.l.b16 %v763
    %v3518 = vunpack.c.h.b16 %v763
    %v3519 = vunpack.c.l.b16 %v764
    %v3520 = vunpack.c.h.b16 %v764
    %v3521 = vunpack.c.l.b16 %v765
    %v3522 = vunpack.c.h.b16 %v765
    %v3523 = vunpack.c.l.b16 %v766
    %v3524 = vunpack.c.h.b16 %v766
    %v3525 = vunpack.c.l.b16 %v767
    %v3526 = vunpack.c.h.b16 %v767
    %v3527 = vunpack.c.l.b16 %v768
    %v3528 = vunpack.c.h.b16 %v768
    %v3529 = vunpack.c.l.b16 %v769
    %v3530 = vunpack.c.h.b16 %v769
    %v3531 = vunpack.c.l.b16 %v770
    %v3532 = vunpack.c.h.b16 %v770
    %v3533 = vunpack.c.l.b16 %v771
    %v3534 = vunpack.c.h.b16 %v771
    %v3535 = vunpack.c.l.b16 %v772
    %v3536 = vunpack.c.h.b16 %v772
    %v3537 = vunpack.c.l.b16 %v773
    %v3538 = vunpack.c.h.b16 %v773
    %v3539 = vunpack.c.l.b16 %v774
    %v3540 = vunpack.c.h.b16 %v774
    %v3541 = vunpack.c.l.b16 %v775
    %v3542 = vunpack.c.h.b16 %v775
    %v3543 = vunpack.c.l.b16 %v776
    %v3544 = vunpack.c.h.b16 %v776
    %v3545 = vunpack.c.l.b16 %v777
    %v3546 = vunpack.c.h.b16 %v777
    %v3547 = vunpack.c.l.b16 %v778
    %v3548 = vunpack.c.h.b16 %v778
    %v3549 = vunpack.c.l.b16 %v779
    %v3550 = vunpack.c.h.b16 %v779
    %v3551 = vunpack.c.l.b16 %v780
    %v3552 = vunpack.c.h.b16 %v780
    %v3553 = vunpack.c.l.b16 %v781
    %v3554 = vunpack.c.h.b16 %v781
    %v3555 = vunpack.c.l.b16 %v782
    %v3556 = vunpack.c.h.b16 %v782
    %v3557 = vunpack.c.l.b16 %v783
    %v3558 = vunpack.c.h.b16 %v783
    %v3559 = vunpack.c.l.b16 %v784
    %v3560 = vunpack.c.h.b16 %v784
    %v3561 = vunpack.c.l.b16 %v785
    %v3562 = vunpack.c.h.b16 %v785
    %v3563 = vunpack.c.l.b16 %v786
    %v3564 = vunpack.c.h.b16 %v786
    %v3565 = vunpack.c.l.b16 %v787
    %v3566 = vunpack.c.h.b16 %v787
    %v3567 = vunpack.c.l.b16 %v788
    %v3568 = vunpack.c.h.b16 %v788
    %v3569 = vunpack.c.l.b16 %v789
    %v3570 = vunpack.c.h.b16 %v789
    %v3571 = vunpack.c.l.b16 %v790
    %v3572 = vunpack.c.h.b16 %v790
    %v3573 = vunpack.c.l.b16 %v791
    %v3574 = vunpack.c.h.b16 %v791
    %v3575 = vunpack.c.l.b16 %v792
    %v3576 = vunpack.c.h.b16 %v792
    %v3577 = vunpack.c.l.b16 %v793
    %v3578 = vunpack.c.h.b16 %v793
    %v3579 = vunpack.c.l.b16 %v794
    %v3580 = vunpack.c.h.b16 %v794
    %v3581 = vunpack.c.l.b16 %v795
    %v3582 = vunpack.c.h.b16 %v795
    %v3583 = vunpack.c.l.b16 %v796
    %v3584 = vunpack.c.h.b16 %v796
    %v3585 = vunpack.c.l.b16 %v797
    %v3586 = vunpack.c.h.b16 %v797
    %v3587 = vunpack.c.l.b16 %v798
    %v3588 = vunpack.c.h.b16 %v798
    %v3589 = vunpack.c.l.b16 %v799
    %v3590 = vunpack.c.h.b16 %v799
    %v3591 = vunpack.c.l.b16 %v800
    %v3592 = vunpack.c.h.b16 %v800
    %v3593 = vunpack.c.l.b16 %v801
    %v3594 = vunpack.c.h.b16 %v801
    %v3595 = vunpack.c.l.b16 %v802
    %v3596 = vunpack.c.h.b16 %v802
    %v3597 = vunpack.c.l.b16 %v803
    %v3598 = vunpack.c.h.b16 %v803
    %v3599 = vunpack.c.l.b16 %v804
    %v3600 = vunpack.c.h.b16 %v804
    %v3601 = vunpack.c.l.b16 %v805
    %v3602 = vunpack.c.h.b16 %v805
    %v3603 = vunpack.c.l.b16 %v806
    %v3604 = vunpack.c.h.b16 %v806
    %v3605 = vunpack.c.l.b16 %v807
    %v3606 = vunpack.c.h.b16 %v807
    %v3607 = vunpack.c.l.b16 %v808
    %v3608 = vunpack.c.h.b16 %v808
    %v3609 = vunpack.c.l.b16 %v809
    %v3610 = vunpack.c.h.b16 %v809
    %v3611 = vunpack.c.l.b16 %v810
    %v3612 = vunpack.c.h.b16 %v810
    %v3613 = vunpack.c.l.b16 %v811
    %v3614 = vunpack.c.h.b16 %v811
    %v3615 = vunpack.c.l.b16 %v812
    %v3616 = vunpack.c.h.b16 %v812
    %v3617 = vunpack.c.l.b16 %v813
    %v3618 = vunpack.c.h.b16 %v813
    %v3619 = vunpack.c.l.b16 %v814
    %v3620 = vunpack.c.h.b16 %v814
    %v3621 = vunpack.c.l.b16 %v815
    %v3622 = vunpack.c.h.b16 %v815
    %v3623 = vunpack.c.l.b16 %v816
    %v3624 = vunpack.c.h.b16 %v816
    %v3625 = vunpack.c.l.b16 %v817
    %v3626 = vunpack.c.h.b16 %v817
    %v3627 = vunpack.c.l.b16 %v818
    %v3628 = vunpack.c.h.b16 %v818
    %v3629 = vunpack.c.l.b16 %v819
    %v3630 = vunpack.c.h.b16 %v819
    %v3631 = vunpack.c.l.b16 %v820
    %v3632 = vunpack.c.h.b16 %v820
    %v3633 = vunpack.c.l.b16 %v821
    %v3634 = vunpack.c.h.b16 %v821
    %v3635 = vunpack.c.l.b16 %v822
    %v3636 = vunpack.c.h.b16 %v822
    %v3637 = vunpack.c.l.b16 %v823
    %v3638 = vunpack.c.h.b16 %v823
    %v3639 = vunpack.c.l.b16 %v824
    %v3640 = vunpack.c.h.b16 %v824
    %v3641 = vunpack.c.l.b16 %v825
    %v3642 = vunpack.c.h.b16 %v825
    %v3643 = vunpack.c.l.b16 %v826
    %v3644 = vunpack.c.h.b16 %v826
    %v3645 = vunpack.c.l.b16 %v827
    %v3646 = vunpack.c.h.b16 %v827
    %v3647 = vunpack.c.l.b16 %v828
    %v3648 = vunpack.c.h.b16 %v828
    %v3649 = vunpack.c.l.b16 %v829
    %v3650 = vunpack.c.h.b16 %v829
    %v3651 = vunpack.c.l.b16 %v830
    %v3652 = vunpack.c.h.b16 %v830
    %v3653 = vunpack.c.l.b16 %v831
    %v3654 = vunpack.c.h.b16 %v831
    %v3655 = vunpack.c.l.b16 %v832
    %v3656 = vunpack.c.h.b16 %v832
    %v3657 = vunpack.c.l.b16 %v833
    %v3658 = vunpack.c.h.b16 %v833
    %v3659 = vunpack.c.l.b16 %v834
    %v3660 = vunpack.c.h.b16 %v834
    %v3661 = vunpack.c.l.b16 %v835
    %v3662 = vunpack.c.h.b16 %v835
    %v3663 = vunpack.c.l.b16 %v836
    %v3664 = vunpack.c.h.b16 %v836
    %v3665 = vunpack.c.l.b16 %v837
    %v3666 = vunpack.c.h.b16 %v837
    %v3667 = vunpack.c.l.b16 %v838
    %v3668 = vunpack.c.h.b16 %v838
    %v3669 = vunpack.c.l.b16 %v839
    %v3670 = vunpack.c.h.b16 %v839
    %v3671 = vunpack.c.l.b16 %v840
    %v3672 = vunpack.c.h.b16 %v840
    %v3673 = vunpack.c.l.b16 %v841
    %v3674 = vunpack.c.h.b16 %v841
    %v3675 = vunpack.c.l.b16 %v842
    %v3676 = vunpack.c.h.b16 %v842
    %v3677 = vunpack.c.l.b16 %v843
    %v3678 = vunpack.c.h.b16 %v843
    %v3679 = vunpack.c.l.b16 %v844
    %v3680 = vunpack.c.h.b16 %v844
    %v3681 = vunpack.c.l.b16 %v845
    %v3682 = vunpack.c.h.b16 %v845
    %v3683 = vunpack.c.l.b16 %v846
    %v3684 = vunpack.c.h.b16 %v846
    %v3685 = vunpack.c.l.b16 %v847
    %v3686 = vunpack.c.h.b16 %v847
    %v3687 = vunpack.c.l.b16 %v848
    %v3688 = vunpack.c.h.b16 %v848
    %v3689 = vunpack.c.l.b16 %v849
    %v3690 = vunpack.c.h.b16 %v849
    %v3691 = vunpack.c.l.b16 %v850
    %v3692 = vunpack.c.h.b16 %v850
    %v3693 = vunpack.c.l.b16 %v851
    %v3694 = vunpack.c.h.b16 %v851
    %v3695 = vunpack.c.l.b16 %v852
    %v3696 = vunpack.c.h.b16 %v852
    %v3697 = vunpack.c.l.b16 %v853
    %v3698 = vunpack.c.h.b16 %v853
    %v3699 = vunpack.c.l.b16 %v854
    %v3700 = vunpack.c.h.b16 %v854
    %v3701 = vunpack.c.l.b16 %v855
    %v3702 = vunpack.c.h.b16 %v855
    %v3703 = vunpack.c.l.b16 %v856
    %v3704 = vunpack.c.h.b16 %v856
    %v3705 = vunpack.c.l.b16 %v857
    %v3706 = vunpack.c.h.b16 %v857
    %v3707 = vunpack.c.l.b16 %v858
    %v3708 = vunpack.c.h.b16 %v858
    %v3709 = vunpack.c.l.b16 %v859
    %v3710 = vunpack.c.h.b16 %v859
    %v3711 = vunpack.c.l.b16 %v860
    %v3712 = vunpack.c.h.b16 %v860
    %v3713 = vunpack.c.l.b16 %v861
    %v3714 = vunpack.c.h.b16 %v861
    %v3715 = vunpack.c.l.b16 %v862
    %v3716 = vunpack.c.h.b16 %v862
    %v3717 = vunpack.c.l.b16 %v863
    %v3718 = vunpack.c.h.b16 %v863
    %v3719 = vunpack.c.l.b16 %v864
    %v3720 = vunpack.c.h.b16 %v864
    %v3721 = vunpack.c.l.b16 %v865
    %v3722 = vunpack.c.h.b16 %v865
    %v3723 = vunpack.c.l.b16 %v866
    %v3724 = vunpack.c.h.b16 %v866
    %v3725 = vunpack.c.l.b16 %v867
    %v3726 = vunpack.c.h.b16 %v867
    %v3727 = vunpack.c.l.b16 %v868
    %v3728 = vunpack.c.h.b16 %v868
    %v3729 = vunpack.c.l.b16 %v869
    %v3730 = vunpack.c.h.b16 %v869
    %v3731 = vunpack.c.l.b16 %v870
    %v3732 = vunpack.c.h.b16 %v870
    %v3733 = vunpack.c.l.b16 %v871
    %v3734 = vunpack.c.h.b16 %v871
    %v3735 = vunpack.c.l.b16 %v872
    %v3736 = vunpack.c.h.b16 %v872
    %v3737 = vunpack.c.l.b16 %v873
    %v3738 = vunpack.c.h.b16 %v873
    %v3739 = vunpack.c.l.b16 %v874
    %v3740 = vunpack.c.h.b16 %v874
    %v3741 = vunpack.c.l.b16 %v875
    %v3742 = vunpack.c.h.b16 %v875
    %v3743 = vunpack.c.l.b16 %v876
    %v3744 = vunpack.c.h.b16 %v876
    %v3745 = vunpack.c.l.b16 %v877
    %v3746 = vunpack.c.h.b16 %v877
    %v3747 = vunpack.c.l.b16 %v878
    %v3748 = vunpack.c.h.b16 %v878
    %v3749 = vunpack.c.l.b16 %v879
    %v3750 = vunpack.c.h.b16 %v879
    %v3751 = vunpack.c.l.b16 %v880
    %v3752 = vunpack.c.h.b16 %v880
    %v3753 = vunpack.c.l.b16 %v881
    %v3754 = vunpack.c.h.b16 %v881
    %v3755 = vunpack.c.l.b16 %v882
    %v3756 = vunpack.c.h.b16 %v882
    %v3757 = vunpack.c.l.b16 %v883
    %v3758 = vunpack.c.h.b16 %v883
    %v3759 = vunpack.c.l.b16 %v884
    %v3760 = vunpack.c.h.b16 %v884
    %v3761 = vunpack.c.l.b16 %v885
    %v3762 = vunpack.c.h.b16 %v885
    %v3763 = vunpack.c.l.b16 %v886
    %v3764 = vunpack.c.h.b16 %v886
    %v3765 = vunpack.c.l.b16 %v887
    %v3766 = vunpack.c.h.b16 %v887
    %v3767 = vunpack.c.l.b16 %v888
    %v3768 = vunpack.c.h.b16 %v888
    %v3769 = vunpack.c.l.b16 %v889
    %v3770 = vunpack.c.h.b16 %v889
    %v3771 = vunpack.c.l.b16 %v890
    %v3772 = vunpack.c.h.b16 %v890
    %v3773 = vunpack.c.l.b16 %v891
    %v3774 = vunpack.c.h.b16 %v891
    %v3775 = vunpack.c.l.b16 %v892
    %v3776 = vunpack.c.h.b16 %v892
    %v3777 = vunpack.c.l.b16 %v893
    %v3778 = vunpack.c.h.b16 %v893
    %v3779 = vunpack.c.l.b16 %v894
    %v3780 = vunpack.c.h.b16 %v894
    %v3781 = vunpack.c.l.b16 %v895
    %v3782 = vunpack.c.h.b16 %v895
    %v3783 = vunpack.c.l.b16 %v896
    %v3784 = vunpack.c.h.b16 %v896
    %v3785 = vunpack.c.l.b16 %v897
    %v3786 = vunpack.c.h.b16 %v897
    %v3787 = vunpack.c.l.b16 %v898
    %v3788 = vunpack.c.h.b16 %v898
    %v3789 = vunpack.c.l.b16 %v899
    %v3790 = vunpack.c.h.b16 %v899
    %v3791 = vunpack.c.l.b16 %v900
    %v3792 = vunpack.c.h.b16 %v900
    %v3793 = vunpack.c.l.b16 %v901
    %v3794 = vunpack.c.h.b16 %v901
    %v3795 = vunpack.c.l.b16 %v902
    %v3796 = vunpack.c.h.b16 %v902
    %v3797 = vunpack.c.l.b16 %v903
    %v3798 = vunpack.c.h.b16 %v903
    %v3799 = vunpack.c.l.b16 %v904
    %v3800 = vunpack.c.h.b16 %v904
    %v3801 = vunpack.c.l.b16 %v905
    %v3802 = vunpack.c.h.b16 %v905
    %v3803 = vunpack.c.l.b16 %v906
    %v3804 = vunpack.c.h.b16 %v906
    %v3805 = vunpack.c.l.b16 %v907
    %v3806 = vunpack.c.h.b16 %v907
    %v3807 = vunpack.c.l.b16 %v908
    %v3808 = vunpack.c.h.b16 %v908
    %v3809 = vunpack.c.l.b16 %v909
    %v3810 = vunpack.c.h.b16 %v909
    %v3811 = vunpack.c.l.b16 %v910
    %v3812 = vunpack.c.h.b16 %v910
    %v3813 = vunpack.c.l.b16 %v911
    %v3814 = vunpack.c.h.b16 %v911
    %v3815 = vunpack.c.l.b16 %v912
    %v3816 = vunpack.c.h.b16 %v912
    %v3817 = vunpack.c.l.b16 %v913
    %v3818 = vunpack.c.h.b16 %v913
    %v3819 = vunpack.c.l.b16 %v914
    %v3820 = vunpack.c.h.b16 %v914
    %v3821 = vunpack.c.l.b16 %v915
    %v3822 = vunpack.c.h.b16 %v915
    %v3823 = vunpack.c.l.b16 %v916
    %v3824 = vunpack.c.h.b16 %v916
    %v3825 = vunpack.c.l.b16 %v917
    %v3826 = vunpack.c.h.b16 %v917
    %v3827 = vunpack.c.l.b16 %v918
    %v3828 = vunpack.c.h.b16 %v918
    %v3829 = vunpack.c.l.b16 %v919
    %v3830 = vunpack.c.h.b16 %v919
    %v3831 = vunpack.c.l.b16 %v920
    %v3832 = vunpack.c.h.b16 %v920
    %v3833 = vunpack.c.l.b16 %v921
    %v3834 = vunpack.c.h.b16 %v921
    %v3835 = vunpack.c.l.b16 %v922
    %v3836 = vunpack.c.h.b16 %v922
    %v3837 = vunpack.c.l.b16 %v923
    %v3838 = vunpack.c.h.b16 %v923
    %v3839 = vunpack.c.l.b16 %v924
    %v3840 = vunpack.c.h.b16 %v924
    %v3841 = vunpack.c.l.b16 %v925
    %v3842 = vunpack.c.h.b16 %v925
    %v3843 = vunpack.c.l.b16 %v926
    %v3844 = vunpack.c.h.b16 %v926
    %v3845 = vunpack.c.l.b16 %v927
    %v3846 = vunpack.c.h.b16 %v927
    %v3847 = vunpack.c.l.b16 %v928
    %v3848 = vunpack.c.h.b16 %v928
    %v3849 = vunpack.c.l.b16 %v929
    %v3850 = vunpack.c.h.b16 %v929
    %v3851 = vunpack.c.l.b16 %v930
    %v3852 = vunpack.c.h.b16 %v930
    %v3853 = vunpack.c.l.b16 %v931
    %v3854 = vunpack.c.h.b16 %v931
    %v3855 = vunpack.c.l.b16 %v932
    %v3856 = vunpack.c.h.b16 %v932
    %v3857 = vunpack.c.l.b16 %v933
    %v3858 = vunpack.c.h.b16 %v933
    %v3859 = vunpack.c.l.b16 %v934
    %v3860 = vunpack.c.h.b16 %v934
    %v3861 = vunpack.c.l.b16 %v935
    %v3862 = vunpack.c.h.b16 %v935
    %v3863 = vunpack.c.l.b16 %v936
    %v3864 = vunpack.c.h.b16 %v936
    %v3865 = vunpack.c.l.b16 %v937
    %v3866 = vunpack.c.h.b16 %v937
    %v3867 = vunpack.c.l.b16 %v938
    %v3868 = vunpack.c.h.b16 %v938
    %v3869 = vunpack.c.l.b16 %v939
    %v3870 = vunpack.c.h.b16 %v939
    %v3871 = vunpack.c.l.b16 %v940
    %v3872 = vunpack.c.h.b16 %v940
    %v3873 = vunpack.c.l.b16 %v941
    %v3874 = vunpack.c.h.b16 %v941
    %v3875 = vunpack.c.l.b16 %v942
    %v3876 = vunpack.c.h.b16 %v942
    %v3877 = vunpack.c.l.b16 %v943
    %v3878 = vunpack.c.h.b16 %v943
    %v3879 = vunpack.c.l.b16 %v944
    %v3880 = vunpack.c.h.b16 %v944
    %v3881 = vunpack.c.l.b16 %v945
    %v3882 = vunpack.c.h.b16 %v945
    %v3883 = vunpack.c.l.b16 %v946
    %v3884 = vunpack.c.h.b16 %v946
    %v3885 = vunpack.c.l.b16 %v947
    %v3886 = vunpack.c.h.b16 %v947
    %v3887 = vunpack.c.l.b16 %v948
    %v3888 = vunpack.c.h.b16 %v948
    %v3889 = vunpack.c.l.b16 %v949
    %v3890 = vunpack.c.h.b16 %v949
    %v3891 = vunpack.c.l.b16 %v950
    %v3892 = vunpack.c.h.b16 %v950
    %v3893 = vunpack.c.l.b16 %v951
    %v3894 = vunpack.c.h.b16 %v951
    %v3895 = vunpack.c.l.b16 %v952
    %v3896 = vunpack.c.h.b16 %v952
    %v3897 = vunpack.c.l.b16 %v953
    %v3898 = vunpack.c.h.b16 %v953
    %v3899 = vunpack.c.l.b16 %v954
    %v3900 = vunpack.c.h.b16 %v954
    %v3901 = vunpack.c.l.b16 %v955
    %v3902 = vunpack.c.h.b16 %v955
    %v3903 = vunpack.c.l.b16 %v956
    %v3904 = vunpack.c.h.b16 %v956
    %v3905 = vunpack.c.l.b16 %v957
    %v3906 = vunpack.c.h.b16 %v957
    %v3907 = vunpack.c.l.b16 %v958
    %v3908 = vunpack.c.h.b16 %v958
    %v3909 = vunpack.c.l.b16 %v959
    %v3910 = vunpack.c.h.b16 %v959
    %v3911 = vunpack.c.l.b16 %v960
    %v3912 = vunpack.c.h.b16 %v960
    %v3913 = vunpack.c.l.b16 %v961
    %v3914 = vunpack.c.h.b16 %v961
    %v3915 = vunpack.c.l.b16 %v962
    %v3916 = vunpack.c.h.b16 %v962
    %v3917 = vunpack.c.l.b16 %v963
    %v3918 = vunpack.c.h.b16 %v963
    %v3919 = vunpack.c.l.b16 %v964
    %v3920 = vunpack.c.h.b16 %v964
    %v3921 = vunpack.c.l.b16 %v965
    %v3922 = vunpack.c.h.b16 %v965
    %v3923 = vunpack.c.l.b16 %v966
    %v3924 = vunpack.c.h.b16 %v966
    %v3925 = vunpack.c.l.b16 %v967
    %v3926 = vunpack.c.h.b16 %v967
    %v3927 = vunpack.c.l.b16 %v968
    %v3928 = vunpack.c.h.b16 %v968
    %v3929 = vunpack.c.l.b16 %v969
    %v3930 = vunpack.c.h.b16 %v969
    %v3931 = vunpack.c.l.b16 %v970
    %v3932 = vunpack.c.h.b16 %v970
    %v3933 = vunpack.c.l.b16 %v971
    %v3934 = vunpack.c.h.b16 %v971
    %v3935 = vunpack.c.l.b16 %v972
    %v3936 = vunpack.c.h.b16 %v972
    %v3937 = vunpack.c.l.b16 %v973
    %v3938 = vunpack.c.h.b16 %v973
    %v3939 = vunpack.c.l.b16 %v974
    %v3940 = vunpack.c.h.b16 %v974
    %v3941 = vunpack.c.l.b16 %v975
    %v3942 = vunpack.c.h.b16 %v975
    %v3943 = vunpack.c.l.b16 %v976
    %v3944 = vunpack.c.h.b16 %v976
    %v3945 = vunpack.c.l.b16 %v977
    %v3946 = vunpack.c.h.b16 %v977
    %v3947 = vunpack.c.l.b16 %v978
    %v3948 = vunpack.c.h.b16 %v978
    %v3949 = vunpack.c.l.b16 %v979
    %v3950 = vunpack.c.h.b16 %v979
    %v3951 = vunpack.c.l.b16 %v980
    %v3952 = vunpack.c.h.b16 %v980
    %v3953 = vunpack.c.l.b16 %v981
    %v3954 = vunpack.c.h.b16 %v981
    %v3955 = vunpack.c.l.b16 %v982
    %v3956 = vunpack.c.h.b16 %v982
    %v3957 = vunpack.c.l.b16 %v983
    %v3958 = vunpack.c.h.b16 %v983
    %v3959 = vunpack.c.l.b16 %v984
    %v3960 = vunpack.c.h.b16 %v984
    %v3961 = vunpack.c.l.b16 %v985
    %v3962 = vunpack.c.h.b16 %v985
    %v3963 = vunpack.c.l.b16 %v986
    %v3964 = vunpack.c.h.b16 %v986
    %v3965 = vunpack.c.l.b16 %v987
    %v3966 = vunpack.c.h.b16 %v987
    %v3967 = vunpack.c.l.b16 %v988
    %v3968 = vunpack.c.h.b16 %v988
    %v3969 = vunpack.c.l.b16 %v989
    %v3970 = vunpack.c.h.b16 %v989
    %v3971 = vunpack.c.l.b16 %v990
    %v3972 = vunpack.c.h.b16 %v990
    %v3973 = vunpack.c.l.b16 %v991
    %v3974 = vunpack.c.h.b16 %v991
    %v3975 = vunpack.c.l.b16 %v992
    %v3976 = vunpack.c.h.b16 %v992
    %v3977 = vunpack.c.l.b16 %v993
    %v3978 = vunpack.c.h.b16 %v993
    %v3979 = vunpack.c.l.b16 %v994
    %v3980 = vunpack.c.h.b16 %v994
    %v3981 = vunpack.c.l.b16 %v995
    %v3982 = vunpack.c.h.b16 %v995
    %v3983 = vunpack.c.l.b16 %v996
    %v3984 = vunpack.c.h.b16 %v996
    %v3985 = vunpack.c.l.b16 %v997
    %v3986 = vunpack.c.h.b16 %v997
    %v3987 = vunpack.c.l.b16 %v998
    %v3988 = vunpack.c.h.b16 %v998
    %v3989 = vunpack.c.l.b16 %v999
    %v3990 = vunpack.c.h.b16 %v999
    %v3991 = vunpack.c.l.b16 %v1000
    %v3992 = vunpack.c.h.b16 %v1000
    %v3993 = vunpack.c.l.b16 %v1001
    %v3994 = vunpack.c.h.b16 %v1001
    %v3995 = vunpack.c.l.b16 %v1002
    %v3996 = vunpack.c.h.b16 %v1002
    %v3997 = vunpack.c.l.b16 %v1003
    %v3998 = vunpack.c.h.b16 %v1003
    %v3999 = vunpack.c.l.b16 %v1004
    %v4000 = vunpack.c.h.b16 %v1004
    %v4001 = vunpack.c.l.b16 %v1005
    %v4002 = vunpack.c.h.b16 %v1005
    %v4003 = vunpack.c.l.b16 %v1006
    %v4004 = vunpack.c.h.b16 %v1006
    %v4005 = vunpack.c.l.b16 %v1007
    %v4006 = vunpack.c.h.b16 %v1007
    %v4007 = vunpack.c.l.b16 %v1008
    %v4008 = vunpack.c.h.b16 %v1008
    %v4009 = vunpack.c.l.b16 %v1009
    %v4010 = vunpack.c.h.b16 %v1009
    %v4011 = vunpack.c.l.b16 %v1010
    %v4012 = vunpack.c.h.b16 %v1010
    %v4013 = vunpack.c.l.b16 %v1011
    %v4014 = vunpack.c.h.b16 %v1011
    %v4015 = vunpack.c.l.b16 %v1012
    %v4016 = vunpack.c.h.b16 %v1012
    %v4017 = vunpack.c.l.b16 %v1013
    %v4018 = vunpack.c.h.b16 %v1013
    %v4019 = vunpack.c.l.b16 %v1014
    %v4020 = vunpack.c.h.b16 %v1014
    %v4021 = vunpack.c.l.b16 %v1015
    %v4022 = vunpack.c.h.b16 %v1015
    %v4023 = vunpack.c.l.b16 %v1016
    %v4024 = vunpack.c.h.b16 %v1016
    %v4025 = vunpack.c.l.b16 %v1017
    %v4026 = vunpack.c.h.b16 %v1017
    %v4027 = vunpack.c.l.b16 %v1018
    %v4028 = vunpack.c.h.b16 %v1018
    %v4029 = vunpack.c.l.b16 %v1019
    %v4030 = vunpack.c.h.b16 %v1019
    %v4031 = vunpack.c.l.b16 %v1020
    %v4032 = vunpack.c.h.b16 %v1020
    %v4033 = vunpack.c.l.b16 %v1021
    %v4034 = vunpack.c.h.b16 %v1021
    %v4035 = vunpack.c.l.b16 %v1022
    %v4036 = vunpack.c.h.b16 %v1022
    %v4037 = vunpack.c.l.b16 %v1023
    %v4038 = vunpack.c.h.b16 %v1023
    %v4039 = vunpack.c.l.b16 %v1024
    %v4040 = vunpack.c.h.b16 %v1024
    %v4041 = vunpack.c.l.b16 %v1025
    %v4042 = vunpack.c.h.b16 %v1025
    %v4043 = vunpack.c.l.b16 %v1026
    %v4044 = vunpack.c.h.b16 %v1026
    %v4045 = vunpack.c.l.b16 %v1027
    %v4046 = vunpack.c.h.b16 %v1027
    %v4047 = vunpack.c.l.b16 %v1028
    %v4048 = vunpack.c.h.b16 %v1028
    %v4049 = vunpack.c.l.b16 %v1029
    %v4050 = vunpack.c.h.b16 %v1029
    %v4051 = vunpack.c.l.b16 %v1030
    %v4052 = vunpack.c.h.b16 %v1030
    %v4053 = vunpack.c.l.b16 %v1031
    %v4054 = vunpack.c.h.b16 %v1031
    %v4055 = vunpack.c.l.b16 %v1032
    %v4056 = vunpack.c.h.b16 %v1032
    %v4057 = vunpack.c.l.b16 %v1033
    %v4058 = vunpack.c.h.b16 %v1033
    %v4059 = vunpack.c.l.b16 %v1034
    %v4060 = vunpack.c.h.b16 %v1034
    %v4061 = vunpack.c.l.b16 %v1035
    %v4062 = vunpack.c.h.b16 %v1035
    %v4063 = vunpack.c.l.b16 %v1036
    %v4064 = vunpack.c.h.b16 %v1036
    %v4065 = vunpack.c.l.b16 %v1037
    %v4066 = vunpack.c.h.b16 %v1037
    %v4067 = vunpack.c.l.b16 %v1038
    %v4068 = vunpack.c.h.b16 %v1038
    %v4069 = vunpack.c.l.b16 %v1039
    %v4070 = vunpack.c.h.b16 %v1039
    %v4071 = vunpack.c.l.b16 %v1040
    %v4072 = vunpack.c.h.b16 %v1040
    %v4073 = vunpack.c.l.b16 %v1041
    %v4074 = vunpack.c.h.b16 %v1041
    %v4075 = vunpack.c.l.b16 %v1042
    %v4076 = vunpack.c.h.b16 %v1042
    %v4077 = vunpack.c.l.b16 %v1043
    %v4078 = vunpack.c.h.b16 %v1043
    %v4079 = vunpack.c.l.b16 %v1044
    %v4080 = vunpack.c.h.b16 %v1044
    %v4081 = vunpack.c.l.b16 %v1045
    %v4082 = vunpack.c.h.b16 %v1045
    %v4083 = vunpack.c.l.b16 %v1046
    %v4084 = vunpack.c.h.b16 %v1046
    %v4085 = vunpack.c.l.b16 %v1047
    %v4086 = vunpack.c.h.b16 %v1047
    %v4087 = vunpack.c.l.b16 %v1048
    %v4088 = vunpack.c.h.b16 %v1048
    %v4089 = vunpack.c.l.b16 %v1049
    %v4090 = vunpack.c.h.b16 %v1049
    %v4091 = vunpack.c.l.b16 %v1050
    %v4092 = vunpack.c.h.b16 %v1050
    %v4093 = vunpack.c.l.b16 %v1051
    %v4094 = vunpack.c.h.b16 %v1051
    %v4095 = vunpack.c.l.b16 %v1052
    %v4096 = vunpack.c.h.b16 %v1052
    %v4097 = vunpack.c.l.b16 %v1053
    %v4098 = vunpack.c.h.b16 %v1053
    %v4099 = vunpack.c.l.b16 %v1054
    %v4100 = vunpack.c.h.b16 %v1054
    %v4101 = vunpack.c.l.b16 %v1055
    %v4102 = vunpack.c.h.b16 %v1055
    %v4103 = vunpack.c.l.b16 %v1056
    %v4104 = vunpack.c.h.b16 %v1056
    %v4105 = vunpack.c.l.b16 %v1057
    %v4106 = vunpack.c.h.b16 %v1057
    %v4107 = vunpack.c.l.b16 %v1058
    %v4108 = vunpack.c.h.b16 %v1058
    %v4109 = vunpack.c.l.b16 %v1059
    %v4110 = vunpack.c.h.b16 %v1059
    %v4111 = vunpack.c.l.b16 %v1060
    %v4112 = vunpack.c.h.b16 %v1060
    %v4113 = vunpack.c.l.b16 %v1061
    %v4114 = vunpack.c.h.b16 %v1061
    %v4115 = vunpack.c.l.b16 %v1062
    %v4116 = vunpack.c.h.b16 %v1062
    %v4117 = vunpack.c.l.b16 %v1063
    %v4118 = vunpack.c.h.b16 %v1063
    %v4119 = vunpack.c.l.b16 %v1064
    %v4120 = vunpack.c.h.b16 %v1064
    %v4121 = vunpack.c.l.b16 %v1065
    %v4122 = vunpack.c.h.b16 %v1065
    %v4123 = vunpack.c.l.b16 %v1066
    %v4124 = vunpack.c.h.b16 %v1066
    %v4125 = vunpack.c.l.b16 %v1067
    %v4126 = vunpack.c.h.b16 %v1067
    %v4127 = vunpack.c.l.b16 %v1068
    %v4128 = vunpack.c.h.b16 %v1068
    %v4129 = vunpack.c.l.b16 %v1069
    %v4130 = vunpack.c.h.b16 %v1069
    %v4131 = vunpack.c.l.b16 %v1070
    %v4132 = vunpack.c.h.b16 %v1070
    %v4133 = vunpack.c.l.b16 %v1071
    %v4134 = vunpack.c.h.b16 %v1071
    %v4135 = vunpack.c.l.b16 %v1072
    %v4136 = vunpack.c.h.b16 %v1072
    %v4137 = vunpack.c.l.b16 %v1073
    %v4138 = vunpack.c.h.b16 %v1073
    %v4139 = vunpack.c.l.b16 %v1074
    %v4140 = vunpack.c.h.b16 %v1074
    %v4141 = vunpack.c.l.b16 %v1075
    %v4142 = vunpack.c.h.b16 %v1075
    %v4143 = vunpack.c.l.b16 %v1076
    %v4144 = vunpack.c.h.b16 %v1076
    %v4145 = vunpack.c.l.b16 %v1077
    %v4146 = vunpack.c.h.b16 %v1077
    %v4147 = vunpack.c.l.b16 %v1078
    %v4148 = vunpack.c.h.b16 %v1078
    %v4149 = vunpack.c.l.b16 %v1079
    %v4150 = vunpack.c.h.b16 %v1079
    %v4151 = vunpack.c.l.b16 %v1080
    %v4152 = vunpack.c.h.b16 %v1080
    %v4153 = vunpack.c.l.b16 %v1081
    %v4154 = vunpack.c.h.b16 %v1081
    %v4155 = vunpack.c.l.b16 %v1082
    %v4156 = vunpack.c.h.b16 %v1082
    %v4157 = vunpack.c.l.b16 %v1083
    %v4158 = vunpack.c.h.b16 %v1083
    %v4159 = vunpack.c.l.b16 %v1084
    %v4160 = vunpack.c.h.b16 %v1084
    %v4161 = vunpack.c.l.b16 %v1085
    %v4162 = vunpack.c.h.b16 %v1085
    %v4163 = vunpack.c.l.b16 %v1086
    %v4164 = vunpack.c.h.b16 %v1086
    %v4165 = vunpack.c.l.b16 %v1087
    %v4166 = vunpack.c.h.b16 %v1087
    %v4167 = vunpack.c.l.b16 %v1088
    %v4168 = vunpack.c.h.b16 %v1088
    %v4169 = vunpack.c.l.b16 %v1089
    %v4170 = vunpack.c.h.b16 %v1089
    %v4171 = vunpack.c.l.b16 %v1090
    %v4172 = vunpack.c.h.b16 %v1090
    %v4173 = vunpack.c.l.b16 %v1091
    %v4174 = vunpack.c.h.b16 %v1091
    %v4175 = vunpack.c.l.b16 %v1092
    %v4176 = vunpack.c.h.b16 %v1092
    %v4177 = vunpack.c.l.b16 %v1093
    %v4178 = vunpack.c.h.b16 %v1093
    %v4179 = vunpack.c.l.b16 %v1094
    %v4180 = vunpack.c.h.b16 %v1094
    %v4181 = vunpack.c.l.b16 %v1095
    %v4182 = vunpack.c.h.b16 %v1095
    %v4183 = vunpack.c.l.b16 %v1096
    %v4184 = vunpack.c.h.b16 %v1096
    %v4185 = vunpack.c.l.b16 %v1097
    %v4186 = vunpack.c.h.b16 %v1097
    %v4187 = vunpack.c.l.b16 %v1098
    %v4188 = vunpack.c.h.b16 %v1098
    %v4189 = vunpack.c.l.b16 %v1099
    %v4190 = vunpack.c.h.b16 %v1099
    %v4191 = vunpack.c.l.b16 %v1100
    %v4192 = vunpack.c.h.b16 %v1100
    %v4193 = vunpack.c.l.b16 %v1101
    %v4194 = vunpack.c.h.b16 %v1101
    %v4195 = vunpack.c.l.b16 %v1102
    %v4196 = vunpack.c.h.b16 %v1102
    %v4197 = vunpack.c.l.b16 %v1103
    %v4198 = vunpack.c.h.b16 %v1103
    %v4199 = vunpack.c.l.b16 %v1104
    %v4200 = vunpack.c.h.b16 %v1104
    %v4201 = vunpack.c.l.b16 %v1105
    %v4202 = vunpack.c.h.b16 %v1105
    %v4203 = vunpack.c.l.b16 %v1106
    %v4204 = vunpack.c.h.b16 %v1106
    %v4205 = vunpack.c.l.b16 %v1107
    %v4206 = vunpack.c.h.b16 %v1107
    %v4207 = vunpack.c.l.b16 %v1108
    %v4208 = vunpack.c.h.b16 %v1108
    %v4209 = vunpack.c.l.b16 %v1109
    %v4210 = vunpack.c.h.b16 %v1109
    %v4211 = vunpack.c.l.b16 %v1110
    %v4212 = vunpack.c.h.b16 %v1110
    %v4213 = vunpack.c.l.b16 %v1111
    %v4214 = vunpack.c.h.b16 %v1111
    %v4215 = vunpack.c.l.b16 %v1112
    %v4216 = vunpack.c.h.b16 %v1112
    %v4217 = vunpack.c.l.b16 %v1113
    %v4218 = vunpack.c.h.b16 %v1113
    %v4219 = vunpack.c.l.b16 %v1114
    %v4220 = vunpack.c.h.b16 %v1114
    %v4221 = vunpack.c.l.b16 %v1115
    %v4222 = vunpack.c.h.b16 %v1115
    %v4223 = vunpack.c.l.b16 %v1116
    %v4224 = vunpack.c.h.b16 %v1116
    %v4225 = vunpack.c.l.b16 %v1117
    %v4226 = vunpack.c.h.b16 %v1117
    %v4227 = vunpack.c.l.b16 %v1118
    %v4228 = vunpack.c.h.b16 %v1118
    %v4229 = vunpack.c.l.b16 %v1119
    %v4230 = vunpack.c.h.b16 %v1119
    %v4231 = vunpack.c.l.b16 %v1120
    %v4232 = vunpack.c.h.b16 %v1120
    %v4233 = vunpack.c.l.b16 %v1121
    %v4234 = vunpack.c.h.b16 %v1121
    %v4235 = vunpack.c.l.b16 %v1122
    %v4236 = vunpack.c.h.b16 %v1122
    %v4237 = vpack.c.b16 %v2197, %v2189
    %v4238 = vpack.c.b16 %v2198, %v2190
    %v4239 = vpack.c.b16 %v2199, %v2191
    %v4240 = vpack.c.b16 %v2200, %v2192
    %v4241 = vpack.c.b16 %v2201, %v2193
    %v4242 = vpack.c.b16 %v2202, %v2194
    %v4243 = vpack.c.b16 %v2203, %v2195
    %v4244 = vpack.c.b16 %v2204, %v2196
    %v4245 = vpack.c.b16 %v2213, %v2205
    %v4246 = vpack.c.b16 %v2214, %v2206
    %v4247 = vpack.c.b16 %v2215, %v2207
    %v4248 = vpack.c.b16 %v2216, %v2208
    %v4249 = vpack.c.b16 %v2217, %v2209
    %v4250 = vpack.c.b16 %v2218, %v2210
    %v4251 = vpack.c.b16 %v2219, %v2211
    %v4252 = vpack.c.b16 %v2220, %v2212
    %v4253 = vpack.c.b16 %v2229, %v2221
    %v4254 = vpack.c.b16 %v2230, %v2222
    %v4255 = vpack.c.b16 %v2231, %v2223
    %v4256 = vpack.c.b16 %v2232, %v2224
    %v4257 = vpack.c.b16 %v2233, %v2225
    %v4258 = vpack.c.b16 %v2234, %v2226
    %v4259 = vpack.c.b16 %v2235, %v2227
    %v4260 = vpack.c.b16 %v2236, %v2228
    %v4261 = vpack.c.b16 %v2245, %v2237
    %v4262 = vpack.c.b16 %v2246, %v2238
    %v4263 = vpack.c.b16 %v2247, %v2239
    %v4264 = vpack.c.b16 %v2248, %v2240
    %v4265 = vpack.c.b16 %v2249, %v2241
    %v4266 = vpack.c.b16 %v2250, %v2242
    %v4267 = vpack.c.b16 %v2251, %v2243
    %v4268 = vpack.c.b16 %v2252, %v2244
    %v4269 = vpack.c.b16 %v2261, %v2253
    %v4270 = vpack.c.b16 %v2262, %v2254
    %v4271 = vpack.c.b16 %v2263, %v2255
    %v4272 = vpack.c.b16 %v2264, %v2256
    %v4273 = vpack.c.b16 %v2265, %v2257
    %v4274 = vpack.c.b16 %v2266, %v2258
    %v4275 = vpack.c.b16 %v2267, %v2259
    %v4276 = vpack.c.b16 %v2268, %v2260
    %v4277 = vpack.c.b16 %v2277, %v2269
    %v4278 = vpack.c.b16 %v2278, %v2270
    %v4279 = vpack.c.b16 %v2279, %v2271
    %v4280 = vpack.c.b16 %v2280, %v2272
    %v4281 = vpack.c.b16 %v2281, %v2273
    %v4282 = vpack.c.b16 %v2282, %v2274
    %v4283 = vpack.c.b16 %v2283, %v2275
    %v4284 = vpack.c.b16 %v2284, %v2276
    %v4285 = vpack.c.b16 %v2293, %v2285
    %v4286 = vpack.c.b16 %v2294, %v2286
    %v4287 = vpack.c.b16 %v2295, %v2287
    %v4288 = vpack.c.b16 %v2296, %v2288
    %v4289 = vpack.c.b16 %v2297, %v2289
    %v4290 = vpack.c.b16 %v2298, %v2290
    %v4291 = vpack.c.b16 %v2299, %v2291
    %v4292 = vpack.c.b16 %v2300, %v2292
    %v4293 = vpack.c.b16 %v2309, %v2301
    %v4294 = vpack.c.b16 %v2310, %v2302
    %v4295 = vpack.c.b16 %v2311, %v2303
    %v4296 = vpack.c.b16 %v2312, %v2304
    %v4297 = vpack.c.b16 %v2313, %v2305
    %v4298 = vpack.c.b16 %v2314, %v2306
    %v4299 = vpack.c.b16 %v2315, %v2307
    %v4300 = vpack.c.b16 %v2316, %v2308
    %v4301 = vpack.c.b16 %v2325, %v2317
    %v4302 = vpack.c.b16 %v2326, %v2318
    %v4303 = vpack.c.b16 %v2327, %v2319
    %v4304 = vpack.c.b16 %v2328, %v2320
    %v4305 = vpack.c.b16 %v2329, %v2321
    %v4306 = vpack.c.b16 %v2330, %v2322
    %v4307 = vpack.c.b16 %v2331, %v2323
    %v4308 = vpack.c.b16 %v2332, %v2324
    %v4309 = vpack.c.b16 %v2341, %v2333
    %v4310 = vpack.c.b16 %v2342, %v2334
    %v4311 = vpack.c.b16 %v2343, %v2335
    %v4312 = vpack.c.b16 %v2344, %v2336
    %v4313 = vpack.c.b16 %v2345, %v2337
    %v4314 = vpack.c.b16 %v2346, %v2338
    %v4315 = vpack.c.b16 %v2347, %v2339
    %v4316 = vpack.c.b16 %v2348, %v2340
    %v4317 = vpack.c.b16 %v2357, %v2349
    %v4318 = vpack.c.b16 %v2358, %v2350
    %v4319 = vpack.c.b16 %v2359, %v2351
    %v4320 = vpack.c.b16 %v2360, %v2352
    %v4321 = vpack.c.b16 %v2361, %v2353
    %v4322 = vpack.c.b16 %v2362, %v2354
    %v4323 = vpack.c.b16 %v2363, %v2355
    %v4324 = vpack.c.b16 %v2364, %v2356
    %v4325 = vpack.c.b16 %v2373, %v2365
    %v4326 = vpack.c.b16 %v2374, %v2366
    %v4327 = vpack.c.b16 %v2375, %v2367
    %v4328 = vpack.c.b16 %v2376, %v2368
    %v4329 = vpack.c.b16 %v2377, %v2369
    %v4330 = vpack.c.b16 %v2378, %v2370
    %v4331 = vpack.c.b16 %v2379, %v2371
    %v4332 = vpack.c.b16 %v2380, %v2372
    %v4333 = vpack.c.b16 %v2389, %v2381
    %v4334 = vpack.c.b16 %v2390, %v2382
    %v4335 = vpack.c.b16 %v2391, %v2383
    %v4336 = vpack.c.b16 %v2392, %v2384
    %v4337 = vpack.c.b16 %v2393, %v2385
    %v4338 = vpack.c.b16 %v2394, %v2386
    %v4339 = vpack.c.b16 %v2395, %v2387
    %v4340 = vpack.c.b16 %v2396, %v2388
    %v4341 = vpack.c.b16 %v2405, %v2397
    %v4342 = vpack.c.b16 %v2406, %v2398
    %v4343 = vpack.c.b16 %v2407, %v2399
    %v4344 = vpack.c.b16 %v2408, %v2400
    %v4345 = vpack.c.b16 %v2409, %v2401
    %v4346 = vpack.c.b16 %v2410, %v2402
    %v4347 = vpack.c.b16 %v2411, %v2403
    %v4348 = vpack.c.b16 %v2412, %v2404
    %v4349 = vpack.c.b16 %v2421, %v2413
    %v4350 = vpack.c.b16 %v2422, %v2414
    %v4351 = vpack.c.b16 %v2423, %v2415
    %v4352 = vpack.c.b16 %v2424, %v2416
    %v4353 = vpack.c.b16 %v2425, %v2417
    %v4354 = vpack.c.b16 %v2426, %v2418
    %v4355 = vpack.c.b16 %v2427, %v2419
    %v4356 = vpack.c.b16 %v2428, %v2420
    %v4357 = vpack.c.b16 %v2437, %v2429
    %v4358 = vpack.c.b16 %v2438, %v2430
    %v4359 = vpack.c.b16 %v2439, %v2431
    %v4360 = vpack.c.b16 %v2440, %v2432
    %v4361 = vpack.c.b16 %v2441, %v2433
    %v4362 = vpack.c.b16 %v2442, %v2434
    %v4363 = vpack.c.b16 %v2443, %v2435
    %v4364 = vpack.c.b16 %v2444, %v2436
    %v4365 = vpack.c.b16 %v2453, %v2445
    %v4366 = vpack.c.b16 %v2454, %v2446
    %v4367 = vpack.c.b16 %v2455, %v2447
    %v4368 = vpack.c.b16 %v2456, %v2448
    %v4369 = vpack.c.b16 %v2457, %v2449
    %v4370 = vpack.c.b16 %v2458, %v2450
    %v4371 = vpack.c.b16 %v2459, %v2451
    %v4372 = vpack.c.b16 %v2460, %v2452
    %v4373 = vpack.c.b16 %v2469, %v2461
    %v4374 = vpack.c.b16 %v2470, %v2462
    %v4375 = vpack.c.b16 %v2471, %v2463
    %v4376 = vpack.c.b16 %v2472, %v2464
    %v4377 = vpack.c.b16 %v2473, %v2465
    %v4378 = vpack.c.b16 %v2474, %v2466
    %v4379 = vpack.c.b16 %v2475, %v2467
    %v4380 = vpack.c.b16 %v2476, %v2468
    %v4381 = vpack.c.b16 %v2485, %v2477
    %v4382 = vpack.c.b16 %v2486, %v2478
    %v4383 = vpack.c.b16 %v2487, %v2479
    %v4384 = vpack.c.b16 %v2488, %v2480
    %v4385 = vpack.c.b16 %v2489, %v2481
    %v4386 = vpack.c.b16 %v2490, %v2482
    %v4387 = vpack.c.b16 %v2491, %v2483
    %v4388 = vpack.c.b16 %v2492, %v2484
    %v4389 = vpack.c.b16 %v2501, %v2493
    %v4390 = vpack.c.b16 %v2502, %v2494
    %v4391 = vpack.c.b16 %v2503, %v2495
    %v4392 = vpack.c.b16 %v2504, %v2496
    %v4393 = vpack.c.b16 %v2505, %v2497
    %v4394 = vpack.c.b16 %v2506, %v2498
    %v4395 = vpack.c.b16 %v2507, %v2499
    %v4396 = vpack.c.b16 %v2508, %v2500
    %v4397 = vpack.c.b16 %v2517, %v2509
    %v4398 = vpack.c.b16 %v2518, %v2510
    %v4399 = vpack.c.b16 %v2519, %v2511
    %v4400 = vpack.c.b16 %v2520, %v2512
    %v4401 = vpack.c.b16 %v2521, %v2513
    %v4402 = vpack.c.b16 %v2522, %v2514
    %v4403 = vpack.c.b16 %v2523, %v2515
    %v4404 = vpack.c.b16 %v2524, %v2516
    %v4405 = vpack.c.b16 %v2533, %v2525
    %v4406 = vpack.c.b16 %v2534, %v2526
    %v4407 = vpack.c.b16 %v2535, %v2527
    %v4408 = vpack.c.b16 %v2536, %v2528
    %v4409 = vpack.c.b16 %v2537, %v2529
    %v4410 = vpack.c.b16 %v2538, %v2530
    %v4411 = vpack.c.b16 %v2539, %v2531
    %v4412 = vpack.c.b16 %v2540, %v2532
    %v4413 = vpack.c.b16 %v2549, %v2541
    %v4414 = vpack.c.b16 %v2550, %v2542
    %v4415 = vpack.c.b16 %v2551, %v2543
    %v4416 = vpack.c.b16 %v2552, %v2544
    %v4417 = vpack.c.b16 %v2553, %v2545
    %v4418 = vpack.c.b16 %v2554, %v2546
    %v4419 = vpack.c.b16 %v2555, %v2547
    %v4420 = vpack.c.b16 %v2556, %v2548
    %v4421 = vpack.c.b16 %v2565, %v2557
    %v4422 = vpack.c.b16 %v2566, %v2558
    %v4423 = vpack.c.b16 %v2567, %v2559
    %v4424 = vpack.c.b16 %v2568, %v2560
    %v4425 = vpack.c.b16 %v2569, %v2561
    %v4426 = vpack.c.b16 %v2570, %v2562
    %v4427 = vpack.c.b16 %v2571, %v2563
    %v4428 = vpack.c.b16 %v2572, %v2564
    %v4429 = vpack.c.b16 %v2581, %v2573
    %v4430 = vpack.c.b16 %v2582, %v2574
    %v4431 = vpack.c.b16 %v2583, %v2575
    %v4432 = vpack.c.b16 %v2584, %v2576
    %v4433 = vpack.c.b16 %v2585, %v2577
    %v4434 = vpack.c.b16 %v2586, %v2578
    %v4435 = vpack.c.b16 %v2587, %v2579
    %v4436 = vpack.c.b16 %v2588, %v2580
    %v4437 = vpack.c.b16 %v2597, %v2589
    %v4438 = vpack.c.b16 %v2598, %v2590
    %v4439 = vpack.c.b16 %v2599, %v2591
    %v4440 = vpack.c.b16 %v2600, %v2592
    %v4441 = vpack.c.b16 %v2601, %v2593
    %v4442 = vpack.c.b16 %v2602, %v2594
    %v4443 = vpack.c.b16 %v2603, %v2595
    %v4444 = vpack.c.b16 %v2604, %v2596
    %v4445 = vpack.c.b16 %v2613, %v2605
    %v4446 = vpack.c.b16 %v2614, %v2606
    %v4447 = vpack.c.b16 %v2615, %v2607
    %v4448 = vpack.c.b16 %v2616, %v2608
    %v4449 = vpack.c.b16 %v2617, %v2609
    %v4450 = vpack.c.b16 %v2618, %v2610
    %v4451 = vpack.c.b16 %v2619, %v2611
    %v4452 = vpack.c.b16 %v2620, %v2612
    %v4453 = vpack.c.b16 %v2629, %v2621
    %v4454 = vpack.c.b16 %v2630, %v2622
    %v4455 = vpack.c.b16 %v2631, %v2623
    %v4456 = vpack.c.b16 %v2632, %v2624
    %v4457 = vpack.c.b16 %v2633, %v2625
    %v4458 = vpack.c.b16 %v2634, %v2626
    %v4459 = vpack.c.b16 %v2635, %v2627
    %v4460 = vpack.c.b16 %v2636, %v2628
    %v4461 = vpack.c.b16 %v2645, %v2637
    %v4462 = vpack.c.b16 %v2646, %v2638
    %v4463 = vpack.c.b16 %v2647, %v2639
    %v4464 = vpack.c.b16 %v2648, %v2640
    %v4465 = vpack.c.b16 %v2649, %v2641
    %v4466 = vpack.c.b16 %v2650, %v2642
    %v4467 = vpack.c.b16 %v2651, %v2643
    %v4468 = vpack.c.b16 %v2652, %v2644
    %v4469 = vpack.c.b16 %v2661, %v2653
    %v4470 = vpack.c.b16 %v2662, %v2654
    %v4471 = vpack.c.b16 %v2663, %v2655
    %v4472 = vpack.c.b16 %v2664, %v2656
    %v4473 = vpack.c.b16 %v2665, %v2657
    %v4474 = vpack.c.b16 %v2666, %v2658
    %v4475 = vpack.c.b16 %v2667, %v2659
    %v4476 = vpack.c.b16 %v2668, %v2660
    %v4477 = vpack.c.b16 %v2677, %v2669
    %v4478 = vpack.c.b16 %v2678, %v2670
    %v4479 = vpack.c.b16 %v2679, %v2671
    %v4480 = vpack.c.b16 %v2680, %v2672
    %v4481 = vpack.c.b16 %v2681, %v2673
    %v4482 = vpack.c.b16 %v2682, %v2674
    %v4483 = vpack.c.b16 %v2683, %v2675
    %v4484 = vpack.c.b16 %v2684, %v2676
    %v4485 = vpack.c.b16 %v2693, %v2685
    %v4486 = vpack.c.b16 %v2694, %v2686
    %v4487 = vpack.c.b16 %v2695, %v2687
    %v4488 = vpack.c.b16 %v2696, %v2688
    %v4489 = vpack.c.b16 %v2697, %v2689
    %v4490 = vpack.c.b16 %v2698, %v2690
    %v4491 = vpack.c.b16 %v2699, %v2691
    %v4492 = vpack.c.b16 %v2700, %v2692
    %v4493 = vpack.c.b16 %v2709, %v2701
    %v4494 = vpack.c.b16 %v2710, %v2702
    %v4495 = vpack.c.b16 %v2711, %v2703
    %v4496 = vpack.c.b16 %v2712, %v2704
    %v4497 = vpack.c.b16 %v2713, %v2705
    %v4498 = vpack.c.b16 %v2714, %v2706
    %v4499 = vpack.c.b16 %v2715, %v2707
    %v4500 = vpack.c.b16 %v2716, %v2708
    %v4501 = vpack.c.b16 %v2725, %v2717
    %v4502 = vpack.c.b16 %v2726, %v2718
    %v4503 = vpack.c.b16 %v2727, %v2719
    %v4504 = vpack.c.b16 %v2728, %v2720
    %v4505 = vpack.c.b16 %v2729, %v2721
    %v4506 = vpack.c.b16 %v2730, %v2722
    %v4507 = vpack.c.b16 %v2731, %v2723
    %v4508 = vpack.c.b16 %v2732, %v2724
    %v4509 = vpack.c.b16 %v2741, %v2733
    %v4510 = vpack.c.b16 %v2742, %v2734
    %v4511 = vpack.c.b16 %v2743, %v2735
    %v4512 = vpack.c.b16 %v2744, %v2736
    %v4513 = vpack.c.b16 %v2745, %v2737
    %v4514 = vpack.c.b16 %v2746, %v2738
    %v4515 = vpack.c.b16 %v2747, %v2739
    %v4516 = vpack.c.b16 %v2748, %v2740
    %v4517 = vpack.c.b16 %v2757, %v2749
    %v4518 = vpack.c.b16 %v2758, %v2750
    %v4519 = vpack.c.b16 %v2759, %v2751
    %v4520 = vpack.c.b16 %v2760, %v2752
    %v4521 = vpack.c.b16 %v2761, %v2753
    %v4522 = vpack.c.b16 %v2762, %v2754
    %v4523 = vpack.c.b16 %v2763, %v2755
    %v4524 = vpack.c.b16 %v2764, %v2756
    %v4525 = vpack.c.b16 %v2773, %v2765
    %v4526 = vpack.c.b16 %v2774, %v2766
    %v4527 = vpack.c.b16 %v2775, %v2767
    %v4528 = vpack.c.b16 %v2776, %v2768
    %v4529 = vpack.c.b16 %v2777, %v2769
    %v4530 = vpack.c.b16 %v2778, %v2770
    %v4531 = vpack.c.b16 %v2779, %v2771
    %v4532 = vpack.c.b16 %v2780, %v2772
    %v4533 = vpack.c.b16 %v2789, %v2781
    %v4534 = vpack.c.b16 %v2790, %v2782
    %v4535 = vpack.c.b16 %v2791, %v2783
    %v4536 = vpack.c.b16 %v2792, %v2784
    %v4537 = vpack.c.b16 %v2793, %v2785
    %v4538 = vpack.c.b16 %v2794, %v2786
    %v4539 = vpack.c.b16 %v2795, %v2787
    %v4540 = vpack.c.b16 %v2796, %v2788
    %v4541 = vpack.c.b16 %v2805, %v2797
    %v4542 = vpack.c.b16 %v2806, %v2798
    %v4543 = vpack.c.b16 %v2807, %v2799
    %v4544 = vpack.c.b16 %v2808, %v2800
    %v4545 = vpack.c.b16 %v2809, %v2801
    %v4546 = vpack.c.b16 %v2810, %v2802
    %v4547 = vpack.c.b16 %v2811, %v2803
    %v4548 = vpack.c.b16 %v2812, %v2804
    %v4549 = vpack.c.b16 %v2821, %v2813
    %v4550 = vpack.c.b16 %v2822, %v2814
    %v4551 = vpack.c.b16 %v2823, %v2815
    %v4552 = vpack.c.b16 %v2824, %v2816
    %v4553 = vpack.c.b16 %v2825, %v2817
    %v4554 = vpack.c.b16 %v2826, %v2818
    %v4555 = vpack.c.b16 %v2827, %v2819
    %v4556 = vpack.c.b16 %v2828, %v2820
    %v4557 = vpack.c.b16 %v2837, %v2829
    %v4558 = vpack.c.b16 %v2838, %v2830
    %v4559 = vpack.c.b16 %v2839, %v2831
    %v4560 = vpack.c.b16 %v2840, %v2832
    %v4561 = vpack.c.b16 %v2841, %v2833
    %v4562 = vpack.c.b16 %v2842, %v2834
    %v4563 = vpack.c.b16 %v2843, %v2835
    %v4564 = vpack.c.b16 %v2844, %v2836
    %v4565 = vpack.c.b16 %v2853, %v2845
    %v4566 = vpack.c.b16 %v2854, %v2846
    %v4567 = vpack.c.b16 %v2855, %v2847
    %v4568 = vpack.c.b16 %v2856, %v2848
    %v4569 = vpack.c.b16 %v2857, %v2849
    %v4570 = vpack.c.b16 %v2858, %v2850
    %v4571 = vpack.c.b16 %v2859, %v2851
    %v4572 = vpack.c.b16 %v2860, %v2852
    %v4573 = vpack.c.b16 %v2869, %v2861
    %v4574 = vpack.c.b16 %v2870, %v2862
    %v4575 = vpack.c.b16 %v2871, %v2863
    %v4576 = vpack.c.b16 %v2872, %v2864
    %v4577 = vpack.c.b16 %v2873, %v2865
    %v4578 = vpack.c.b16 %v2874, %v2866
    %v4579 = vpack.c.b16 %v2875, %v2867
    %v4580 = vpack.c.b16 %v2876, %v2868
    %v4581 = vpack.c.b16 %v2885, %v2877
    %v4582 = vpack.c.b16 %v2886, %v2878
    %v4583 = vpack.c.b16 %v2887, %v2879
    %v4584 = vpack.c.b16 %v2888, %v2880
    %v4585 = vpack.c.b16 %v2889, %v2881
    %v4586 = vpack.c.b16 %v2890, %v2882
    %v4587 = vpack.c.b16 %v2891, %v2883
    %v4588 = vpack.c.b16 %v2892, %v2884
    %v4589 = vpack.c.b16 %v2901, %v2893
    %v4590 = vpack.c.b16 %v2902, %v2894
    %v4591 = vpack.c.b16 %v2903, %v2895
    %v4592 = vpack.c.b16 %v2904, %v2896
    %v4593 = vpack.c.b16 %v2905, %v2897
    %v4594 = vpack.c.b16 %v2906, %v2898
    %v4595 = vpack.c.b16 %v2907, %v2899
    %v4596 = vpack.c.b16 %v2908, %v2900
    %v4597 = vpack.c.b16 %v2917, %v2909
    %v4598 = vpack.c.b16 %v2918, %v2910
    %v4599 = vpack.c.b16 %v2919, %v2911
    %v4600 = vpack.c.b16 %v2920, %v2912
    %v4601 = vpack.c.b16 %v2921, %v2913
    %v4602 = vpack.c.b16 %v2922, %v2914
    %v4603 = vpack.c.b16 %v2923, %v2915
    %v4604 = vpack.c.b16 %v2924, %v2916
    %v4605 = vpack.c.b16 %v2933, %v2925
    %v4606 = vpack.c.b16 %v2934, %v2926
    %v4607 = vpack.c.b16 %v2935, %v2927
    %v4608 = vpack.c.b16 %v2936, %v2928
    %v4609 = vpack.c.b16 %v2937, %v2929
    %v4610 = vpack.c.b16 %v2938, %v2930
    %v4611 = vpack.c.b16 %v2939, %v2931
    %v4612 = vpack.c.b16 %v2940, %v2932
    %v4613 = vpack.c.b16 %v2949, %v2941
    %v4614 = vpack.c.b16 %v2950, %v2942
    %v4615 = vpack.c.b16 %v2951, %v2943
    %v4616 = vpack.c.b16 %v2952, %v2944
    %v4617 = vpack.c.b16 %v2953, %v2945
    %v4618 = vpack.c.b16 %v2954, %v2946
    %v4619 = vpack.c.b16 %v2955, %v2947
    %v4620 = vpack.c.b16 %v2956, %v2948
    %v4621 = vpack.c.b16 %v2965, %v2957
    %v4622 = vpack.c.b16 %v2966, %v2958
    %v4623 = vpack.c.b16 %v2967, %v2959
    %v4624 = vpack.c.b16 %v2968, %v2960
    %v4625 = vpack.c.b16 %v2969, %v2961
    %v4626 = vpack.c.b16 %v2970, %v2962
    %v4627 = vpack.c.b16 %v2971, %v2963
    %v4628 = vpack.c.b16 %v2972, %v2964
    %v4629 = vpack.c.b16 %v2981, %v2973
    %v4630 = vpack.c.b16 %v2982, %v2974
    %v4631 = vpack.c.b16 %v2983, %v2975
    %v4632 = vpack.c.b16 %v2984, %v2976
    %v4633 = vpack.c.b16 %v2985, %v2977
    %v4634 = vpack.c.b16 %v2986, %v2978
    %v4635 = vpack.c.b16 %v2987, %v2979
    %v4636 = vpack.c.b16 %v2988, %v2980
    %v4637 = vpack.c.b16 %v2997, %v2989
    %v4638 = vpack.c.b16 %v2998, %v2990
    %v4639 = vpack.c.b16 %v2999, %v2991
    %v4640 = vpack.c.b16 %v3000, %v2992
    %v4641 = vpack.c.b16 %v3001, %v2993
    %v4642 = vpack.c.b16 %v3002, %v2994
    %v4643 = vpack.c.b16 %v3003, %v2995
    %v4644 = vpack.c.b16 %v3004, %v2996
    %v4645 = vpack.c.b16 %v3013, %v3005
    %v4646 = vpack.c.b16 %v3014, %v3006
    %v4647 = vpack.c.b16 %v3015, %v3007
    %v4648 = vpack.c.b16 %v3016, %v3008
    %v4649 = vpack.c.b16 %v3017, %v3009
    %v4650 = vpack.c.b16 %v3018, %v3010
    %v4651 = vpack.c.b16 %v3019, %v3011
    %v4652 = vpack.c.b16 %v3020, %v3012
    %v4653 = vpack.c.b16 %v3029, %v3021
    %v4654 = vpack.c.b16 %v3030, %v3022
    %v4655 = vpack.c.b16 %v3031, %v3023
    %v4656 = vpack.c.b16 %v3032, %v3024
    %v4657 = vpack.c.b16 %v3033, %v3025
    %v4658 = vpack.c.b16 %v3034, %v3026
    %v4659 = vpack.c.b16 %v3035, %v3027
    %v4660 = vpack.c.b16 %v3036, %v3028
    %v4661 = vpack.c.b16 %v3045, %v3037
    %v4662 = vpack.c.b16 %v3046, %v3038
    %v4663 = vpack.c.b16 %v3047, %v3039
    %v4664 = vpack.c.b16 %v3048, %v3040
    %v4665 = vpack.c.b16 %v3049, %v3041
    %v4666 = vpack.c.b16 %v3050, %v3042
    %v4667 = vpack.c.b16 %v3051, %v3043
    %v4668 = vpack.c.b16 %v3052, %v3044
    %v4669 = vpack.c.b16 %v3061, %v3053
    %v4670 = vpack.c.b16 %v3062, %v3054
    %v4671 = vpack.c.b16 %v3063, %v3055
    %v4672 = vpack.c.b16 %v3064, %v3056
    %v4673 = vpack.c.b16 %v3065, %v3057
    %v4674 = vpack.c.b16 %v3066, %v3058
    %v4675 = vpack.c.b16 %v3067, %v3059
    %v4676 = vpack.c.b16 %v3068, %v3060
    %v4677 = vpack.c.b16 %v3077, %v3069
    %v4678 = vpack.c.b16 %v3078, %v3070
    %v4679 = vpack.c.b16 %v3079, %v3071
    %v4680 = vpack.c.b16 %v3080, %v3072
    %v4681 = vpack.c.b16 %v3081, %v3073
    %v4682 = vpack.c.b16 %v3082, %v3074
    %v4683 = vpack.c.b16 %v3083, %v3075
    %v4684 = vpack.c.b16 %v3084, %v3076
    %v4685 = vpack.c.b16 %v3093, %v3085
    %v4686 = vpack.c.b16 %v3094, %v3086
    %v4687 = vpack.c.b16 %v3095, %v3087
    %v4688 = vpack.c.b16 %v3096, %v3088
    %v4689 = vpack.c.b16 %v3097, %v3089
    %v4690 = vpack.c.b16 %v3098, %v3090
    %v4691 = vpack.c.b16 %v3099, %v3091
    %v4692 = vpack.c.b16 %v3100, %v3092
    %v4693 = vpack.c.b16 %v3109, %v3101
    %v4694 = vpack.c.b16 %v3110, %v3102
    %v4695 = vpack.c.b16 %v3111, %v3103
    %v4696 = vpack.c.b16 %v3112, %v3104
    %v4697 = vpack.c.b16 %v3113, %v3105
    %v4698 = vpack.c.b16 %v3114, %v3106
    %v4699 = vpack.c.b16 %v3115, %v3107
    %v4700 = vpack.c.b16 %v3116, %v3108
    %v4701 = vpack.c.b16 %v3125, %v3117
    %v4702 = vpack.c.b16 %v3126, %v3118
    %v4703 = vpack.c.b16 %v3127, %v3119
    %v4704 = vpack.c.b16 %v3128, %v3120
    %v4705 = vpack.c.b16 %v3129, %v3121
    %v4706 = vpack.c.b16 %v3130, %v3122
    %v4707 = vpack.c.b16 %v3131, %v3123
    %v4708 = vpack.c.b16 %v3132, %v3124
    %v4709 = vpack.c.b16 %v3141, %v3133
    %v4710 = vpack.c.b16 %v3142, %v3134
    %v4711 = vpack.c.b16 %v3143, %v3135
    %v4712 = vpack.c.b16 %v3144, %v3136
    %v4713 = vpack.c.b16 %v3145, %v3137
    %v4714 = vpack.c.b16 %v3146, %v3138
    %v4715 = vpack.c.b16 %v3147, %v3139
    %v4716 = vpack.c.b16 %v3148, %v3140
    %v4717 = vpack.c.b16 %v3157, %v3149
    %v4718 = vpack.c.b16 %v3158, %v3150
    %v4719 = vpack.c.b16 %v3159, %v3151
    %v4720 = vpack.c.b16 %v3160, %v3152
    %v4721 = vpack.c.b16 %v3161, %v3153
    %v4722 = vpack.c.b16 %v3162, %v3154
    %v4723 = vpack.c.b16 %v3163, %v3155
    %v4724 = vpack.c.b16 %v3164, %v3156
    %v4725 = vpack.c.b16 %v3173, %v3165
    %v4726 = vpack.c.b16 %v3174, %v3166
    %v4727 = vpack.c.b16 %v3175, %v3167
    %v4728 = vpack.c.b16 %v3176, %v3168
    %v4729 = vpack.c.b16 %v3177, %v3169
    %v4730 = vpack.c.b16 %v3178, %v3170
    %v4731 = vpack.c.b16 %v3179, %v3171
    %v4732 = vpack.c.b16 %v3180, %v3172
    %v4733 = vpack.c.b16 %v3189, %v3181
    %v4734 = vpack.c.b16 %v3190, %v3182
    %v4735 = vpack.c.b16 %v3191, %v3183
    %v4736 = vpack.c.b16 %v3192, %v3184
    %v4737 = vpack.c.b16 %v3193, %v3185
    %v4738 = vpack.c.b16 %v3194, %v3186
    %v4739 = vpack.c.b16 %v3195, %v3187
    %v4740 = vpack.c.b16 %v3196, %v3188
    %v4741 = vpack.c.b16 %v3205, %v3197
    %v4742 = vpack.c.b16 %v3206, %v3198
    %v4743 = vpack.c.b16 %v3207, %v3199
    %v4744 = vpack.c.b16 %v3208, %v3200
    %v4745 = vpack.c.b16 %v3209, %v3201
    %v4746 = vpack.c.b16 %v3210, %v3202
    %v4747 = vpack.c.b16 %v3211, %v3203
    %v4748 = vpack.c.b16 %v3212, %v3204
    %v4749 = vpack.c.b16 %v3221, %v3213
    %v4750 = vpack.c.b16 %v3222, %v3214
    %v4751 = vpack.c.b16 %v3223, %v3215
    %v4752 = vpack.c.b16 %v3224, %v3216
    %v4753 = vpack.c.b16 %v3225, %v3217
    %v4754 = vpack.c.b16 %v3226, %v3218
    %v4755 = vpack.c.b16 %v3227, %v3219
    %v4756 = vpack.c.b16 %v3228, %v3220
    %v4757 = vpack.c.b16 %v3237, %v3229
    %v4758 = vpack.c.b16 %v3238, %v3230
    %v4759 = vpack.c.b16 %v3239, %v3231
    %v4760 = vpack.c.b16 %v3240, %v3232
    %v4761 = vpack.c.b16 %v3241, %v3233
    %v4762 = vpack.c.b16 %v3242, %v3234
    %v4763 = vpack.c.b16 %v3243, %v3235
    %v4764 = vpack.c.b16 %v3244, %v3236
    %v4765 = vpack.c.b16 %v3253, %v3245
    %v4766 = vpack.c.b16 %v3254, %v3246
    %v4767 = vpack.c.b16 %v3255, %v3247
    %v4768 = vpack.c.b16 %v3256, %v3248
    %v4769 = vpack.c.b16 %v3257, %v3249
    %v4770 = vpack.c.b16 %v3258, %v3250
    %v4771 = vpack.c.b16 %v3259, %v3251
    %v4772 = vpack.c.b16 %v3260, %v3252
    %v4773 = vpack.c.b16 %v3269, %v3261
    %v4774 = vpack.c.b16 %v3270, %v3262
    %v4775 = vpack.c.b16 %v3271, %v3263
    %v4776 = vpack.c.b16 %v3272, %v3264
    %v4777 = vpack.c.b16 %v3273, %v3265
    %v4778 = vpack.c.b16 %v3274, %v3266
    %v4779 = vpack.c.b16 %v3275, %v3267
    %v4780 = vpack.c.b16 %v3276, %v3268
    %v4781 = vpack.c.b16 %v3285, %v3277
    %v4782 = vpack.c.b16 %v3286, %v3278
    %v4783 = vpack.c.b16 %v3287, %v3279
    %v4784 = vpack.c.b16 %v3288, %v3280
    %v4785 = vpack.c.b16 %v3289, %v3281
    %v4786 = vpack.c.b16 %v3290, %v3282
    %v4787 = vpack.c.b16 %v3291, %v3283
    %v4788 = vpack.c.b16 %v3292, %v3284
    %v4789 = vpack.c.b16 %v3301, %v3293
    %v4790 = vpack.c.b16 %v3302, %v3294
    %v4791 = vpack.c.b16 %v3303, %v3295
    %v4792 = vpack.c.b16 %v3304, %v3296
    %v4793 = vpack.c.b16 %v3305, %v3297
    %v4794 = vpack.c.b16 %v3306, %v3298
    %v4795 = vpack.c.b16 %v3307, %v3299
    %v4796 = vpack.c.b16 %v3308, %v3300
    %v4797 = vpack.c.b16 %v3317, %v3309
    %v4798 = vpack.c.b16 %v3318, %v3310
    %v4799 = vpack.c.b16 %v3319, %v3311
    %v4800 = vpack.c.b16 %v3320, %v3312
    %v4801 = vpack.c.b16 %v3321, %v3313
    %v4802 = vpack.c.b16 %v3322, %v3314
    %v4803 = vpack.c.b16 %v3323, %v3315
    %v4804 = vpack.c.b16 %v3324, %v3316
    %v4805 = vpack.c.b16 %v3333, %v3325
    %v4806 = vpack.c.b16 %v3334, %v3326
    %v4807 = vpack.c.b16 %v3335, %v3327
    %v4808 = vpack.c.b16 %v3336, %v3328
    %v4809 = vpack.c.b16 %v3337, %v3329
    %v4810 = vpack.c.b16 %v3338, %v3330
    %v4811 = vpack.c.b16 %v3339, %v3331
    %v4812 = vpack.c.b16 %v3340, %v3332
    %v4813 = vpack.c.b16 %v3349, %v3341
    %v4814 = vpack.c.b16 %v3350, %v3342
    %v4815 = vpack.c.b16 %v3351, %v3343
    %v4816 = vpack.c.b16 %v3352, %v3344
    %v4817 = vpack.c.b16 %v3353, %v3345
    %v4818 = vpack.c.b16 %v3354, %v3346
    %v4819 = vpack.c.b16 %v3355, %v3347
    %v4820 = vpack.c.b16 %v3356, %v3348
    %v4821 = vpack.c.b16 %v3365, %v3357
    %v4822 = vpack.c.b16 %v3366, %v3358
    %v4823 = vpack.c.b16 %v3367, %v3359
    %v4824 = vpack.c.b16 %v3368, %v3360
    %v4825 = vpack.c.b16 %v3369, %v3361
    %v4826 = vpack.c.b16 %v3370, %v3362
    %v4827 = vpack.c.b16 %v3371, %v3363
    %v4828 = vpack.c.b16 %v3372, %v3364
    %v4829 = vpack.c.b16 %v3381, %v3373
    %v4830 = vpack.c.b16 %v3382, %v3374
    %v4831 = vpack.c.b16 %v3383, %v3375
    %v4832 = vpack.c.b16 %v3384, %v3376
    %v4833 = vpack.c.b16 %v3385, %v3377
    %v4834 = vpack.c.b16 %v3386, %v3378
    %v4835 = vpack.c.b16 %v3387, %v3379
    %v4836 = vpack.c.b16 %v3388, %v3380
    %v4837 = vpack.c.b16 %v3397, %v3389
    %v4838 = vpack.c.b16 %v3398, %v3390
    %v4839 = vpack.c.b16 %v3399, %v3391
    %v4840 = vpack.c.b16 %v3400, %v3392
    %v4841 = vpack.c.b16 %v3401, %v3393
    %v4842 = vpack.c.b16 %v3402, %v3394
    %v4843 = vpack.c.b16 %v3403, %v3395
    %v4844 = vpack.c.b16 %v3404, %v3396
    %v4845 = vpack.c.b16 %v3413, %v3405
    %v4846 = vpack.c.b16 %v3414, %v3406
    %v4847 = vpack.c.b16 %v3415, %v3407
    %v4848 = vpack.c.b16 %v3416, %v3408
    %v4849 = vpack.c.b16 %v3417, %v3409
    %v4850 = vpack.c.b16 %v3418, %v3410
    %v4851 = vpack.c.b16 %v3419, %v3411
    %v4852 = vpack.c.b16 %v3420, %v3412
    %v4853 = vpack.c.b16 %v3429, %v3421
    %v4854 = vpack.c.b16 %v3430, %v3422
    %v4855 = vpack.c.b16 %v3431, %v3423
    %v4856 = vpack.c.b16 %v3432, %v3424
    %v4857 = vpack.c.b16 %v3433, %v3425
    %v4858 = vpack.c.b16 %v3434, %v3426
    %v4859 = vpack.c.b16 %v3435, %v3427
    %v4860 = vpack.c.b16 %v3436, %v3428
    %v4861 = vpack.c.b16 %v3445, %v3437
    %v4862 = vpack.c.b16 %v3446, %v3438
    %v4863 = vpack.c.b16 %v3447, %v3439
    %v4864 = vpack.c.b16 %v3448, %v3440
    %v4865 = vpack.c.b16 %v3449, %v3441
    %v4866 = vpack.c.b16 %v3450, %v3442
    %v4867 = vpack.c.b16 %v3451, %v3443
    %v4868 = vpack.c.b16 %v3452, %v3444
    %v4869 = vpack.c.b16 %v3461, %v3453
    %v4870 = vpack.c.b16 %v3462, %v3454
    %v4871 = vpack.c.b16 %v3463, %v3455
    %v4872 = vpack.c.b16 %v3464, %v3456
    %v4873 = vpack.c.b16 %v3465, %v3457
    %v4874 = vpack.c.b16 %v3466, %v3458
    %v4875 = vpack.c.b16 %v3467, %v3459
    %v4876 = vpack.c.b16 %v3468, %v3460
    %v4877 = vpack.c.b16 %v3477, %v3469
    %v4878 = vpack.c.b16 %v3478, %v3470
    %v4879 = vpack.c.b16 %v3479, %v3471
    %v4880 = vpack.c.b16 %v3480, %v3472
    %v4881 = vpack.c.b16 %v3481, %v3473
    %v4882 = vpack.c.b16 %v3482, %v3474
    %v4883 = vpack.c.b16 %v3483, %v3475
    %v4884 = vpack.c.b16 %v3484, %v3476
    %v4885 = vpack.c.b16 %v3493, %v3485
    %v4886 = vpack.c.b16 %v3494, %v3486
    %v4887 = vpack.c.b16 %v3495, %v3487
    %v4888 = vpack.c.b16 %v3496, %v3488
    %v4889 = vpack.c.b16 %v3497, %v3489
    %v4890 = vpack.c.b16 %v3498, %v3490
    %v4891 = vpack.c.b16 %v3499, %v3491
    %v4892 = vpack.c.b16 %v3500, %v3492
    %v4893 = vpack.c.b16 %v3509, %v3501
    %v4894 = vpack.c.b16 %v3510, %v3502
    %v4895 = vpack.c.b16 %v3511, %v3503
    %v4896 = vpack.c.b16 %v3512, %v3504
    %v4897 = vpack.c.b16 %v3513, %v3505
    %v4898 = vpack.c.b16 %v3514, %v3506
    %v4899 = vpack.c.b16 %v3515, %v3507
    %v4900 = vpack.c.b16 %v3516, %v3508
    %v4901 = vpack.c.b16 %v3525, %v3517
    %v4902 = vpack.c.b16 %v3526, %v3518
    %v4903 = vpack.c.b16 %v3527, %v3519
    %v4904 = vpack.c.b16 %v3528, %v3520
    %v4905 = vpack.c.b16 %v3529, %v3521
    %v4906 = vpack.c.b16 %v3530, %v3522
    %v4907 = vpack.c.b16 %v3531, %v3523
    %v4908 = vpack.c.b16 %v3532, %v3524
    %v4909 = vpack.c.b16 %v3541, %v3533
    %v4910 = vpack.c.b16 %v3542, %v3534
    %v4911 = vpack.c.b16 %v3543, %v3535
    %v4912 = vpack.c.b16 %v3544, %v3536
    %v4913 = vpack.c.b16 %v3545, %v3537
    %v4914 = vpack.c.b16 %v3546, %v3538
    %v4915 = vpack.c.b16 %v3547, %v3539
    %v4916 = vpack.c.b16 %v3548, %v3540
    %v4917 = vpack.c.b16 %v3557, %v3549
    %v4918 = vpack.c.b16 %v3558, %v3550
    %v4919 = vpack.c.b16 %v3559, %v3551
    %v4920 = vpack.c.b16 %v3560, %v3552
    %v4921 = vpack.c.b16 %v3561, %v3553
    %v4922 = vpack.c.b16 %v3562, %v3554
    %v4923 = vpack.c.b16 %v3563, %v3555
    %v4924 = vpack.c.b16 %v3564, %v3556
    %v4925 = vpack.c.b16 %v3573, %v3565
    %v4926 = vpack.c.b16 %v3574, %v3566
    %v4927 = vpack.c.b16 %v3575, %v3567
    %v4928 = vpack.c.b16 %v3576, %v3568
    %v4929 = vpack.c.b16 %v3577, %v3569
    %v4930 = vpack.c.b16 %v3578, %v3570
    %v4931 = vpack.c.b16 %v3579, %v3571
    %v4932 = vpack.c.b16 %v3580, %v3572
    %v4933 = vpack.c.b16 %v3589, %v3581
    %v4934 = vpack.c.b16 %v3590, %v3582
    %v4935 = vpack.c.b16 %v3591, %v3583
    %v4936 = vpack.c.b16 %v3592, %v3584
    %v4937 = vpack.c.b16 %v3593, %v3585
    %v4938 = vpack.c.b16 %v3594, %v3586
    %v4939 = vpack.c.b16 %v3595, %v3587
    %v4940 = vpack.c.b16 %v3596, %v3588
    %v4941 = vpack.c.b16 %v3605, %v3597
    %v4942 = vpack.c.b16 %v3606, %v3598
    %v4943 = vpack.c.b16 %v3607, %v3599
    %v4944 = vpack.c.b16 %v3608, %v3600
    %v4945 = vpack.c.b16 %v3609, %v3601
    %v4946 = vpack.c.b16 %v3610, %v3602
    %v4947 = vpack.c.b16 %v3611, %v3603
    %v4948 = vpack.c.b16 %v3612, %v3604
    %v4949 = vpack.c.b16 %v3621, %v3613
    %v4950 = vpack.c.b16 %v3622, %v3614
    %v4951 = vpack.c.b16 %v3623, %v3615
    %v4952 = vpack.c.b16 %v3624, %v3616
    %v4953 = vpack.c.b16 %v3625, %v3617
    %v4954 = vpack.c.b16 %v3626, %v3618
    %v4955 = vpack.c.b16 %v3627, %v3619
    %v4956 = vpack.c.b16 %v3628, %v3620
    %v4957 = vpack.c.b16 %v3637, %v3629
    %v4958 = vpack.c.b16 %v3638, %v3630
    %v4959 = vpack.c.b16 %v3639, %v3631
    %v4960 = vpack.c.b16 %v3640, %v3632
    %v4961 = vpack.c.b16 %v3641, %v3633
    %v4962 = vpack.c.b16 %v3642, %v3634
    %v4963 = vpack.c.b16 %v3643, %v3635
    %v4964 = vpack.c.b16 %v3644, %v3636
    %v4965 = vpack.c.b16 %v3653, %v3645
    %v4966 = vpack.c.b16 %v3654, %v3646
    %v4967 = vpack.c.b16 %v3655, %v3647
    %v4968 = vpack.c.b16 %v3656, %v3648
    %v4969 = vpack.c.b16 %v3657, %v3649
    %v4970 = vpack.c.b16 %v3658, %v3650
    %v4971 = vpack.c.b16 %v3659, %v3651
    %v4972 = vpack.c.b16 %v3660, %v3652
    %v4973 = vpack.c.b16 %v3669, %v3661
    %v4974 = vpack.c.b16 %v3670, %v3662
    %v4975 = vpack.c.b16 %v3671, %v3663
    %v4976 = vpack.c.b16 %v3672, %v3664
    %v4977 = vpack.c.b16 %v3673, %v3665
    %v4978 = vpack.c.b16 %v3674, %v3666
    %v4979 = vpack.c.b16 %v3675, %v3667
    %v4980 = vpack.c.b16 %v3676, %v3668
    %v4981 = vpack.c.b16 %v3685, %v3677
    %v4982 = vpack.c.b16 %v3686, %v3678
    %v4983 = vpack.c.b16 %v3687, %v3679
    %v4984 = vpack.c.b16 %v3688, %v3680
    %v4985 = vpack.c.b16 %v3689, %v3681
    %v4986 = vpack.c.b16 %v3690, %v3682
    %v4987 = vpack.c.b16 %v3691, %v3683
    %v4988 = vpack.c.b16 %v3692, %v3684
    %v4989 = vpack.c.b16 %v3701, %v3693
    %v4990 = vpack.c.b16 %v3702, %v3694
    %v4991 = vpack.c.b16 %v3703, %v3695
    %v4992 = vpack.c.b16 %v3704, %v3696
    %v4993 = vpack.c.b16 %v3705, %v3697
    %v4994 = vpack.c.b16 %v3706, %v3698
    %v4995 = vpack.c.b16 %v3707, %v3699
    %v4996 = vpack.c.b16 %v3708, %v3700
    %v4997 = vpack.c.b16 %v3717, %v3709
    %v4998 = vpack.c.b16 %v3718, %v3710
    %v4999 = vpack.c.b16 %v3719, %v3711
    %v5000 = vpack.c.b16 %v3720, %v3712
    %v5001 = vpack.c.b16 %v3721, %v3713
    %v5002 = vpack.c.b16 %v3722, %v3714
    %v5003 = vpack.c.b16 %v3723, %v3715
    %v5004 = vpack.c.b16 %v3724, %v3716
    %v5005 = vpack.c.b16 %v3733, %v3725
    %v5006 = vpack.c.b16 %v3734, %v3726
    %v5007 = vpack.c.b16 %v3735, %v3727
    %v5008 = vpack.c.b16 %v3736, %v3728
    %v5009 = vpack.c.b16 %v3737, %v3729
    %v5010 = vpack.c.b16 %v3738, %v3730
    %v5011 = vpack.c.b16 %v3739, %v3731
    %v5012 = vpack.c.b16 %v3740, %v3732
    %v5013 = vpack.c.b16 %v3749, %v3741
    %v5014 = vpack.c.b16 %v3750, %v3742
    %v5015 = vpack.c.b16 %v3751, %v3743
    %v5016 = vpack.c.b16 %v3752, %v3744
    %v5017 = vpack.c.b16 %v3753, %v3745
    %v5018 = vpack.c.b16 %v3754, %v3746
    %v5019 = vpack.c.b16 %v3755, %v3747
    %v5020 = vpack.c.b16 %v3756, %v3748
    %v5021 = vpack.c.b16 %v3765, %v3757
    %v5022 = vpack.c.b16 %v3766, %v3758
    %v5023 = vpack.c.b16 %v3767, %v3759
    %v5024 = vpack.c.b16 %v3768, %v3760
    %v5025 = vpack.c.b16 %v3769, %v3761
    %v5026 = vpack.c.b16 %v3770, %v3762
    %v5027 = vpack.c.b16 %v3771, %v3763
    %v5028 = vpack.c.b16 %v3772, %v3764
    %v5029 = vpack.c.b16 %v3781, %v3773
    %v5030 = vpack.c.b16 %v3782, %v3774
    %v5031 = vpack.c.b16 %v3783, %v3775
    %v5032 = vpack.c.b16 %v3784, %v3776
    %v5033 = vpack.c.b16 %v3785, %v3777
    %v5034 = vpack.c.b16 %v3786, %v3778
    %v5035 = vpack.c.b16 %v3787, %v3779
    %v5036 = vpack.c.b16 %v3788, %v3780
    %v5037 = vpack.c.b16 %v3797, %v3789
    %v5038 = vpack.c.b16 %v3798, %v3790
    %v5039 = vpack.c.b16 %v3799, %v3791
    %v5040 = vpack.c.b16 %v3800, %v3792
    %v5041 = vpack.c.b16 %v3801, %v3793
    %v5042 = vpack.c.b16 %v3802, %v3794
    %v5043 = vpack.c.b16 %v3803, %v3795
    %v5044 = vpack.c.b16 %v3804, %v3796
    %v5045 = vpack.c.b16 %v3813, %v3805
    %v5046 = vpack.c.b16 %v3814, %v3806
    %v5047 = vpack.c.b16 %v3815, %v3807
    %v5048 = vpack.c.b16 %v3816, %v3808
    %v5049 = vpack.c.b16 %v3817, %v3809
    %v5050 = vpack.c.b16 %v3818, %v3810
    %v5051 = vpack.c.b16 %v3819, %v3811
    %v5052 = vpack.c.b16 %v3820, %v3812
    %v5053 = vpack.c.b16 %v3829, %v3821
    %v5054 = vpack.c.b16 %v3830, %v3822
    %v5055 = vpack.c.b16 %v3831, %v3823
    %v5056 = vpack.c.b16 %v3832, %v3824
    %v5057 = vpack.c.b16 %v3833, %v3825
    %v5058 = vpack.c.b16 %v3834, %v3826
    %v5059 = vpack.c.b16 %v3835, %v3827
    %v5060 = vpack.c.b16 %v3836, %v3828
    %v5061 = vpack.c.b16 %v3845, %v3837
    %v5062 = vpack.c.b16 %v3846, %v3838
    %v5063 = vpack.c.b16 %v3847, %v3839
    %v5064 = vpack.c.b16 %v3848, %v3840
    %v5065 = vpack.c.b16 %v3849, %v3841
    %v5066 = vpack.c.b16 %v3850, %v3842
    %v5067 = vpack.c.b16 %v3851, %v3843
    %v5068 = vpack.c.b16 %v3852, %v3844
    %v5069 = vpack.c.b16 %v3861, %v3853
    %v5070 = vpack.c.b16 %v3862, %v3854
    %v5071 = vpack.c.b16 %v3863, %v3855
    %v5072 = vpack.c.b16 %v3864, %v3856
    %v5073 = vpack.c.b16 %v3865, %v3857
    %v5074 = vpack.c.b16 %v3866, %v3858
    %v5075 = vpack.c.b16 %v3867, %v3859
    %v5076 = vpack.c.b16 %v3868, %v3860
    %v5077 = vpack.c.b16 %v3877, %v3869
    %v5078 = vpack.c.b16 %v3878, %v3870
    %v5079 = vpack.c.b16 %v3879, %v3871
    %v5080 = vpack.c.b16 %v3880, %v3872
    %v5081 = vpack.c.b16 %v3881, %v3873
    %v5082 = vpack.c.b16 %v3882, %v3874
    %v5083 = vpack.c.b16 %v3883, %v3875
    %v5084 = vpack.c.b16 %v3884, %v3876
    %v5085 = vpack.c.b16 %v3893, %v3885
    %v5086 = vpack.c.b16 %v3894, %v3886
    %v5087 = vpack.c.b16 %v3895, %v3887
    %v5088 = vpack.c.b16 %v3896, %v3888
    %v5089 = vpack.c.b16 %v3897, %v3889
    %v5090 = vpack.c.b16 %v3898, %v3890
    %v5091 = vpack.c.b16 %v3899, %v3891
    %v5092 = vpack.c.b16 %v3900, %v3892
    %v5093 = vpack.c.b16 %v3909, %v3901
    %v5094 = vpack.c.b16 %v3910, %v3902
    %v5095 = vpack.c.b16 %v3911, %v3903
    %v5096 = vpack.c.b16 %v3912, %v3904
    %v5097 = vpack.c.b16 %v3913, %v3905
    %v5098 = vpack.c.b16 %v3914, %v3906
    %v5099 = vpack.c.b16 %v3915, %v3907
    %v5100 = vpack.c.b16 %v3916, %v3908
    %v5101 = vpack.c.b16 %v3925, %v3917
    %v5102 = vpack.c.b16 %v3926, %v3918
    %v5103 = vpack.c.b16 %v3927, %v3919
    %v5104 = vpack.c.b16 %v3928, %v3920
    %v5105 = vpack.c.b16 %v3929, %v3921
    %v5106 = vpack.c.b16 %v3930, %v3922
    %v5107 = vpack.c.b16 %v3931, %v3923
    %v5108 = vpack.c.b16 %v3932, %v3924
    %v5109 = vpack.c.b16 %v3941, %v3933
    %v5110 = vpack.c.b16 %v3942, %v3934
    %v5111 = vpack.c.b16 %v3943, %v3935
    %v5112 = vpack.c.b16 %v3944, %v3936
    %v5113 = vpack.c.b16 %v3945, %v3937
    %v5114 = vpack.c.b16 %v3946, %v3938
    %v5115 = vpack.c.b16 %v3947, %v3939
    %v5116 = vpack.c.b16 %v3948, %v3940
    %v5117 = vpack.c.b16 %v3957, %v3949
    %v5118 = vpack.c.b16 %v3958, %v3950
    %v5119 = vpack.c.b16 %v3959, %v3951
    %v5120 = vpack.c.b16 %v3960, %v3952
    %v5121 = vpack.c.b16 %v3961, %v3953
    %v5122 = vpack.c.b16 %v3962, %v3954
    %v5123 = vpack.c.b16 %v3963, %v3955
    %v5124 = vpack.c.b16 %v3964, %v3956
    %v5125 = vpack.c.b16 %v3973, %v3965
    %v5126 = vpack.c.b16 %v3974, %v3966
    %v5127 = vpack.c.b16 %v3975, %v3967
    %v5128 = vpack.c.b16 %v3976, %v3968
    %v5129 = vpack.c.b16 %v3977, %v3969
    %v5130 = vpack.c.b16 %v3978, %v3970
    %v5131 = vpack.c.b16 %v3979, %v3971
    %v5132 = vpack.c.b16 %v3980, %v3972
    %v5133 = vpack.c.b16 %v3989, %v3981
    %v5134 = vpack.c.b16 %v3990, %v3982
    %v5135 = vpack.c.b16 %v3991, %v3983
    %v5136 = vpack.c.b16 %v3992, %v3984
    %v5137 = vpack.c.b16 %v3993, %v3985
    %v5138 = vpack.c.b16 %v3994, %v3986
    %v5139 = vpack.c.b16 %v3995, %v3987
    %v5140 = vpack.c.b16 %v3996, %v3988
    %v5141 = vpack.c.b16 %v4005, %v3997
    %v5142 = vpack.c.b16 %v4006, %v3998
    %v5143 = vpack.c.b16 %v4007, %v3999
    %v5144 = vpack.c.b16 %v4008, %v4000
    %v5145 = vpack.c.b16 %v4009, %v4001
    %v5146 = vpack.c.b16 %v4010, %v4002
    %v5147 = vpack.c.b16 %v4011, %v4003
    %v5148 = vpack.c.b16 %v4012, %v4004
    %v5149 = vpack.c.b16 %v4021, %v4013
    %v5150 = vpack.c.b16 %v4022, %v4014
    %v5151 = vpack.c.b16 %v4023, %v4015
    %v5152 = vpack.c.b16 %v4024, %v4016
    %v5153 = vpack.c.b16 %v4025, %v4017
    %v5154 = vpack.c.b16 %v4026, %v4018
    %v5155 = vpack.c.b16 %v4027, %v4019
    %v5156 = vpack.c.b16 %v4028, %v4020
    %v5157 = vpack.c.b16 %v4037, %v4029
    %v5158 = vpack.c.b16 %v4038, %v4030
    %v5159 = vpack.c.b16 %v4039, %v4031
    %v5160 = vpack.c.b16 %v4040, %v4032
    %v5161 = vpack.c.b16 %v4041, %v4033
    %v5162 = vpack.c.b16 %v4042, %v4034
    %v5163 = vpack.c.b16 %v4043, %v4035
    %v5164 = vpack.c.b16 %v4044, %v4036
    %v5165 = vpack.c.b16 %v4053, %v4045
    %v5166 = vpack.c.b16 %v4054, %v4046
    %v5167 = vpack.c.b16 %v4055, %v4047
    %v5168 = vpack.c.b16 %v4056, %v4048
    %v5169 = vpack.c.b16 %v4057, %v4049
    %v5170 = vpack.c.b16 %v4058, %v4050
    %v5171 = vpack.c.b16 %v4059, %v4051
    %v5172 = vpack.c.b16 %v4060, %v4052
    %v5173 = vpack.c.b16 %v4069, %v4061
    %v5174 = vpack.c.b16 %v4070, %v4062
    %v5175 = vpack.c.b16 %v4071, %v4063
    %v5176 = vpack.c.b16 %v4072, %v4064
    %v5177 = vpack.c.b16 %v4073, %v4065
    %v5178 = vpack.c.b16 %v4074, %v4066
    %v5179 = vpack.c.b16 %v4075, %v4067
    %v5180 = vpack.c.b16 %v4076, %v4068
    %v5181 = vpack.c.b16 %v4085, %v4077
    %v5182 = vpack.c.b16 %v4086, %v4078
    %v5183 = vpack.c.b16 %v4087, %v4079
    %v5184 = vpack.c.b16 %v4088, %v4080
    %v5185 = vpack.c.b16 %v4089, %v4081
    %v5186 = vpack.c.b16 %v4090, %v4082
    %v5187 = vpack.c.b16 %v4091, %v4083
    %v5188 = vpack.c.b16 %v4092, %v4084
    %v5189 = vpack.c.b16 %v4101, %v4093
    %v5190 = vpack.c.b16 %v4102, %v4094
    %v5191 = vpack.c.b16 %v4103, %v4095
    %v5192 = vpack.c.b16 %v4104, %v4096
    %v5193 = vpack.c.b16 %v4105, %v4097
    %v5194 = vpack.c.b16 %v4106, %v4098
    %v5195 = vpack.c.b16 %v4107, %v4099
    %v5196 = vpack.c.b16 %v4108, %v4100
    %v5197 = vpack.c.b16 %v4117, %v4109
    %v5198 = vpack.c.b16 %v4118, %v4110
    %v5199 = vpack.c.b16 %v4119, %v4111
    %v5200 = vpack.c.b16 %v4120, %v4112
    %v5201 = vpack.c.b16 %v4121, %v4113
    %v5202 = vpack.c.b16 %v4122, %v4114
    %v5203 = vpack.c.b16 %v4123, %v4115
    %v5204 = vpack.c.b16 %v4124, %v4116
    %v5205 = vpack.c.b16 %v4133, %v4125
    %v5206 = vpack.c.b16 %v4134, %v4126
    %v5207 = vpack.c.b16 %v4135, %v4127
    %v5208 = vpack.c.b16 %v4136, %v4128
    %v5209 = vpack.c.b16 %v4137, %v4129
    %v5210 = vpack.c.b16 %v4138, %v4130
    %v5211 = vpack.c.b16 %v4139, %v4131
    %v5212 = vpack.c.b16 %v4140, %v4132
    %v5213 = vpack.c.b16 %v4149, %v4141
    %v5214 = vpack.c.b16 %v4150, %v4142
    %v5215 = vpack.c.b16 %v4151, %v4143
    %v5216 = vpack.c.b16 %v4152, %v4144
    %v5217 = vpack.c.b16 %v4153, %v4145
    %v5218 = vpack.c.b16 %v4154, %v4146
    %v5219 = vpack.c.b16 %v4155, %v4147
    %v5220 = vpack.c.b16 %v4156, %v4148
    %v5221 = vpack.c.b16 %v4165, %v4157
    %v5222 = vpack.c.b16 %v4166, %v4158
    %v5223 = vpack.c.b16 %v4167, %v4159
    %v5224 = vpack.c.b16 %v4168, %v4160
    %v5225 = vpack.c.b16 %v4169, %v4161
    %v5226 = vpack.c.b16 %v4170, %v4162
    %v5227 = vpack.c.b16 %v4171, %v4163
    %v5228 = vpack.c.b16 %v4172, %v4164
    %v5229 = vpack.c.b16 %v4181, %v4173
    %v5230 = vpack.c.b16 %v4182, %v4174
    %v5231 = vpack.c.b16 %v4183, %v4175
    %v5232 = vpack.c.b16 %v4184, %v4176
    %v5233 = vpack.c.b16 %v4185, %v4177
    %v5234 = vpack.c.b16 %v4186, %v4178
    %v5235 = vpack.c.b16 %v4187, %v4179
    %v5236 = vpack.c.b16 %v4188, %v4180
    %v5237 = vpack.c.b16 %v4197, %v4189
    %v5238 = vpack.c.b16 %v4198, %v4190
    %v5239 = vpack.c.b16 %v4199, %v4191
    %v5240 = vpack.c.b16 %v4200, %v4192
    %v5241 = vpack.c.b16 %v4201, %v4193
    %v5242 = vpack.c.b16 %v4202, %v4194
    %v5243 = vpack.c.b16 %v4203, %v4195
    %v5244 = vpack.c.b16 %v4204, %v4196
    %v5245 = vpack.c.b16 %v4213, %v4205
    %v5246 = vpack.c.b16 %v4214, %v4206
    %v5247 = vpack.c.b16 %v4215, %v4207
    %v5248 = vpack.c.b16 %v4216, %v4208
    %v5249 = vpack.c.b16 %v4217, %v4209
    %v5250 = vpack.c.b16 %v4218, %v4210
    %v5251 = vpack.c.b16 %v4219, %v4211
    %v5252 = vpack.c.b16 %v4220, %v4212
    %v5253 = vpack.c.b16 %v4229, %v4221
    %v5254 = vpack.c.b16 %v4230, %v4222
    %v5255 = vpack.c.b16 %v4231, %v4223
    %v5256 = vpack.c.b16 %v4232, %v4224
    %v5257 = vpack.c.b16 %v4233, %v4225
    %v5258 = vpack.c.b16 %v4234, %v4226
    %v5259 = vpack.c.b16 %v4235, %v4227
    %v5260 = vpack.c.b16 %v4236, %v4228
    %6285 = vmatprep.subr.bf16.mxu0 %v4238
    %6286 = vmatpush1.bf16.msra.mxu0 %v4237
    %6287 = vmatprep.subr.bf16.mxu0 %v4246
    %6288 = vmatpush1.bf16.msra.mxu0 %v4245
    %6289 = vmatprep.subr.bf16.mxu0 %v4254
    %6290 = vmatpush1.bf16.msra.mxu0 %v4253
    %6291 = vmatprep.subr.bf16.mxu0 %v4262
    %6292 = vmatpush1.bf16.msra.mxu0 %v4261
    %6293 = vmatprep.subr.bf16.mxu0 %v4270
    %6294 = vmatpush1.bf16.msra.mxu0 %v4269
    %6295 = vmatprep.subr.bf16.mxu0 %v4278
    %6296 = vmatpush1.bf16.msra.mxu0 %v4277
    %6297 = vmatprep.subr.bf16.mxu0 %v4286
    %6298 = vmatpush1.bf16.msra.mxu0 %v4285
    %6299 = vmatprep.subr.bf16.mxu0 %v4294
    %6300 = vmatpush1.bf16.msra.mxu0 %v4293
    %6301 = vmatprep.subr.bf16.mxu0 %v4302
    %6302 = vmatpush1.bf16.msra.mxu0 %v4301
    %6303 = vmatprep.subr.bf16.mxu0 %v4310
    %6304 = vmatpush1.bf16.msra.mxu0 %v4309
    %6305 = vmatprep.subr.bf16.mxu0 %v4318
    %6306 = vmatpush1.bf16.msra.mxu0 %v4317
    %6307 = vmatprep.subr.bf16.mxu0 %v4326
    %6308 = vmatpush1.bf16.msra.mxu0 %v4325
    %6309 = vmatprep.subr.bf16.mxu0 %v4334
    %6310 = vmatpush1.bf16.msra.mxu0 %v4333
    %6311 = vmatprep.subr.bf16.mxu0 %v4342
    %6312 = vmatpush1.bf16.msra.mxu0 %v4341
    %6313 = vmatprep.subr.bf16.mxu0 %v4350
    %6314 = vmatpush1.bf16.msra.mxu0 %v4349
    %6315 = vmatprep.subr.bf16.mxu0 %v4358
    %6316 = vmatpush1.bf16.msra.mxu0 %v4357
    %6317 = vmatprep.mubr.bf16.mxu0 %v84
    %6318 = vmatmul.mubr.bf16.gmra.mrb[0].mxu0 %v83
    %v6319 = vpop.f32.mrb[0].mxu0
    %v6320 = vadd.f32 %v1128, %v6319
    %v6321 = vpop.f32.mrb[0].mxu0
    %v6322 = vadd.f32 %v1132, %v6321
    %v6323 = vpop.f32.mrb[0].mxu0
    %v6324 = vpop.f32.mrb[0].mxu0
    %6325 = vdwg.mxu0
    %6326 = vmatprep.subr.bf16.mxu0 %v4366
    %6327 = vmatpush1.bf16.msra.mxu0 %v4365
    %6328 = vmatprep.subr.bf16.mxu0 %v4374
    %6329 = vmatpush1.bf16.msra.mxu0 %v4373
    %6330 = vmatprep.subr.bf16.mxu0 %v4382
    %6331 = vmatpush1.bf16.msra.mxu0 %v4381
    %6332 = vmatprep.subr.bf16.mxu0 %v4390
    %6333 = vmatpush1.bf16.msra.mxu0 %v4389
    %6334 = vmatprep.subr.bf16.mxu0 %v4398
    %6335 = vmatpush1.bf16.msra.mxu0 %v4397
    %6336 = vmatprep.subr.bf16.mxu0 %v4406
    %6337 = vmatpush1.bf16.msra.mxu0 %v4405
    %6338 = vmatprep.subr.bf16.mxu0 %v4414
    %6339 = vmatpush1.bf16.msra.mxu0 %v4413
    %6340 = vmatprep.subr.bf16.mxu0 %v4422
    %6341 = vmatpush1.bf16.msra.mxu0 %v4421
    %6342 = vmatprep.subr.bf16.mxu0 %v4430
    %6343 = vmatpush1.bf16.msra.mxu0 %v4429
    %6344 = vmatprep.subr.bf16.mxu0 %v4438
    %6345 = vmatpush1.bf16.msra.mxu0 %v4437
    %6346 = vmatprep.subr.bf16.mxu0 %v4446
    %6347 = vmatpush1.bf16.msra.mxu0 %v4445
    %6348 = vmatprep.subr.bf16.mxu0 %v4454
    %6349 = vmatpush1.bf16.msra.mxu0 %v4453
    %6350 = vmatprep.subr.bf16.mxu0 %v4462
    %6351 = vmatpush1.bf16.msra.mxu0 %v4461
    %6352 = vmatprep.subr.bf16.mxu0 %v4470
    %6353 = vmatpush1.bf16.msra.mxu0 %v4469
    %6354 = vmatprep.subr.bf16.mxu0 %v4478
    %6355 = vmatpush1.bf16.msra.mxu0 %v4477
    %6356 = vmatprep.subr.bf16.mxu0 %v4486
    %6357 = vmatpush1.bf16.msra.mxu0 %v4485
    %6358 = vmatprep.mubr.bf16.mxu0 %v86
    %6359 = vmatmul.mubr.bf16.gmra.mrb[0].mxu0 %v85
    %v6360 = vpop.f32.mrb[0].mxu0
    %v6361 = vadd.f32 %v6320, %v6360
    %v6362 = vpop.f32.mrb[0].mxu0
    %v6363 = vadd.f32 %v6322, %v6362
    %v6364 = vpop.f32.mrb[0].mxu0
    %v6365 = vpop.f32.mrb[0].mxu0
    %6366 = vdwg.mxu0
    %6367 = vmatprep.subr.bf16.mxu0 %v4494
    %6368 = vmatpush1.bf16.msra.mxu0 %v4493
    %6369 = vmatprep.subr.bf16.mxu0 %v4502
    %6370 = vmatpush1.bf16.msra.mxu0 %v4501
    %6371 = vmatprep.subr.bf16.mxu0 %v4510
    %6372 = vmatpush1.bf16.msra.mxu0 %v4509
    %6373 = vmatprep.subr.bf16.mxu0 %v4518
    %6374 = vmatpush1.bf16.msra.mxu0 %v4517
    %6375 = vmatprep.subr.bf16.mxu0 %v4526
    %6376 = vmatpush1.bf16.msra.mxu0 %v4525
    %6377 = vmatprep.subr.bf16.mxu0 %v4534
    %6378 = vmatpush1.bf16.msra.mxu0 %v4533
    %6379 = vmatprep.subr.bf16.mxu0 %v4542
    %6380 = vmatpush1.bf16.msra.mxu0 %v4541
    %6381 = vmatprep.subr.bf16.mxu0 %v4550
    %6382 = vmatpush1.bf16.msra.mxu0 %v4549
    %6383 = vmatprep.subr.bf16.mxu0 %v4558
    %6384 = vmatpush1.bf16.msra.mxu0 %v4557
    %6385 = vmatprep.subr.bf16.mxu0 %v4566
    %6386 = vmatpush1.bf16.msra.mxu0 %v4565
    %6387 = vmatprep.subr.bf16.mxu0 %v4574
    %6388 = vmatpush1.bf16.msra.mxu0 %v4573
    %6389 = vmatprep.subr.bf16.mxu0 %v4582
    %6390 = vmatpush1.bf16.msra.mxu0 %v4581
    %6391 = vmatprep.subr.bf16.mxu0 %v4590
    %6392 = vmatpush1.bf16.msra.mxu0 %v4589
    %6393 = vmatprep.subr.bf16.mxu0 %v4598
    %6394 = vmatpush1.bf16.msra.mxu0 %v4597
    %6395 = vmatprep.subr.bf16.mxu0 %v4606
    %6396 = vmatpush1.bf16.msra.mxu0 %v4605
    %6397 = vmatprep.subr.bf16.mxu0 %v4614
    %6398 = vmatpush1.bf16.msra.mxu0 %v4613
    %6399 = vmatprep.mubr.bf16.mxu0 %v88
    %6400 = vmatmul.mubr.bf16.gmra.mrb[0].mxu0 %v87
    %v6401 = vpop.f32.mrb[0].mxu0
    %v6402 = vadd.f32 %v6361, %v6401
    %v6403 = vpop.f32.mrb[0].mxu0
    %v6404 = vadd.f32 %v6363, %v6403
    %v6405 = vpop.f32.mrb[0].mxu0
    %v6406 = vpop.f32.mrb[0].mxu0
    %6407 = vdwg.mxu0
    %6408 = vmatprep.subr.bf16.mxu0 %v4622
    %6409 = vmatpush1.bf16.msra.mxu0 %v4621
    %6410 = vmatprep.subr.bf16.mxu0 %v4630
    %6411 = vmatpush1.bf16.msra.mxu0 %v4629
    %6412 = vmatprep.subr.bf16.mxu0 %v4638
    %6413 = vmatpush1.bf16.msra.mxu0 %v4637
    %6414 = vmatprep.subr.bf16.mxu0 %v4646
    %6415 = vmatpush1.bf16.msra.mxu0 %v4645
    %6416 = vmatprep.subr.bf16.mxu0 %v4654
    %6417 = vmatpush1.bf16.msra.mxu0 %v4653
    %6418 = vmatprep.subr.bf16.mxu0 %v4662
    %6419 = vmatpush1.bf16.msra.mxu0 %v4661
    %6420 = vmatprep.subr.bf16.mxu0 %v4670
    %6421 = vmatpush1.bf16.msra.mxu0 %v4669
    %6422 = vmatprep.subr.bf16.mxu0 %v4678
    %6423 = vmatpush1.bf16.msra.mxu0 %v4677
    %6424 = vmatprep.subr.bf16.mxu0 %v4686
    %6425 = vmatpush1.bf16.msra.mxu0 %v4685
    %6426 = vmatprep.subr.bf16.mxu0 %v4694
    %6427 = vmatpush1.bf16.msra.mxu0 %v4693
    %6428 = vmatprep.subr.bf16.mxu0 %v4702
    %6429 = vmatpush1.bf16.msra.mxu0 %v4701
    %6430 = vmatprep.subr.bf16.mxu0 %v4710
    %6431 = vmatpush1.bf16.msra.mxu0 %v4709
    %6432 = vmatprep.subr.bf16.mxu0 %v4718
    %6433 = vmatpush1.bf16.msra.mxu0 %v4717
    %6434 = vmatprep.subr.bf16.mxu0 %v4726
    %6435 = vmatpush1.bf16.msra.mxu0 %v4725
    %6436 = vmatprep.subr.bf16.mxu0 %v4734
    %6437 = vmatpush1.bf16.msra.mxu0 %v4733
    %6438 = vmatprep.subr.bf16.mxu0 %v4742
    %6439 = vmatpush1.bf16.msra.mxu0 %v4741
    %6440 = vmatprep.mubr.bf16.mxu0 %v90
    %6441 = vmatmul.mubr.bf16.gmra.mrb[0].mxu0 %v89
    %v6442 = vpop.f32.mrb[0].mxu0
    %v6443 = vadd.f32 %v6402, %v6442
    %v6444 = vpop.f32.mrb[0].mxu0
    %v6445 = vadd.f32 %v6404, %v6444
    %v6446 = vpop.f32.mrb[0].mxu0
    %v6447 = vpop.f32.mrb[0].mxu0
    %6448 = vdwg.mxu0
    %6449 = vmatprep.subr.bf16.mxu0 %v4750
    %6450 = vmatpush1.bf16.msra.mxu0 %v4749
    %6451 = vmatprep.subr.bf16.mxu0 %v4758
    %6452 = vmatpush1.bf16.msra.mxu0 %v4757
    %6453 = vmatprep.subr.bf16.mxu0 %v4766
    %6454 = vmatpush1.bf16.msra.mxu0 %v4765
    %6455 = vmatprep.subr.bf16.mxu0 %v4774
    %6456 = vmatpush1.bf16.msra.mxu0 %v4773
    %6457 = vmatprep.subr.bf16.mxu0 %v4782
    %6458 = vmatpush1.bf16.msra.mxu0 %v4781
    %6459 = vmatprep.subr.bf16.mxu0 %v4790
    %6460 = vmatpush1.bf16.msra.mxu0 %v4789
    %6461 = vmatprep.subr.bf16.mxu0 %v4798
    %6462 = vmatpush1.bf16.msra.mxu0 %v4797
    %6463 = vmatprep.subr.bf16.mxu0 %v4806
    %6464 = vmatpush1.bf16.msra.mxu0 %v4805
    %6465 = vmatprep.subr.bf16.mxu0 %v4814
    %6466 = vmatpush1.bf16.msra.mxu0 %v4813
    %6467 = vmatprep.subr.bf16.mxu0 %v4822
    %6468 = vmatpush1.bf16.msra.mxu0 %v4821
    %6469 = vmatprep.subr.bf16.mxu0 %v4830
    %6470 = vmatpush1.bf16.msra.mxu0 %v4829
    %6471 = vmatprep.subr.bf16.mxu0 %v4838
    %6472 = vmatpush1.bf16.msra.mxu0 %v4837
    %6473 = vmatprep.subr.bf16.mxu0 %v4846
    %6474 = vmatpush1.bf16.msra.mxu0 %v4845
    %6475 = vmatprep.subr.bf16.mxu0 %v4854
    %6476 = vmatpush1.bf16.msra.mxu0 %v4853
    %6477 = vmatprep.subr.bf16.mxu0 %v4862
    %6478 = vmatpush1.bf16.msra.mxu0 %v4861
    %6479 = vmatprep.subr.bf16.mxu0 %v4870
    %6480 = vmatpush1.bf16.msra.mxu0 %v4869
    %6481 = vmatprep.mubr.bf16.mxu0 %v92
    %6482 = vmatmul.mubr.bf16.gmra.mrb[0].mxu0 %v91
    %v6483 = vpop.f32.mrb[0].mxu0
    %v6484 = vadd.f32 %v6443, %v6483
    %v6485 = vpop.f32.mrb[0].mxu0
    %v6486 = vadd.f32 %v6445, %v6485
    %v6487 = vpop.f32.mrb[0].mxu0
    %v6488 = vpop.f32.mrb[0].mxu0
    %6489 = vdwg.mxu0
    %6490 = vmatprep.subr.bf16.mxu0 %v4878
    %6491 = vmatpush1.bf16.msra.mxu0 %v4877
    %6492 = vmatprep.subr.bf16.mxu0 %v4886
    %6493 = vmatpush1.bf16.msra.mxu0 %v4885
    %6494 = vmatprep.subr.bf16.mxu0 %v4894
    %6495 = vmatpush1.bf16.msra.mxu0 %v4893
    %6496 = vmatprep.subr.bf16.mxu0 %v4902
    %6497 = vmatpush1.bf16.msra.mxu0 %v4901
    %6498 = vmatprep.subr.bf16.mxu0 %v4910
    %6499 = vmatpush1.bf16.msra.mxu0 %v4909
    %6500 = vmatprep.subr.bf16.mxu0 %v4918
    %6501 = vmatpush1.bf16.msra.mxu0 %v4917
    %6502 = vmatprep.subr.bf16.mxu0 %v4926
    %6503 = vmatpush1.bf16.msra.mxu0 %v4925
    %6504 = vmatprep.subr.bf16.mxu0 %v4934
    %6505 = vmatpush1.bf16.msra.mxu0 %v4933
    %6506 = vmatprep.subr.bf16.mxu0 %v4942
    %6507 = vmatpush1.bf16.msra.mxu0 %v4941
    %6508 = vmatprep.subr.bf16.mxu0 %v4950
    %6509 = vmatpush1.bf16.msra.mxu0 %v4949
    %6510 = vmatprep.subr.bf16.mxu0 %v4958
    %6511 = vmatpush1.bf16.msra.mxu0 %v4957
    %6512 = vmatprep.subr.bf16.mxu0 %v4966
    %6513 = vmatpush1.bf16.msra.mxu0 %v4965
    %6514 = vmatprep.subr.bf16.mxu0 %v4974
    %6515 = vmatpush1.bf16.msra.mxu0 %v4973
    %6516 = vmatprep.subr.bf16.mxu0 %v4982
    %6517 = vmatpush1.bf16.msra.mxu0 %v4981
    %6518 = vmatprep.subr.bf16.mxu0 %v4990
    %6519 = vmatpush1.bf16.msra.mxu0 %v4989
    %6520 = vmatprep.subr.bf16.mxu0 %v4998
    %6521 = vmatpush1.bf16.msra.mxu0 %v4997
    %6522 = vmatprep.mubr.bf16.mxu0 %v94
    %6523 = vmatmul.mubr.bf16.gmra.mrb[0].mxu0 %v93
    %v6524 = vpop.f32.mrb[0].mxu0
    %v6525 = vadd.f32 %v6484, %v6524
    %v6526 = vpop.f32.mrb[0].mxu0
    %v6527 = vadd.f32 %v6486, %v6526
    %v6528 = vpop.f32.mrb[0].mxu0
    %v6529 = vpop.f32.mrb[0].mxu0
    %6530 = vdwg.mxu0
    %6531 = vmatprep.subr.bf16.mxu0 %v5006
    %6532 = vmatpush1.bf16.msra.mxu0 %v5005
    %6533 = vmatprep.subr.bf16.mxu0 %v5014
    %6534 = vmatpush1.bf16.msra.mxu0 %v5013
    %6535 = vmatprep.subr.bf16.mxu0 %v5022
    %6536 = vmatpush1.bf16.msra.mxu0 %v5021
    %6537 = vmatprep.subr.bf16.mxu0 %v5030
    %6538 = vmatpush1.bf16.msra.mxu0 %v5029
    %6539 = vmatprep.subr.bf16.mxu0 %v5038
    %6540 = vmatpush1.bf16.msra.mxu0 %v5037
    %6541 = vmatprep.subr.bf16.mxu0 %v5046
    %6542 = vmatpush1.bf16.msra.mxu0 %v5045
    %6543 = vmatprep.subr.bf16.mxu0 %v5054
    %6544 = vmatpush1.bf16.msra.mxu0 %v5053
    %6545 = vmatprep.subr.bf16.mxu0 %v5062
    %6546 = vmatpush1.bf16.msra.mxu0 %v5061
    %6547 = vmatprep.subr.bf16.mxu0 %v5070
    %6548 = vmatpush1.bf16.msra.mxu0 %v5069
    %6549 = vmatprep.subr.bf16.mxu0 %v5078
    %6550 = vmatpush1.bf16.msra.mxu0 %v5077
    %6551 = vmatprep.subr.bf16.mxu0 %v5086
    %6552 = vmatpush1.bf16.msra.mxu0 %v5085
    %6553 = vmatprep.subr.bf16.mxu0 %v5094
    %6554 = vmatpush1.bf16.msra.mxu0 %v5093
    %6555 = vmatprep.subr.bf16.mxu0 %v5102
    %6556 = vmatpush1.bf16.msra.mxu0 %v5101
    %6557 = vmatprep.subr.bf16.mxu0 %v5110
    %6558 = vmatpush1.bf16.msra.mxu0 %v5109
    %6559 = vmatprep.subr.bf16.mxu0 %v5118
    %6560 = vmatpush1.bf16.msra.mxu0 %v5117
    %6561 = vmatprep.subr.bf16.mxu0 %v5126
    %6562 = vmatpush1.bf16.msra.mxu0 %v5125
    %6563 = vmatprep.mubr.bf16.mxu0 %v96
    %6564 = vmatmul.mubr.bf16.gmra.mrb[0].mxu0 %v95
    %v6565 = vpop.f32.mrb[0].mxu0
    %v6566 = vadd.f32 %v6525, %v6565
    %v6567 = vpop.f32.mrb[0].mxu0
    %v6568 = vadd.f32 %v6527, %v6567
    %v6569 = vpop.f32.mrb[0].mxu0
    %v6570 = vpop.f32.mrb[0].mxu0
    %6571 = vdwg.mxu0
    %6572 = vmatprep.subr.bf16.mxu0 %v5134
    %6573 = vmatpush1.bf16.msra.mxu0 %v5133
    %6574 = vmatprep.subr.bf16.mxu0 %v5142
    %6575 = vmatpush1.bf16.msra.mxu0 %v5141
    %6576 = vmatprep.subr.bf16.mxu0 %v5150
    %6577 = vmatpush1.bf16.msra.mxu0 %v5149
    %6578 = vmatprep.subr.bf16.mxu0 %v5158
    %6579 = vmatpush1.bf16.msra.mxu0 %v5157
    %6580 = vmatprep.subr.bf16.mxu0 %v5166
    %6581 = vmatpush1.bf16.msra.mxu0 %v5165
    %6582 = vmatprep.subr.bf16.mxu0 %v5174
    %6583 = vmatpush1.bf16.msra.mxu0 %v5173
    %6584 = vmatprep.subr.bf16.mxu0 %v5182
    %6585 = vmatpush1.bf16.msra.mxu0 %v5181
    %6586 = vmatprep.subr.bf16.mxu0 %v5190
    %6587 = vmatpush1.bf16.msra.mxu0 %v5189
    %6588 = vmatprep.subr.bf16.mxu0 %v5198
    %6589 = vmatpush1.bf16.msra.mxu0 %v5197
    %6590 = vmatprep.subr.bf16.mxu0 %v5206
    %6591 = vmatpush1.bf16.msra.mxu0 %v5205
    %6592 = vmatprep.subr.bf16.mxu0 %v5214
    %6593 = vmatpush1.bf16.msra.mxu0 %v5213
    %6594 = vmatprep.subr.bf16.mxu0 %v5222
    %6595 = vmatpush1.bf16.msra.mxu0 %v5221
    %6596 = vmatprep.subr.bf16.mxu0 %v5230
    %6597 = vmatpush1.bf16.msra.mxu0 %v5229
    %6598 = vmatprep.subr.bf16.mxu0 %v5238
    %6599 = vmatpush1.bf16.msra.mxu0 %v5237
    %6600 = vmatprep.subr.bf16.mxu0 %v5246
    %6601 = vmatpush1.bf16.msra.mxu0 %v5245
    %6602 = vmatprep.subr.bf16.mxu0 %v5254
    %6603 = vmatpush1.bf16.msra.mxu0 %v5253
    %6604 = vmatprep.mubr.bf16.mxu0 %v98
    %6605 = vmatmul.mubr.bf16.gmra.mrb[0].mxu0 %v97
    %v6606 = vpop.f32.mrb[0].mxu0
    %v6607 = vadd.f32 %v6566, %v6606
    %v6608 = vpop.f32.mrb[0].mxu0
    %v6609 = vadd.f32 %v6568, %v6608
    %v6610 = vpop.f32.mrb[0].mxu0
    %v6611 = vpop.f32.mrb[0].mxu0
    %6612 = vdwg.mxu0
    %6613 = vmatprep.subr.bf16.mxu0 %v4240
    %6614 = vmatpush1.bf16.msra.mxu0 %v4239
    %6615 = vmatprep.subr.bf16.mxu0 %v4248
    %6616 = vmatpush1.bf16.msra.mxu0 %v4247
    %6617 = vmatprep.subr.bf16.mxu0 %v4256
    %6618 = vmatpush1.bf16.msra.mxu0 %v4255
    %6619 = vmatprep.subr.bf16.mxu0 %v4264
    %6620 = vmatpush1.bf16.msra.mxu0 %v4263
    %6621 = vmatprep.subr.bf16.mxu0 %v4272
    %6622 = vmatpush1.bf16.msra.mxu0 %v4271
    %6623 = vmatprep.subr.bf16.mxu0 %v4280
    %6624 = vmatpush1.bf16.msra.mxu0 %v4279
    %6625 = vmatprep.subr.bf16.mxu0 %v4288
    %6626 = vmatpush1.bf16.msra.mxu0 %v4287
    %6627 = vmatprep.subr.bf16.mxu0 %v4296
    %6628 = vmatpush1.bf16.msra.mxu0 %v4295
    %6629 = vmatprep.subr.bf16.mxu0 %v4304
    %6630 = vmatpush1.bf16.msra.mxu0 %v4303
    %6631 = vmatprep.subr.bf16.mxu0 %v4312
    %6632 = vmatpush1.bf16.msra.mxu0 %v4311
    %6633 = vmatprep.subr.bf16.mxu0 %v4320
    %6634 = vmatpush1.bf16.msra.mxu0 %v4319
    %6635 = vmatprep.subr.bf16.mxu0 %v4328
    %6636 = vmatpush1.bf16.msra.mxu0 %v4327
    %6637 = vmatprep.subr.bf16.mxu0 %v4336
    %6638 = vmatpush1.bf16.msra.mxu0 %v4335
    %6639 = vmatprep.subr.bf16.mxu0 %v4344
    %6640 = vmatpush1.bf16.msra.mxu0 %v4343
    %6641 = vmatprep.subr.bf16.mxu0 %v4352
    %6642 = vmatpush1.bf16.msra.mxu0 %v4351
    %6643 = vmatprep.subr.bf16.mxu0 %v4360
    %6644 = vmatpush1.bf16.msra.mxu0 %v4359
    %6645 = vmatprep.mubr.bf16.mxu0 %v84
    %6646 = vmatmul.mubr.bf16.gmra.mrb[0].mxu0 %v83
    %v6647 = vpop.f32.mrb[0].mxu0
    %v6648 = vadd.f32 %v1136, %v6647
    %v6649 = vpop.f32.mrb[0].mxu0
    %v6650 = vadd.f32 %v1140, %v6649
    %v6651 = vpop.f32.mrb[0].mxu0
    %v6652 = vpop.f32.mrb[0].mxu0
    %6653 = vdwg.mxu0
    %6654 = vmatprep.subr.bf16.mxu0 %v4368
    %6655 = vmatpush1.bf16.msra.mxu0 %v4367
    %6656 = vmatprep.subr.bf16.mxu0 %v4376
    %6657 = vmatpush1.bf16.msra.mxu0 %v4375
    %6658 = vmatprep.subr.bf16.mxu0 %v4384
    %6659 = vmatpush1.bf16.msra.mxu0 %v4383
    %6660 = vmatprep.subr.bf16.mxu0 %v4392
    %6661 = vmatpush1.bf16.msra.mxu0 %v4391
    %6662 = vmatprep.subr.bf16.mxu0 %v4400
    %6663 = vmatpush1.bf16.msra.mxu0 %v4399
    %6664 = vmatprep.subr.bf16.mxu0 %v4408
    %6665 = vmatpush1.bf16.msra.mxu0 %v4407
    %6666 = vmatprep.subr.bf16.mxu0 %v4416
    %6667 = vmatpush1.bf16.msra.mxu0 %v4415
    %6668 = vmatprep.subr.bf16.mxu0 %v4424
    %6669 = vmatpush1.bf16.msra.mxu0 %v4423
    %6670 = vmatprep.subr.bf16.mxu0 %v4432
    %6671 = vmatpush1.bf16.msra.mxu0 %v4431
    %6672 = vmatprep.subr.bf16.mxu0 %v4440
    %6673 = vmatpush1.bf16.msra.mxu0 %v4439
    %6674 = vmatprep.subr.bf16.mxu0 %v4448
    %6675 = vmatpush1.bf16.msra.mxu0 %v4447
    %6676 = vmatprep.subr.bf16.mxu0 %v4456
    %6677 = vmatpush1.bf16.msra.mxu0 %v4455
    %6678 = vmatprep.subr.bf16.mxu0 %v4464
    %6679 = vmatpush1.bf16.msra.mxu0 %v4463
    %6680 = vmatprep.subr.bf16.mxu0 %v4472
    %6681 = vmatpush1.bf16.msra.mxu0 %v4471
    %6682 = vmatprep.subr.bf16.mxu0 %v4480
    %6683 = vmatpush1.bf16.msra.mxu0 %v4479
    %6684 = vmatprep.subr.bf16.mxu0 %v4488
    %6685 = vmatpush1.bf16.msra.mxu0 %v4487
    %6686 = vmatprep.mubr.bf16.mxu0 %v86
    %6687 = vmatmul.mubr.bf16.gmra.mrb[0].mxu0 %v85
    %v6688 = vpop.f32.mrb[0].mxu0
    %v6689 = vadd.f32 %v6648, %v6688
    %v6690 = vpop.f32.mrb[0].mxu0
    %v6691 = vadd.f32 %v6650, %v6690
    %v6692 = vpop.f32.mrb[0].mxu0
    %v6693 = vpop.f32.mrb[0].mxu0
    %6694 = vdwg.mxu0
    %6695 = vmatprep.subr.bf16.mxu0 %v4496
    %6696 = vmatpush1.bf16.msra.mxu0 %v4495
    %6697 = vmatprep.subr.bf16.mxu0 %v4504
    %6698 = vmatpush1.bf16.msra.mxu0 %v4503
    %6699 = vmatprep.subr.bf16.mxu0 %v4512
    %6700 = vmatpush1.bf16.msra.mxu0 %v4511
    %6701 = vmatprep.subr.bf16.mxu0 %v4520
    %6702 = vmatpush1.bf16.msra.mxu0 %v4519
    %6703 = vmatprep.subr.bf16.mxu0 %v4528
    %6704 = vmatpush1.bf16.msra.mxu0 %v4527
    %6705 = vmatprep.subr.bf16.mxu0 %v4536
    %6706 = vmatpush1.bf16.msra.mxu0 %v4535
    %6707 = vmatprep.subr.bf16.mxu0 %v4544
    %6708 = vmatpush1.bf16.msra.mxu0 %v4543
    %6709 = vmatprep.subr.bf16.mxu0 %v4552
    %6710 = vmatpush1.bf16.msra.mxu0 %v4551
    %6711 = vmatprep.subr.bf16.mxu0 %v4560
    %6712 = vmatpush1.bf16.msra.mxu0 %v4559
    %6713 = vmatprep.subr.bf16.mxu0 %v4568
    %6714 = vmatpush1.bf16.msra.mxu0 %v4567
    %6715 = vmatprep.subr.bf16.mxu0 %v4576
    %6716 = vmatpush1.bf16.msra.mxu0 %v4575
    %6717 = vmatprep.subr.bf16.mxu0 %v4584
    %6718 = vmatpush1.bf16.msra.mxu0 %v4583
    %6719 = vmatprep.subr.bf16.mxu0 %v4592
    %6720 = vmatpush1.bf16.msra.mxu0 %v4591
    %6721 = vmatprep.subr.bf16.mxu0 %v4600
    %6722 = vmatpush1.bf16.msra.mxu0 %v4599
    %6723 = vmatprep.subr.bf16.mxu0 %v4608
    %6724 = vmatpush1.bf16.msra.mxu0 %v4607
    %6725 = vmatprep.subr.bf16.mxu0 %v4616
    %6726 = vmatpush1.bf16.msra.mxu0 %v4615
    %6727 = vmatprep.mubr.bf16.mxu0 %v88
    %6728 = vmatmul.mubr.bf16.gmra.mrb[0].mxu0 %v87
    %v6729 = vpop.f32.mrb[0].mxu0
    %v6730 = vadd.f32 %v6689, %v6729
    %v6731 = vpop.f32.mrb[0].mxu0
    %v6732 = vadd.f32 %v6691, %v6731
    %v6733 = vpop.f32.mrb[0].mxu0
    %v6734 = vpop.f32.mrb[0].mxu0
    %6735 = vdwg.mxu0
    %6736 = vmatprep.subr.bf16.mxu0 %v4624
    %6737 = vmatpush1.bf16.msra.mxu0 %v4623
    %6738 = vmatprep.subr.bf16.mxu0 %v4632
    %6739 = vmatpush1.bf16.msra.mxu0 %v4631
    %6740 = vmatprep.subr.bf16.mxu0 %v4640
    %6741 = vmatpush1.bf16.msra.mxu0 %v4639
    %6742 = vmatprep.subr.bf16.mxu0 %v4648
    %6743 = vmatpush1.bf16.msra.mxu0 %v4647
    %6744 = vmatprep.subr.bf16.mxu0 %v4656
    %6745 = vmatpush1.bf16.msra.mxu0 %v4655
    %6746 = vmatprep.subr.bf16.mxu0 %v4664
    %6747 = vmatpush1.bf16.msra.mxu0 %v4663
    %6748 = vmatprep.subr.bf16.mxu0 %v4672
    %6749 = vmatpush1.bf16.msra.mxu0 %v4671
    %6750 = vmatprep.subr.bf16.mxu0 %v4680
    %6751 = vmatpush1.bf16.msra.mxu0 %v4679
    %6752 = vmatprep.subr.bf16.mxu0 %v4688
    %6753 = vmatpush1.bf16.msra.mxu0 %v4687
    %6754 = vmatprep.subr.bf16.mxu0 %v4696
    %6755 = vmatpush1.bf16.msra.mxu0 %v4695
    %6756 = vmatprep.subr.bf16.mxu0 %v4704
    %6757 = vmatpush1.bf16.msra.mxu0 %v4703
    %6758 = vmatprep.subr.bf16.mxu0 %v4712
    %6759 = vmatpush1.bf16.msra.mxu0 %v4711
    %6760 = vmatprep.subr.bf16.mxu0 %v4720
    %6761 = vmatpush1.bf16.msra.mxu0 %v4719
    %6762 = vmatprep.subr.bf16.mxu0 %v4728
    %6763 = vmatpush1.bf16.msra.mxu0 %v4727
    %6764 = vmatprep.subr.bf16.mxu0 %v4736
    %6765 = vmatpush1.bf16.msra.mxu0 %v4735
    %6766 = vmatprep.subr.bf16.mxu0 %v4744
    %6767 = vmatpush1.bf16.msra.mxu0 %v4743
    %6768 = vmatprep.mubr.bf16.mxu0 %v90
    %6769 = vmatmul.mubr.bf16.gmra.mrb[0].mxu0 %v89
    %v6770 = vpop.f32.mrb[0].mxu0
    %v6771 = vadd.f32 %v6730, %v6770
    %v6772 = vpop.f32.mrb[0].mxu0
    %v6773 = vadd.f32 %v6732, %v6772
    %v6774 = vpop.f32.mrb[0].mxu0
    %v6775 = vpop.f32.mrb[0].mxu0
    %6776 = vdwg.mxu0
    %6777 = vmatprep.subr.bf16.mxu0 %v4752
    %6778 = vmatpush1.bf16.msra.mxu0 %v4751
    %6779 = vmatprep.subr.bf16.mxu0 %v4760
    %6780 = vmatpush1.bf16.msra.mxu0 %v4759
    %6781 = vmatprep.subr.bf16.mxu0 %v4768
    %6782 = vmatpush1.bf16.msra.mxu0 %v4767
    %6783 = vmatprep.subr.bf16.mxu0 %v4776
    %6784 = vmatpush1.bf16.msra.mxu0 %v4775
    %6785 = vmatprep.subr.bf16.mxu0 %v4784
    %6786 = vmatpush1.bf16.msra.mxu0 %v4783
    %6787 = vmatprep.subr.bf16.mxu0 %v4792
    %6788 = vmatpush1.bf16.msra.mxu0 %v4791
    %6789 = vmatprep.subr.bf16.mxu0 %v4800
    %6790 = vmatpush1.bf16.msra.mxu0 %v4799
    %6791 = vmatprep.subr.bf16.mxu0 %v4808
    %6792 = vmatpush1.bf16.msra.mxu0 %v4807
    %6793 = vmatprep.subr.bf16.mxu0 %v4816
    %6794 = vmatpush1.bf16.msra.mxu0 %v4815
    %6795 = vmatprep.subr.bf16.mxu0 %v4824
    %6796 = vmatpush1.bf16.msra.mxu0 %v4823
    %6797 = vmatprep.subr.bf16.mxu0 %v4832
    %6798 = vmatpush1.bf16.msra.mxu0 %v4831
    %6799 = vmatprep.subr.bf16.mxu0 %v4840
    %6800 = vmatpush1.bf16.msra.mxu0 %v4839
    %6801 = vmatprep.subr.bf16.mxu0 %v4848
    %6802 = vmatpush1.bf16.msra.mxu0 %v4847
    %6803 = vmatprep.subr.bf16.mxu0 %v4856
    %6804 = vmatpush1.bf16.msra.mxu0 %v4855
    %6805 = vmatprep.subr.bf16.mxu0 %v4864
    %6806 = vmatpush1.bf16.msra.mxu0 %v4863
    %6807 = vmatprep.subr.bf16.mxu0 %v4872
    %6808 = vmatpush1.bf16.msra.mxu0 %v4871
    %6809 = vmatprep.mubr.bf16.mxu0 %v92
    %6810 = vmatmul.mubr.bf16.gmra.mrb[0].mxu0 %v91
    %v6811 = vpop.f32.mrb[0].mxu0
    %v6812 = vadd.f32 %v6771, %v6811
    %v6813 = vpop.f32.mrb[0].mxu0
    %v6814 = vadd.f32 %v6773, %v6813
    %v6815 = vpop.f32.mrb[0].mxu0
    %v6816 = vpop.f32.mrb[0].mxu0
    %6817 = vdwg.mxu0
    %6818 = vmatprep.subr.bf16.mxu0 %v4880
    %6819 = vmatpush1.bf16.msra.mxu0 %v4879
    %6820 = vmatprep.subr.bf16.mxu0 %v4888
    %6821 = vmatpush1.bf16.msra.mxu0 %v4887
    %6822 = vmatprep.subr.bf16.mxu0 %v4896
    %6823 = vmatpush1.bf16.msra.mxu0 %v4895
    %6824 = vmatprep.subr.bf16.mxu0 %v4904
    %6825 = vmatpush1.bf16.msra.mxu0 %v4903
    %6826 = vmatprep.subr.bf16.mxu0 %v4912
    %6827 = vmatpush1.bf16.msra.mxu0 %v4911
    %6828 = vmatprep.subr.bf16.mxu0 %v4920
    %6829 = vmatpush1.bf16.msra.mxu0 %v4919
    %6830 = vmatprep.subr.bf16.mxu0 %v4928
    %6831 = vmatpush1.bf16.msra.mxu0 %v4927
    %6832 = vmatprep.subr.bf16.mxu0 %v4936
    %6833 = vmatpush1.bf16.msra.mxu0 %v4935
    %6834 = vmatprep.subr.bf16.mxu0 %v4944
    %6835 = vmatpush1.bf16.msra.mxu0 %v4943
    %6836 = vmatprep.subr.bf16.mxu0 %v4952
    %6837 = vmatpush1.bf16.msra.mxu0 %v4951
    %6838 = vmatprep.subr.bf16.mxu0 %v4960
    %6839 = vmatpush1.bf16.msra.mxu0 %v4959
    %6840 = vmatprep.subr.bf16.mxu0 %v4968
    %6841 = vmatpush1.bf16.msra.mxu0 %v4967
    %6842 = vmatprep.subr.bf16.mxu0 %v4976
    %6843 = vmatpush1.bf16.msra.mxu0 %v4975
    %6844 = vmatprep.subr.bf16.mxu0 %v4984
    %6845 = vmatpush1.bf16.msra.mxu0 %v4983
    %6846 = vmatprep.subr.bf16.mxu0 %v4992
    %6847 = vmatpush1.bf16.msra.mxu0 %v4991
    %6848 = vmatprep.subr.bf16.mxu0 %v5000
    %6849 = vmatpush1.bf16.msra.mxu0 %v4999
    %6850 = vmatprep.mubr.bf16.mxu0 %v94
    %6851 = vmatmul.mubr.bf16.gmra.mrb[0].mxu0 %v93
    %v6852 = vpop.f32.mrb[0].mxu0
    %v6853 = vadd.f32 %v6812, %v6852
    %v6854 = vpop.f32.mrb[0].mxu0
    %v6855 = vadd.f32 %v6814, %v6854
    %v6856 = vpop.f32.mrb[0].mxu0
    %v6857 = vpop.f32.mrb[0].mxu0
    %6858 = vdwg.mxu0
    %6859 = vmatprep.subr.bf16.mxu0 %v5008
    %6860 = vmatpush1.bf16.msra.mxu0 %v5007
    %6861 = vmatprep.subr.bf16.mxu0 %v5016
    %6862 = vmatpush1.bf16.msra.mxu0 %v5015
    %6863 = vmatprep.subr.bf16.mxu0 %v5024
    %6864 = vmatpush1.bf16.msra.mxu0 %v5023
    %6865 = vmatprep.subr.bf16.mxu0 %v5032
    %6866 = vmatpush1.bf16.msra.mxu0 %v5031
    %6867 = vmatprep.subr.bf16.mxu0 %v5040
    %6868 = vmatpush1.bf16.msra.mxu0 %v5039
    %6869 = vmatprep.subr.bf16.mxu0 %v5048
    %6870 = vmatpush1.bf16.msra.mxu0 %v5047
    %6871 = vmatprep.subr.bf16.mxu0 %v5056
    %6872 = vmatpush1.bf16.msra.mxu0 %v5055
    %6873 = vmatprep.subr.bf16.mxu0 %v5064
    %6874 = vmatpush1.bf16.msra.mxu0 %v5063
    %6875 = vmatprep.subr.bf16.mxu0 %v5072
    %6876 = vmatpush1.bf16.msra.mxu0 %v5071
    %6877 = vmatprep.subr.bf16.mxu0 %v5080
    %6878 = vmatpush1.bf16.msra.mxu0 %v5079
    %6879 = vmatprep.subr.bf16.mxu0 %v5088
    %6880 = vmatpush1.bf16.msra.mxu0 %v5087
    %6881 = vmatprep.subr.bf16.mxu0 %v5096
    %6882 = vmatpush1.bf16.msra.mxu0 %v5095
    %6883 = vmatprep.subr.bf16.mxu0 %v5104
    %6884 = vmatpush1.bf16.msra.mxu0 %v5103
    %6885 = vmatprep.subr.bf16.mxu0 %v5112
    %6886 = vmatpush1.bf16.msra.mxu0 %v5111
    %6887 = vmatprep.subr.bf16.mxu0 %v5120
    %6888 = vmatpush1.bf16.msra.mxu0 %v5119
    %6889 = vmatprep.subr.bf16.mxu0 %v5128
    %6890 = vmatpush1.bf16.msra.mxu0 %v5127
    %6891 = vmatprep.mubr.bf16.mxu0 %v96
    %6892 = vmatmul.mubr.bf16.gmra.mrb[0].mxu0 %v95
    %v6893 = vpop.f32.mrb[0].mxu0
    %v6894 = vadd.f32 %v6853, %v6893
    %v6895 = vpop.f32.mrb[0].mxu0
    %v6896 = vadd.f32 %v6855, %v6895
    %v6897 = vpop.f32.mrb[0].mxu0
    %v6898 = vpop.f32.mrb[0].mxu0
    %6899 = vdwg.mxu0
    %6900 = vmatprep.subr.bf16.mxu0 %v5136
    %6901 = vmatpush1.bf16.msra.mxu0 %v5135
    %6902 = vmatprep.subr.bf16.mxu0 %v5144
    %6903 = vmatpush1.bf16.msra.mxu0 %v5143
    %6904 = vmatprep.subr.bf16.mxu0 %v5152
    %6905 = vmatpush1.bf16.msra.mxu0 %v5151
    %6906 = vmatprep.subr.bf16.mxu0 %v5160
    %6907 = vmatpush1.bf16.msra.mxu0 %v5159
    %6908 = vmatprep.subr.bf16.mxu0 %v5168
    %6909 = vmatpush1.bf16.msra.mxu0 %v5167
    %6910 = vmatprep.subr.bf16.mxu0 %v5176
    %6911 = vmatpush1.bf16.msra.mxu0 %v5175
    %6912 = vmatprep.subr.bf16.mxu0 %v5184
    %6913 = vmatpush1.bf16.msra.mxu0 %v5183
    %6914 = vmatprep.subr.bf16.mxu0 %v5192
    %6915 = vmatpush1.bf16.msra.mxu0 %v5191
    %6916 = vmatprep.subr.bf16.mxu0 %v5200
    %6917 = vmatpush1.bf16.msra.mxu0 %v5199
    %6918 = vmatprep.subr.bf16.mxu0 %v5208
    %6919 = vmatpush1.bf16.msra.mxu0 %v5207
    %6920 = vmatprep.subr.bf16.mxu0 %v5216
    %6921 = vmatpush1.bf16.msra.mxu0 %v5215
    %6922 = vmatprep.subr.bf16.mxu0 %v5224
    %6923 = vmatpush1.bf16.msra.mxu0 %v5223
    %6924 = vmatprep.subr.bf16.mxu0 %v5232
    %6925 = vmatpush1.bf16.msra.mxu0 %v5231
    %6926 = vmatprep.subr.bf16.mxu0 %v5240
    %6927 = vmatpush1.bf16.msra.mxu0 %v5239
    %6928 = vmatprep.subr.bf16.mxu0 %v5248
    %6929 = vmatpush1.bf16.msra.mxu0 %v5247
    %6930 = vmatprep.subr.bf16.mxu0 %v5256
    %6931 = vmatpush1.bf16.msra.mxu0 %v5255
    %6932 = vmatprep.mubr.bf16.mxu0 %v98
    %6933 = vmatmul.mubr.bf16.gmra.mrb[0].mxu0 %v97
    %v6934 = vpop.f32.mrb[0].mxu0
    %v6935 = vadd.f32 %v6894, %v6934
    %v6936 = vpop.f32.mrb[0].mxu0
    %v6937 = vadd.f32 %v6896, %v6936
    %v6938 = vpop.f32.mrb[0].mxu0
    %v6939 = vpop.f32.mrb[0].mxu0
    %6940 = vdwg.mxu0
    %6941 = vmatprep.subr.bf16.mxu0 %v4242
    %6942 = vmatpush1.bf16.msra.mxu0 %v4241
    %6943 = vmatprep.subr.bf16.mxu0 %v4250
    %6944 = vmatpush1.bf16.msra.mxu0 %v4249
    %6945 = vmatprep.subr.bf16.mxu0 %v4258
    %6946 = vmatpush1.bf16.msra.mxu0 %v4257
    %6947 = vmatprep.subr.bf16.mxu0 %v4266
    %6948 = vmatpush1.bf16.msra.mxu0 %v4265
    %6949 = vmatprep.subr.bf16.mxu0 %v4274
    %6950 = vmatpush1.bf16.msra.mxu0 %v4273
    %6951 = vmatprep.subr.bf16.mxu0 %v4282
    %6952 = vmatpush1.bf16.msra.mxu0 %v4281
    %6953 = vmatprep.subr.bf16.mxu0 %v4290
    %6954 = vmatpush1.bf16.msra.mxu0 %v4289
    %6955 = vmatprep.subr.bf16.mxu0 %v4298
    %6956 = vmatpush1.bf16.msra.mxu0 %v4297
    %6957 = vmatprep.subr.bf16.mxu0 %v4306
    %6958 = vmatpush1.bf16.msra.mxu0 %v4305
    %6959 = vmatprep.subr.bf16.mxu0 %v4314
    %6960 = vmatpush1.bf16.msra.mxu0 %v4313
    %6961 = vmatprep.subr.bf16.mxu0 %v4322
    %6962 = vmatpush1.bf16.msra.mxu0 %v4321
    %6963 = vmatprep.subr.bf16.mxu0 %v4330
    %6964 = vmatpush1.bf16.msra.mxu0 %v4329
    %6965 = vmatprep.subr.bf16.mxu0 %v4338
    %6966 = vmatpush1.bf16.msra.mxu0 %v4337
    %6967 = vmatprep.subr.bf16.mxu0 %v4346
    %6968 = vmatpush1.bf16.msra.mxu0 %v4345
    %6969 = vmatprep.subr.bf16.mxu0 %v4354
    %6970 = vmatpush1.bf16.msra.mxu0 %v4353
    %6971 = vmatprep.subr.bf16.mxu0 %v4362
    %6972 = vmatpush1.bf16.msra.mxu0 %v4361
    %6973 = vmatprep.mubr.bf16.mxu0 %v84
    %6974 = vmatmul.mubr.bf16.gmra.mrb[0].mxu0 %v83
    %v6975 = vpop.f32.mrb[0].mxu0
    %v6976 = vadd.f32 %v1144, %v6975
    %v6977 = vpop.f32.mrb[0].mxu0
    %v6978 = vadd.f32 %v1148, %v6977
    %v6979 = vpop.f32.mrb[0].mxu0
    %v6980 = vpop.f32.mrb[0].mxu0
    %6981 = vdwg.mxu0
    %6982 = vmatprep.subr.bf16.mxu0 %v4370
    %6983 = vmatpush1.bf16.msra.mxu0 %v4369
    %6984 = vmatprep.subr.bf16.mxu0 %v4378
    %6985 = vmatpush1.bf16.msra.mxu0 %v4377
    %6986 = vmatprep.subr.bf16.mxu0 %v4386
    %6987 = vmatpush1.bf16.msra.mxu0 %v4385
    %6988 = vmatprep.subr.bf16.mxu0 %v4394
    %6989 = vmatpush1.bf16.msra.mxu0 %v4393
    %6990 = vmatprep.subr.bf16.mxu0 %v4402
    %6991 = vmatpush1.bf16.msra.mxu0 %v4401
    %6992 = vmatprep.subr.bf16.mxu0 %v4410
    %6993 = vmatpush1.bf16.msra.mxu0 %v4409
    %6994 = vmatprep.subr.bf16.mxu0 %v4418
    %6995 = vmatpush1.bf16.msra.mxu0 %v4417
    %6996 = vmatprep.subr.bf16.mxu0 %v4426
    %6997 = vmatpush1.bf16.msra.mxu0 %v4425
    %6998 = vmatprep.subr.bf16.mxu0 %v4434
    %6999 = vmatpush1.bf16.msra.mxu0 %v4433
    %7000 = vmatprep.subr.bf16.mxu0 %v4442
    %7001 = vmatpush1.bf16.msra.mxu0 %v4441
    %7002 = vmatprep.subr.bf16.mxu0 %v4450
    %7003 = vmatpush1.bf16.msra.mxu0 %v4449
    %7004 = vmatprep.subr.bf16.mxu0 %v4458
    %7005 = vmatpush1.bf16.msra.mxu0 %v4457
    %7006 = vmatprep.subr.bf16.mxu0 %v4466
    %7007 = vmatpush1.bf16.msra.mxu0 %v4465
    %7008 = vmatprep.subr.bf16.mxu0 %v4474
    %7009 = vmatpush1.bf16.msra.mxu0 %v4473
    %7010 = vmatprep.subr.bf16.mxu0 %v4482
    %7011 = vmatpush1.bf16.msra.mxu0 %v4481
    %7012 = vmatprep.subr.bf16.mxu0 %v4490
    %7013 = vmatpush1.bf16.msra.mxu0 %v4489
    %7014 = vmatprep.mubr.bf16.mxu0 %v86
    %7015 = vmatmul.mubr.bf16.gmra.mrb[0].mxu0 %v85
    %v7016 = vpop.f32.mrb[0].mxu0
    %v7017 = vadd.f32 %v6976, %v7016
    %v7018 = vpop.f32.mrb[0].mxu0
    %v7019 = vadd.f32 %v6978, %v7018
    %v7020 = vpop.f32.mrb[0].mxu0
    %v7021 = vpop.f32.mrb[0].mxu0
    %7022 = vdwg.mxu0
    %7023 = vmatprep.subr.bf16.mxu0 %v4498
    %7024 = vmatpush1.bf16.msra.mxu0 %v4497
    %7025 = vmatprep.subr.bf16.mxu0 %v4506
    %7026 = vmatpush1.bf16.msra.mxu0 %v4505
    %7027 = vmatprep.subr.bf16.mxu0 %v4514
    %7028 = vmatpush1.bf16.msra.mxu0 %v4513
    %7029 = vmatprep.subr.bf16.mxu0 %v4522
    %7030 = vmatpush1.bf16.msra.mxu0 %v4521
    %7031 = vmatprep.subr.bf16.mxu0 %v4530
    %7032 = vmatpush1.bf16.msra.mxu0 %v4529
    %7033 = vmatprep.subr.bf16.mxu0 %v4538
    %7034 = vmatpush1.bf16.msra.mxu0 %v4537
    %7035 = vmatprep.subr.bf16.mxu0 %v4546
    %7036 = vmatpush1.bf16.msra.mxu0 %v4545
    %7037 = vmatprep.subr.bf16.mxu0 %v4554
    %7038 = vmatpush1.bf16.msra.mxu0 %v4553
    %7039 = vmatprep.subr.bf16.mxu0 %v4562
    %7040 = vmatpush1.bf16.msra.mxu0 %v4561
    %7041 = vmatprep.subr.bf16.mxu0 %v4570
    %7042 = vmatpush1.bf16.msra.mxu0 %v4569
    %7043 = vmatprep.subr.bf16.mxu0 %v4578
    %7044 = vmatpush1.bf16.msra.mxu0 %v4577
    %7045 = vmatprep.subr.bf16.mxu0 %v4586
    %7046 = vmatpush1.bf16.msra.mxu0 %v4585
    %7047 = vmatprep.subr.bf16.mxu0 %v4594
    %7048 = vmatpush1.bf16.msra.mxu0 %v4593
    %7049 = vmatprep.subr.bf16.mxu0 %v4602
    %7050 = vmatpush1.bf16.msra.mxu0 %v4601
    %7051 = vmatprep.subr.bf16.mxu0 %v4610
    %7052 = vmatpush1.bf16.msra.mxu0 %v4609
    %7053 = vmatprep.subr.bf16.mxu0 %v4618
    %7054 = vmatpush1.bf16.msra.mxu0 %v4617
    %7055 = vmatprep.mubr.bf16.mxu0 %v88
    %7056 = vmatmul.mubr.bf16.gmra.mrb[0].mxu0 %v87
    %v7057 = vpop.f32.mrb[0].mxu0
    %v7058 = vadd.f32 %v7017, %v7057
    %v7059 = vpop.f32.mrb[0].mxu0
    %v7060 = vadd.f32 %v7019, %v7059
    %v7061 = vpop.f32.mrb[0].mxu0
    %v7062 = vpop.f32.mrb[0].mxu0
    %7063 = vdwg.mxu0
    %7064 = vmatprep.subr.bf16.mxu0 %v4626
    %7065 = vmatpush1.bf16.msra.mxu0 %v4625
    %7066 = vmatprep.subr.bf16.mxu0 %v4634
    %7067 = vmatpush1.bf16.msra.mxu0 %v4633
    %7068 = vmatprep.subr.bf16.mxu0 %v4642
    %7069 = vmatpush1.bf16.msra.mxu0 %v4641
    %7070 = vmatprep.subr.bf16.mxu0 %v4650
    %7071 = vmatpush1.bf16.msra.mxu0 %v4649
    %7072 = vmatprep.subr.bf16.mxu0 %v4658
    %7073 = vmatpush1.bf16.msra.mxu0 %v4657
    %7074 = vmatprep.subr.bf16.mxu0 %v4666
    %7075 = vmatpush1.bf16.msra.mxu0 %v4665
    %7076 = vmatprep.subr.bf16.mxu0 %v4674
    %7077 = vmatpush1.bf16.msra.mxu0 %v4673
    %7078 = vmatprep.subr.bf16.mxu0 %v4682
    %7079 = vmatpush1.bf16.msra.mxu0 %v4681
    %7080 = vmatprep.subr.bf16.mxu0 %v4690
    %7081 = vmatpush1.bf16.msra.mxu0 %v4689
    %7082 = vmatprep.subr.bf16.mxu0 %v4698
    %7083 = vmatpush1.bf16.msra.mxu0 %v4697
    %7084 = vmatprep.subr.bf16.mxu0 %v4706
    %7085 = vmatpush1.bf16.msra.mxu0 %v4705
    %7086 = vmatprep.subr.bf16.mxu0 %v4714
    %7087 = vmatpush1.bf16.msra.mxu0 %v4713
    %7088 = vmatprep.subr.bf16.mxu0 %v4722
    %7089 = vmatpush1.bf16.msra.mxu0 %v4721
    %7090 = vmatprep.subr.bf16.mxu0 %v4730
    %7091 = vmatpush1.bf16.msra.mxu0 %v4729
    %7092 = vmatprep.subr.bf16.mxu0 %v4738
    %7093 = vmatpush1.bf16.msra.mxu0 %v4737
    %7094 = vmatprep.subr.bf16.mxu0 %v4746
    %7095 = vmatpush1.bf16.msra.mxu0 %v4745
    %7096 = vmatprep.mubr.bf16.mxu0 %v90
    %7097 = vmatmul.mubr.bf16.gmra.mrb[0].mxu0 %v89
    %v7098 = vpop.f32.mrb[0].mxu0
    %v7099 = vadd.f32 %v7058, %v7098
    %v7100 = vpop.f32.mrb[0].mxu0
    %v7101 = vadd.f32 %v7060, %v7100
    %v7102 = vpop.f32.mrb[0].mxu0
    %v7103 = vpop.f32.mrb[0].mxu0
    %7104 = vdwg.mxu0
    %7105 = vmatprep.subr.bf16.mxu0 %v4754
    %7106 = vmatpush1.bf16.msra.mxu0 %v4753
    %7107 = vmatprep.subr.bf16.mxu0 %v4762
    %7108 = vmatpush1.bf16.msra.mxu0 %v4761
    %7109 = vmatprep.subr.bf16.mxu0 %v4770
    %7110 = vmatpush1.bf16.msra.mxu0 %v4769
    %7111 = vmatprep.subr.bf16.mxu0 %v4778
    %7112 = vmatpush1.bf16.msra.mxu0 %v4777
    %7113 = vmatprep.subr.bf16.mxu0 %v4786
    %7114 = vmatpush1.bf16.msra.mxu0 %v4785
    %7115 = vmatprep.subr.bf16.mxu0 %v4794
    %7116 = vmatpush1.bf16.msra.mxu0 %v4793
    %7117 = vmatprep.subr.bf16.mxu0 %v4802
    %7118 = vmatpush1.bf16.msra.mxu0 %v4801
    %7119 = vmatprep.subr.bf16.mxu0 %v4810
    %7120 = vmatpush1.bf16.msra.mxu0 %v4809
    %7121 = vmatprep.subr.bf16.mxu0 %v4818
    %7122 = vmatpush1.bf16.msra.mxu0 %v4817
    %7123 = vmatprep.subr.bf16.mxu0 %v4826
    %7124 = vmatpush1.bf16.msra.mxu0 %v4825
    %7125 = vmatprep.subr.bf16.mxu0 %v4834
    %7126 = vmatpush1.bf16.msra.mxu0 %v4833
    %7127 = vmatprep.subr.bf16.mxu0 %v4842
    %7128 = vmatpush1.bf16.msra.mxu0 %v4841
    %7129 = vmatprep.subr.bf16.mxu0 %v4850
    %7130 = vmatpush1.bf16.msra.mxu0 %v4849
    %7131 = vmatprep.subr.bf16.mxu0 %v4858
    %7132 = vmatpush1.bf16.msra.mxu0 %v4857
    %7133 = vmatprep.subr.bf16.mxu0 %v4866
    %7134 = vmatpush1.bf16.msra.mxu0 %v4865
    %7135 = vmatprep.subr.bf16.mxu0 %v4874
    %7136 = vmatpush1.bf16.msra.mxu0 %v4873
    %7137 = vmatprep.mubr.bf16.mxu0 %v92
    %7138 = vmatmul.mubr.bf16.gmra.mrb[0].mxu0 %v91
    %v7139 = vpop.f32.mrb[0].mxu0
    %v7140 = vadd.f32 %v7099, %v7139
    %v7141 = vpop.f32.mrb[0].mxu0
    %v7142 = vadd.f32 %v7101, %v7141
    %v7143 = vpop.f32.mrb[0].mxu0
    %v7144 = vpop.f32.mrb[0].mxu0
    %7145 = vdwg.mxu0
    %7146 = vmatprep.subr.bf16.mxu0 %v4882
    %7147 = vmatpush1.bf16.msra.mxu0 %v4881
    %7148 = vmatprep.subr.bf16.mxu0 %v4890
    %7149 = vmatpush1.bf16.msra.mxu0 %v4889
    %7150 = vmatprep.subr.bf16.mxu0 %v4898
    %7151 = vmatpush1.bf16.msra.mxu0 %v4897
    %7152 = vmatprep.subr.bf16.mxu0 %v4906
    %7153 = vmatpush1.bf16.msra.mxu0 %v4905
    %7154 = vmatprep.subr.bf16.mxu0 %v4914
    %7155 = vmatpush1.bf16.msra.mxu0 %v4913
    %7156 = vmatprep.subr.bf16.mxu0 %v4922
    %7157 = vmatpush1.bf16.msra.mxu0 %v4921
    %7158 = vmatprep.subr.bf16.mxu0 %v4930
    %7159 = vmatpush1.bf16.msra.mxu0 %v4929
    %7160 = vmatprep.subr.bf16.mxu0 %v4938
    %7161 = vmatpush1.bf16.msra.mxu0 %v4937
    %7162 = vmatprep.subr.bf16.mxu0 %v4946
    %7163 = vmatpush1.bf16.msra.mxu0 %v4945
    %7164 = vmatprep.subr.bf16.mxu0 %v4954
    %7165 = vmatpush1.bf16.msra.mxu0 %v4953
    %7166 = vmatprep.subr.bf16.mxu0 %v4962
    %7167 = vmatpush1.bf16.msra.mxu0 %v4961
    %7168 = vmatprep.subr.bf16.mxu0 %v4970
    %7169 = vmatpush1.bf16.msra.mxu0 %v4969
    %7170 = vmatprep.subr.bf16.mxu0 %v4978
    %7171 = vmatpush1.bf16.msra.mxu0 %v4977
    %7172 = vmatprep.subr.bf16.mxu0 %v4986
    %7173 = vmatpush1.bf16.msra.mxu0 %v4985
    %7174 = vmatprep.subr.bf16.mxu0 %v4994
    %7175 = vmatpush1.bf16.msra.mxu0 %v4993
    %7176 = vmatprep.subr.bf16.mxu0 %v5002
    %7177 = vmatpush1.bf16.msra.mxu0 %v5001
    %7178 = vmatprep.mubr.bf16.mxu0 %v94
    %7179 = vmatmul.mubr.bf16.gmra.mrb[0].mxu0 %v93
    %v7180 = vpop.f32.mrb[0].mxu0
    %v7181 = vadd.f32 %v7140, %v7180
    %v7182 = vpop.f32.mrb[0].mxu0
    %v7183 = vadd.f32 %v7142, %v7182
    %v7184 = vpop.f32.mrb[0].mxu0
    %v7185 = vpop.f32.mrb[0].mxu0
    %7186 = vdwg.mxu0
    %7187 = vmatprep.subr.bf16.mxu0 %v5010
    %7188 = vmatpush1.bf16.msra.mxu0 %v5009
    %7189 = vmatprep.subr.bf16.mxu0 %v5018
    %7190 = vmatpush1.bf16.msra.mxu0 %v5017
    %7191 = vmatprep.subr.bf16.mxu0 %v5026
    %7192 = vmatpush1.bf16.msra.mxu0 %v5025
    %7193 = vmatprep.subr.bf16.mxu0 %v5034
    %7194 = vmatpush1.bf16.msra.mxu0 %v5033
    %7195 = vmatprep.subr.bf16.mxu0 %v5042
    %7196 = vmatpush1.bf16.msra.mxu0 %v5041
    %7197 = vmatprep.subr.bf16.mxu0 %v5050
    %7198 = vmatpush1.bf16.msra.mxu0 %v5049
    %7199 = vmatprep.subr.bf16.mxu0 %v5058
    %7200 = vmatpush1.bf16.msra.mxu0 %v5057
    %7201 = vmatprep.subr.bf16.mxu0 %v5066
    %7202 = vmatpush1.bf16.msra.mxu0 %v5065
    %7203 = vmatprep.subr.bf16.mxu0 %v5074
    %7204 = vmatpush1.bf16.msra.mxu0 %v5073
    %7205 = vmatprep.subr.bf16.mxu0 %v5082
    %7206 = vmatpush1.bf16.msra.mxu0 %v5081
    %7207 = vmatprep.subr.bf16.mxu0 %v5090
    %7208 = vmatpush1.bf16.msra.mxu0 %v5089
    %7209 = vmatprep.subr.bf16.mxu0 %v5098
    %7210 = vmatpush1.bf16.msra.mxu0 %v5097
    %7211 = vmatprep.subr.bf16.mxu0 %v5106
    %7212 = vmatpush1.bf16.msra.mxu0 %v5105
    %7213 = vmatprep.subr.bf16.mxu0 %v5114
    %7214 = vmatpush1.bf16.msra.mxu0 %v5113
    %7215 = vmatprep.subr.bf16.mxu0 %v5122
    %7216 = vmatpush1.bf16.msra.mxu0 %v5121
    %7217 = vmatprep.subr.bf16.mxu0 %v5130
    %7218 = vmatpush1.bf16.msra.mxu0 %v5129
    %7219 = vmatprep.mubr.bf16.mxu0 %v96
    %7220 = vmatmul.mubr.bf16.gmra.mrb[0].mxu0 %v95
    %v7221 = vpop.f32.mrb[0].mxu0
    %v7222 = vadd.f32 %v7181, %v7221
    %v7223 = vpop.f32.mrb[0].mxu0
    %v7224 = vadd.f32 %v7183, %v7223
    %v7225 = vpop.f32.mrb[0].mxu0
    %v7226 = vpop.f32.mrb[0].mxu0
    %7227 = vdwg.mxu0
    %7228 = vmatprep.subr.bf16.mxu0 %v5138
    %7229 = vmatpush1.bf16.msra.mxu0 %v5137
    %7230 = vmatprep.subr.bf16.mxu0 %v5146
    %7231 = vmatpush1.bf16.msra.mxu0 %v5145
    %7232 = vmatprep.subr.bf16.mxu0 %v5154
    %7233 = vmatpush1.bf16.msra.mxu0 %v5153
    %7234 = vmatprep.subr.bf16.mxu0 %v5162
    %7235 = vmatpush1.bf16.msra.mxu0 %v5161
    %7236 = vmatprep.subr.bf16.mxu0 %v5170
    %7237 = vmatpush1.bf16.msra.mxu0 %v5169
    %7238 = vmatprep.subr.bf16.mxu0 %v5178
    %7239 = vmatpush1.bf16.msra.mxu0 %v5177
    %7240 = vmatprep.subr.bf16.mxu0 %v5186
    %7241 = vmatpush1.bf16.msra.mxu0 %v5185
    %7242 = vmatprep.subr.bf16.mxu0 %v5194
    %7243 = vmatpush1.bf16.msra.mxu0 %v5193
    %7244 = vmatprep.subr.bf16.mxu0 %v5202
    %7245 = vmatpush1.bf16.msra.mxu0 %v5201
    %7246 = vmatprep.subr.bf16.mxu0 %v5210
    %7247 = vmatpush1.bf16.msra.mxu0 %v5209
    %7248 = vmatprep.subr.bf16.mxu0 %v5218
    %7249 = vmatpush1.bf16.msra.mxu0 %v5217
    %7250 = vmatprep.subr.bf16.mxu0 %v5226
    %7251 = vmatpush1.bf16.msra.mxu0 %v5225
    %7252 = vmatprep.subr.bf16.mxu0 %v5234
    %7253 = vmatpush1.bf16.msra.mxu0 %v5233
    %7254 = vmatprep.subr.bf16.mxu0 %v5242
    %7255 = vmatpush1.bf16.msra.mxu0 %v5241
    %7256 = vmatprep.subr.bf16.mxu0 %v5250
    %7257 = vmatpush1.bf16.msra.mxu0 %v5249
    %7258 = vmatprep.subr.bf16.mxu0 %v5258
    %7259 = vmatpush1.bf16.msra.mxu0 %v5257
    %7260 = vmatprep.mubr.bf16.mxu0 %v98
    %7261 = vmatmul.mubr.bf16.gmra.mrb[0].mxu0 %v97
    %v7262 = vpop.f32.mrb[0].mxu0
    %v7263 = vadd.f32 %v7222, %v7262
    %v7264 = vpop.f32.mrb[0].mxu0
    %v7265 = vadd.f32 %v7224, %v7264
    %v7266 = vpop.f32.mrb[0].mxu0
    %v7267 = vpop.f32.mrb[0].mxu0
    %7268 = vdwg.mxu0
    %7269 = vmatprep.subr.bf16.mxu0 %v4244
    %7270 = vmatpush1.bf16.msra.mxu0 %v4243
    %7271 = vmatprep.subr.bf16.mxu0 %v4252
    %7272 = vmatpush1.bf16.msra.mxu0 %v4251
    %7273 = vmatprep.subr.bf16.mxu0 %v4260
    %7274 = vmatpush1.bf16.msra.mxu0 %v4259
    %7275 = vmatprep.subr.bf16.mxu0 %v4268
    %7276 = vmatpush1.bf16.msra.mxu0 %v4267
    %7277 = vmatprep.subr.bf16.mxu0 %v4276
    %7278 = vmatpush1.bf16.msra.mxu0 %v4275
    %7279 = vmatprep.subr.bf16.mxu0 %v4284
    %7280 = vmatpush1.bf16.msra.mxu0 %v4283
    %7281 = vmatprep.subr.bf16.mxu0 %v4292
    %7282 = vmatpush1.bf16.msra.mxu0 %v4291
    %7283 = vmatprep.subr.bf16.mxu0 %v4300
    %7284 = vmatpush1.bf16.msra.mxu0 %v4299
    %7285 = vmatprep.subr.bf16.mxu0 %v4308
    %7286 = vmatpush1.bf16.msra.mxu0 %v4307
    %7287 = vmatprep.subr.bf16.mxu0 %v4316
    %7288 = vmatpush1.bf16.msra.mxu0 %v4315
    %7289 = vmatprep.subr.bf16.mxu0 %v4324
    %7290 = vmatpush1.bf16.msra.mxu0 %v4323
    %7291 = vmatprep.subr.bf16.mxu0 %v4332
    %7292 = vmatpush1.bf16.msra.mxu0 %v4331
    %7293 = vmatprep.subr.bf16.mxu0 %v4340
    %7294 = vmatpush1.bf16.msra.mxu0 %v4339
    %7295 = vmatprep.subr.bf16.mxu0 %v4348
    %7296 = vmatpush1.bf16.msra.mxu0 %v4347
    %7297 = vmatprep.subr.bf16.mxu0 %v4356
    %7298 = vmatpush1.bf16.msra.mxu0 %v4355
    %7299 = vmatprep.subr.bf16.mxu0 %v4364
    %7300 = vmatpush1.bf16.msra.mxu0 %v4363
    %7301 = vmatprep.mubr.bf16.mxu0 %v84
    %7302 = vmatmul.mubr.bf16.gmra.mrb[0].mxu0 %v83
    %v7303 = vpop.f32.mrb[0].mxu0
    %v7304 = vadd.f32 %v1152, %v7303
    %v7305 = vpop.f32.mrb[0].mxu0
    %v7306 = vadd.f32 %v1156, %v7305
    %v7307 = vpop.f32.mrb[0].mxu0
    %v7308 = vpop.f32.mrb[0].mxu0
    %7309 = vdwg.mxu0
    %7310 = vmatprep.subr.bf16.mxu0 %v4372
    %7311 = vmatpush1.bf16.msra.mxu0 %v4371
    %7312 = vmatprep.subr.bf16.mxu0 %v4380
    %7313 = vmatpush1.bf16.msra.mxu0 %v4379
    %7314 = vmatprep.subr.bf16.mxu0 %v4388
    %7315 = vmatpush1.bf16.msra.mxu0 %v4387
    %7316 = vmatprep.subr.bf16.mxu0 %v4396
    %7317 = vmatpush1.bf16.msra.mxu0 %v4395
    %7318 = vmatprep.subr.bf16.mxu0 %v4404
    %7319 = vmatpush1.bf16.msra.mxu0 %v4403
    %7320 = vmatprep.subr.bf16.mxu0 %v4412
    %7321 = vmatpush1.bf16.msra.mxu0 %v4411
    %7322 = vmatprep.subr.bf16.mxu0 %v4420
    %7323 = vmatpush1.bf16.msra.mxu0 %v4419
    %7324 = vmatprep.subr.bf16.mxu0 %v4428
    %7325 = vmatpush1.bf16.msra.mxu0 %v4427
    %7326 = vmatprep.subr.bf16.mxu0 %v4436
    %7327 = vmatpush1.bf16.msra.mxu0 %v4435
    %7328 = vmatprep.subr.bf16.mxu0 %v4444
    %7329 = vmatpush1.bf16.msra.mxu0 %v4443
    %7330 = vmatprep.subr.bf16.mxu0 %v4452
    %7331 = vmatpush1.bf16.msra.mxu0 %v4451
    %7332 = vmatprep.subr.bf16.mxu0 %v4460
    %7333 = vmatpush1.bf16.msra.mxu0 %v4459
    %7334 = vmatprep.subr.bf16.mxu0 %v4468
    %7335 = vmatpush1.bf16.msra.mxu0 %v4467
    %7336 = vmatprep.subr.bf16.mxu0 %v4476
    %7337 = vmatpush1.bf16.msra.mxu0 %v4475
    %7338 = vmatprep.subr.bf16.mxu0 %v4484
    %7339 = vmatpush1.bf16.msra.mxu0 %v4483
    %7340 = vmatprep.subr.bf16.mxu0 %v4492
    %7341 = vmatpush1.bf16.msra.mxu0 %v4491
    %7342 = vmatprep.mubr.bf16.mxu0 %v86
    %7343 = vmatmul.mubr.bf16.gmra.mrb[0].mxu0 %v85
    %v7344 = vpop.f32.mrb[0].mxu0
    %v7345 = vadd.f32 %v7304, %v7344
    %v7346 = vpop.f32.mrb[0].mxu0
    %v7347 = vadd.f32 %v7306, %v7346
    %v7348 = vpop.f32.mrb[0].mxu0
    %v7349 = vpop.f32.mrb[0].mxu0
    %7350 = vdwg.mxu0
    %7351 = vmatprep.subr.bf16.mxu0 %v4500
    %7352 = vmatpush1.bf16.msra.mxu0 %v4499
    %7353 = vmatprep.subr.bf16.mxu0 %v4508
    %7354 = vmatpush1.bf16.msra.mxu0 %v4507
    %7355 = vmatprep.subr.bf16.mxu0 %v4516
    %7356 = vmatpush1.bf16.msra.mxu0 %v4515
    %7357 = vmatprep.subr.bf16.mxu0 %v4524
    %7358 = vmatpush1.bf16.msra.mxu0 %v4523
    %7359 = vmatprep.subr.bf16.mxu0 %v4532
    %7360 = vmatpush1.bf16.msra.mxu0 %v4531
    %7361 = vmatprep.subr.bf16.mxu0 %v4540
    %7362 = vmatpush1.bf16.msra.mxu0 %v4539
    %7363 = vmatprep.subr.bf16.mxu0 %v4548
    %7364 = vmatpush1.bf16.msra.mxu0 %v4547
    %7365 = vmatprep.subr.bf16.mxu0 %v4556
    %7366 = vmatpush1.bf16.msra.mxu0 %v4555
    %7367 = vmatprep.subr.bf16.mxu0 %v4564
    %7368 = vmatpush1.bf16.msra.mxu0 %v4563
    %7369 = vmatprep.subr.bf16.mxu0 %v4572
    %7370 = vmatpush1.bf16.msra.mxu0 %v4571
    %7371 = vmatprep.subr.bf16.mxu0 %v4580
    %7372 = vmatpush1.bf16.msra.mxu0 %v4579
    %7373 = vmatprep.subr.bf16.mxu0 %v4588
    %7374 = vmatpush1.bf16.msra.mxu0 %v4587
    %7375 = vmatprep.subr.bf16.mxu0 %v4596
    %7376 = vmatpush1.bf16.msra.mxu0 %v4595
    %7377 = vmatprep.subr.bf16.mxu0 %v4604
    %7378 = vmatpush1.bf16.msra.mxu0 %v4603
    %7379 = vmatprep.subr.bf16.mxu0 %v4612
    %7380 = vmatpush1.bf16.msra.mxu0 %v4611
    %7381 = vmatprep.subr.bf16.mxu0 %v4620
    %7382 = vmatpush1.bf16.msra.mxu0 %v4619
    %7383 = vmatprep.mubr.bf16.mxu0 %v88
    %7384 = vmatmul.mubr.bf16.gmra.mrb[0].mxu0 %v87
    %v7385 = vpop.f32.mrb[0].mxu0
    %v7386 = vadd.f32 %v7345, %v7385
    %v7387 = vpop.f32.mrb[0].mxu0
    %v7388 = vadd.f32 %v7347, %v7387
    %v7389 = vpop.f32.mrb[0].mxu0
    %v7390 = vpop.f32.mrb[0].mxu0
    %7391 = vdwg.mxu0
    %7392 = vmatprep.subr.bf16.mxu0 %v4628
    %7393 = vmatpush1.bf16.msra.mxu0 %v4627
    %7394 = vmatprep.subr.bf16.mxu0 %v4636
    %7395 = vmatpush1.bf16.msra.mxu0 %v4635
    %7396 = vmatprep.subr.bf16.mxu0 %v4644
    %7397 = vmatpush1.bf16.msra.mxu0 %v4643
    %7398 = vmatprep.subr.bf16.mxu0 %v4652
    %7399 = vmatpush1.bf16.msra.mxu0 %v4651
    %7400 = vmatprep.subr.bf16.mxu0 %v4660
    %7401 = vmatpush1.bf16.msra.mxu0 %v4659
    %7402 = vmatprep.subr.bf16.mxu0 %v4668
    %7403 = vmatpush1.bf16.msra.mxu0 %v4667
    %7404 = vmatprep.subr.bf16.mxu0 %v4676
    %7405 = vmatpush1.bf16.msra.mxu0 %v4675
    %7406 = vmatprep.subr.bf16.mxu0 %v4684
    %7407 = vmatpush1.bf16.msra.mxu0 %v4683
    %7408 = vmatprep.subr.bf16.mxu0 %v4692
    %7409 = vmatpush1.bf16.msra.mxu0 %v4691
    %7410 = vmatprep.subr.bf16.mxu0 %v4700
    %7411 = vmatpush1.bf16.msra.mxu0 %v4699
    %7412 = vmatprep.subr.bf16.mxu0 %v4708
    %7413 = vmatpush1.bf16.msra.mxu0 %v4707
    %7414 = vmatprep.subr.bf16.mxu0 %v4716
    %7415 = vmatpush1.bf16.msra.mxu0 %v4715
    %7416 = vmatprep.subr.bf16.mxu0 %v4724
    %7417 = vmatpush1.bf16.msra.mxu0 %v4723
    %7418 = vmatprep.subr.bf16.mxu0 %v4732
    %7419 = vmatpush1.bf16.msra.mxu0 %v4731
    %7420 = vmatprep.subr.bf16.mxu0 %v4740
    %7421 = vmatpush1.bf16.msra.mxu0 %v4739
    %7422 = vmatprep.subr.bf16.mxu0 %v4748
    %7423 = vmatpush1.bf16.msra.mxu0 %v4747
    %7424 = vmatprep.mubr.bf16.mxu0 %v90
    %7425 = vmatmul.mubr.bf16.gmra.mrb[0].mxu0 %v89
    %v7426 = vpop.f32.mrb[0].mxu0
    %v7427 = vadd.f32 %v7386, %v7426
    %v7428 = vpop.f32.mrb[0].mxu0
    %v7429 = vadd.f32 %v7388, %v7428
    %v7430 = vpop.f32.mrb[0].mxu0
    %v7431 = vpop.f32.mrb[0].mxu0
    %7432 = vdwg.mxu0
    %7433 = vmatprep.subr.bf16.mxu0 %v4756
    %7434 = vmatpush1.bf16.msra.mxu0 %v4755
    %7435 = vmatprep.subr.bf16.mxu0 %v4764
    %7436 = vmatpush1.bf16.msra.mxu0 %v4763
    %7437 = vmatprep.subr.bf16.mxu0 %v4772
    %7438 = vmatpush1.bf16.msra.mxu0 %v4771
    %7439 = vmatprep.subr.bf16.mxu0 %v4780
    %7440 = vmatpush1.bf16.msra.mxu0 %v4779
    %7441 = vmatprep.subr.bf16.mxu0 %v4788
    %7442 = vmatpush1.bf16.msra.mxu0 %v4787
    %7443 = vmatprep.subr.bf16.mxu0 %v4796
    %7444 = vmatpush1.bf16.msra.mxu0 %v4795
    %7445 = vmatprep.subr.bf16.mxu0 %v4804
    %7446 = vmatpush1.bf16.msra.mxu0 %v4803
    %7447 = vmatprep.subr.bf16.mxu0 %v4812
    %7448 = vmatpush1.bf16.msra.mxu0 %v4811
    %7449 = vmatprep.subr.bf16.mxu0 %v4820
    %7450 = vmatpush1.bf16.msra.mxu0 %v4819
    %7451 = vmatprep.subr.bf16.mxu0 %v4828
    %7452 = vmatpush1.bf16.msra.mxu0 %v4827
    %7453 = vmatprep.subr.bf16.mxu0 %v4836
    %7454 = vmatpush1.bf16.msra.mxu0 %v4835
    %7455 = vmatprep.subr.bf16.mxu0 %v4844
    %7456 = vmatpush1.bf16.msra.mxu0 %v4843
    %7457 = vmatprep.subr.bf16.mxu0 %v4852
    %7458 = vmatpush1.bf16.msra.mxu0 %v4851
    %7459 = vmatprep.subr.bf16.mxu0 %v4860
    %7460 = vmatpush1.bf16.msra.mxu0 %v4859
    %7461 = vmatprep.subr.bf16.mxu0 %v4868
    %7462 = vmatpush1.bf16.msra.mxu0 %v4867
    %7463 = vmatprep.subr.bf16.mxu0 %v4876
    %7464 = vmatpush1.bf16.msra.mxu0 %v4875
    %7465 = vmatprep.mubr.bf16.mxu0 %v92
    %7466 = vmatmul.mubr.bf16.gmra.mrb[0].mxu0 %v91
    %v7467 = vpop.f32.mrb[0].mxu0
    %v7468 = vadd.f32 %v7427, %v7467
    %v7469 = vpop.f32.mrb[0].mxu0
    %v7470 = vadd.f32 %v7429, %v7469
    %v7471 = vpop.f32.mrb[0].mxu0
    %v7472 = vpop.f32.mrb[0].mxu0
    %7473 = vdwg.mxu0
    %7474 = vmatprep.subr.bf16.mxu0 %v4884
    %7475 = vmatpush1.bf16.msra.mxu0 %v4883
    %7476 = vmatprep.subr.bf16.mxu0 %v4892
    %7477 = vmatpush1.bf16.msra.mxu0 %v4891
    %7478 = vmatprep.subr.bf16.mxu0 %v4900
    %7479 = vmatpush1.bf16.msra.mxu0 %v4899
    %7480 = vmatprep.subr.bf16.mxu0 %v4908
    %7481 = vmatpush1.bf16.msra.mxu0 %v4907
    %7482 = vmatprep.subr.bf16.mxu0 %v4916
    %7483 = vmatpush1.bf16.msra.mxu0 %v4915
    %7484 = vmatprep.subr.bf16.mxu0 %v4924
    %7485 = vmatpush1.bf16.msra.mxu0 %v4923
    %7486 = vmatprep.subr.bf16.mxu0 %v4932
    %7487 = vmatpush1.bf16.msra.mxu0 %v4931
    %7488 = vmatprep.subr.bf16.mxu0 %v4940
    %7489 = vmatpush1.bf16.msra.mxu0 %v4939
    %7490 = vmatprep.subr.bf16.mxu0 %v4948
    %7491 = vmatpush1.bf16.msra.mxu0 %v4947
    %7492 = vmatprep.subr.bf16.mxu0 %v4956
    %7493 = vmatpush1.bf16.msra.mxu0 %v4955
    %7494 = vmatprep.subr.bf16.mxu0 %v4964
    %7495 = vmatpush1.bf16.msra.mxu0 %v4963
    %7496 = vmatprep.subr.bf16.mxu0 %v4972
    %7497 = vmatpush1.bf16.msra.mxu0 %v4971
    %7498 = vmatprep.subr.bf16.mxu0 %v4980
    %7499 = vmatpush1.bf16.msra.mxu0 %v4979
    %7500 = vmatprep.subr.bf16.mxu0 %v4988
    %7501 = vmatpush1.bf16.msra.mxu0 %v4987
    %7502 = vmatprep.subr.bf16.mxu0 %v4996
    %7503 = vmatpush1.bf16.msra.mxu0 %v4995
    %7504 = vmatprep.subr.bf16.mxu0 %v5004
    %7505 = vmatpush1.bf16.msra.mxu0 %v5003
    %7506 = vmatprep.mubr.bf16.mxu0 %v94
    %7507 = vmatmul.mubr.bf16.gmra.mrb[0].mxu0 %v93
    %v7508 = vpop.f32.mrb[0].mxu0
    %v7509 = vadd.f32 %v7468, %v7508
    %v7510 = vpop.f32.mrb[0].mxu0
    %v7511 = vadd.f32 %v7470, %v7510
    %v7512 = vpop.f32.mrb[0].mxu0
    %v7513 = vpop.f32.mrb[0].mxu0
    %7514 = vdwg.mxu0
    %7515 = vmatprep.subr.bf16.mxu0 %v5012
    %7516 = vmatpush1.bf16.msra.mxu0 %v5011
    %7517 = vmatprep.subr.bf16.mxu0 %v5020
    %7518 = vmatpush1.bf16.msra.mxu0 %v5019
    %7519 = vmatprep.subr.bf16.mxu0 %v5028
    %7520 = vmatpush1.bf16.msra.mxu0 %v5027
    %7521 = vmatprep.subr.bf16.mxu0 %v5036
    %7522 = vmatpush1.bf16.msra.mxu0 %v5035
    %7523 = vmatprep.subr.bf16.mxu0 %v5044
    %7524 = vmatpush1.bf16.msra.mxu0 %v5043
    %7525 = vmatprep.subr.bf16.mxu0 %v5052
    %7526 = vmatpush1.bf16.msra.mxu0 %v5051
    %7527 = vmatprep.subr.bf16.mxu0 %v5060
    %7528 = vmatpush1.bf16.msra.mxu0 %v5059
    %7529 = vmatprep.subr.bf16.mxu0 %v5068
    %7530 = vmatpush1.bf16.msra.mxu0 %v5067
    %7531 = vmatprep.subr.bf16.mxu0 %v5076
    %7532 = vmatpush1.bf16.msra.mxu0 %v5075
    %7533 = vmatprep.subr.bf16.mxu0 %v5084
    %7534 = vmatpush1.bf16.msra.mxu0 %v5083
    %7535 = vmatprep.subr.bf16.mxu0 %v5092
    %7536 = vmatpush1.bf16.msra.mxu0 %v5091
    %7537 = vmatprep.subr.bf16.mxu0 %v5100
    %7538 = vmatpush1.bf16.msra.mxu0 %v5099
    %7539 = vmatprep.subr.bf16.mxu0 %v5108
    %7540 = vmatpush1.bf16.msra.mxu0 %v5107
    %7541 = vmatprep.subr.bf16.mxu0 %v5116
    %7542 = vmatpush1.bf16.msra.mxu0 %v5115
    %7543 = vmatprep.subr.bf16.mxu0 %v5124
    %7544 = vmatpush1.bf16.msra.mxu0 %v5123
    %7545 = vmatprep.subr.bf16.mxu0 %v5132
    %7546 = vmatpush1.bf16.msra.mxu0 %v5131
    %7547 = vmatprep.mubr.bf16.mxu0 %v96
    %7548 = vmatmul.mubr.bf16.gmra.mrb[0].mxu0 %v95
    %v7549 = vpop.f32.mrb[0].mxu0
    %v7550 = vadd.f32 %v7509, %v7549
    %v7551 = vpop.f32.mrb[0].mxu0
    %v7552 = vadd.f32 %v7511, %v7551
    %v7553 = vpop.f32.mrb[0].mxu0
    %v7554 = vpop.f32.mrb[0].mxu0
    %7555 = vdwg.mxu0
    %7556 = vmatprep.subr.bf16.mxu0 %v5140
    %7557 = vmatpush1.bf16.msra.mxu0 %v5139
    %7558 = vmatprep.subr.bf16.mxu0 %v5148
    %7559 = vmatpush1.bf16.msra.mxu0 %v5147
    %7560 = vmatprep.subr.bf16.mxu0 %v5156
    %7561 = vmatpush1.bf16.msra.mxu0 %v5155
    %7562 = vmatprep.subr.bf16.mxu0 %v5164
    %7563 = vmatpush1.bf16.msra.mxu0 %v5163
    %7564 = vmatprep.subr.bf16.mxu0 %v5172
    %7565 = vmatpush1.bf16.msra.mxu0 %v5171
    %7566 = vmatprep.subr.bf16.mxu0 %v5180
    %7567 = vmatpush1.bf16.msra.mxu0 %v5179
    %7568 = vmatprep.subr.bf16.mxu0 %v5188
    %7569 = vmatpush1.bf16.msra.mxu0 %v5187
    %7570 = vmatprep.subr.bf16.mxu0 %v5196
    %7571 = vmatpush1.bf16.msra.mxu0 %v5195
    %7572 = vmatprep.subr.bf16.mxu0 %v5204
    %7573 = vmatpush1.bf16.msra.mxu0 %v5203
    %7574 = vmatprep.subr.bf16.mxu0 %v5212
    %7575 = vmatpush1.bf16.msra.mxu0 %v5211
    %7576 = vmatprep.subr.bf16.mxu0 %v5220
    %7577 = vmatpush1.bf16.msra.mxu0 %v5219
    %7578 = vmatprep.subr.bf16.mxu0 %v5228
    %7579 = vmatpush1.bf16.msra.mxu0 %v5227
    %7580 = vmatprep.subr.bf16.mxu0 %v5236
    %7581 = vmatpush1.bf16.msra.mxu0 %v5235
    %7582 = vmatprep.subr.bf16.mxu0 %v5244
    %7583 = vmatpush1.bf16.msra.mxu0 %v5243
    %7584 = vmatprep.subr.bf16.mxu0 %v5252
    %7585 = vmatpush1.bf16.msra.mxu0 %v5251
    %7586 = vmatprep.subr.bf16.mxu0 %v5260
    %7587 = vmatpush1.bf16.msra.mxu0 %v5259
    %7588 = vmatprep.mubr.bf16.mxu0 %v98
    %7589 = vmatmul.mubr.bf16.gmra.mrb[0].mxu0 %v97
    %v7590 = vpop.f32.mrb[0].mxu0
    %v7591 = vadd.f32 %v7550, %v7590
    %v7592 = vpop.f32.mrb[0].mxu0
    %v7593 = vadd.f32 %v7552, %v7592
    %v7594 = vpop.f32.mrb[0].mxu0
    %v7595 = vpop.f32.mrb[0].mxu0
    %7596 = vdwg.mxu0
    %v7597 = vmax.f32 %v6607, 0.0
    %v7598 = vmax.f32 %v6609, 0.0
    %v7599 = vmax.f32 %v6935, 0.0
    %v7600 = vmax.f32 %v6937, 0.0
    %v7601 = vmax.f32 %v7263, 0.0
    %v7602 = vmax.f32 %v7265, 0.0
    %v7603 = vmax.f32 %v7591, 0.0
    %v7604 = vmax.f32 %v7593, 0.0
    %v7605 = vpack.c.bf16 %v7597, %v7597
    %v7606 = vpack.c.bf16 %v7598, %v7598
    %v7607 = vpack.c.bf16 %v7599, %v7599
    %v7608 = vpack.c.bf16 %v7600, %v7600
    %v7609 = vpack.c.bf16 %v7601, %v7601
    %v7610 = vpack.c.bf16 %v7602, %v7602
    %v7611 = vpack.c.bf16 %v7603, %v7603
    %v7612 = vpack.c.bf16 %v7604, %v7604
    %v7613 = vld [vmem:[#allocation5] sm:$0xff]
    %v7614 = vld [vmem:[#allocation5 + $0x8] sm:$0xff]
    %v7615 = vld [vmem:[#allocation5 + $0x10] sm:$0xff]
    %v7616 = vld [vmem:[#allocation5 + $0x18] sm:$0xff]
    %v7617 = vld [vmem:[#allocation5 + $0x20] sm:$0xff]
    %v7618 = vld [vmem:[#allocation5 + $0x28] sm:$0xff]
    %v7619 = vld [vmem:[#allocation5 + $0x30] sm:$0xff]
    %v7620 = vld [vmem:[#allocation5 + $0x38] sm:$0xff]
    %v7621 = vld [vmem:[#allocation5 + $0x40] sm:$0xff]
    %v7622 = vld [vmem:[#allocation5 + $0x48] sm:$0xff]
    %v7623 = vld [vmem:[#allocation5 + $0x50] sm:$0xff]
    %v7624 = vld [vmem:[#allocation5 + $0x58] sm:$0xff]
    %v7625 = vld [vmem:[#allocation5 + $0x60] sm:$0xff]
    %v7626 = vld [vmem:[#allocation5 + $0x68] sm:$0xff]
    %v7627 = vld [vmem:[#allocation5 + $0x70] sm:$0xff]
    %v7628 = vld [vmem:[#allocation5 + $0x78] sm:$0xff]
    %v7629 = vld [vmem:[#allocation5 + $0x80] sm:$0xff]
    %v7630 = vld [vmem:[#allocation5 + $0x88] sm:$0xff]
    %v7631 = vld [vmem:[#allocation5 + $0x90] sm:$0xff]
    %v7632 = vld [vmem:[#allocation5 + $0x98] sm:$0xff]
    %v7633 = vld [vmem:[#allocation5 + $0xa0] sm:$0xff]
    %v7634 = vld [vmem:[#allocation5 + $0xa8] sm:$0xff]
    %v7635 = vld [vmem:[#allocation5 + $0xb0] sm:$0xff]
    %v7636 = vld [vmem:[#allocation5 + $0xb8] sm:$0xff]
    %v7637 = vld [vmem:[#allocation5 + $0xc0] sm:$0xff]
    %v7638 = vld [vmem:[#allocation5 + $0xc8] sm:$0xff]
    %v7639 = vld [vmem:[#allocation5 + $0xd0] sm:$0xff]
    %v7640 = vld [vmem:[#allocation5 + $0xd8] sm:$0xff]
    %v7641 = vld [vmem:[#allocation5 + $0xe0] sm:$0xff]
    %v7642 = vld [vmem:[#allocation5 + $0xe8] sm:$0xff]
    %v7643 = vld [vmem:[#allocation5 + $0xf0] sm:$0xff]
    %v7644 = vld [vmem:[#allocation5 + $0xf8] sm:$0xff]
    %v7645 = vld [vmem:[#allocation5 + $0x100] sm:$0xff]
    %v7646 = vld [vmem:[#allocation5 + $0x108] sm:$0xff]
    %v7647 = vld [vmem:[#allocation5 + $0x110] sm:$0xff]
    %v7648 = vld [vmem:[#allocation5 + $0x118] sm:$0xff]
    %v7649 = vld [vmem:[#allocation5 + $0x120] sm:$0xff]
    %v7650 = vld [vmem:[#allocation5 + $0x128] sm:$0xff]
    %v7651 = vld [vmem:[#allocation5 + $0x130] sm:$0xff]
    %v7652 = vld [vmem:[#allocation5 + $0x138] sm:$0xff]
    %v7653 = vld [vmem:[#allocation5 + $0x140] sm:$0xff]
    %v7654 = vld [vmem:[#allocation5 + $0x148] sm:$0xff]
    %v7655 = vld [vmem:[#allocation5 + $0x150] sm:$0xff]
    %v7656 = vld [vmem:[#allocation5 + $0x158] sm:$0xff]
    %v7657 = vld [vmem:[#allocation5 + $0x160] sm:$0xff]
    %v7658 = vld [vmem:[#allocation5 + $0x168] sm:$0xff]
    %v7659 = vld [vmem:[#allocation5 + $0x170] sm:$0xff]
    %v7660 = vld [vmem:[#allocation5 + $0x178] sm:$0xff]
    %v7661 = vld [vmem:[#allocation5 + $0x180] sm:$0xff]
    %v7662 = vld [vmem:[#allocation5 + $0x188] sm:$0xff]
    %v7663 = vld [vmem:[#allocation5 + $0x190] sm:$0xff]
    %v7664 = vld [vmem:[#allocation5 + $0x198] sm:$0xff]
    %v7665 = vld [vmem:[#allocation5 + $0x1a0] sm:$0xff]
    %v7666 = vld [vmem:[#allocation5 + $0x1a8] sm:$0xff]
    %v7667 = vld [vmem:[#allocation5 + $0x1b0] sm:$0xff]
    %v7668 = vld [vmem:[#allocation5 + $0x1b8] sm:$0xff]
    %v7669 = vld [vmem:[#allocation5 + $0x1c0] sm:$0xff]
    %v7670 = vld [vmem:[#allocation5 + $0x1c8] sm:$0xff]
    %v7671 = vld [vmem:[#allocation5 + $0x1d0] sm:$0xff]
    %v7672 = vld [vmem:[#allocation5 + $0x1d8] sm:$0xff]
    %v7673 = vld [vmem:[#allocation5 + $0x1e0] sm:$0xff]
    %v7674 = vld [vmem:[#allocation5 + $0x1e8] sm:$0xff]
    %v7675 = vld [vmem:[#allocation5 + $0x1f0] sm:$0xff]
    %v7676 = vld [vmem:[#allocation5 + $0x1f8] sm:$0xff]
    %v7677 = vld [vmem:[#allocation5 + $0x200] sm:$0xff]
    %v7678 = vld [vmem:[#allocation5 + $0x208] sm:$0xff]
    %v7679 = vld [vmem:[#allocation5 + $0x210] sm:$0xff]
    %v7680 = vld [vmem:[#allocation5 + $0x218] sm:$0xff]
    %v7681 = vld [vmem:[#allocation5 + $0x220] sm:$0xff]
    %v7682 = vld [vmem:[#allocation5 + $0x228] sm:$0xff]
    %v7683 = vld [vmem:[#allocation5 + $0x230] sm:$0xff]
    %v7684 = vld [vmem:[#allocation5 + $0x238] sm:$0xff]
    %v7685 = vld [vmem:[#allocation5 + $0x240] sm:$0xff]
    %v7686 = vld [vmem:[#allocation5 + $0x248] sm:$0xff]
    %v7687 = vld [vmem:[#allocation5 + $0x250] sm:$0xff]
    %v7688 = vld [vmem:[#allocation5 + $0x258] sm:$0xff]
    %v7689 = vld [vmem:[#allocation5 + $0x260] sm:$0xff]
    %v7690 = vld [vmem:[#allocation5 + $0x268] sm:$0xff]
    %v7691 = vld [vmem:[#allocation5 + $0x270] sm:$0xff]
    %v7692 = vld [vmem:[#allocation5 + $0x278] sm:$0xff]
    %v7693 = vld [vmem:[#allocation5 + $0x280] sm:$0xff]
    %v7694 = vld [vmem:[#allocation5 + $0x288] sm:$0xff]
    %v7695 = vld [vmem:[#allocation5 + $0x290] sm:$0xff]
    %v7696 = vld [vmem:[#allocation5 + $0x298] sm:$0xff]
    %v7697 = vld [vmem:[#allocation5 + $0x2a0] sm:$0xff]
    %v7698 = vld [vmem:[#allocation5 + $0x2a8] sm:$0xff]
    %v7699 = vld [vmem:[#allocation5 + $0x2b0] sm:$0xff]
    %v7700 = vld [vmem:[#allocation5 + $0x2b8] sm:$0xff]
    %v7701 = vld [vmem:[#allocation5 + $0x2c0] sm:$0xff]
    %v7702 = vld [vmem:[#allocation5 + $0x2c8] sm:$0xff]
    %v7703 = vld [vmem:[#allocation5 + $0x2d0] sm:$0xff]
    %v7704 = vld [vmem:[#allocation5 + $0x2d8] sm:$0xff]
    %v7705 = vld [vmem:[#allocation5 + $0x2e0] sm:$0xff]
    %v7706 = vld [vmem:[#allocation5 + $0x2e8] sm:$0xff]
    %v7707 = vld [vmem:[#allocation5 + $0x2f0] sm:$0xff]
    %v7708 = vld [vmem:[#allocation5 + $0x2f8] sm:$0xff]
    %v7709 = vld [vmem:[#allocation5 + $0x300] sm:$0xff]
    %v7710 = vld [vmem:[#allocation5 + $0x308] sm:$0xff]
    %v7711 = vld [vmem:[#allocation5 + $0x310] sm:$0xff]
    %v7712 = vld [vmem:[#allocation5 + $0x318] sm:$0xff]
    %v7713 = vld [vmem:[#allocation5 + $0x320] sm:$0xff]
    %v7714 = vld [vmem:[#allocation5 + $0x328] sm:$0xff]
    %v7715 = vld [vmem:[#allocation5 + $0x330] sm:$0xff]
    %v7716 = vld [vmem:[#allocation5 + $0x338] sm:$0xff]
    %v7717 = vld [vmem:[#allocation5 + $0x340] sm:$0xff]
    %v7718 = vld [vmem:[#allocation5 + $0x348] sm:$0xff]
    %v7719 = vld [vmem:[#allocation5 + $0x350] sm:$0xff]
    %v7720 = vld [vmem:[#allocation5 + $0x358] sm:$0xff]
    %v7721 = vld [vmem:[#allocation5 + $0x360] sm:$0xff]
    %v7722 = vld [vmem:[#allocation5 + $0x368] sm:$0xff]
    %v7723 = vld [vmem:[#allocation5 + $0x370] sm:$0xff]
    %v7724 = vld [vmem:[#allocation5 + $0x378] sm:$0xff]
    %v7725 = vld [vmem:[#allocation5 + $0x380] sm:$0xff]
    %v7726 = vld [vmem:[#allocation5 + $0x388] sm:$0xff]
    %v7727 = vld [vmem:[#allocation5 + $0x390] sm:$0xff]
    %v7728 = vld [vmem:[#allocation5 + $0x398] sm:$0xff]
    %v7729 = vld [vmem:[#allocation5 + $0x3a0] sm:$0xff]
    %v7730 = vld [vmem:[#allocation5 + $0x3a8] sm:$0xff]
    %v7731 = vld [vmem:[#allocation5 + $0x3b0] sm:$0xff]
    %v7732 = vld [vmem:[#allocation5 + $0x3b8] sm:$0xff]
    %v7733 = vld [vmem:[#allocation5 + $0x3c0] sm:$0xff]
    %v7734 = vld [vmem:[#allocation5 + $0x3c8] sm:$0xff]
    %v7735 = vld [vmem:[#allocation5 + $0x3d0] sm:$0xff]
    %v7736 = vld [vmem:[#allocation5 + $0x3d8] sm:$0xff]
    %v7737 = vld [vmem:[#allocation5 + $0x3e0] sm:$0xff]
    %v7738 = vld [vmem:[#allocation5 + $0x3e8] sm:$0xff]
    %v7739 = vld [vmem:[#allocation5 + $0x3f0] sm:$0xff]
    %v7740 = vld [vmem:[#allocation5 + $0x3f8] sm:$0xff]
    %v7741 = vld [vmem:[#allocation5 + $0x400] sm:$0xff]
    %v7742 = vld [vmem:[#allocation5 + $0x408] sm:$0xff]
    %v7743 = vld [vmem:[#allocation5 + $0x410] sm:$0xff]
    %v7744 = vld [vmem:[#allocation5 + $0x418] sm:$0xff]
    %v7745 = vld [vmem:[#allocation5 + $0x420] sm:$0xff]
    %v7746 = vld [vmem:[#allocation5 + $0x428] sm:$0xff]
    %v7747 = vld [vmem:[#allocation5 + $0x430] sm:$0xff]
    %v7748 = vld [vmem:[#allocation5 + $0x438] sm:$0xff]
    %v7749 = vld [vmem:[#allocation5 + $0x440] sm:$0xff]
    %v7750 = vld [vmem:[#allocation5 + $0x448] sm:$0xff]
    %v7751 = vld [vmem:[#allocation5 + $0x450] sm:$0xff]
    %v7752 = vld [vmem:[#allocation5 + $0x458] sm:$0xff]
    %v7753 = vld [vmem:[#allocation5 + $0x460] sm:$0xff]
    %v7754 = vld [vmem:[#allocation5 + $0x468] sm:$0xff]
    %v7755 = vld [vmem:[#allocation5 + $0x470] sm:$0xff]
    %v7756 = vld [vmem:[#allocation5 + $0x478] sm:$0xff]
    %v7757 = vld [vmem:[#allocation5 + $0x480] sm:$0xff]
    %v7758 = vld [vmem:[#allocation5 + $0x488] sm:$0xff]
    %v7759 = vld [vmem:[#allocation5 + $0x490] sm:$0xff]
    %v7760 = vld [vmem:[#allocation5 + $0x498] sm:$0xff]
    %v7761 = vld [vmem:[#allocation5 + $0x4a0] sm:$0xff]
    %v7762 = vld [vmem:[#allocation5 + $0x4a8] sm:$0xff]
    %v7763 = vld [vmem:[#allocation5 + $0x4b0] sm:$0xff]
    %v7764 = vld [vmem:[#allocation5 + $0x4b8] sm:$0xff]
    %v7765 = vld [vmem:[#allocation5 + $0x4c0] sm:$0xff]
    %v7766 = vld [vmem:[#allocation5 + $0x4c8] sm:$0xff]
    %v7767 = vld [vmem:[#allocation5 + $0x4d0] sm:$0xff]
    %v7768 = vld [vmem:[#allocation5 + $0x4d8] sm:$0xff]
    %v7769 = vld [vmem:[#allocation5 + $0x4e0] sm:$0xff]
    %v7770 = vld [vmem:[#allocation5 + $0x4e8] sm:$0xff]
    %v7771 = vld [vmem:[#allocation5 + $0x4f0] sm:$0xff]
    %v7772 = vld [vmem:[#allocation5 + $0x4f8] sm:$0xff]
    %v7773 = vld [vmem:[#allocation5 + $0x500] sm:$0xff]
    %v7774 = vld [vmem:[#allocation5 + $0x508] sm:$0xff]
    %v7775 = vld [vmem:[#allocation5 + $0x510] sm:$0xff]
    %v7776 = vld [vmem:[#allocation5 + $0x518] sm:$0xff]
    %v7777 = vld [vmem:[#allocation5 + $0x520] sm:$0xff]
    %v7778 = vld [vmem:[#allocation5 + $0x528] sm:$0xff]
    %v7779 = vld [vmem:[#allocation5 + $0x530] sm:$0xff]
    %v7780 = vld [vmem:[#allocation5 + $0x538] sm:$0xff]
    %v7781 = vld [vmem:[#allocation5 + $0x540] sm:$0xff]
    %v7782 = vld [vmem:[#allocation5 + $0x548] sm:$0xff]
    %v7783 = vld [vmem:[#allocation5 + $0x550] sm:$0xff]
    %v7784 = vld [vmem:[#allocation5 + $0x558] sm:$0xff]
    %v7785 = vld [vmem:[#allocation5 + $0x560] sm:$0xff]
    %v7786 = vld [vmem:[#allocation5 + $0x568] sm:$0xff]
    %v7787 = vld [vmem:[#allocation5 + $0x570] sm:$0xff]
    %v7788 = vld [vmem:[#allocation5 + $0x578] sm:$0xff]
    %v7789 = vld [vmem:[#allocation5 + $0x580] sm:$0xff]
    %v7790 = vld [vmem:[#allocation5 + $0x588] sm:$0xff]
    %v7791 = vld [vmem:[#allocation5 + $0x590] sm:$0xff]
    %v7792 = vld [vmem:[#allocation5 + $0x598] sm:$0xff]
    %v7793 = vld [vmem:[#allocation5 + $0x5a0] sm:$0xff]
    %v7794 = vld [vmem:[#allocation5 + $0x5a8] sm:$0xff]
    %v7795 = vld [vmem:[#allocation5 + $0x5b0] sm:$0xff]
    %v7796 = vld [vmem:[#allocation5 + $0x5b8] sm:$0xff]
    %v7797 = vld [vmem:[#allocation5 + $0x5c0] sm:$0xff]
    %v7798 = vld [vmem:[#allocation5 + $0x5c8] sm:$0xff]
    %v7799 = vld [vmem:[#allocation5 + $0x5d0] sm:$0xff]
    %v7800 = vld [vmem:[#allocation5 + $0x5d8] sm:$0xff]
    %v7801 = vld [vmem:[#allocation5 + $0x5e0] sm:$0xff]
    %v7802 = vld [vmem:[#allocation5 + $0x5e8] sm:$0xff]
    %v7803 = vld [vmem:[#allocation5 + $0x5f0] sm:$0xff]
    %v7804 = vld [vmem:[#allocation5 + $0x5f8] sm:$0xff]
    %v7805 = vld [vmem:[#allocation5 + $0x600] sm:$0xff]
    %v7806 = vld [vmem:[#allocation5 + $0x608] sm:$0xff]
    %v7807 = vld [vmem:[#allocation5 + $0x610] sm:$0xff]
    %v7808 = vld [vmem:[#allocation5 + $0x618] sm:$0xff]
    %v7809 = vld [vmem:[#allocation5 + $0x620] sm:$0xff]
    %v7810 = vld [vmem:[#allocation5 + $0x628] sm:$0xff]
    %v7811 = vld [vmem:[#allocation5 + $0x630] sm:$0xff]
    %v7812 = vld [vmem:[#allocation5 + $0x638] sm:$0xff]
    %v7813 = vld [vmem:[#allocation5 + $0x640] sm:$0xff]
    %v7814 = vld [vmem:[#allocation5 + $0x648] sm:$0xff]
    %v7815 = vld [vmem:[#allocation5 + $0x650] sm:$0xff]
    %v7816 = vld [vmem:[#allocation5 + $0x658] sm:$0xff]
    %v7817 = vld [vmem:[#allocation5 + $0x660] sm:$0xff]
    %v7818 = vld [vmem:[#allocation5 + $0x668] sm:$0xff]
    %v7819 = vld [vmem:[#allocation5 + $0x670] sm:$0xff]
    %v7820 = vld [vmem:[#allocation5 + $0x678] sm:$0xff]
    %v7821 = vld [vmem:[#allocation5 + $0x680] sm:$0xff]
    %v7822 = vld [vmem:[#allocation5 + $0x688] sm:$0xff]
    %v7823 = vld [vmem:[#allocation5 + $0x690] sm:$0xff]
    %v7824 = vld [vmem:[#allocation5 + $0x698] sm:$0xff]
    %v7825 = vld [vmem:[#allocation5 + $0x6a0] sm:$0xff]
    %v7826 = vld [vmem:[#allocation5 + $0x6a8] sm:$0xff]
    %v7827 = vld [vmem:[#allocation5 + $0x6b0] sm:$0xff]
    %v7828 = vld [vmem:[#allocation5 + $0x6b8] sm:$0xff]
    %v7829 = vld [vmem:[#allocation5 + $0x6c0] sm:$0xff]
    %v7830 = vld [vmem:[#allocation5 + $0x6c8] sm:$0xff]
    %v7831 = vld [vmem:[#allocation5 + $0x6d0] sm:$0xff]
    %v7832 = vld [vmem:[#allocation5 + $0x6d8] sm:$0xff]
    %v7833 = vld [vmem:[#allocation5 + $0x6e0] sm:$0xff]
    %v7834 = vld [vmem:[#allocation5 + $0x6e8] sm:$0xff]
    %v7835 = vld [vmem:[#allocation5 + $0x6f0] sm:$0xff]
    %v7836 = vld [vmem:[#allocation5 + $0x6f8] sm:$0xff]
    %v7837 = vld [vmem:[#allocation5 + $0x700] sm:$0xff]
    %v7838 = vld [vmem:[#allocation5 + $0x708] sm:$0xff]
    %v7839 = vld [vmem:[#allocation5 + $0x710] sm:$0xff]
    %v7840 = vld [vmem:[#allocation5 + $0x718] sm:$0xff]
    %v7841 = vld [vmem:[#allocation5 + $0x720] sm:$0xff]
    %v7842 = vld [vmem:[#allocation5 + $0x728] sm:$0xff]
    %v7843 = vld [vmem:[#allocation5 + $0x730] sm:$0xff]
    %v7844 = vld [vmem:[#allocation5 + $0x738] sm:$0xff]
    %v7845 = vld [vmem:[#allocation5 + $0x740] sm:$0xff]
    %v7846 = vld [vmem:[#allocation5 + $0x748] sm:$0xff]
    %v7847 = vld [vmem:[#allocation5 + $0x750] sm:$0xff]
    %v7848 = vld [vmem:[#allocation5 + $0x758] sm:$0xff]
    %v7849 = vld [vmem:[#allocation5 + $0x760] sm:$0xff]
    %v7850 = vld [vmem:[#allocation5 + $0x768] sm:$0xff]
    %v7851 = vld [vmem:[#allocation5 + $0x770] sm:$0xff]
    %v7852 = vld [vmem:[#allocation5 + $0x778] sm:$0xff]
    %v7853 = vld [vmem:[#allocation5 + $0x780] sm:$0xff]
    %v7854 = vld [vmem:[#allocation5 + $0x788] sm:$0xff]
    %v7855 = vld [vmem:[#allocation5 + $0x790] sm:$0xff]
    %v7856 = vld [vmem:[#allocation5 + $0x798] sm:$0xff]
    %v7857 = vld [vmem:[#allocation5 + $0x7a0] sm:$0xff]
    %v7858 = vld [vmem:[#allocation5 + $0x7a8] sm:$0xff]
    %v7859 = vld [vmem:[#allocation5 + $0x7b0] sm:$0xff]
    %v7860 = vld [vmem:[#allocation5 + $0x7b8] sm:$0xff]
    %v7861 = vld [vmem:[#allocation5 + $0x7c0] sm:$0xff]
    %v7862 = vld [vmem:[#allocation5 + $0x7c8] sm:$0xff]
    %v7863 = vld [vmem:[#allocation5 + $0x7d0] sm:$0xff]
    %v7864 = vld [vmem:[#allocation5 + $0x7d8] sm:$0xff]
    %v7865 = vld [vmem:[#allocation5 + $0x7e0] sm:$0xff]
    %v7866 = vld [vmem:[#allocation5 + $0x7e8] sm:$0xff]
    %v7867 = vld [vmem:[#allocation5 + $0x7f0] sm:$0xff]
    %v7868 = vld [vmem:[#allocation5 + $0x7f8] sm:$0xff]
    %v7869 = vld [vmem:[%s4] sm:$0xf]
    %v7871 = vlaneseq
    %v7872 = vshrl.u32 %v7871, 7
    %v7873 = vsub.s32 0, %v7872
    %v7874 = vrot.slane %v7869, %v7873
    %v7875 = vlaneseq
    %v7876 = vshrl.u32 %v7875, 7
    %v7877 = vsub.s32 1, %v7876
    %v7878 = vrot.slane %v7869, %v7877
    %v7879 = vlaneseq
    %v7880 = vshrl.u32 %v7879, 7
    %v7881 = vsub.s32 2, %v7880
    %v7882 = vrot.slane %v7869, %v7881
    %v7883 = vlaneseq
    %v7884 = vshrl.u32 %v7883, 7
    %v7885 = vsub.s32 3, %v7884
    %v7886 = vrot.slane %v7869, %v7885
    %v8147 = vunpack.c.l.b16 %v7613
    %v8148 = vunpack.c.h.b16 %v7613
    %v8149 = vunpack.c.l.b16 %v7614
    %v8150 = vunpack.c.h.b16 %v7614
    %v8151 = vunpack.c.l.b16 %v7615
    %v8152 = vunpack.c.h.b16 %v7615
    %v8153 = vunpack.c.l.b16 %v7616
    %v8154 = vunpack.c.h.b16 %v7616
    %v8155 = vunpack.c.l.b16 %v7617
    %v8156 = vunpack.c.h.b16 %v7617
    %v8157 = vunpack.c.l.b16 %v7618
    %v8158 = vunpack.c.h.b16 %v7618
    %v8159 = vunpack.c.l.b16 %v7619
    %v8160 = vunpack.c.h.b16 %v7619
    %v8161 = vunpack.c.l.b16 %v7620
    %v8162 = vunpack.c.h.b16 %v7620
    %v8163 = vunpack.c.l.b16 %v7621
    %v8164 = vunpack.c.h.b16 %v7621
    %v8165 = vunpack.c.l.b16 %v7622
    %v8166 = vunpack.c.h.b16 %v7622
    %v8167 = vunpack.c.l.b16 %v7623
    %v8168 = vunpack.c.h.b16 %v7623
    %v8169 = vunpack.c.l.b16 %v7624
    %v8170 = vunpack.c.h.b16 %v7624
    %v8171 = vunpack.c.l.b16 %v7625
    %v8172 = vunpack.c.h.b16 %v7625
    %v8173 = vunpack.c.l.b16 %v7626
    %v8174 = vunpack.c.h.b16 %v7626
    %v8175 = vunpack.c.l.b16 %v7627
    %v8176 = vunpack.c.h.b16 %v7627
    %v8177 = vunpack.c.l.b16 %v7628
    %v8178 = vunpack.c.h.b16 %v7628
    %v8179 = vunpack.c.l.b16 %v7629
    %v8180 = vunpack.c.h.b16 %v7629
    %v8181 = vunpack.c.l.b16 %v7630
    %v8182 = vunpack.c.h.b16 %v7630
    %v8183 = vunpack.c.l.b16 %v7631
    %v8184 = vunpack.c.h.b16 %v7631
    %v8185 = vunpack.c.l.b16 %v7632
    %v8186 = vunpack.c.h.b16 %v7632
    %v8187 = vunpack.c.l.b16 %v7633
    %v8188 = vunpack.c.h.b16 %v7633
    %v8189 = vunpack.c.l.b16 %v7634
    %v8190 = vunpack.c.h.b16 %v7634
    %v8191 = vunpack.c.l.b16 %v7635
    %v8192 = vunpack.c.h.b16 %v7635
    %v8193 = vunpack.c.l.b16 %v7636
    %v8194 = vunpack.c.h.b16 %v7636
    %v8195 = vunpack.c.l.b16 %v7637
    %v8196 = vunpack.c.h.b16 %v7637
    %v8197 = vunpack.c.l.b16 %v7638
    %v8198 = vunpack.c.h.b16 %v7638
    %v8199 = vunpack.c.l.b16 %v7639
    %v8200 = vunpack.c.h.b16 %v7639
    %v8201 = vunpack.c.l.b16 %v7640
    %v8202 = vunpack.c.h.b16 %v7640
    %v8203 = vunpack.c.l.b16 %v7641
    %v8204 = vunpack.c.h.b16 %v7641
    %v8205 = vunpack.c.l.b16 %v7642
    %v8206 = vunpack.c.h.b16 %v7642
    %v8207 = vunpack.c.l.b16 %v7643
    %v8208 = vunpack.c.h.b16 %v7643
    %v8209 = vunpack.c.l.b16 %v7644
    %v8210 = vunpack.c.h.b16 %v7644
    %v8211 = vunpack.c.l.b16 %v7645
    %v8212 = vunpack.c.h.b16 %v7645
    %v8213 = vunpack.c.l.b16 %v7646
    %v8214 = vunpack.c.h.b16 %v7646
    %v8215 = vunpack.c.l.b16 %v7647
    %v8216 = vunpack.c.h.b16 %v7647
    %v8217 = vunpack.c.l.b16 %v7648
    %v8218 = vunpack.c.h.b16 %v7648
    %v8219 = vunpack.c.l.b16 %v7649
    %v8220 = vunpack.c.h.b16 %v7649
    %v8221 = vunpack.c.l.b16 %v7650
    %v8222 = vunpack.c.h.b16 %v7650
    %v8223 = vunpack.c.l.b16 %v7651
    %v8224 = vunpack.c.h.b16 %v7651
    %v8225 = vunpack.c.l.b16 %v7652
    %v8226 = vunpack.c.h.b16 %v7652
    %v8227 = vunpack.c.l.b16 %v7653
    %v8228 = vunpack.c.h.b16 %v7653
    %v8229 = vunpack.c.l.b16 %v7654
    %v8230 = vunpack.c.h.b16 %v7654
    %v8231 = vunpack.c.l.b16 %v7655
    %v8232 = vunpack.c.h.b16 %v7655
    %v8233 = vunpack.c.l.b16 %v7656
    %v8234 = vunpack.c.h.b16 %v7656
    %v8235 = vunpack.c.l.b16 %v7657
    %v8236 = vunpack.c.h.b16 %v7657
    %v8237 = vunpack.c.l.b16 %v7658
    %v8238 = vunpack.c.h.b16 %v7658
    %v8239 = vunpack.c.l.b16 %v7659
    %v8240 = vunpack.c.h.b16 %v7659
    %v8241 = vunpack.c.l.b16 %v7660
    %v8242 = vunpack.c.h.b16 %v7660
    %v8243 = vunpack.c.l.b16 %v7661
    %v8244 = vunpack.c.h.b16 %v7661
    %v8245 = vunpack.c.l.b16 %v7662
    %v8246 = vunpack.c.h.b16 %v7662
    %v8247 = vunpack.c.l.b16 %v7663
    %v8248 = vunpack.c.h.b16 %v7663
    %v8249 = vunpack.c.l.b16 %v7664
    %v8250 = vunpack.c.h.b16 %v7664
    %v8251 = vunpack.c.l.b16 %v7665
    %v8252 = vunpack.c.h.b16 %v7665
    %v8253 = vunpack.c.l.b16 %v7666
    %v8254 = vunpack.c.h.b16 %v7666
    %v8255 = vunpack.c.l.b16 %v7667
    %v8256 = vunpack.c.h.b16 %v7667
    %v8257 = vunpack.c.l.b16 %v7668
    %v8258 = vunpack.c.h.b16 %v7668
    %v8259 = vunpack.c.l.b16 %v7669
    %v8260 = vunpack.c.h.b16 %v7669
    %v8261 = vunpack.c.l.b16 %v7670
    %v8262 = vunpack.c.h.b16 %v7670
    %v8263 = vunpack.c.l.b16 %v7671
    %v8264 = vunpack.c.h.b16 %v7671
    %v8265 = vunpack.c.l.b16 %v7672
    %v8266 = vunpack.c.h.b16 %v7672
    %v8267 = vunpack.c.l.b16 %v7673
    %v8268 = vunpack.c.h.b16 %v7673
    %v8269 = vunpack.c.l.b16 %v7674
    %v8270 = vunpack.c.h.b16 %v7674
    %v8271 = vunpack.c.l.b16 %v7675
    %v8272 = vunpack.c.h.b16 %v7675
    %v8273 = vunpack.c.l.b16 %v7676
    %v8274 = vunpack.c.h.b16 %v7676
    %v8275 = vunpack.c.l.b16 %v7677
    %v8276 = vunpack.c.h.b16 %v7677
    %v8277 = vunpack.c.l.b16 %v7678
    %v8278 = vunpack.c.h.b16 %v7678
    %v8279 = vunpack.c.l.b16 %v7679
    %v8280 = vunpack.c.h.b16 %v7679
    %v8281 = vunpack.c.l.b16 %v7680
    %v8282 = vunpack.c.h.b16 %v7680
    %v8283 = vunpack.c.l.b16 %v7681
    %v8284 = vunpack.c.h.b16 %v7681
    %v8285 = vunpack.c.l.b16 %v7682
    %v8286 = vunpack.c.h.b16 %v7682
    %v8287 = vunpack.c.l.b16 %v7683
    %v8288 = vunpack.c.h.b16 %v7683
    %v8289 = vunpack.c.l.b16 %v7684
    %v8290 = vunpack.c.h.b16 %v7684
    %v8291 = vunpack.c.l.b16 %v7685
    %v8292 = vunpack.c.h.b16 %v7685
    %v8293 = vunpack.c.l.b16 %v7686
    %v8294 = vunpack.c.h.b16 %v7686
    %v8295 = vunpack.c.l.b16 %v7687
    %v8296 = vunpack.c.h.b16 %v7687
    %v8297 = vunpack.c.l.b16 %v7688
    %v8298 = vunpack.c.h.b16 %v7688
    %v8299 = vunpack.c.l.b16 %v7689
    %v8300 = vunpack.c.h.b16 %v7689
    %v8301 = vunpack.c.l.b16 %v7690
    %v8302 = vunpack.c.h.b16 %v7690
    %v8303 = vunpack.c.l.b16 %v7691
    %v8304 = vunpack.c.h.b16 %v7691
    %v8305 = vunpack.c.l.b16 %v7692
    %v8306 = vunpack.c.h.b16 %v7692
    %v8307 = vunpack.c.l.b16 %v7693
    %v8308 = vunpack.c.h.b16 %v7693
    %v8309 = vunpack.c.l.b16 %v7694
    %v8310 = vunpack.c.h.b16 %v7694
    %v8311 = vunpack.c.l.b16 %v7695
    %v8312 = vunpack.c.h.b16 %v7695
    %v8313 = vunpack.c.l.b16 %v7696
    %v8314 = vunpack.c.h.b16 %v7696
    %v8315 = vunpack.c.l.b16 %v7697
    %v8316 = vunpack.c.h.b16 %v7697
    %v8317 = vunpack.c.l.b16 %v7698
    %v8318 = vunpack.c.h.b16 %v7698
    %v8319 = vunpack.c.l.b16 %v7699
    %v8320 = vunpack.c.h.b16 %v7699
    %v8321 = vunpack.c.l.b16 %v7700
    %v8322 = vunpack.c.h.b16 %v7700
    %v8323 = vunpack.c.l.b16 %v7701
    %v8324 = vunpack.c.h.b16 %v7701
    %v8325 = vunpack.c.l.b16 %v7702
    %v8326 = vunpack.c.h.b16 %v7702
    %v8327 = vunpack.c.l.b16 %v7703
    %v8328 = vunpack.c.h.b16 %v7703
    %v8329 = vunpack.c.l.b16 %v7704
    %v8330 = vunpack.c.h.b16 %v7704
    %v8331 = vunpack.c.l.b16 %v7705
    %v8332 = vunpack.c.h.b16 %v7705
    %v8333 = vunpack.c.l.b16 %v7706
    %v8334 = vunpack.c.h.b16 %v7706
    %v8335 = vunpack.c.l.b16 %v7707
    %v8336 = vunpack.c.h.b16 %v7707
    %v8337 = vunpack.c.l.b16 %v7708
    %v8338 = vunpack.c.h.b16 %v7708
    %v8339 = vunpack.c.l.b16 %v7709
    %v8340 = vunpack.c.h.b16 %v7709
    %v8341 = vunpack.c.l.b16 %v7710
    %v8342 = vunpack.c.h.b16 %v7710
    %v8343 = vunpack.c.l.b16 %v7711
    %v8344 = vunpack.c.h.b16 %v7711
    %v8345 = vunpack.c.l.b16 %v7712
    %v8346 = vunpack.c.h.b16 %v7712
    %v8347 = vunpack.c.l.b16 %v7713
    %v8348 = vunpack.c.h.b16 %v7713
    %v8349 = vunpack.c.l.b16 %v7714
    %v8350 = vunpack.c.h.b16 %v7714
    %v8351 = vunpack.c.l.b16 %v7715
    %v8352 = vunpack.c.h.b16 %v7715
    %v8353 = vunpack.c.l.b16 %v7716
    %v8354 = vunpack.c.h.b16 %v7716
    %v8355 = vunpack.c.l.b16 %v7717
    %v8356 = vunpack.c.h.b16 %v7717
    %v8357 = vunpack.c.l.b16 %v7718
    %v8358 = vunpack.c.h.b16 %v7718
    %v8359 = vunpack.c.l.b16 %v7719
    %v8360 = vunpack.c.h.b16 %v7719
    %v8361 = vunpack.c.l.b16 %v7720
    %v8362 = vunpack.c.h.b16 %v7720
    %v8363 = vunpack.c.l.b16 %v7721
    %v8364 = vunpack.c.h.b16 %v7721
    %v8365 = vunpack.c.l.b16 %v7722
    %v8366 = vunpack.c.h.b16 %v7722
    %v8367 = vunpack.c.l.b16 %v7723
    %v8368 = vunpack.c.h.b16 %v7723
    %v8369 = vunpack.c.l.b16 %v7724
    %v8370 = vunpack.c.h.b16 %v7724
    %v8371 = vunpack.c.l.b16 %v7725
    %v8372 = vunpack.c.h.b16 %v7725
    %v8373 = vunpack.c.l.b16 %v7726
    %v8374 = vunpack.c.h.b16 %v7726
    %v8375 = vunpack.c.l.b16 %v7727
    %v8376 = vunpack.c.h.b16 %v7727
    %v8377 = vunpack.c.l.b16 %v7728
    %v8378 = vunpack.c.h.b16 %v7728
    %v8379 = vunpack.c.l.b16 %v7729
    %v8380 = vunpack.c.h.b16 %v7729
    %v8381 = vunpack.c.l.b16 %v7730
    %v8382 = vunpack.c.h.b16 %v7730
    %v8383 = vunpack.c.l.b16 %v7731
    %v8384 = vunpack.c.h.b16 %v7731
    %v8385 = vunpack.c.l.b16 %v7732
    %v8386 = vunpack.c.h.b16 %v7732
    %v8387 = vunpack.c.l.b16 %v7733
    %v8388 = vunpack.c.h.b16 %v7733
    %v8389 = vunpack.c.l.b16 %v7734
    %v8390 = vunpack.c.h.b16 %v7734
    %v8391 = vunpack.c.l.b16 %v7735
    %v8392 = vunpack.c.h.b16 %v7735
    %v8393 = vunpack.c.l.b16 %v7736
    %v8394 = vunpack.c.h.b16 %v7736
    %v8395 = vunpack.c.l.b16 %v7737
    %v8396 = vunpack.c.h.b16 %v7737
    %v8397 = vunpack.c.l.b16 %v7738
    %v8398 = vunpack.c.h.b16 %v7738
    %v8399 = vunpack.c.l.b16 %v7739
    %v8400 = vunpack.c.h.b16 %v7739
    %v8401 = vunpack.c.l.b16 %v7740
    %v8402 = vunpack.c.h.b16 %v7740
    %v8403 = vunpack.c.l.b16 %v7741
    %v8404 = vunpack.c.h.b16 %v7741
    %v8405 = vunpack.c.l.b16 %v7742
    %v8406 = vunpack.c.h.b16 %v7742
    %v8407 = vunpack.c.l.b16 %v7743
    %v8408 = vunpack.c.h.b16 %v7743
    %v8409 = vunpack.c.l.b16 %v7744
    %v8410 = vunpack.c.h.b16 %v7744
    %v8411 = vunpack.c.l.b16 %v7745
    %v8412 = vunpack.c.h.b16 %v7745
    %v8413 = vunpack.c.l.b16 %v7746
    %v8414 = vunpack.c.h.b16 %v7746
    %v8415 = vunpack.c.l.b16 %v7747
    %v8416 = vunpack.c.h.b16 %v7747
    %v8417 = vunpack.c.l.b16 %v7748
    %v8418 = vunpack.c.h.b16 %v7748
    %v8419 = vunpack.c.l.b16 %v7749
    %v8420 = vunpack.c.h.b16 %v7749
    %v8421 = vunpack.c.l.b16 %v7750
    %v8422 = vunpack.c.h.b16 %v7750
    %v8423 = vunpack.c.l.b16 %v7751
    %v8424 = vunpack.c.h.b16 %v7751
    %v8425 = vunpack.c.l.b16 %v7752
    %v8426 = vunpack.c.h.b16 %v7752
    %v8427 = vunpack.c.l.b16 %v7753
    %v8428 = vunpack.c.h.b16 %v7753
    %v8429 = vunpack.c.l.b16 %v7754
    %v8430 = vunpack.c.h.b16 %v7754
    %v8431 = vunpack.c.l.b16 %v7755
    %v8432 = vunpack.c.h.b16 %v7755
    %v8433 = vunpack.c.l.b16 %v7756
    %v8434 = vunpack.c.h.b16 %v7756
    %v8435 = vunpack.c.l.b16 %v7757
    %v8436 = vunpack.c.h.b16 %v7757
    %v8437 = vunpack.c.l.b16 %v7758
    %v8438 = vunpack.c.h.b16 %v7758
    %v8439 = vunpack.c.l.b16 %v7759
    %v8440 = vunpack.c.h.b16 %v7759
    %v8441 = vunpack.c.l.b16 %v7760
    %v8442 = vunpack.c.h.b16 %v7760
    %v8443 = vunpack.c.l.b16 %v7761
    %v8444 = vunpack.c.h.b16 %v7761
    %v8445 = vunpack.c.l.b16 %v7762
    %v8446 = vunpack.c.h.b16 %v7762
    %v8447 = vunpack.c.l.b16 %v7763
    %v8448 = vunpack.c.h.b16 %v7763
    %v8449 = vunpack.c.l.b16 %v7764
    %v8450 = vunpack.c.h.b16 %v7764
    %v8451 = vunpack.c.l.b16 %v7765
    %v8452 = vunpack.c.h.b16 %v7765
    %v8453 = vunpack.c.l.b16 %v7766
    %v8454 = vunpack.c.h.b16 %v7766
    %v8455 = vunpack.c.l.b16 %v7767
    %v8456 = vunpack.c.h.b16 %v7767
    %v8457 = vunpack.c.l.b16 %v7768
    %v8458 = vunpack.c.h.b16 %v7768
    %v8459 = vunpack.c.l.b16 %v7769
    %v8460 = vunpack.c.h.b16 %v7769
    %v8461 = vunpack.c.l.b16 %v7770
    %v8462 = vunpack.c.h.b16 %v7770
    %v8463 = vunpack.c.l.b16 %v7771
    %v8464 = vunpack.c.h.b16 %v7771
    %v8465 = vunpack.c.l.b16 %v7772
    %v8466 = vunpack.c.h.b16 %v7772
    %v8467 = vunpack.c.l.b16 %v7773
    %v8468 = vunpack.c.h.b16 %v7773
    %v8469 = vunpack.c.l.b16 %v7774
    %v8470 = vunpack.c.h.b16 %v7774
    %v8471 = vunpack.c.l.b16 %v7775
    %v8472 = vunpack.c.h.b16 %v7775
    %v8473 = vunpack.c.l.b16 %v7776
    %v8474 = vunpack.c.h.b16 %v7776
    %v8475 = vunpack.c.l.b16 %v7777
    %v8476 = vunpack.c.h.b16 %v7777
    %v8477 = vunpack.c.l.b16 %v7778
    %v8478 = vunpack.c.h.b16 %v7778
    %v8479 = vunpack.c.l.b16 %v7779
    %v8480 = vunpack.c.h.b16 %v7779
    %v8481 = vunpack.c.l.b16 %v7780
    %v8482 = vunpack.c.h.b16 %v7780
    %v8483 = vunpack.c.l.b16 %v7781
    %v8484 = vunpack.c.h.b16 %v7781
    %v8485 = vunpack.c.l.b16 %v7782
    %v8486 = vunpack.c.h.b16 %v7782
    %v8487 = vunpack.c.l.b16 %v7783
    %v8488 = vunpack.c.h.b16 %v7783
    %v8489 = vunpack.c.l.b16 %v7784
    %v8490 = vunpack.c.h.b16 %v7784
    %v8491 = vunpack.c.l.b16 %v7785
    %v8492 = vunpack.c.h.b16 %v7785
    %v8493 = vunpack.c.l.b16 %v7786
    %v8494 = vunpack.c.h.b16 %v7786
    %v8495 = vunpack.c.l.b16 %v7787
    %v8496 = vunpack.c.h.b16 %v7787
    %v8497 = vunpack.c.l.b16 %v7788
    %v8498 = vunpack.c.h.b16 %v7788
    %v8499 = vunpack.c.l.b16 %v7789
    %v8500 = vunpack.c.h.b16 %v7789
    %v8501 = vunpack.c.l.b16 %v7790
    %v8502 = vunpack.c.h.b16 %v7790
    %v8503 = vunpack.c.l.b16 %v7791
    %v8504 = vunpack.c.h.b16 %v7791
    %v8505 = vunpack.c.l.b16 %v7792
    %v8506 = vunpack.c.h.b16 %v7792
    %v8507 = vunpack.c.l.b16 %v7793
    %v8508 = vunpack.c.h.b16 %v7793
    %v8509 = vunpack.c.l.b16 %v7794
    %v8510 = vunpack.c.h.b16 %v7794
    %v8511 = vunpack.c.l.b16 %v7795
    %v8512 = vunpack.c.h.b16 %v7795
    %v8513 = vunpack.c.l.b16 %v7796
    %v8514 = vunpack.c.h.b16 %v7796
    %v8515 = vunpack.c.l.b16 %v7797
    %v8516 = vunpack.c.h.b16 %v7797
    %v8517 = vunpack.c.l.b16 %v7798
    %v8518 = vunpack.c.h.b16 %v7798
    %v8519 = vunpack.c.l.b16 %v7799
    %v8520 = vunpack.c.h.b16 %v7799
    %v8521 = vunpack.c.l.b16 %v7800
    %v8522 = vunpack.c.h.b16 %v7800
    %v8523 = vunpack.c.l.b16 %v7801
    %v8524 = vunpack.c.h.b16 %v7801
    %v8525 = vunpack.c.l.b16 %v7802
    %v8526 = vunpack.c.h.b16 %v7802
    %v8527 = vunpack.c.l.b16 %v7803
    %v8528 = vunpack.c.h.b16 %v7803
    %v8529 = vunpack.c.l.b16 %v7804
    %v8530 = vunpack.c.h.b16 %v7804
    %v8531 = vunpack.c.l.b16 %v7805
    %v8532 = vunpack.c.h.b16 %v7805
    %v8533 = vunpack.c.l.b16 %v7806
    %v8534 = vunpack.c.h.b16 %v7806
    %v8535 = vunpack.c.l.b16 %v7807
    %v8536 = vunpack.c.h.b16 %v7807
    %v8537 = vunpack.c.l.b16 %v7808
    %v8538 = vunpack.c.h.b16 %v7808
    %v8539 = vunpack.c.l.b16 %v7809
    %v8540 = vunpack.c.h.b16 %v7809
    %v8541 = vunpack.c.l.b16 %v7810
    %v8542 = vunpack.c.h.b16 %v7810
    %v8543 = vunpack.c.l.b16 %v7811
    %v8544 = vunpack.c.h.b16 %v7811
    %v8545 = vunpack.c.l.b16 %v7812
    %v8546 = vunpack.c.h.b16 %v7812
    %v8547 = vunpack.c.l.b16 %v7813
    %v8548 = vunpack.c.h.b16 %v7813
    %v8549 = vunpack.c.l.b16 %v7814
    %v8550 = vunpack.c.h.b16 %v7814
    %v8551 = vunpack.c.l.b16 %v7815
    %v8552 = vunpack.c.h.b16 %v7815
    %v8553 = vunpack.c.l.b16 %v7816
    %v8554 = vunpack.c.h.b16 %v7816
    %v8555 = vunpack.c.l.b16 %v7817
    %v8556 = vunpack.c.h.b16 %v7817
    %v8557 = vunpack.c.l.b16 %v7818
    %v8558 = vunpack.c.h.b16 %v7818
    %v8559 = vunpack.c.l.b16 %v7819
    %v8560 = vunpack.c.h.b16 %v7819
    %v8561 = vunpack.c.l.b16 %v7820
    %v8562 = vunpack.c.h.b16 %v7820
    %v8563 = vunpack.c.l.b16 %v7821
    %v8564 = vunpack.c.h.b16 %v7821
    %v8565 = vunpack.c.l.b16 %v7822
    %v8566 = vunpack.c.h.b16 %v7822
    %v8567 = vunpack.c.l.b16 %v7823
    %v8568 = vunpack.c.h.b16 %v7823
    %v8569 = vunpack.c.l.b16 %v7824
    %v8570 = vunpack.c.h.b16 %v7824
    %v8571 = vunpack.c.l.b16 %v7825
    %v8572 = vunpack.c.h.b16 %v7825
    %v8573 = vunpack.c.l.b16 %v7826
    %v8574 = vunpack.c.h.b16 %v7826
    %v8575 = vunpack.c.l.b16 %v7827
    %v8576 = vunpack.c.h.b16 %v7827
    %v8577 = vunpack.c.l.b16 %v7828
    %v8578 = vunpack.c.h.b16 %v7828
    %v8579 = vunpack.c.l.b16 %v7829
    %v8580 = vunpack.c.h.b16 %v7829
    %v8581 = vunpack.c.l.b16 %v7830
    %v8582 = vunpack.c.h.b16 %v7830
    %v8583 = vunpack.c.l.b16 %v7831
    %v8584 = vunpack.c.h.b16 %v7831
    %v8585 = vunpack.c.l.b16 %v7832
    %v8586 = vunpack.c.h.b16 %v7832
    %v8587 = vunpack.c.l.b16 %v7833
    %v8588 = vunpack.c.h.b16 %v7833
    %v8589 = vunpack.c.l.b16 %v7834
    %v8590 = vunpack.c.h.b16 %v7834
    %v8591 = vunpack.c.l.b16 %v7835
    %v8592 = vunpack.c.h.b16 %v7835
    %v8593 = vunpack.c.l.b16 %v7836
    %v8594 = vunpack.c.h.b16 %v7836
    %v8595 = vunpack.c.l.b16 %v7837
    %v8596 = vunpack.c.h.b16 %v7837
    %v8597 = vunpack.c.l.b16 %v7838
    %v8598 = vunpack.c.h.b16 %v7838
    %v8599 = vunpack.c.l.b16 %v7839
    %v8600 = vunpack.c.h.b16 %v7839
    %v8601 = vunpack.c.l.b16 %v7840
    %v8602 = vunpack.c.h.b16 %v7840
    %v8603 = vunpack.c.l.b16 %v7841
    %v8604 = vunpack.c.h.b16 %v7841
    %v8605 = vunpack.c.l.b16 %v7842
    %v8606 = vunpack.c.h.b16 %v7842
    %v8607 = vunpack.c.l.b16 %v7843
    %v8608 = vunpack.c.h.b16 %v7843
    %v8609 = vunpack.c.l.b16 %v7844
    %v8610 = vunpack.c.h.b16 %v7844
    %v8611 = vunpack.c.l.b16 %v7845
    %v8612 = vunpack.c.h.b16 %v7845
    %v8613 = vunpack.c.l.b16 %v7846
    %v8614 = vunpack.c.h.b16 %v7846
    %v8615 = vunpack.c.l.b16 %v7847
    %v8616 = vunpack.c.h.b16 %v7847
    %v8617 = vunpack.c.l.b16 %v7848
    %v8618 = vunpack.c.h.b16 %v7848
    %v8619 = vunpack.c.l.b16 %v7849
    %v8620 = vunpack.c.h.b16 %v7849
    %v8621 = vunpack.c.l.b16 %v7850
    %v8622 = vunpack.c.h.b16 %v7850
    %v8623 = vunpack.c.l.b16 %v7851
    %v8624 = vunpack.c.h.b16 %v7851
    %v8625 = vunpack.c.l.b16 %v7852
    %v8626 = vunpack.c.h.b16 %v7852
    %v8627 = vunpack.c.l.b16 %v7853
    %v8628 = vunpack.c.h.b16 %v7853
    %v8629 = vunpack.c.l.b16 %v7854
    %v8630 = vunpack.c.h.b16 %v7854
    %v8631 = vunpack.c.l.b16 %v7855
    %v8632 = vunpack.c.h.b16 %v7855
    %v8633 = vunpack.c.l.b16 %v7856
    %v8634 = vunpack.c.h.b16 %v7856
    %v8635 = vunpack.c.l.b16 %v7857
    %v8636 = vunpack.c.h.b16 %v7857
    %v8637 = vunpack.c.l.b16 %v7858
    %v8638 = vunpack.c.h.b16 %v7858
    %v8639 = vunpack.c.l.b16 %v7859
    %v8640 = vunpack.c.h.b16 %v7859
    %v8641 = vunpack.c.l.b16 %v7860
    %v8642 = vunpack.c.h.b16 %v7860
    %v8643 = vunpack.c.l.b16 %v7861
    %v8644 = vunpack.c.h.b16 %v7861
    %v8645 = vunpack.c.l.b16 %v7862
    %v8646 = vunpack.c.h.b16 %v7862
    %v8647 = vunpack.c.l.b16 %v7863
    %v8648 = vunpack.c.h.b16 %v7863
    %v8649 = vunpack.c.l.b16 %v7864
    %v8650 = vunpack.c.h.b16 %v7864
    %v8651 = vunpack.c.l.b16 %v7865
    %v8652 = vunpack.c.h.b16 %v7865
    %v8653 = vunpack.c.l.b16 %v7866
    %v8654 = vunpack.c.h.b16 %v7866
    %v8655 = vunpack.c.l.b16 %v7867
    %v8656 = vunpack.c.h.b16 %v7867
    %v8657 = vunpack.c.l.b16 %v7868
    %v8658 = vunpack.c.h.b16 %v7868
    %v8659 = vpack.c.b16 %v8151, %v8147
    %v8660 = vpack.c.b16 %v8152, %v8148
    %v8661 = vpack.c.b16 %v8153, %v8149
    %v8662 = vpack.c.b16 %v8154, %v8150
    %v8663 = vpack.c.b16 %v8159, %v8155
    %v8664 = vpack.c.b16 %v8160, %v8156
    %v8665 = vpack.c.b16 %v8161, %v8157
    %v8666 = vpack.c.b16 %v8162, %v8158
    %v8667 = vpack.c.b16 %v8167, %v8163
    %v8668 = vpack.c.b16 %v8168, %v8164
    %v8669 = vpack.c.b16 %v8169, %v8165
    %v8670 = vpack.c.b16 %v8170, %v8166
    %v8671 = vpack.c.b16 %v8175, %v8171
    %v8672 = vpack.c.b16 %v8176, %v8172
    %v8673 = vpack.c.b16 %v8177, %v8173
    %v8674 = vpack.c.b16 %v8178, %v8174
    %v8675 = vpack.c.b16 %v8183, %v8179
    %v8676 = vpack.c.b16 %v8184, %v8180
    %v8677 = vpack.c.b16 %v8185, %v8181
    %v8678 = vpack.c.b16 %v8186, %v8182
    %v8679 = vpack.c.b16 %v8191, %v8187
    %v8680 = vpack.c.b16 %v8192, %v8188
    %v8681 = vpack.c.b16 %v8193, %v8189
    %v8682 = vpack.c.b16 %v8194, %v8190
    %v8683 = vpack.c.b16 %v8199, %v8195
    %v8684 = vpack.c.b16 %v8200, %v8196
    %v8685 = vpack.c.b16 %v8201, %v8197
    %v8686 = vpack.c.b16 %v8202, %v8198
    %v8687 = vpack.c.b16 %v8207, %v8203
    %v8688 = vpack.c.b16 %v8208, %v8204
    %v8689 = vpack.c.b16 %v8209, %v8205
    %v8690 = vpack.c.b16 %v8210, %v8206
    %v8691 = vpack.c.b16 %v8215, %v8211
    %v8692 = vpack.c.b16 %v8216, %v8212
    %v8693 = vpack.c.b16 %v8217, %v8213
    %v8694 = vpack.c.b16 %v8218, %v8214
    %v8695 = vpack.c.b16 %v8223, %v8219
    %v8696 = vpack.c.b16 %v8224, %v8220
    %v8697 = vpack.c.b16 %v8225, %v8221
    %v8698 = vpack.c.b16 %v8226, %v8222
    %v8699 = vpack.c.b16 %v8231, %v8227
    %v8700 = vpack.c.b16 %v8232, %v8228
    %v8701 = vpack.c.b16 %v8233, %v8229
    %v8702 = vpack.c.b16 %v8234, %v8230
    %v8703 = vpack.c.b16 %v8239, %v8235
    %v8704 = vpack.c.b16 %v8240, %v8236
    %v8705 = vpack.c.b16 %v8241, %v8237
    %v8706 = vpack.c.b16 %v8242, %v8238
    %v8707 = vpack.c.b16 %v8247, %v8243
    %v8708 = vpack.c.b16 %v8248, %v8244
    %v8709 = vpack.c.b16 %v8249, %v8245
    %v8710 = vpack.c.b16 %v8250, %v8246
    %v8711 = vpack.c.b16 %v8255, %v8251
    %v8712 = vpack.c.b16 %v8256, %v8252
    %v8713 = vpack.c.b16 %v8257, %v8253
    %v8714 = vpack.c.b16 %v8258, %v8254
    %v8715 = vpack.c.b16 %v8263, %v8259
    %v8716 = vpack.c.b16 %v8264, %v8260
    %v8717 = vpack.c.b16 %v8265, %v8261
    %v8718 = vpack.c.b16 %v8266, %v8262
    %v8719 = vpack.c.b16 %v8271, %v8267
    %v8720 = vpack.c.b16 %v8272, %v8268
    %v8721 = vpack.c.b16 %v8273, %v8269
    %v8722 = vpack.c.b16 %v8274, %v8270
    %v8723 = vpack.c.b16 %v8279, %v8275
    %v8724 = vpack.c.b16 %v8280, %v8276
    %v8725 = vpack.c.b16 %v8281, %v8277
    %v8726 = vpack.c.b16 %v8282, %v8278
    %v8727 = vpack.c.b16 %v8287, %v8283
    %v8728 = vpack.c.b16 %v8288, %v8284
    %v8729 = vpack.c.b16 %v8289, %v8285
    %v8730 = vpack.c.b16 %v8290, %v8286
    %v8731 = vpack.c.b16 %v8295, %v8291
    %v8732 = vpack.c.b16 %v8296, %v8292
    %v8733 = vpack.c.b16 %v8297, %v8293
    %v8734 = vpack.c.b16 %v8298, %v8294
    %v8735 = vpack.c.b16 %v8303, %v8299
    %v8736 = vpack.c.b16 %v8304, %v8300
    %v8737 = vpack.c.b16 %v8305, %v8301
    %v8738 = vpack.c.b16 %v8306, %v8302
    %v8739 = vpack.c.b16 %v8311, %v8307
    %v8740 = vpack.c.b16 %v8312, %v8308
    %v8741 = vpack.c.b16 %v8313, %v8309
    %v8742 = vpack.c.b16 %v8314, %v8310
    %v8743 = vpack.c.b16 %v8319, %v8315
    %v8744 = vpack.c.b16 %v8320, %v8316
    %v8745 = vpack.c.b16 %v8321, %v8317
    %v8746 = vpack.c.b16 %v8322, %v8318
    %v8747 = vpack.c.b16 %v8327, %v8323
    %v8748 = vpack.c.b16 %v8328, %v8324
    %v8749 = vpack.c.b16 %v8329, %v8325
    %v8750 = vpack.c.b16 %v8330, %v8326
    %v8751 = vpack.c.b16 %v8335, %v8331
    %v8752 = vpack.c.b16 %v8336, %v8332
    %v8753 = vpack.c.b16 %v8337, %v8333
    %v8754 = vpack.c.b16 %v8338, %v8334
    %v8755 = vpack.c.b16 %v8343, %v8339
    %v8756 = vpack.c.b16 %v8344, %v8340
    %v8757 = vpack.c.b16 %v8345, %v8341
    %v8758 = vpack.c.b16 %v8346, %v8342
    %v8759 = vpack.c.b16 %v8351, %v8347
    %v8760 = vpack.c.b16 %v8352, %v8348
    %v8761 = vpack.c.b16 %v8353, %v8349
    %v8762 = vpack.c.b16 %v8354, %v8350
    %v8763 = vpack.c.b16 %v8359, %v8355
    %v8764 = vpack.c.b16 %v8360, %v8356
    %v8765 = vpack.c.b16 %v8361, %v8357
    %v8766 = vpack.c.b16 %v8362, %v8358
    %v8767 = vpack.c.b16 %v8367, %v8363
    %v8768 = vpack.c.b16 %v8368, %v8364
    %v8769 = vpack.c.b16 %v8369, %v8365
    %v8770 = vpack.c.b16 %v8370, %v8366
    %v8771 = vpack.c.b16 %v8375, %v8371
    %v8772 = vpack.c.b16 %v8376, %v8372
    %v8773 = vpack.c.b16 %v8377, %v8373
    %v8774 = vpack.c.b16 %v8378, %v8374
    %v8775 = vpack.c.b16 %v8383, %v8379
    %v8776 = vpack.c.b16 %v8384, %v8380
    %v8777 = vpack.c.b16 %v8385, %v8381
    %v8778 = vpack.c.b16 %v8386, %v8382
    %v8779 = vpack.c.b16 %v8391, %v8387
    %v8780 = vpack.c.b16 %v8392, %v8388
    %v8781 = vpack.c.b16 %v8393, %v8389
    %v8782 = vpack.c.b16 %v8394, %v8390
    %v8783 = vpack.c.b16 %v8399, %v8395
    %v8784 = vpack.c.b16 %v8400, %v8396
    %v8785 = vpack.c.b16 %v8401, %v8397
    %v8786 = vpack.c.b16 %v8402, %v8398
    %v8787 = vpack.c.b16 %v8407, %v8403
    %v8788 = vpack.c.b16 %v8408, %v8404
    %v8789 = vpack.c.b16 %v8409, %v8405
    %v8790 = vpack.c.b16 %v8410, %v8406
    %v8791 = vpack.c.b16 %v8415, %v8411
    %v8792 = vpack.c.b16 %v8416, %v8412
    %v8793 = vpack.c.b16 %v8417, %v8413
    %v8794 = vpack.c.b16 %v8418, %v8414
    %v8795 = vpack.c.b16 %v8423, %v8419
    %v8796 = vpack.c.b16 %v8424, %v8420
    %v8797 = vpack.c.b16 %v8425, %v8421
    %v8798 = vpack.c.b16 %v8426, %v8422
    %v8799 = vpack.c.b16 %v8431, %v8427
    %v8800 = vpack.c.b16 %v8432, %v8428
    %v8801 = vpack.c.b16 %v8433, %v8429
    %v8802 = vpack.c.b16 %v8434, %v8430
    %v8803 = vpack.c.b16 %v8439, %v8435
    %v8804 = vpack.c.b16 %v8440, %v8436
    %v8805 = vpack.c.b16 %v8441, %v8437
    %v8806 = vpack.c.b16 %v8442, %v8438
    %v8807 = vpack.c.b16 %v8447, %v8443
    %v8808 = vpack.c.b16 %v8448, %v8444
    %v8809 = vpack.c.b16 %v8449, %v8445
    %v8810 = vpack.c.b16 %v8450, %v8446
    %v8811 = vpack.c.b16 %v8455, %v8451
    %v8812 = vpack.c.b16 %v8456, %v8452
    %v8813 = vpack.c.b16 %v8457, %v8453
    %v8814 = vpack.c.b16 %v8458, %v8454
    %v8815 = vpack.c.b16 %v8463, %v8459
    %v8816 = vpack.c.b16 %v8464, %v8460
    %v8817 = vpack.c.b16 %v8465, %v8461
    %v8818 = vpack.c.b16 %v8466, %v8462
    %v8819 = vpack.c.b16 %v8471, %v8467
    %v8820 = vpack.c.b16 %v8472, %v8468
    %v8821 = vpack.c.b16 %v8473, %v8469
    %v8822 = vpack.c.b16 %v8474, %v8470
    %v8823 = vpack.c.b16 %v8479, %v8475
    %v8824 = vpack.c.b16 %v8480, %v8476
    %v8825 = vpack.c.b16 %v8481, %v8477
    %v8826 = vpack.c.b16 %v8482, %v8478
    %v8827 = vpack.c.b16 %v8487, %v8483
    %v8828 = vpack.c.b16 %v8488, %v8484
    %v8829 = vpack.c.b16 %v8489, %v8485
    %v8830 = vpack.c.b16 %v8490, %v8486
    %v8831 = vpack.c.b16 %v8495, %v8491
    %v8832 = vpack.c.b16 %v8496, %v8492
    %v8833 = vpack.c.b16 %v8497, %v8493
    %v8834 = vpack.c.b16 %v8498, %v8494
    %v8835 = vpack.c.b16 %v8503, %v8499
    %v8836 = vpack.c.b16 %v8504, %v8500
    %v8837 = vpack.c.b16 %v8505, %v8501
    %v8838 = vpack.c.b16 %v8506, %v8502
    %v8839 = vpack.c.b16 %v8511, %v8507
    %v8840 = vpack.c.b16 %v8512, %v8508
    %v8841 = vpack.c.b16 %v8513, %v8509
    %v8842 = vpack.c.b16 %v8514, %v8510
    %v8843 = vpack.c.b16 %v8519, %v8515
    %v8844 = vpack.c.b16 %v8520, %v8516
    %v8845 = vpack.c.b16 %v8521, %v8517
    %v8846 = vpack.c.b16 %v8522, %v8518
    %v8847 = vpack.c.b16 %v8527, %v8523
    %v8848 = vpack.c.b16 %v8528, %v8524
    %v8849 = vpack.c.b16 %v8529, %v8525
    %v8850 = vpack.c.b16 %v8530, %v8526
    %v8851 = vpack.c.b16 %v8535, %v8531
    %v8852 = vpack.c.b16 %v8536, %v8532
    %v8853 = vpack.c.b16 %v8537, %v8533
    %v8854 = vpack.c.b16 %v8538, %v8534
    %v8855 = vpack.c.b16 %v8543, %v8539
    %v8856 = vpack.c.b16 %v8544, %v8540
    %v8857 = vpack.c.b16 %v8545, %v8541
    %v8858 = vpack.c.b16 %v8546, %v8542
    %v8859 = vpack.c.b16 %v8551, %v8547
    %v8860 = vpack.c.b16 %v8552, %v8548
    %v8861 = vpack.c.b16 %v8553, %v8549
    %v8862 = vpack.c.b16 %v8554, %v8550
    %v8863 = vpack.c.b16 %v8559, %v8555
    %v8864 = vpack.c.b16 %v8560, %v8556
    %v8865 = vpack.c.b16 %v8561, %v8557
    %v8866 = vpack.c.b16 %v8562, %v8558
    %v8867 = vpack.c.b16 %v8567, %v8563
    %v8868 = vpack.c.b16 %v8568, %v8564
    %v8869 = vpack.c.b16 %v8569, %v8565
    %v8870 = vpack.c.b16 %v8570, %v8566
    %v8871 = vpack.c.b16 %v8575, %v8571
    %v8872 = vpack.c.b16 %v8576, %v8572
    %v8873 = vpack.c.b16 %v8577, %v8573
    %v8874 = vpack.c.b16 %v8578, %v8574
    %v8875 = vpack.c.b16 %v8583, %v8579
    %v8876 = vpack.c.b16 %v8584, %v8580
    %v8877 = vpack.c.b16 %v8585, %v8581
    %v8878 = vpack.c.b16 %v8586, %v8582
    %v8879 = vpack.c.b16 %v8591, %v8587
    %v8880 = vpack.c.b16 %v8592, %v8588
    %v8881 = vpack.c.b16 %v8593, %v8589
    %v8882 = vpack.c.b16 %v8594, %v8590
    %v8883 = vpack.c.b16 %v8599, %v8595
    %v8884 = vpack.c.b16 %v8600, %v8596
    %v8885 = vpack.c.b16 %v8601, %v8597
    %v8886 = vpack.c.b16 %v8602, %v8598
    %v8887 = vpack.c.b16 %v8607, %v8603
    %v8888 = vpack.c.b16 %v8608, %v8604
    %v8889 = vpack.c.b16 %v8609, %v8605
    %v8890 = vpack.c.b16 %v8610, %v8606
    %v8891 = vpack.c.b16 %v8615, %v8611
    %v8892 = vpack.c.b16 %v8616, %v8612
    %v8893 = vpack.c.b16 %v8617, %v8613
    %v8894 = vpack.c.b16 %v8618, %v8614
    %v8895 = vpack.c.b16 %v8623, %v8619
    %v8896 = vpack.c.b16 %v8624, %v8620
    %v8897 = vpack.c.b16 %v8625, %v8621
    %v8898 = vpack.c.b16 %v8626, %v8622
    %v8899 = vpack.c.b16 %v8631, %v8627
    %v8900 = vpack.c.b16 %v8632, %v8628
    %v8901 = vpack.c.b16 %v8633, %v8629
    %v8902 = vpack.c.b16 %v8634, %v8630
    %v8903 = vpack.c.b16 %v8639, %v8635
    %v8904 = vpack.c.b16 %v8640, %v8636
    %v8905 = vpack.c.b16 %v8641, %v8637
    %v8906 = vpack.c.b16 %v8642, %v8638
    %v8907 = vpack.c.b16 %v8647, %v8643
    %v8908 = vpack.c.b16 %v8648, %v8644
    %v8909 = vpack.c.b16 %v8649, %v8645
    %v8910 = vpack.c.b16 %v8650, %v8646
    %v8911 = vpack.c.b16 %v8655, %v8651
    %v8912 = vpack.c.b16 %v8656, %v8652
    %v8913 = vpack.c.b16 %v8657, %v8653
    %v8914 = vpack.c.b16 %v8658, %v8654
    %9171 = vmatprep.subr.bf16.mxu0 %v8660
    %9172 = vmatpush1.bf16.msra.mxu0 %v8659
    %9173 = vmatprep.subr.bf16.mxu0 %v8664
    %9174 = vmatpush1.bf16.msra.mxu0 %v8663
    %9175 = vmatprep.subr.bf16.mxu0 %v8668
    %9176 = vmatpush1.bf16.msra.mxu0 %v8667
    %9177 = vmatprep.subr.bf16.mxu0 %v8672
    %9178 = vmatpush1.bf16.msra.mxu0 %v8671
    %9179 = vmatprep.subr.bf16.mxu0 %v8676
    %9180 = vmatpush1.bf16.msra.mxu0 %v8675
    %9181 = vmatprep.subr.bf16.mxu0 %v8680
    %9182 = vmatpush1.bf16.msra.mxu0 %v8679
    %9183 = vmatprep.subr.bf16.mxu0 %v8684
    %9184 = vmatpush1.bf16.msra.mxu0 %v8683
    %9185 = vmatprep.subr.bf16.mxu0 %v8688
    %9186 = vmatpush1.bf16.msra.mxu0 %v8687
    %9187 = vmatprep.subr.bf16.mxu0 %v8692
    %9188 = vmatpush1.bf16.msra.mxu0 %v8691
    %9189 = vmatprep.subr.bf16.mxu0 %v8696
    %9190 = vmatpush1.bf16.msra.mxu0 %v8695
    %9191 = vmatprep.subr.bf16.mxu0 %v8700
    %9192 = vmatpush1.bf16.msra.mxu0 %v8699
    %9193 = vmatprep.subr.bf16.mxu0 %v8704
    %9194 = vmatpush1.bf16.msra.mxu0 %v8703
    %9195 = vmatprep.subr.bf16.mxu0 %v8708
    %9196 = vmatpush1.bf16.msra.mxu0 %v8707
    %9197 = vmatprep.subr.bf16.mxu0 %v8712
    %9198 = vmatpush1.bf16.msra.mxu0 %v8711
    %9199 = vmatprep.subr.bf16.mxu0 %v8716
    %9200 = vmatpush1.bf16.msra.mxu0 %v8715
    %9201 = vmatprep.subr.bf16.mxu0 %v8720
    %9202 = vmatpush1.bf16.msra.mxu0 %v8719
    %9203 = vmatprep.mubr.bf16.mxu0 %v7606
    %9204 = vmatmul.mubr.bf16.gmra.mrb[0].mxu0 %v7605
    %v9205 = vpop.f32.mrb[0].mxu0
    %v9206 = vadd.f32 %v7874, %v9205
    %v9207 = vpop.f32.mrb[0].mxu0
    %v9208 = vadd.f32 %v7878, %v9207
    %v9209 = vpop.f32.mrb[0].mxu0
    %v9210 = vpop.f32.mrb[0].mxu0
    %9211 = vdwg.mxu0
    %9212 = vmatprep.subr.bf16.mxu0 %v8724
    %9213 = vmatpush1.bf16.msra.mxu0 %v8723
    %9214 = vmatprep.subr.bf16.mxu0 %v8728
    %9215 = vmatpush1.bf16.msra.mxu0 %v8727
    %9216 = vmatprep.subr.bf16.mxu0 %v8732
    %9217 = vmatpush1.bf16.msra.mxu0 %v8731
    %9218 = vmatprep.subr.bf16.mxu0 %v8736
    %9219 = vmatpush1.bf16.msra.mxu0 %v8735
    %9220 = vmatprep.subr.bf16.mxu0 %v8740
    %9221 = vmatpush1.bf16.msra.mxu0 %v8739
    %9222 = vmatprep.subr.bf16.mxu0 %v8744
    %9223 = vmatpush1.bf16.msra.mxu0 %v8743
    %9224 = vmatprep.subr.bf16.mxu0 %v8748
    %9225 = vmatpush1.bf16.msra.mxu0 %v8747
    %9226 = vmatprep.subr.bf16.mxu0 %v8752
    %9227 = vmatpush1.bf16.msra.mxu0 %v8751
    %9228 = vmatprep.subr.bf16.mxu0 %v8756
    %9229 = vmatpush1.bf16.msra.mxu0 %v8755
    %9230 = vmatprep.subr.bf16.mxu0 %v8760
    %9231 = vmatpush1.bf16.msra.mxu0 %v8759
    %9232 = vmatprep.subr.bf16.mxu0 %v8764
    %9233 = vmatpush1.bf16.msra.mxu0 %v8763
    %9234 = vmatprep.subr.bf16.mxu0 %v8768
    %9235 = vmatpush1.bf16.msra.mxu0 %v8767
    %9236 = vmatprep.subr.bf16.mxu0 %v8772
    %9237 = vmatpush1.bf16.msra.mxu0 %v8771
    %9238 = vmatprep.subr.bf16.mxu0 %v8776
    %9239 = vmatpush1.bf16.msra.mxu0 %v8775
    %9240 = vmatprep.subr.bf16.mxu0 %v8780
    %9241 = vmatpush1.bf16.msra.mxu0 %v8779
    %9242 = vmatprep.subr.bf16.mxu0 %v8784
    %9243 = vmatpush1.bf16.msra.mxu0 %v8783
    %9244 = vmatprep.mubr.bf16.mxu0 %v7608
    %9245 = vmatmul.mubr.bf16.gmra.mrb[0].mxu0 %v7607
    %v9246 = vpop.f32.mrb[0].mxu0
    %v9247 = vadd.f32 %v9206, %v9246
    %v9248 = vpop.f32.mrb[0].mxu0
    %v9249 = vadd.f32 %v9208, %v9248
    %v9250 = vpop.f32.mrb[0].mxu0
    %v9251 = vpop.f32.mrb[0].mxu0
    %9252 = vdwg.mxu0
    %9253 = vmatprep.subr.bf16.mxu0 %v8788
    %9254 = vmatpush1.bf16.msra.mxu0 %v8787
    %9255 = vmatprep.subr.bf16.mxu0 %v8792
    %9256 = vmatpush1.bf16.msra.mxu0 %v8791
    %9257 = vmatprep.subr.bf16.mxu0 %v8796
    %9258 = vmatpush1.bf16.msra.mxu0 %v8795
    %9259 = vmatprep.subr.bf16.mxu0 %v8800
    %9260 = vmatpush1.bf16.msra.mxu0 %v8799
    %9261 = vmatprep.subr.bf16.mxu0 %v8804
    %9262 = vmatpush1.bf16.msra.mxu0 %v8803
    %9263 = vmatprep.subr.bf16.mxu0 %v8808
    %9264 = vmatpush1.bf16.msra.mxu0 %v8807
    %9265 = vmatprep.subr.bf16.mxu0 %v8812
    %9266 = vmatpush1.bf16.msra.mxu0 %v8811
    %9267 = vmatprep.subr.bf16.mxu0 %v8816
    %9268 = vmatpush1.bf16.msra.mxu0 %v8815
    %9269 = vmatprep.subr.bf16.mxu0 %v8820
    %9270 = vmatpush1.bf16.msra.mxu0 %v8819
    %9271 = vmatprep.subr.bf16.mxu0 %v8824
    %9272 = vmatpush1.bf16.msra.mxu0 %v8823
    %9273 = vmatprep.subr.bf16.mxu0 %v8828
    %9274 = vmatpush1.bf16.msra.mxu0 %v8827
    %9275 = vmatprep.subr.bf16.mxu0 %v8832
    %9276 = vmatpush1.bf16.msra.mxu0 %v8831
    %9277 = vmatprep.subr.bf16.mxu0 %v8836
    %9278 = vmatpush1.bf16.msra.mxu0 %v8835
    %9279 = vmatprep.subr.bf16.mxu0 %v8840
    %9280 = vmatpush1.bf16.msra.mxu0 %v8839
    %9281 = vmatprep.subr.bf16.mxu0 %v8844
    %9282 = vmatpush1.bf16.msra.mxu0 %v8843
    %9283 = vmatprep.subr.bf16.mxu0 %v8848
    %9284 = vmatpush1.bf16.msra.mxu0 %v8847
    %9285 = vmatprep.mubr.bf16.mxu0 %v7610
    %9286 = vmatmul.mubr.bf16.gmra.mrb[0].mxu0 %v7609
    %v9287 = vpop.f32.mrb[0].mxu0
    %v9288 = vadd.f32 %v9247, %v9287
    %v9289 = vpop.f32.mrb[0].mxu0
    %v9290 = vadd.f32 %v9249, %v9289
    %v9291 = vpop.f32.mrb[0].mxu0
    %v9292 = vpop.f32.mrb[0].mxu0
    %9293 = vdwg.mxu0
    %9294 = vmatprep.subr.bf16.mxu0 %v8852
    %9295 = vmatpush1.bf16.msra.mxu0 %v8851
    %9296 = vmatprep.subr.bf16.mxu0 %v8856
    %9297 = vmatpush1.bf16.msra.mxu0 %v8855
    %9298 = vmatprep.subr.bf16.mxu0 %v8860
    %9299 = vmatpush1.bf16.msra.mxu0 %v8859
    %9300 = vmatprep.subr.bf16.mxu0 %v8864
    %9301 = vmatpush1.bf16.msra.mxu0 %v8863
    %9302 = vmatprep.subr.bf16.mxu0 %v8868
    %9303 = vmatpush1.bf16.msra.mxu0 %v8867
    %9304 = vmatprep.subr.bf16.mxu0 %v8872
    %9305 = vmatpush1.bf16.msra.mxu0 %v8871
    %9306 = vmatprep.subr.bf16.mxu0 %v8876
    %9307 = vmatpush1.bf16.msra.mxu0 %v8875
    %9308 = vmatprep.subr.bf16.mxu0 %v8880
    %9309 = vmatpush1.bf16.msra.mxu0 %v8879
    %9310 = vmatprep.subr.bf16.mxu0 %v8884
    %9311 = vmatpush1.bf16.msra.mxu0 %v8883
    %9312 = vmatprep.subr.bf16.mxu0 %v8888
    %9313 = vmatpush1.bf16.msra.mxu0 %v8887
    %9314 = vmatprep.subr.bf16.mxu0 %v8892
    %9315 = vmatpush1.bf16.msra.mxu0 %v8891
    %9316 = vmatprep.subr.bf16.mxu0 %v8896
    %9317 = vmatpush1.bf16.msra.mxu0 %v8895
    %9318 = vmatprep.subr.bf16.mxu0 %v8900
    %9319 = vmatpush1.bf16.msra.mxu0 %v8899
    %9320 = vmatprep.subr.bf16.mxu0 %v8904
    %9321 = vmatpush1.bf16.msra.mxu0 %v8903
    %9322 = vmatprep.subr.bf16.mxu0 %v8908
    %9323 = vmatpush1.bf16.msra.mxu0 %v8907
    %9324 = vmatprep.subr.bf16.mxu0 %v8912
    %9325 = vmatpush1.bf16.msra.mxu0 %v8911
    %9326 = vmatprep.mubr.bf16.mxu0 %v7612
    %9327 = vmatmul.mubr.bf16.gmra.mrb[0].mxu0 %v7611
    %v9328 = vpop.f32.mrb[0].mxu0
    %v9329 = vadd.f32 %v9288, %v9328
    %v9330 = vpop.f32.mrb[0].mxu0
    %v9331 = vadd.f32 %v9290, %v9330
    %v9332 = vpop.f32.mrb[0].mxu0
    %v9333 = vpop.f32.mrb[0].mxu0
    %9334 = vdwg.mxu0
    %9335 = vmatprep.subr.bf16.mxu0 %v8662
    %9336 = vmatpush1.bf16.msra.mxu0 %v8661
    %9337 = vmatprep.subr.bf16.mxu0 %v8666
    %9338 = vmatpush1.bf16.msra.mxu0 %v8665
    %9339 = vmatprep.subr.bf16.mxu0 %v8670
    %9340 = vmatpush1.bf16.msra.mxu0 %v8669
    %9341 = vmatprep.subr.bf16.mxu0 %v8674
    %9342 = vmatpush1.bf16.msra.mxu0 %v8673
    %9343 = vmatprep.subr.bf16.mxu0 %v8678
    %9344 = vmatpush1.bf16.msra.mxu0 %v8677
    %9345 = vmatprep.subr.bf16.mxu0 %v8682
    %9346 = vmatpush1.bf16.msra.mxu0 %v8681
    %9347 = vmatprep.subr.bf16.mxu0 %v8686
    %9348 = vmatpush1.bf16.msra.mxu0 %v8685
    %9349 = vmatprep.subr.bf16.mxu0 %v8690
    %9350 = vmatpush1.bf16.msra.mxu0 %v8689
    %9351 = vmatprep.subr.bf16.mxu0 %v8694
    %9352 = vmatpush1.bf16.msra.mxu0 %v8693
    %9353 = vmatprep.subr.bf16.mxu0 %v8698
    %9354 = vmatpush1.bf16.msra.mxu0 %v8697
    %9355 = vmatprep.subr.bf16.mxu0 %v8702
    %9356 = vmatpush1.bf16.msra.mxu0 %v8701
    %9357 = vmatprep.subr.bf16.mxu0 %v8706
    %9358 = vmatpush1.bf16.msra.mxu0 %v8705
    %9359 = vmatprep.subr.bf16.mxu0 %v8710
    %9360 = vmatpush1.bf16.msra.mxu0 %v8709
    %9361 = vmatprep.subr.bf16.mxu0 %v8714
    %9362 = vmatpush1.bf16.msra.mxu0 %v8713
    %9363 = vmatprep.subr.bf16.mxu0 %v8718
    %9364 = vmatpush1.bf16.msra.mxu0 %v8717
    %9365 = vmatprep.subr.bf16.mxu0 %v8722
    %9366 = vmatpush1.bf16.msra.mxu0 %v8721
    %9367 = vmatprep.mubr.bf16.mxu0 %v7606
    %9368 = vmatmul.mubr.bf16.gmra.mrb[0].mxu0 %v7605
    %v9369 = vpop.f32.mrb[0].mxu0
    %v9370 = vadd.f32 %v7882, %v9369
    %v9371 = vpop.f32.mrb[0].mxu0
    %v9372 = vadd.f32 %v7886, %v9371
    %v9373 = vpop.f32.mrb[0].mxu0
    %v9374 = vpop.f32.mrb[0].mxu0
    %9375 = vdwg.mxu0
    %9376 = vmatprep.subr.bf16.mxu0 %v8726
    %9377 = vmatpush1.bf16.msra.mxu0 %v8725
    %9378 = vmatprep.subr.bf16.mxu0 %v8730
    %9379 = vmatpush1.bf16.msra.mxu0 %v8729
    %9380 = vmatprep.subr.bf16.mxu0 %v8734
    %9381 = vmatpush1.bf16.msra.mxu0 %v8733
    %9382 = vmatprep.subr.bf16.mxu0 %v8738
    %9383 = vmatpush1.bf16.msra.mxu0 %v8737
    %9384 = vmatprep.subr.bf16.mxu0 %v8742
    %9385 = vmatpush1.bf16.msra.mxu0 %v8741
    %9386 = vmatprep.subr.bf16.mxu0 %v8746
    %9387 = vmatpush1.bf16.msra.mxu0 %v8745
    %9388 = vmatprep.subr.bf16.mxu0 %v8750
    %9389 = vmatpush1.bf16.msra.mxu0 %v8749
    %9390 = vmatprep.subr.bf16.mxu0 %v8754
    %9391 = vmatpush1.bf16.msra.mxu0 %v8753
    %9392 = vmatprep.subr.bf16.mxu0 %v8758
    %9393 = vmatpush1.bf16.msra.mxu0 %v8757
    %9394 = vmatprep.subr.bf16.mxu0 %v8762
    %9395 = vmatpush1.bf16.msra.mxu0 %v8761
    %9396 = vmatprep.subr.bf16.mxu0 %v8766
    %9397 = vmatpush1.bf16.msra.mxu0 %v8765
    %9398 = vmatprep.subr.bf16.mxu0 %v8770
    %9399 = vmatpush1.bf16.msra.mxu0 %v8769
    %9400 = vmatprep.subr.bf16.mxu0 %v8774
    %9401 = vmatpush1.bf16.msra.mxu0 %v8773
    %9402 = vmatprep.subr.bf16.mxu0 %v8778
    %9403 = vmatpush1.bf16.msra.mxu0 %v8777
    %9404 = vmatprep.subr.bf16.mxu0 %v8782
    %9405 = vmatpush1.bf16.msra.mxu0 %v8781
    %9406 = vmatprep.subr.bf16.mxu0 %v8786
    %9407 = vmatpush1.bf16.msra.mxu0 %v8785
    %9408 = vmatprep.mubr.bf16.mxu0 %v7608
    %9409 = vmatmul.mubr.bf16.gmra.mrb[0].mxu0 %v7607
    %v9410 = vpop.f32.mrb[0].mxu0
    %v9411 = vadd.f32 %v9370, %v9410
    %v9412 = vpop.f32.mrb[0].mxu0
    %v9413 = vadd.f32 %v9372, %v9412
    %v9414 = vpop.f32.mrb[0].mxu0
    %v9415 = vpop.f32.mrb[0].mxu0
    %9416 = vdwg.mxu0
    %9417 = vmatprep.subr.bf16.mxu0 %v8790
    %9418 = vmatpush1.bf16.msra.mxu0 %v8789
    %9419 = vmatprep.subr.bf16.mxu0 %v8794
    %9420 = vmatpush1.bf16.msra.mxu0 %v8793
    %9421 = vmatprep.subr.bf16.mxu0 %v8798
    %9422 = vmatpush1.bf16.msra.mxu0 %v8797
    %9423 = vmatprep.subr.bf16.mxu0 %v8802
    %9424 = vmatpush1.bf16.msra.mxu0 %v8801
    %9425 = vmatprep.subr.bf16.mxu0 %v8806
    %9426 = vmatpush1.bf16.msra.mxu0 %v8805
    %9427 = vmatprep.subr.bf16.mxu0 %v8810
    %9428 = vmatpush1.bf16.msra.mxu0 %v8809
    %9429 = vmatprep.subr.bf16.mxu0 %v8814
    %9430 = vmatpush1.bf16.msra.mxu0 %v8813
    %9431 = vmatprep.subr.bf16.mxu0 %v8818
    %9432 = vmatpush1.bf16.msra.mxu0 %v8817
    %9433 = vmatprep.subr.bf16.mxu0 %v8822
    %9434 = vmatpush1.bf16.msra.mxu0 %v8821
    %9435 = vmatprep.subr.bf16.mxu0 %v8826
    %9436 = vmatpush1.bf16.msra.mxu0 %v8825
    %9437 = vmatprep.subr.bf16.mxu0 %v8830
    %9438 = vmatpush1.bf16.msra.mxu0 %v8829
    %9439 = vmatprep.subr.bf16.mxu0 %v8834
    %9440 = vmatpush1.bf16.msra.mxu0 %v8833
    %9441 = vmatprep.subr.bf16.mxu0 %v8838
    %9442 = vmatpush1.bf16.msra.mxu0 %v8837
    %9443 = vmatprep.subr.bf16.mxu0 %v8842
    %9444 = vmatpush1.bf16.msra.mxu0 %v8841
    %9445 = vmatprep.subr.bf16.mxu0 %v8846
    %9446 = vmatpush1.bf16.msra.mxu0 %v8845
    %9447 = vmatprep.subr.bf16.mxu0 %v8850
    %9448 = vmatpush1.bf16.msra.mxu0 %v8849
    %9449 = vmatprep.mubr.bf16.mxu0 %v7610
    %9450 = vmatmul.mubr.bf16.gmra.mrb[0].mxu0 %v7609
    %v9451 = vpop.f32.mrb[0].mxu0
    %v9452 = vadd.f32 %v9411, %v9451
    %v9453 = vpop.f32.mrb[0].mxu0
    %v9454 = vadd.f32 %v9413, %v9453
    %v9455 = vpop.f32.mrb[0].mxu0
    %v9456 = vpop.f32.mrb[0].mxu0
    %9457 = vdwg.mxu0
    %9458 = vmatprep.subr.bf16.mxu0 %v8854
    %9459 = vmatpush1.bf16.msra.mxu0 %v8853
    %9460 = vmatprep.subr.bf16.mxu0 %v8858
    %9461 = vmatpush1.bf16.msra.mxu0 %v8857
    %9462 = vmatprep.subr.bf16.mxu0 %v8862
    %9463 = vmatpush1.bf16.msra.mxu0 %v8861
    %9464 = vmatprep.subr.bf16.mxu0 %v8866
    %9465 = vmatpush1.bf16.msra.mxu0 %v8865
    %9466 = vmatprep.subr.bf16.mxu0 %v8870
    %9467 = vmatpush1.bf16.msra.mxu0 %v8869
    %9468 = vmatprep.subr.bf16.mxu0 %v8874
    %9469 = vmatpush1.bf16.msra.mxu0 %v8873
    %9470 = vmatprep.subr.bf16.mxu0 %v8878
    %9471 = vmatpush1.bf16.msra.mxu0 %v8877
    %9472 = vmatprep.subr.bf16.mxu0 %v8882
    %9473 = vmatpush1.bf16.msra.mxu0 %v8881
    %9474 = vmatprep.subr.bf16.mxu0 %v8886
    %9475 = vmatpush1.bf16.msra.mxu0 %v8885
    %9476 = vmatprep.subr.bf16.mxu0 %v8890
    %9477 = vmatpush1.bf16.msra.mxu0 %v8889
    %9478 = vmatprep.subr.bf16.mxu0 %v8894
    %9479 = vmatpush1.bf16.msra.mxu0 %v8893
    %9480 = vmatprep.subr.bf16.mxu0 %v8898
    %9481 = vmatpush1.bf16.msra.mxu0 %v8897
    %9482 = vmatprep.subr.bf16.mxu0 %v8902
    %9483 = vmatpush1.bf16.msra.mxu0 %v8901
    %9484 = vmatprep.subr.bf16.mxu0 %v8906
    %9485 = vmatpush1.bf16.msra.mxu0 %v8905
    %9486 = vmatprep.subr.bf16.mxu0 %v8910
    %9487 = vmatpush1.bf16.msra.mxu0 %v8909
    %9488 = vmatprep.subr.bf16.mxu0 %v8914
    %9489 = vmatpush1.bf16.msra.mxu0 %v8913
    %9490 = vmatprep.mubr.bf16.mxu0 %v7612
    %9491 = vmatmul.mubr.bf16.gmra.mrb[0].mxu0 %v7611
    %v9492 = vpop.f32.mrb[0].mxu0
    %v9493 = vadd.f32 %v9452, %v9492
    %v9494 = vpop.f32.mrb[0].mxu0
    %v9495 = vadd.f32 %v9454, %v9494
    %v9496 = vpop.f32.mrb[0].mxu0
    %v9497 = vpop.f32.mrb[0].mxu0
    %9498 = vdwg.mxu0
    %v9499 = vmax.f32 %v9329, 0.0
    %v9500 = vmax.f32 %v9331, 0.0
    %v9501 = vmax.f32 %v9493, 0.0
    %v9502 = vmax.f32 %v9495, 0.0
    %v9503 = vpack.c.bf16 %v9499, %v9499
    %v9504 = vpack.c.bf16 %v9500, %v9500
    %v9505 = vpack.c.bf16 %v9501, %v9501
    %v9506 = vpack.c.bf16 %v9502, %v9502
    %v9507 = vld [vmem:[%s5] sm:$0xf]
    %v9508 = vld [vmem:[%s5 + $0x4] sm:$0xf]
    %v9509 = vld [vmem:[%s5 + $0x8] sm:$0xf]
    %v9510 = vld [vmem:[%s5 + $0xc] sm:$0xf]
    %v9511 = vld [vmem:[%s5 + $0x10] sm:$0xf]
    %v9512 = vld [vmem:[%s5 + $0x14] sm:$0xf]
    %v9513 = vld [vmem:[%s5 + $0x18] sm:$0xf]
    %v9514 = vld [vmem:[%s5 + $0x1c] sm:$0xf]
    %v9515 = vld [vmem:[%s5 + $0x20] sm:$0xf]
    %v9516 = vld [vmem:[%s5 + $0x24] sm:$0xf]
    %v9517 = vld [vmem:[%s5 + $0x28] sm:$0xf]
    %v9518 = vld [vmem:[%s5 + $0x2c] sm:$0xf]
    %v9519 = vld [vmem:[%s5 + $0x30] sm:$0xf]
    %v9520 = vld [vmem:[%s5 + $0x34] sm:$0xf]
    %v9521 = vld [vmem:[%s5 + $0x38] sm:$0xf]
    %v9522 = vld [vmem:[%s5 + $0x3c] sm:$0xf]
    %v9523 = vld [vmem:[%s5 + $0x40] sm:$0xf]
    %v9524 = vld [vmem:[%s5 + $0x44] sm:$0xf]
    %v9525 = vld [vmem:[%s5 + $0x48] sm:$0xf]
    %v9526 = vld [vmem:[%s5 + $0x4c] sm:$0xf]
    %v9527 = vld [vmem:[%s5 + $0x50] sm:$0xf]
    %v9528 = vld [vmem:[%s5 + $0x54] sm:$0xf]
    %v9529 = vld [vmem:[%s5 + $0x58] sm:$0xf]
    %v9530 = vld [vmem:[%s5 + $0x5c] sm:$0xf]
    %v9531 = vld [vmem:[%s5 + $0x60] sm:$0xf]
    %v9532 = vld [vmem:[%s5 + $0x64] sm:$0xf]
    %v9533 = vld [vmem:[%s5 + $0x68] sm:$0xf]
    %v9534 = vld [vmem:[%s5 + $0x6c] sm:$0xf]
    %v9535 = vld [vmem:[%s5 + $0x70] sm:$0xf]
    %v9536 = vld [vmem:[%s5 + $0x74] sm:$0xf]
    %v9537 = vld [vmem:[%s5 + $0x78] sm:$0xf]
    %v9538 = vld [vmem:[%s5 + $0x7c] sm:$0xf]
    %v9539 = vld [vmem:[%s5 + $0x80] sm:$0xf]
    %v9540 = vld [vmem:[%s5 + $0x84] sm:$0xf]
    %v9541 = vld [vmem:[%s5 + $0x88] sm:$0xf]
    %v9542 = vld [vmem:[%s5 + $0x8c] sm:$0xf]
    %v9543 = vld [vmem:[%s5 + $0x90] sm:$0xf]
    %v9544 = vld [vmem:[%s5 + $0x94] sm:$0xf]
    %v9545 = vld [vmem:[%s5 + $0x98] sm:$0xf]
    %v9546 = vld [vmem:[%s5 + $0x9c] sm:$0xf]
    %v9547 = vld [vmem:[%s5 + $0xa0] sm:$0xf]
    %v9548 = vld [vmem:[%s5 + $0xa4] sm:$0xf]
    %v9549 = vld [vmem:[%s5 + $0xa8] sm:$0xf]
    %v9550 = vld [vmem:[%s5 + $0xac] sm:$0xf]
    %v9551 = vld [vmem:[%s5 + $0xb0] sm:$0xf]
    %v9552 = vld [vmem:[%s5 + $0xb4] sm:$0xf]
    %v9553 = vld [vmem:[%s5 + $0xb8] sm:$0xf]
    %v9554 = vld [vmem:[%s5 + $0xbc] sm:$0xf]
    %v9555 = vld [vmem:[%s5 + $0xc0] sm:$0xf]
    %v9556 = vld [vmem:[%s5 + $0xc4] sm:$0xf]
    %v9557 = vld [vmem:[%s5 + $0xc8] sm:$0xf]
    %v9558 = vld [vmem:[%s5 + $0xcc] sm:$0xf]
    %v9559 = vld [vmem:[%s5 + $0xd0] sm:$0xf]
    %v9560 = vld [vmem:[%s5 + $0xd4] sm:$0xf]
    %v9561 = vld [vmem:[%s5 + $0xd8] sm:$0xf]
    %v9562 = vld [vmem:[%s5 + $0xdc] sm:$0xf]
    %v9563 = vld [vmem:[%s5 + $0xe0] sm:$0xf]
    %v9564 = vld [vmem:[%s5 + $0xe4] sm:$0xf]
    %v9565 = vld [vmem:[%s5 + $0xe8] sm:$0xf]
    %v9566 = vld [vmem:[%s5 + $0xec] sm:$0xf]
    %v9567 = vld [vmem:[%s5 + $0xf0] sm:$0xf]
    %v9568 = vld [vmem:[%s5 + $0xf4] sm:$0xf]
    %v9569 = vld [vmem:[%s5 + $0xf8] sm:$0xf]
    %v9570 = vld [vmem:[%s5 + $0xfc] sm:$0xf]
    %v9571 = vld [vmem:[#allocation7] sm:$0x1]
    %v9573 = vlaneseq
    %v9574 = vshrl.u32 %v9573, 7
    %v9575 = vsub.s32 0, %v9574
    %v9576 = vrot.slane %v9571, %v9575
    %v9642 = vunpack.c.l.b16 %v9507
    %v9643 = vunpack.c.l.b16 %v9508
    %v9644 = vunpack.c.l.b16 %v9509
    %v9645 = vunpack.c.l.b16 %v9510
    %v9646 = vunpack.c.l.b16 %v9511
    %v9647 = vunpack.c.l.b16 %v9512
    %v9648 = vunpack.c.l.b16 %v9513
    %v9649 = vunpack.c.l.b16 %v9514
    %v9650 = vunpack.c.l.b16 %v9515
    %v9651 = vunpack.c.l.b16 %v9516
    %v9652 = vunpack.c.l.b16 %v9517
    %v9653 = vunpack.c.l.b16 %v9518
    %v9654 = vunpack.c.l.b16 %v9519
    %v9655 = vunpack.c.l.b16 %v9520
    %v9656 = vunpack.c.l.b16 %v9521
    %v9657 = vunpack.c.l.b16 %v9522
    %v9658 = vunpack.c.l.b16 %v9523
    %v9659 = vunpack.c.l.b16 %v9524
    %v9660 = vunpack.c.l.b16 %v9525
    %v9661 = vunpack.c.l.b16 %v9526
    %v9662 = vunpack.c.l.b16 %v9527
    %v9663 = vunpack.c.l.b16 %v9528
    %v9664 = vunpack.c.l.b16 %v9529
    %v9665 = vunpack.c.l.b16 %v9530
    %v9666 = vunpack.c.l.b16 %v9531
    %v9667 = vunpack.c.l.b16 %v9532
    %v9668 = vunpack.c.l.b16 %v9533
    %v9669 = vunpack.c.l.b16 %v9534
    %v9670 = vunpack.c.l.b16 %v9535
    %v9671 = vunpack.c.l.b16 %v9536
    %v9672 = vunpack.c.l.b16 %v9537
    %v9673 = vunpack.c.l.b16 %v9538
    %v9674 = vunpack.c.l.b16 %v9539
    %v9675 = vunpack.c.l.b16 %v9540
    %v9676 = vunpack.c.l.b16 %v9541
    %v9677 = vunpack.c.l.b16 %v9542
    %v9678 = vunpack.c.l.b16 %v9543
    %v9679 = vunpack.c.l.b16 %v9544
    %v9680 = vunpack.c.l.b16 %v9545
    %v9681 = vunpack.c.l.b16 %v9546
    %v9682 = vunpack.c.l.b16 %v9547
    %v9683 = vunpack.c.l.b16 %v9548
    %v9684 = vunpack.c.l.b16 %v9549
    %v9685 = vunpack.c.l.b16 %v9550
    %v9686 = vunpack.c.l.b16 %v9551
    %v9687 = vunpack.c.l.b16 %v9552
    %v9688 = vunpack.c.l.b16 %v9553
    %v9689 = vunpack.c.l.b16 %v9554
    %v9690 = vunpack.c.l.b16 %v9555
    %v9691 = vunpack.c.l.b16 %v9556
    %v9692 = vunpack.c.l.b16 %v9557
    %v9693 = vunpack.c.l.b16 %v9558
    %v9694 = vunpack.c.l.b16 %v9559
    %v9695 = vunpack.c.l.b16 %v9560
    %v9696 = vunpack.c.l.b16 %v9561
    %v9697 = vunpack.c.l.b16 %v9562
    %v9698 = vunpack.c.l.b16 %v9563
    %v9699 = vunpack.c.l.b16 %v9564
    %v9700 = vunpack.c.l.b16 %v9565
    %v9701 = vunpack.c.l.b16 %v9566
    %v9702 = vunpack.c.l.b16 %v9567
    %v9703 = vunpack.c.l.b16 %v9568
    %v9704 = vunpack.c.l.b16 %v9569
    %v9705 = vunpack.c.l.b16 %v9570
    %v9706 = vpack.c.b16 %v9643, %v9642
    %v9707 = vpack.c.b16 %v9645, %v9644
    %v9708 = vpack.c.b16 %v9647, %v9646
    %v9709 = vpack.c.b16 %v9649, %v9648
    %v9710 = vpack.c.b16 %v9651, %v9650
    %v9711 = vpack.c.b16 %v9653, %v9652
    %v9712 = vpack.c.b16 %v9655, %v9654
    %v9713 = vpack.c.b16 %v9657, %v9656
    %v9714 = vpack.c.b16 %v9659, %v9658
    %v9715 = vpack.c.b16 %v9661, %v9660
    %v9716 = vpack.c.b16 %v9663, %v9662
    %v9717 = vpack.c.b16 %v9665, %v9664
    %v9718 = vpack.c.b16 %v9667, %v9666
    %v9719 = vpack.c.b16 %v9669, %v9668
    %v9720 = vpack.c.b16 %v9671, %v9670
    %v9721 = vpack.c.b16 %v9673, %v9672
    %v9722 = vpack.c.b16 %v9675, %v9674
    %v9723 = vpack.c.b16 %v9677, %v9676
    %v9724 = vpack.c.b16 %v9679, %v9678
    %v9725 = vpack.c.b16 %v9681, %v9680
    %v9726 = vpack.c.b16 %v9683, %v9682
    %v9727 = vpack.c.b16 %v9685, %v9684
    %v9728 = vpack.c.b16 %v9687, %v9686
    %v9729 = vpack.c.b16 %v9689, %v9688
    %v9730 = vpack.c.b16 %v9691, %v9690
    %v9731 = vpack.c.b16 %v9693, %v9692
    %v9732 = vpack.c.b16 %v9695, %v9694
    %v9733 = vpack.c.b16 %v9697, %v9696
    %v9734 = vpack.c.b16 %v9699, %v9698
    %v9735 = vpack.c.b16 %v9701, %v9700
    %v9736 = vpack.c.b16 %v9703, %v9702
    %v9737 = vpack.c.b16 %v9705, %v9704
    %9770 = vmatprep.subr.bf16.mxu0 0
    %9771 = vmatpush1.bf16.msra.mxu0 %v9706
    %9772 = vmatprep.subr.bf16.mxu0 0
    %9773 = vmatpush1.bf16.msra.mxu0 %v9707
    %9774 = vmatprep.subr.bf16.mxu0 0
    %9775 = vmatpush1.bf16.msra.mxu0 %v9708
    %9776 = vmatprep.subr.bf16.mxu0 0
    %9777 = vmatpush1.bf16.msra.mxu0 %v9709
    %9778 = vmatprep.subr.bf16.mxu0 0
    %9779 = vmatpush1.bf16.msra.mxu0 %v9710
    %9780 = vmatprep.subr.bf16.mxu0 0
    %9781 = vmatpush1.bf16.msra.mxu0 %v9711
    %9782 = vmatprep.subr.bf16.mxu0 0
    %9783 = vmatpush1.bf16.msra.mxu0 %v9712
    %9784 = vmatprep.subr.bf16.mxu0 0
    %9785 = vmatpush1.bf16.msra.mxu0 %v9713
    %9786 = vmatprep.subr.bf16.mxu0 0
    %9787 = vmatpush1.bf16.msra.mxu0 %v9714
    %9788 = vmatprep.subr.bf16.mxu0 0
    %9789 = vmatpush1.bf16.msra.mxu0 %v9715
    %9790 = vmatprep.subr.bf16.mxu0 0
    %9791 = vmatpush1.bf16.msra.mxu0 %v9716
    %9792 = vmatprep.subr.bf16.mxu0 0
    %9793 = vmatpush1.bf16.msra.mxu0 %v9717
    %9794 = vmatprep.subr.bf16.mxu0 0
    %9795 = vmatpush1.bf16.msra.mxu0 %v9718
    %9796 = vmatprep.subr.bf16.mxu0 0
    %9797 = vmatpush1.bf16.msra.mxu0 %v9719
    %9798 = vmatprep.subr.bf16.mxu0 0
    %9799 = vmatpush1.bf16.msra.mxu0 %v9720
    %9800 = vmatprep.subr.bf16.mxu0 0
    %9801 = vmatpush1.bf16.msra.mxu0 %v9721
    %9802 = vmatprep.mubr.bf16.mxu0 %v9504
    %9803 = vmatmul.mubr.bf16.gmra.mrb[0].mxu0 %v9503
    %v9804 = vpop.f32.mrb[0].mxu0
    %v9805 = vadd.f32 %v9576, %v9804
    %v9806 = vpop.f32.mrb[0].mxu0
    %v9807 = vpop.f32.mrb[0].mxu0
    %v9808 = vpop.f32.mrb[0].mxu0
    %9809 = vdwg.mxu0
    %9810 = vmatprep.subr.bf16.mxu0 0
    %9811 = vmatpush1.bf16.msra.mxu0 %v9722
    %9812 = vmatprep.subr.bf16.mxu0 0
    %9813 = vmatpush1.bf16.msra.mxu0 %v9723
    %9814 = vmatprep.subr.bf16.mxu0 0
    %9815 = vmatpush1.bf16.msra.mxu0 %v9724
    %9816 = vmatprep.subr.bf16.mxu0 0
    %9817 = vmatpush1.bf16.msra.mxu0 %v9725
    %9818 = vmatprep.subr.bf16.mxu0 0
    %9819 = vmatpush1.bf16.msra.mxu0 %v9726
    %9820 = vmatprep.subr.bf16.mxu0 0
    %9821 = vmatpush1.bf16.msra.mxu0 %v9727
    %9822 = vmatprep.subr.bf16.mxu0 0
    %9823 = vmatpush1.bf16.msra.mxu0 %v9728
    %9824 = vmatprep.subr.bf16.mxu0 0
    %9825 = vmatpush1.bf16.msra.mxu0 %v9729
    %9826 = vmatprep.subr.bf16.mxu0 0
    %9827 = vmatpush1.bf16.msra.mxu0 %v9730
    %9828 = vmatprep.subr.bf16.mxu0 0
    %9829 = vmatpush1.bf16.msra.mxu0 %v9731
    %9830 = vmatprep.subr.bf16.mxu0 0
    %9831 = vmatpush1.bf16.msra.mxu0 %v9732
    %9832 = vmatprep.subr.bf16.mxu0 0
    %9833 = vmatpush1.bf16.msra.mxu0 %v9733
    %9834 = vmatprep.subr.bf16.mxu0 0
    %9835 = vmatpush1.bf16.msra.mxu0 %v9734
    %9836 = vmatprep.subr.bf16.mxu0 0
    %9837 = vmatpush1.bf16.msra.mxu0 %v9735
    %9838 = vmatprep.subr.bf16.mxu0 0
    %9839 = vmatpush1.bf16.msra.mxu0 %v9736
    %9840 = vmatprep.subr.bf16.mxu0 0
    %9841 = vmatpush1.bf16.msra.mxu0 %v9737
    %9842 = vmatprep.mubr.bf16.mxu0 %v9506
    %9843 = vmatmul.mubr.bf16.gmra.mrb[0].mxu0 %v9505
    %v9844 = vpop.f32.mrb[0].mxu0
    %v9845 = vadd.f32 %v9805, %v9844
    %v9846 = vpop.f32.mrb[0].mxu0
    %v9847 = vpop.f32.mrb[0].mxu0
    %v9848 = vpop.f32.mrb[0].mxu0
    %9849 = vdwg.mxu0
    %vm9850 = vcmask 261120
    %9851 = vst.msk [vmem:[#allocation8] sm:$0xff] %vm9850, %v9845
    // Predicated region
    $region42: #{encoder_forward.3} parent=1 // pred_check
      _
    $region43: #{encoder_forward.3} parent=1 // pred_check_branch
      %9853 = sbr.rel (0) target = $region45
    $region44: #{encoder_forward.3} parent=1 // pred_region
      %s9855 = ssub.s32 128, 128
      %9856 = vsyncadd [#allocation4], %s9855
      %s9858 = sshll.u32 [#allocation8], 4
      %s9859 = int_to_ptr.vmem [resolvable:$true] %s9858
      %9861 = dma.vmem_to_hbm [thread:$0]  %s9859, 128, %s7, [#allocation4]
    $region45: #{encoder_forward.3} parent=1 // pred_fallthru
      _
    // Predicated region
    $region46: #{encoder_forward.3} parent=1 // pred_check
      _
    $region47: #{encoder_forward.3} parent=1 // pred_check_branch
      %9863 = sbr.rel (0) target = $region49
    $region48: #{encoder_forward.3} parent=1 // pred_region
      %9864 = dma.done [#allocation4], 128
    $region49: #{encoder_forward.3} parent=1 // pred_fallthru
      _
    %9865 = vsyncpa [#allocation3], 1
    %9866 = vsyncpa [#allocation6], 1
    %9867 = vsyncpa [#allocation4], 1

</llo_original>
